<compile_context>
chip_gen: v7x
topology: tpu7x:2x2x1
jax: 0.10.0
libtpu: 0.0.40
codegen_flags: <defaults>
</compile_context>

<pallas_src>
import jax
import jax.numpy as jnp
import numpy as np
from jax.experimental import pallas as pl
from jax.experimental.pallas import tpu as pltpu

EPS = 1e-5          # nn.BatchNorm2d default eps
NEG_SLOPE = 0.01    # nn.LeakyReLU default negative_slope
LANE = 128          # TPU lane width


def _round_up(x, m):
    return ((x + m - 1) // m) * m


def _leaky(x):
    return jnp.where(x > 0, x, NEG_SLOPE * x)


def _pick_row_tile(H, W, ci, cp, budget=6 << 20):
    """Largest row tile tH dividing H whose per-step working set fits the budget."""
    best = 1
    for th in range(1, H + 1):
        if H % th:
            continue
        m = th * W
        halo = (th + 2) * W
        p1 = halo * ci * 2 + (m * 9 * ci * 2 if ci < LANE else 0) + m * cp * 4
        p2 = halo * cp * 2 + (m * 9 * cp * 2 if cp < LANE else 0) + m * cp * 4
        if 2 * max(p1, p2) <= budget:            # 2x headroom for double buffering
            best = th
    return best


# ----------------------------------------------------------------------------
# In-kernel helpers
# ----------------------------------------------------------------------------
def _assemble_halo(top, body, bot, r, nrt):
    """(1,W,C)+(tH,W,C)+(1,W,C) -> (tH+2,W,C); rows outside the image are zeroed."""
    top = jnp.where(r == 0, jnp.zeros_like(top), top)
    bot = jnp.where(r == nrt - 1, jnp.zeros_like(bot), bot)
    return jnp.concatenate([top, body, bot], axis=0)


def _conv3x3(xh, w_ref):
    """3x3 'SAME' conv of a halo'd bf16 row tile.

    xh:    (tH+2, W, Cin) bf16 — top/bottom halo rows already included.
    w_ref: (9*Cin, Cout) bf16 ref, rows ordered (ky, kx, cin).
    Returns (tH*W, Cout) f32 (bf16 operands, f32 accumulation).
    """
    hh, W, cin = xh.shape
    th = hh - 2
    zc = jnp.zeros((hh, 1, cin), xh.dtype)
    xp = jnp.concatenate([zc, xh, zc], axis=1)                # (tH+2, W+2, Cin) bf16
    if cin < LANE:
        # im2col: single MXU matmul with K = 9*Cin (small-channel path).
        cols = [xp[dy:dy + th, dx:dx + W, :].reshape(th * W, cin)
                for dy in range(3) for dx in range(3)]
        lhs = jnp.concatenate(cols, axis=-1)                   # (tH*W, 9*Cin) bf16
        return jnp.dot(lhs, w_ref[...], preferred_element_type=jnp.float32)
    # Cin >= 128: 9 per-tap matmuls (K=Cin each) accumulated in f32 — avoids the
    # 9x-larger materialized im2col LHS.
    acc = None
    taps = [(dy, dx) for dy in range(3) for dx in range(3)]
    for t, (dy, dx) in enumerate(taps):
        lhs = xp[dy:dy + th, dx:dx + W, :].reshape(th * W, cin)
        part = jnp.dot(lhs, w_ref[t * cin:(t + 1) * cin, :],
                       preferred_element_type=jnp.float32)
        acc = part if acc is None else acc + part
    return acc


def _store_out_and_stats(y, y_ref, st_ref):
    """Store the pre-BN conv tile (bf16, lane-dense) + f32 (sum, sum_sq) partials."""
    _, th, w, cp = y_ref.shape
    y_ref[0] = y.reshape(th, w, cp).astype(y_ref.dtype)
    st_ref[0, 0] = jnp.concatenate(
        [jnp.sum(y, axis=0, keepdims=True),
         jnp.sum(y * y, axis=0, keepdims=True)], axis=0)       # (2, Cp) f32


# ----------------------------------------------------------------------------
# Pallas kernels (grid = (N, H // tH), both axes "parallel")
# ----------------------------------------------------------------------------
def _conv1_kernel(ut_ref, ub_ref, ubt_ref, ct_ref, cb_ref, cbt_ref,
                  wx_ref, wc_ref, y_ref, st_ref):
    # conv1 = conv(up_x) @ Wx + conv(skip) @ Wc  (no concatenated feature map in HBM).
    r, nrt = pl.program_id(1), pl.num_programs(1)
    xu = _assemble_halo(ut_ref[0], ub_ref[0], ubt_ref[0], r, nrt)   # (tH+2,W,Cx) bf16
    xc = _assemble_halo(ct_ref[0], cb_ref[0], cbt_ref[0], r, nrt)   # (tH+2,W,Cc) bf16
    y = _conv3x3(xu, wx_ref) + _conv3x3(xc, wc_ref)                 # (tH*W, Cp) f32
    _store_out_and_stats(y, y_ref, st_ref)


def _bn_act_conv2_kernel(yt_ref, yb_ref, ybt_ref, sc_ref, sh_ref, w_ref,
                         y2_ref, st_ref):
    # BN1 (folded scale/shift) + LeakyReLU on the tile *and* its halo rows, then conv2.
    r, nrt = pl.program_id(1), pl.num_programs(1)
    sc, sh = sc_ref[...], sh_ref[...]                               # (1, Cp) f32
    top = _leaky(yt_ref[0].astype(jnp.float32) * sc + sh).astype(jnp.bfloat16)
    body = _leaky(yb_ref[0].astype(jnp.float32) * sc + sh).astype(jnp.bfloat16)
    bot = _leaky(ybt_ref[0].astype(jnp.float32) * sc + sh).astype(jnp.bfloat16)
    a = _assemble_halo(top, body, bot, r, nrt)                      # (tH+2, W, Cp) bf16
    y = _conv3x3(a, w_ref)                                          # (tH*W, Cp) f32
    _store_out_and_stats(y, y2_ref, st_ref)


# ----------------------------------------------------------------------------
# Wrapper-side helpers
# ----------------------------------------------------------------------------
def _bilinear_upsample_nhwc(x_nchw, out_h, out_w):
    """F.interpolate(..., mode='bilinear', align_corners=True); NCHW in, NHWC f32 out."""
    x = jnp.transpose(x_nchw, (0, 2, 3, 1)).astype(jnp.float32)     # low-res, cheap
    _, h, w, _ = x.shape
    ys = (jnp.arange(out_h, dtype=jnp.float32) * ((h - 1) / (out_h - 1))
          if out_h > 1 else jnp.zeros((out_h,), jnp.float32))
    xs = (jnp.arange(out_w, dtype=jnp.float32) * ((w - 1) / (out_w - 1))
          if out_w > 1 else jnp.zeros((out_w,), jnp.float32))
    y0 = jnp.clip(jnp.floor(ys).astype(jnp.int32), 0, h - 1)
    x0 = jnp.clip(jnp.floor(xs).astype(jnp.int32), 0, w - 1)
    y1 = jnp.clip(y0 + 1, 0, h - 1)
    x1 = jnp.clip(x0 + 1, 0, w - 1)
    wy = (ys - y0.astype(jnp.float32))[:, None, None]               # (out_h,1,1)
    wx = (xs - x0.astype(jnp.float32))[:, None]                     # (out_w,1)
    rows0 = x[:, y0, :, :]
    rows1 = x[:, y1, :, :]
    r0 = rows0[:, :, x0, :] * (1.0 - wx) + rows0[:, :, x1, :] * wx
    r1 = rows1[:, :, x0, :] * (1.0 - wx) + rows1[:, :, x1, :] * wx
    return r0 * (1.0 - wy) + r1 * wy                                # (N,out_h,out_w,C)


def _pack_conv_weight(w, cin_pad, cout_pad):
    """(3,3,Cin,Cout) HWIO -> (9*cin_pad, cout_pad) bf16 with zero channel padding."""
    cin, cout = w.shape[2], w.shape[3]
    wp = jnp.zeros((3, 3, cin_pad, cout_pad), jnp.float32)
    wp = wp.at[:, :, :cin, :cout].set(w)
    return wp.reshape(9 * cin_pad, cout_pad).astype(jnp.bfloat16)


def _finalize_bn(stats, gamma_p, beta_p, count):
    """Reduce (N, nRT, 2, Cp) partials -> folded per-channel (scale, shift)."""
    s = jnp.sum(stats[:, :, 0, :], axis=(0, 1))
    sq = jnp.sum(stats[:, :, 1, :], axis=(0, 1))
    mean = s / count
    var = jnp.maximum(sq / count - mean * mean, 0.0)   # biased var (train-mode norm)
    scale = gamma_p * jax.lax.rsqrt(var + EPS)
    shift = beta_p - mean * scale
    return scale[None, :], shift[None, :]              # (1, Cp), lane-aligned


# ----------------------------------------------------------------------------
# Forward: matches UpSampleBN.forward(x, concat_with) with NCHW I/O.
# ----------------------------------------------------------------------------
def upsample_bn_forward(x, concat_with, params):
    N, Cx, _, _ = x.shape
    _, Cc, H, W = concat_with.shape
    Ci = Cx + Cc
    Co = params["w1"].shape[-1]
    Cp = _round_up(Co, LANE)
    count = float(N * H * W)
    tH = _pick_row_tile(H, W, max(Ci, Cp), Cp)
    nrt = H // tH

    # Bilinear upsample (align_corners=True) straight to NHWC; no HBM concat pass.
    up = _bilinear_upsample_nhwc(x, H, W).astype(jnp.bfloat16)      # (N,H,W,Cx)
    skip = jnp.transpose(concat_with, (0, 2, 3, 1)).astype(jnp.bfloat16)

    w1 = params["w1"]
    w1x = _pack_conv_weight(w1[:, :, :Cx, :], Cx, Cp)               # (9*Cx, Cp) bf16
    w1c = _pack_conv_weight(w1[:, :, Cx:, :], Cc, Cp)               # (9*Cc, Cp) bf16
    w2p = _pack_conv_weight(params["w2"], Cp, Cp)                   # (9*Cp, Cp) bf16
    g1p = jnp.zeros((Cp,), jnp.float32).at[:Co].set(params["g1"])
    b1p = jnp.zeros((Cp,), jnp.float32).at[:Co].set(params["b1"])
    g2p = jnp.zeros((Cp,), jnp.float32).at[:Co].set(params["g2"])
    b2p = jnp.zeros((Cp,), jnp.float32).at[:Co].set(params["b2"])

    def top_spec(c):      # 1-row halo just above the body tile (clamped at the border)
        return pl.BlockSpec((1, 1, W, c),
                            lambda n, r: (n, jnp.maximum(r * tH - 1, 0), 0, 0))

    def body_spec(c):
        return pl.BlockSpec((1, tH, W, c), lambda n, r: (n, r, 0, 0))

    def bot_spec(c):      # 1-row halo just below the body tile (clamped at the border)
        return pl.BlockSpec((1, 1, W, c),
                            lambda n, r: (n, jnp.minimum(r * tH + tH, H - 1), 0, 0))

    def full_spec(shape):  # grid-invariant operand (packed weights)
        return pl.BlockSpec(shape, lambda n, r: (0,) * len(shape))

    chan_spec = pl.BlockSpec((1, Cp), lambda n, r: (0, 0))
    stats_spec = pl.BlockSpec((1, 1, 2, Cp), lambda n, r: (n, r, 0, 0))
    slab = jax.ShapeDtypeStruct((N, H, W, Cp), jnp.bfloat16)        # bf16 inter-pass
    stats = jax.ShapeDtypeStruct((N, nrt, 2, Cp), jnp.float32)
    cparams = pltpu.CompilerParams(
        dimension_semantics=("parallel", "parallel"),
        vmem_limit_bytes=64 * 1024 * 1024)

    # ---- pass 1: conv1 (split weights, halo'd row tiles) + BN partial sums ---
    y1, st1 = pl.pallas_call(
        _conv1_kernel,
        out_shape=(slab, stats),
        grid=(N, nrt),
        in_specs=[top_spec(Cx), body_spec(Cx), bot_spec(Cx),
                  top_spec(Cc), body_spec(Cc), bot_spec(Cc),
                  full_spec((9 * Cx, Cp)), full_spec((9 * Cc, Cp))],
        out_specs=(body_spec(Cp), stats_spec),
        compiler_params=cparams,
    )(up, up, up, skip, skip, skip, w1x, w1c)

    sc1, sh1 = _finalize_bn(st1, g1p, b1p, count)

    # ---- pass 2: BN1 + LeakyReLU + conv2 + BN partial sums -------------------
    y2, st2 = pl.pallas_call(
        _bn_act_conv2_kernel,
        out_shape=(slab, stats),
        grid=(N, nrt),
        in_specs=[top_spec(Cp), body_spec(Cp), bot_spec(Cp),
                  chan_spec, chan_spec, full_spec((9 * Cp, Cp))],
        out_specs=(body_spec(Cp), stats_spec),
        compiler_params=cparams,
    )(y1, y1, y1, sc1, sh1, w2p)

    sc2, sh2 = _finalize_bn(st2, g2p, b2p, count)

    # ---- BN2 + LeakyReLU folded into the wrapper, fused with slice+transpose --
    z = y2[..., :Co].astype(jnp.float32) * sc2[0, :Co] + sh2[0, :Co]
    out_nhwc = _leaky(z)
    return jnp.transpose(out_nhwc, (0, 3, 1, 2))                     # NHWC -> NCHW


# ----------------------------------------------------------------------------
# Pure-JAX reference (mirrors the kernel precision policy: bf16 conv operands,
# bf16 inter-pass activations, f32 BN / activation math).
# ----------------------------------------------------------------------------
def _reference(x, concat_with, params):
    H, W = concat_with.shape[2], concat_with.shape[3]
    up = _bilinear_upsample_nhwc(x, H, W)
    skip = jnp.transpose(concat_with, (0, 2, 3, 1)).astype(jnp.float32)
    h = jnp.concatenate([up, skip], axis=-1)

    def block(h, w, g, b):
        y = jax.lax.conv_general_dilated(
            h.astype(jnp.bfloat16), w.astype(jnp.bfloat16), (1, 1), "SAME",
            dimension_numbers=("NHWC", "HWIO", "NHWC"),
            preferred_element_type=jnp.float32)
        y = y.astype(jnp.bfloat16).astype(jnp.float32)   # mirror bf16 inter-pass slabs
        mean = jnp.mean(y, axis=(0, 1, 2), keepdims=True)
        var = jnp.mean((y - mean) ** 2, axis=(0, 1, 2), keepdims=True)
        yhat = (y - mean) * jax.lax.rsqrt(var + EPS)
        yhat = yhat * g.reshape(1, 1, 1, -1) + b.reshape(1, 1, 1, -1)
        return jnp.where(yhat > 0, yhat, NEG_SLOPE * yhat)

    h = block(h, params["w1"], params["g1"], params["b1"])
    h = block(h, params["w2"], params["g2"], params["b2"])
    return jnp.transpose(h, (0, 3, 1, 2))


if __name__ == "__main__":
    key = jax.random.PRNGKey(0)
    k_x, k_c, k_w1, k_w2, k_g1, k_b1, k_g2, k_b2 = jax.random.split(key, 8)

    # x is the low-res feature map, concat_with is the skip connection.
    N, Cx, Cc, Co = 2, 4, 4, 8                   # skip_input = Cx + Cc = 8
    x = jax.random.normal(k_x, (N, Cx, 8, 8), jnp.float32)              # NCHW
    concat_with = jax.random.normal(k_c, (N, Cc, 16, 16), jnp.float32)  # NCHW

    Ci = Cx + Cc
    params = {
        # Conv weights stored in HWIO (3, 3, Cin, Cout); input channels ordered
        # [up_x channels, concat_with channels] like torch.cat(..., dim=1).
        "w1": 0.1 * jax.random.normal(k_w1, (3, 3, Ci, Co), jnp.float32),
        "w2": 0.1 * jax.random.normal(k_w2, (3, 3, Co, Co), jnp.float32),
        # BatchNorm affine params (gamma, beta).
        "g1": 1.0 + 0.1 * jax.random.normal(k_g1, (Co,), jnp.float32),
        "b1": 0.1 * jax.random.normal(k_b1, (Co,), jnp.float32),
        "g2": 1.0 + 0.1 * jax.random.normal(k_g2, (Co,), jnp.float32),
        "b2": 0.1 * jax.random.normal(k_b2, (Co,), jnp.float32),
    }

    fwd = jax.jit(upsample_bn_forward)
    out = jax.block_until_ready(fwd(x, concat_with, params))
    ref = jax.block_until_ready(_reference(x, concat_with, params))

    assert out.shape == (N, Co, 16, 16), out.shape
    np.testing.assert_allclose(np.asarray(out), np.asarray(ref),
                               rtol=2e-2, atol=2e-2)
    print("KERNEL_OK")
</pallas_src>

<mosaic_0001>
module attributes {stable_mosaic.version = 11 : i64} {
  func.func @_conv1_kernel(%arg0: i32, %arg1: i32, %arg2: memref<1x1x16x4xbf16, #tpu.memory_space<vmem>>, %arg3: memref<1x16x16x4xbf16, #tpu.memory_space<vmem>>, %arg4: memref<1x1x16x4xbf16, #tpu.memory_space<vmem>>, %arg5: memref<1x1x16x4xbf16, #tpu.memory_space<vmem>>, %arg6: memref<1x16x16x4xbf16, #tpu.memory_space<vmem>>, %arg7: memref<1x1x16x4xbf16, #tpu.memory_space<vmem>>, %arg8: memref<36x128xbf16, #tpu.memory_space<vmem>>, %arg9: memref<36x128xbf16, #tpu.memory_space<vmem>>, %arg10: memref<1x16x16x128xbf16, #tpu.memory_space<vmem>>, %arg11: memref<1x1x2x128xf32, #tpu.memory_space<vmem>>) attributes {dimension_semantics = [#tpu.dimension_semantics<parallel>, #tpu.dimension_semantics<parallel>], iteration_bounds = array<i64: 2, 1>, scalar_prefetch = 0 : i64, scratch_operands = 0 : i64, tpu.core_type = #tpu.core_type<tc>, window_params = [{transform_indices = @transform_0, window_bounds = array<i64: 1, 1, 16, 4>}, {transform_indices = @transform_1, window_bounds = array<i64: 1, 16, 16, 4>}, {transform_indices = @transform_2, window_bounds = array<i64: 1, 1, 16, 4>}, {transform_indices = @transform_3, window_bounds = array<i64: 1, 1, 16, 4>}, {transform_indices = @transform_4, window_bounds = array<i64: 1, 16, 16, 4>}, {transform_indices = @transform_5, window_bounds = array<i64: 1, 1, 16, 4>}, {pipeline_mode = #tpu.pipeline_mode<synchronous>, transform_indices = @transform_6, window_bounds = array<i64: 36, 128>}, {pipeline_mode = #tpu.pipeline_mode<synchronous>, transform_indices = @transform_7, window_bounds = array<i64: 36, 128>}, {transform_indices = @transform_8, window_bounds = array<i64: 1, 16, 16, 128>}, {transform_indices = @transform_9, window_bounds = array<i64: 1, 1, 2, 128>}]} {
    %c0 = arith.constant 0 : index
    %c0_0 = arith.constant 0 : index
    %c0_1 = arith.constant 0 : index
    %c0_2 = arith.constant 0 : index
    %0 = vector.load %arg2[%c0, %c0_0, %c0_1, %c0_2] : memref<1x1x16x4xbf16, #tpu.memory_space<vmem>>, vector<1x1x16x4xbf16>
    %1 = vector.shape_cast %0 : vector<1x1x16x4xbf16> to vector<1x16x4xbf16>
    %c0_3 = arith.constant 0 : index
    %c0_4 = arith.constant 0 : index
    %c0_5 = arith.constant 0 : index
    %c0_6 = arith.constant 0 : index
    %2 = vector.load %arg3[%c0_3, %c0_4, %c0_5, %c0_6] : memref<1x16x16x4xbf16, #tpu.memory_space<vmem>>, vector<1x16x16x4xbf16>
    %3 = vector.shape_cast %2 : vector<1x16x16x4xbf16> to vector<16x16x4xbf16>
    %c0_7 = arith.constant 0 : index
    %c0_8 = arith.constant 0 : index
    %c0_9 = arith.constant 0 : index
    %c0_10 = arith.constant 0 : index
    %4 = vector.load %arg4[%c0_7, %c0_8, %c0_9, %c0_10] : memref<1x1x16x4xbf16, #tpu.memory_space<vmem>>, vector<1x1x16x4xbf16>
    %5 = vector.shape_cast %4 : vector<1x1x16x4xbf16> to vector<1x16x4xbf16>
    %c0_i32 = arith.constant 0 : i32
    %6 = arith.cmpi eq, %arg1, %c0_i32 : i32
    %cst = arith.constant 0.000000e+00 : bf16
    %7 = vector.broadcast %cst : bf16 to vector<1x16x4xbf16>
    %8 = arith.select %6, %7, %1 : vector<1x16x4xbf16>
    %c0_i32_11 = arith.constant 0 : i32
    %9 = arith.cmpi eq, %arg1, %c0_i32_11 : i32
    %cst_12 = arith.constant 0.000000e+00 : bf16
    %10 = vector.broadcast %cst_12 : bf16 to vector<1x16x4xbf16>
    %11 = arith.select %9, %10, %5 : vector<1x16x4xbf16>
    %12 = tpu.concatenate %8, %3, %11 in 0 : vector<1x16x4xbf16>, vector<16x16x4xbf16>, vector<1x16x4xbf16> -> vector<18x16x4xbf16>
    %c0_13 = arith.constant 0 : index
    %c0_14 = arith.constant 0 : index
    %c0_15 = arith.constant 0 : index
    %c0_16 = arith.constant 0 : index
    %13 = vector.load %arg5[%c0_13, %c0_14, %c0_15, %c0_16] : memref<1x1x16x4xbf16, #tpu.memory_space<vmem>>, vector<1x1x16x4xbf16>
    %14 = vector.shape_cast %13 : vector<1x1x16x4xbf16> to vector<1x16x4xbf16>
    %c0_17 = arith.constant 0 : index
    %c0_18 = arith.constant 0 : index
    %c0_19 = arith.constant 0 : index
    %c0_20 = arith.constant 0 : index
    %15 = vector.load %arg6[%c0_17, %c0_18, %c0_19, %c0_20] : memref<1x16x16x4xbf16, #tpu.memory_space<vmem>>, vector<1x16x16x4xbf16>
    %16 = vector.shape_cast %15 : vector<1x16x16x4xbf16> to vector<16x16x4xbf16>
    %c0_21 = arith.constant 0 : index
    %c0_22 = arith.constant 0 : index
    %c0_23 = arith.constant 0 : index
    %c0_24 = arith.constant 0 : index
    %17 = vector.load %arg7[%c0_21, %c0_22, %c0_23, %c0_24] : memref<1x1x16x4xbf16, #tpu.memory_space<vmem>>, vector<1x1x16x4xbf16>
    %18 = vector.shape_cast %17 : vector<1x1x16x4xbf16> to vector<1x16x4xbf16>
    %c0_i32_25 = arith.constant 0 : i32
    %19 = arith.cmpi eq, %arg1, %c0_i32_25 : i32
    %cst_26 = arith.constant 0.000000e+00 : bf16
    %20 = vector.broadcast %cst_26 : bf16 to vector<1x16x4xbf16>
    %21 = arith.select %19, %20, %14 : vector<1x16x4xbf16>
    %c0_i32_27 = arith.constant 0 : i32
    %22 = arith.cmpi eq, %arg1, %c0_i32_27 : i32
    %cst_28 = arith.constant 0.000000e+00 : bf16
    %23 = vector.broadcast %cst_28 : bf16 to vector<1x16x4xbf16>
    %24 = arith.select %22, %23, %18 : vector<1x16x4xbf16>
    %25 = tpu.concatenate %21, %16, %24 in 0 : vector<1x16x4xbf16>, vector<16x16x4xbf16>, vector<1x16x4xbf16> -> vector<18x16x4xbf16>
    %cst_29 = arith.constant 0.000000e+00 : bf16
    %26 = vector.broadcast %cst_29 : bf16 to vector<18x1x4xbf16>
    %27 = tpu.concatenate %26, %12, %26 in 1 : vector<18x1x4xbf16>, vector<18x16x4xbf16>, vector<18x1x4xbf16> -> vector<18x18x4xbf16>
    %28 = vector.extract_strided_slice %27 {offsets = [0, 0, 0], sizes = [16, 16, 4], strides = [1, 1, 1]} : vector<18x18x4xbf16> to vector<16x16x4xbf16>
    %29 = vector.shape_cast %28 : vector<16x16x4xbf16> to vector<256x4xbf16>
    %30 = vector.extract_strided_slice %27 {offsets = [0, 1, 0], sizes = [16, 16, 4], strides = [1, 1, 1]} : vector<18x18x4xbf16> to vector<16x16x4xbf16>
    %31 = vector.shape_cast %30 : vector<16x16x4xbf16> to vector<256x4xbf16>
    %32 = vector.extract_strided_slice %27 {offsets = [0, 2, 0], sizes = [16, 16, 4], strides = [1, 1, 1]} : vector<18x18x4xbf16> to vector<16x16x4xbf16>
    %33 = vector.shape_cast %32 : vector<16x16x4xbf16> to vector<256x4xbf16>
    %34 = vector.extract_strided_slice %27 {offsets = [1, 0, 0], sizes = [16, 16, 4], strides = [1, 1, 1]} : vector<18x18x4xbf16> to vector<16x16x4xbf16>
    %35 = vector.shape_cast %34 : vector<16x16x4xbf16> to vector<256x4xbf16>
    %36 = vector.extract_strided_slice %27 {offsets = [1, 1, 0], sizes = [16, 16, 4], strides = [1, 1, 1]} : vector<18x18x4xbf16> to vector<16x16x4xbf16>
    %37 = vector.shape_cast %36 : vector<16x16x4xbf16> to vector<256x4xbf16>
    %38 = vector.extract_strided_slice %27 {offsets = [1, 2, 0], sizes = [16, 16, 4], strides = [1, 1, 1]} : vector<18x18x4xbf16> to vector<16x16x4xbf16>
    %39 = vector.shape_cast %38 : vector<16x16x4xbf16> to vector<256x4xbf16>
    %40 = vector.extract_strided_slice %27 {offsets = [2, 0, 0], sizes = [16, 16, 4], strides = [1, 1, 1]} : vector<18x18x4xbf16> to vector<16x16x4xbf16>
    %41 = vector.shape_cast %40 : vector<16x16x4xbf16> to vector<256x4xbf16>
    %42 = vector.extract_strided_slice %27 {offsets = [2, 1, 0], sizes = [16, 16, 4], strides = [1, 1, 1]} : vector<18x18x4xbf16> to vector<16x16x4xbf16>
    %43 = vector.shape_cast %42 : vector<16x16x4xbf16> to vector<256x4xbf16>
    %44 = vector.extract_strided_slice %27 {offsets = [2, 2, 0], sizes = [16, 16, 4], strides = [1, 1, 1]} : vector<18x18x4xbf16> to vector<16x16x4xbf16>
    %45 = vector.shape_cast %44 : vector<16x16x4xbf16> to vector<256x4xbf16>
    %46 = tpu.concatenate %29, %31, %33, %35, %37, %39, %41, %43, %45 in 1 : vector<256x4xbf16>, vector<256x4xbf16>, vector<256x4xbf16>, vector<256x4xbf16>, vector<256x4xbf16>, vector<256x4xbf16>, vector<256x4xbf16>, vector<256x4xbf16>, vector<256x4xbf16> -> vector<256x36xbf16>
    %c0_30 = arith.constant 0 : index
    %c0_31 = arith.constant 0 : index
    %47 = vector.load %arg8[%c0_30, %c0_31] : memref<36x128xbf16, #tpu.memory_space<vmem>>, vector<36x128xbf16>
    %cst_32 = arith.constant dense<0.000000e+00> : vector<256x128xf32>
    %48 = tpu.matmul %46, %47, %cst_32 {dimension_numbers = #tpu.dot_dimension_numbers<[1], [0], [0], [1], [0, 0, 1, 1], [], []>} : vector<256x36xbf16>, vector<36x128xbf16>, vector<256x128xf32> -> vector<256x128xf32>
    %cst_33 = arith.constant 0.000000e+00 : bf16
    %49 = vector.broadcast %cst_33 : bf16 to vector<18x1x4xbf16>
    %50 = tpu.concatenate %49, %25, %49 in 1 : vector<18x1x4xbf16>, vector<18x16x4xbf16>, vector<18x1x4xbf16> -> vector<18x18x4xbf16>
    %51 = vector.extract_strided_slice %50 {offsets = [0, 0, 0], sizes = [16, 16, 4], strides = [1, 1, 1]} : vector<18x18x4xbf16> to vector<16x16x4xbf16>
    %52 = vector.shape_cast %51 : vector<16x16x4xbf16> to vector<256x4xbf16>
    %53 = vector.extract_strided_slice %50 {offsets = [0, 1, 0], sizes = [16, 16, 4], strides = [1, 1, 1]} : vector<18x18x4xbf16> to vector<16x16x4xbf16>
    %54 = vector.shape_cast %53 : vector<16x16x4xbf16> to vector<256x4xbf16>
    %55 = vector.extract_strided_slice %50 {offsets = [0, 2, 0], sizes = [16, 16, 4], strides = [1, 1, 1]} : vector<18x18x4xbf16> to vector<16x16x4xbf16>
    %56 = vector.shape_cast %55 : vector<16x16x4xbf16> to vector<256x4xbf16>
    %57 = vector.extract_strided_slice %50 {offsets = [1, 0, 0], sizes = [16, 16, 4], strides = [1, 1, 1]} : vector<18x18x4xbf16> to vector<16x16x4xbf16>
    %58 = vector.shape_cast %57 : vector<16x16x4xbf16> to vector<256x4xbf16>
    %59 = vector.extract_strided_slice %50 {offsets = [1, 1, 0], sizes = [16, 16, 4], strides = [1, 1, 1]} : vector<18x18x4xbf16> to vector<16x16x4xbf16>
    %60 = vector.shape_cast %59 : vector<16x16x4xbf16> to vector<256x4xbf16>
    %61 = vector.extract_strided_slice %50 {offsets = [1, 2, 0], sizes = [16, 16, 4], strides = [1, 1, 1]} : vector<18x18x4xbf16> to vector<16x16x4xbf16>
    %62 = vector.shape_cast %61 : vector<16x16x4xbf16> to vector<256x4xbf16>
    %63 = vector.extract_strided_slice %50 {offsets = [2, 0, 0], sizes = [16, 16, 4], strides = [1, 1, 1]} : vector<18x18x4xbf16> to vector<16x16x4xbf16>
    %64 = vector.shape_cast %63 : vector<16x16x4xbf16> to vector<256x4xbf16>
    %65 = vector.extract_strided_slice %50 {offsets = [2, 1, 0], sizes = [16, 16, 4], strides = [1, 1, 1]} : vector<18x18x4xbf16> to vector<16x16x4xbf16>
    %66 = vector.shape_cast %65 : vector<16x16x4xbf16> to vector<256x4xbf16>
    %67 = vector.extract_strided_slice %50 {offsets = [2, 2, 0], sizes = [16, 16, 4], strides = [1, 1, 1]} : vector<18x18x4xbf16> to vector<16x16x4xbf16>
    %68 = vector.shape_cast %67 : vector<16x16x4xbf16> to vector<256x4xbf16>
    %69 = tpu.concatenate %52, %54, %56, %58, %60, %62, %64, %66, %68 in 1 : vector<256x4xbf16>, vector<256x4xbf16>, vector<256x4xbf16>, vector<256x4xbf16>, vector<256x4xbf16>, vector<256x4xbf16>, vector<256x4xbf16>, vector<256x4xbf16>, vector<256x4xbf16> -> vector<256x36xbf16>
    %c0_34 = arith.constant 0 : index
    %c0_35 = arith.constant 0 : index
    %70 = vector.load %arg9[%c0_34, %c0_35] : memref<36x128xbf16, #tpu.memory_space<vmem>>, vector<36x128xbf16>
    %cst_36 = arith.constant dense<0.000000e+00> : vector<256x128xf32>
    %71 = tpu.matmul %69, %70, %cst_36 {dimension_numbers = #tpu.dot_dimension_numbers<[1], [0], [0], [1], [0, 0, 1, 1], [], []>} : vector<256x36xbf16>, vector<36x128xbf16>, vector<256x128xf32> -> vector<256x128xf32>
    %72 = arith.addf %48, %71 : vector<256x128xf32>
    %73 = vector.shape_cast %72 : vector<256x128xf32> to vector<16x16x128xf32>
    %74 = arith.truncf %73 : vector<16x16x128xf32> to vector<16x16x128xbf16>
    %c0_37 = arith.constant 0 : index
    %c0_38 = arith.constant 0 : index
    %c0_39 = arith.constant 0 : index
    %c0_40 = arith.constant 0 : index
    %75 = vector.load %arg10[%c0_37, %c0_38, %c0_39, %c0_40] : memref<1x16x16x128xbf16, #tpu.memory_space<vmem>>, vector<1x16x16x128xbf16>
    %76 = vector.shape_cast %75 : vector<1x16x16x128xbf16> to vector<16x16x128xbf16>
    %77 = vector.shape_cast %74 : vector<16x16x128xbf16> to vector<1x16x16x128xbf16>
    tpu.vector_store %arg10[%c0_37, %c0_38, %c0_39, %c0_40], %77 {strides = array<i32>} : memref<1x16x16x128xbf16, #tpu.memory_space<vmem>>, vector<1x16x16x128xbf16>,
    %cst_41 = arith.constant dense<0.000000e+00> : vector<128xf32>
    %78 = vector.multi_reduction <add>, %72, %cst_41 [0] : vector<256x128xf32> to vector<128xf32>
    %79 = vector.shape_cast %78 : vector<128xf32> to vector<1x128xf32>
    %80 = arith.mulf %72, %72 : vector<256x128xf32>
    %cst_42 = arith.constant dense<0.000000e+00> : vector<128xf32>
    %81 = vector.multi_reduction <add>, %80, %cst_42 [0] : vector<256x128xf32> to vector<128xf32>
    %82 = vector.shape_cast %81 : vector<128xf32> to vector<1x128xf32>
    %83 = tpu.concatenate %79, %82 in 0 : vector<1x128xf32>, vector<1x128xf32> -> vector<2x128xf32>
    %c0_43 = arith.constant 0 : index
    %c0_44 = arith.constant 0 : index
    %c0_45 = arith.constant 0 : index
    %c0_46 = arith.constant 0 : index
    %84 = vector.load %arg11[%c0_43, %c0_44, %c0_45, %c0_46] : memref<1x1x2x128xf32, #tpu.memory_space<vmem>>, vector<1x1x2x128xf32>
    %85 = vector.shape_cast %84 : vector<1x1x2x128xf32> to vector<2x128xf32>
    %86 = vector.shape_cast %83 : vector<2x128xf32> to vector<1x1x2x128xf32>
    tpu.vector_store %arg11[%c0_43, %c0_44, %c0_45, %c0_46], %86 {strides = array<i32>} : memref<1x1x2x128xf32, #tpu.memory_space<vmem>>, vector<1x1x2x128xf32>,
    return
  }
  func.func @transform_0(%arg0: i32, %arg1: i32) -> (i32, i32, i32, i32) {
    %c16_i32 = arith.constant 16 : i32
    %0 = arith.muli %arg1, %c16_i32 : i32
    %c1_i32 = arith.constant 1 : i32
    %1 = arith.subi %0, %c1_i32 : i32
    %c0_i32 = arith.constant 0 : i32
    %2 = arith.maxsi %1, %c0_i32 : i32
    %c0_i32_0 = arith.constant 0 : i32
    %c0_i32_1 = arith.constant 0 : i32
    %c0_i32_2 = arith.constant 0 : i32
    return %arg0, %2, %c0_i32_0, %c0_i32_1 : i32, i32, i32, i32
  }
  func.func @transform_1(%arg0: i32, %arg1: i32) -> (i32, i32, i32, i32) {
    %c0_i32 = arith.constant 0 : i32
    %c0_i32_0 = arith.constant 0 : i32
    %c0_i32_1 = arith.constant 0 : i32
    return %arg0, %arg1, %c0_i32, %c0_i32_0 : i32, i32, i32, i32
  }
  func.func @transform_2(%arg0: i32, %arg1: i32) -> (i32, i32, i32, i32) {
    %c16_i32 = arith.constant 16 : i32
    %0 = arith.muli %arg1, %c16_i32 : i32
    %c16_i32_0 = arith.constant 16 : i32
    %1 = arith.addi %0, %c16_i32_0 : i32
    %c15_i32 = arith.constant 15 : i32
    %2 = arith.minsi %1, %c15_i32 : i32
    %c0_i32 = arith.constant 0 : i32
    %c0_i32_1 = arith.constant 0 : i32
    %c0_i32_2 = arith.constant 0 : i32
    return %arg0, %2, %c0_i32, %c0_i32_1 : i32, i32, i32, i32
  }
  func.func @transform_3(%arg0: i32, %arg1: i32) -> (i32, i32, i32, i32) {
    %c16_i32 = arith.constant 16 : i32
    %0 = arith.muli %arg1, %c16_i32 : i32
    %c1_i32 = arith.constant 1 : i32
    %1 = arith.subi %0, %c1_i32 : i32
    %c0_i32 = arith.constant 0 : i32
    %2 = arith.maxsi %1, %c0_i32 : i32
    %c0_i32_0 = arith.constant 0 : i32
    %c0_i32_1 = arith.constant 0 : i32
    %c0_i32_2 = arith.constant 0 : i32
    return %arg0, %2, %c0_i32_0, %c0_i32_1 : i32, i32, i32, i32
  }
  func.func @transform_4(%arg0: i32, %arg1: i32) -> (i32, i32, i32, i32) {
    %c0_i32 = arith.constant 0 : i32
    %c0_i32_0 = arith.constant 0 : i32
    %c0_i32_1 = arith.constant 0 : i32
    return %arg0, %arg1, %c0_i32, %c0_i32_0 : i32, i32, i32, i32
  }
  func.func @transform_5(%arg0: i32, %arg1: i32) -> (i32, i32, i32, i32) {
    %c16_i32 = arith.constant 16 : i32
    %0 = arith.muli %arg1, %c16_i32 : i32
    %c16_i32_0 = arith.constant 16 : i32
    %1 = arith.addi %0, %c16_i32_0 : i32
    %c15_i32 = arith.constant 15 : i32
    %2 = arith.minsi %1, %c15_i32 : i32
    %c0_i32 = arith.constant 0 : i32
    %c0_i32_1 = arith.constant 0 : i32
    %c0_i32_2 = arith.constant 0 : i32
    return %arg0, %2, %c0_i32, %c0_i32_1 : i32, i32, i32, i32
  }
  func.func @transform_6(%arg0: i32, %arg1: i32) -> (i32, i32) {
    %c0_i32 = arith.constant 0 : i32
    %c0_i32_0 = arith.constant 0 : i32
    %c0_i32_1 = arith.constant 0 : i32
    return %c0_i32, %c0_i32_0 : i32, i32
  }
  func.func @transform_7(%arg0: i32, %arg1: i32) -> (i32, i32) {
    %c0_i32 = arith.constant 0 : i32
    %c0_i32_0 = arith.constant 0 : i32
    %c0_i32_1 = arith.constant 0 : i32
    return %c0_i32, %c0_i32_0 : i32, i32
  }
  func.func @transform_8(%arg0: i32, %arg1: i32) -> (i32, i32, i32, i32) {
    %c0_i32 = arith.constant 0 : i32
    %c0_i32_0 = arith.constant 0 : i32
    %c0_i32_1 = arith.constant 0 : i32
    return %arg0, %arg1, %c0_i32, %c0_i32_0 : i32, i32, i32, i32
  }
  func.func @transform_9(%arg0: i32, %arg1: i32) -> (i32, i32, i32, i32) {
    %c0_i32 = arith.constant 0 : i32
    %c0_i32_0 = arith.constant 0 : i32
    %c0_i32_1 = arith.constant 0 : i32
    return %arg0, %arg1, %c0_i32, %c0_i32_0 : i32, i32, i32, i32
  }
}

module attributes {stable_mosaic.version = 11 : i64} {
  func.func @_bn_act_conv2_kernel(%arg0: i32, %arg1: i32, %arg2: memref<1x1x16x128xbf16, #tpu.memory_space<vmem>>, %arg3: memref<1x16x16x128xbf16, #tpu.memory_space<vmem>>, %arg4: memref<1x1x16x128xbf16, #tpu.memory_space<vmem>>, %arg5: memref<1x128xf32, #tpu.memory_space<vmem>>, %arg6: memref<1x128xf32, #tpu.memory_space<vmem>>, %arg7: memref<1152x128xbf16, #tpu.memory_space<vmem>>, %arg8: memref<1x16x16x128xbf16, #tpu.memory_space<vmem>>, %arg9: memref<1x1x2x128xf32, #tpu.memory_space<vmem>>) attributes {dimension_semantics = [#tpu.dimension_semantics<parallel>, #tpu.dimension_semantics<parallel>], iteration_bounds = array<i64: 2, 1>, scalar_prefetch = 0 : i64, scratch_operands = 0 : i64, tpu.core_type = #tpu.core_type<tc>, window_params = [{transform_indices = @transform_0, window_bounds = array<i64: 1, 1, 16, 128>}, {transform_indices = @transform_1, window_bounds = array<i64: 1, 16, 16, 128>}, {transform_indices = @transform_2, window_bounds = array<i64: 1, 1, 16, 128>}, {pipeline_mode = #tpu.pipeline_mode<synchronous>, transform_indices = @transform_3, window_bounds = array<i64: 1, 128>}, {pipeline_mode = #tpu.pipeline_mode<synchronous>, transform_indices = @transform_4, window_bounds = array<i64: 1, 128>}, {pipeline_mode = #tpu.pipeline_mode<synchronous>, transform_indices = @transform_5, window_bounds = array<i64: 1152, 128>}, {transform_indices = @transform_6, window_bounds = array<i64: 1, 16, 16, 128>}, {transform_indices = @transform_7, window_bounds = array<i64: 1, 1, 2, 128>}]} {
    %c0 = arith.constant 0 : index
    %c0_0 = arith.constant 0 : index
    %0 = vector.load %arg5[%c0, %c0_0] : memref<1x128xf32, #tpu.memory_space<vmem>>, vector<1x128xf32>
    %c0_1 = arith.constant 0 : index
    %c0_2 = arith.constant 0 : index
    %1 = vector.load %arg6[%c0_1, %c0_2] : memref<1x128xf32, #tpu.memory_space<vmem>>, vector<1x128xf32>
    %c0_3 = arith.constant 0 : index
    %c0_4 = arith.constant 0 : index
    %c0_5 = arith.constant 0 : index
    %c0_6 = arith.constant 0 : index
    %2 = vector.load %arg2[%c0_3, %c0_4, %c0_5, %c0_6] : memref<1x1x16x128xbf16, #tpu.memory_space<vmem>>, vector<1x1x16x128xbf16>
    %3 = vector.shape_cast %2 : vector<1x1x16x128xbf16> to vector<1x16x128xbf16>
    %4 = arith.extf %3 : vector<1x16x128xbf16> to vector<1x16x128xf32>
    %5 = vector.shape_cast %0 : vector<1x128xf32> to vector<1x1x128xf32>
    %6 = vector.broadcast %5 : vector<1x1x128xf32> to vector<1x16x128xf32>
    %7 = arith.mulf %4, %6 : vector<1x16x128xf32>
    %8 = vector.shape_cast %1 : vector<1x128xf32> to vector<1x1x128xf32>
    %9 = vector.broadcast %8 : vector<1x1x128xf32> to vector<1x16x128xf32>
    %10 = arith.addf %7, %9 : vector<1x16x128xf32>
    %cst = arith.constant 0.000000e+00 : f32
    %11 = vector.broadcast %cst : f32 to vector<1x16x128xf32>
    %12 = arith.cmpf ogt, %10, %11 : vector<1x16x128xf32>
    %cst_7 = arith.constant 0.00999999977 : f32
    %13 = vector.broadcast %cst_7 : f32 to vector<1x16x128xf32>
    %14 = arith.mulf %13, %10 : vector<1x16x128xf32>
    %15 = arith.select %12, %10, %14 : vector<1x16x128xi1>, vector<1x16x128xf32>
    %16 = arith.truncf %15 : vector<1x16x128xf32> to vector<1x16x128xbf16>
    %c0_8 = arith.constant 0 : index
    %c0_9 = arith.constant 0 : index
    %c0_10 = arith.constant 0 : index
    %c0_11 = arith.constant 0 : index
    %17 = vector.load %arg3[%c0_8, %c0_9, %c0_10, %c0_11] : memref<1x16x16x128xbf16, #tpu.memory_space<vmem>>, vector<1x16x16x128xbf16>
    %18 = vector.shape_cast %17 : vector<1x16x16x128xbf16> to vector<16x16x128xbf16>
    %19 = arith.extf %18 : vector<16x16x128xbf16> to vector<16x16x128xf32>
    %20 = vector.shape_cast %0 : vector<1x128xf32> to vector<1x1x128xf32>
    %21 = vector.broadcast %20 : vector<1x1x128xf32> to vector<16x16x128xf32>
    %22 = arith.mulf %19, %21 : vector<16x16x128xf32>
    %23 = vector.shape_cast %1 : vector<1x128xf32> to vector<1x1x128xf32>
    %24 = vector.broadcast %23 : vector<1x1x128xf32> to vector<16x16x128xf32>
    %25 = arith.addf %22, %24 : vector<16x16x128xf32>
    %cst_12 = arith.constant 0.000000e+00 : f32
    %26 = vector.broadcast %cst_12 : f32 to vector<16x16x128xf32>
    %27 = arith.cmpf ogt, %25, %26 : vector<16x16x128xf32>
    %cst_13 = arith.constant 0.00999999977 : f32
    %28 = vector.broadcast %cst_13 : f32 to vector<16x16x128xf32>
    %29 = arith.mulf %28, %25 : vector<16x16x128xf32>
    %30 = arith.select %27, %25, %29 : vector<16x16x128xi1>, vector<16x16x128xf32>
    %31 = arith.truncf %30 : vector<16x16x128xf32> to vector<16x16x128xbf16>
    %c0_14 = arith.constant 0 : index
    %c0_15 = arith.constant 0 : index
    %c0_16 = arith.constant 0 : index
    %c0_17 = arith.constant 0 : index
    %32 = vector.load %arg4[%c0_14, %c0_15, %c0_16, %c0_17] : memref<1x1x16x128xbf16, #tpu.memory_space<vmem>>, vector<1x1x16x128xbf16>
    %33 = vector.shape_cast %32 : vector<1x1x16x128xbf16> to vector<1x16x128xbf16>
    %34 = arith.extf %33 : vector<1x16x128xbf16> to vector<1x16x128xf32>
    %35 = vector.shape_cast %0 : vector<1x128xf32> to vector<1x1x128xf32>
    %36 = vector.broadcast %35 : vector<1x1x128xf32> to vector<1x16x128xf32>
    %37 = arith.mulf %34, %36 : vector<1x16x128xf32>
    %38 = vector.shape_cast %1 : vector<1x128xf32> to vector<1x1x128xf32>
    %39 = vector.broadcast %38 : vector<1x1x128xf32> to vector<1x16x128xf32>
    %40 = arith.addf %37, %39 : vector<1x16x128xf32>
    %cst_18 = arith.constant 0.000000e+00 : f32
    %41 = vector.broadcast %cst_18 : f32 to vector<1x16x128xf32>
    %42 = arith.cmpf ogt, %40, %41 : vector<1x16x128xf32>
    %cst_19 = arith.constant 0.00999999977 : f32
    %43 = vector.broadcast %cst_19 : f32 to vector<1x16x128xf32>
    %44 = arith.mulf %43, %40 : vector<1x16x128xf32>
    %45 = arith.select %42, %40, %44 : vector<1x16x128xi1>, vector<1x16x128xf32>
    %46 = arith.truncf %45 : vector<1x16x128xf32> to vector<1x16x128xbf16>
    %c0_i32 = arith.constant 0 : i32
    %47 = arith.cmpi eq, %arg1, %c0_i32 : i32
    %cst_20 = arith.constant 0.000000e+00 : bf16
    %48 = vector.broadcast %cst_20 : bf16 to vector<1x16x128xbf16>
    %49 = arith.select %47, %48, %16 : vector<1x16x128xbf16>
    %c0_i32_21 = arith.constant 0 : i32
    %50 = arith.cmpi eq, %arg1, %c0_i32_21 : i32
    %cst_22 = arith.constant 0.000000e+00 : bf16
    %51 = vector.broadcast %cst_22 : bf16 to vector<1x16x128xbf16>
    %52 = arith.select %50, %51, %46 : vector<1x16x128xbf16>
    %53 = tpu.concatenate %49, %31, %52 in 0 : vector<1x16x128xbf16>, vector<16x16x128xbf16>, vector<1x16x128xbf16> -> vector<18x16x128xbf16>
    %cst_23 = arith.constant 0.000000e+00 : bf16
    %54 = vector.broadcast %cst_23 : bf16 to vector<18x1x128xbf16>
    %55 = tpu.concatenate %54, %53, %54 in 1 : vector<18x1x128xbf16>, vector<18x16x128xbf16>, vector<18x1x128xbf16> -> vector<18x18x128xbf16>
    %56 = vector.extract_strided_slice %55 {offsets = [0, 0, 0], sizes = [16, 16, 128], strides = [1, 1, 1]} : vector<18x18x128xbf16> to vector<16x16x128xbf16>
    %57 = vector.shape_cast %56 : vector<16x16x128xbf16> to vector<256x128xbf16>
    %c0_24 = arith.constant 0 : index
    %c0_25 = arith.constant 0 : index
    %58 = vector.load %arg7[%c0_24, %c0_25] : memref<1152x128xbf16, #tpu.memory_space<vmem>>, vector<128x128xbf16>
    %cst_26 = arith.constant dense<0.000000e+00> : vector<256x128xf32>
    %59 = tpu.matmul %57, %58, %cst_26 {dimension_numbers = #tpu.dot_dimension_numbers<[1], [0], [0], [1], [0, 0, 1, 1], [], []>} : vector<256x128xbf16>, vector<128x128xbf16>, vector<256x128xf32> -> vector<256x128xf32>
    %60 = vector.extract_strided_slice %55 {offsets = [0, 1, 0], sizes = [16, 16, 128], strides = [1, 1, 1]} : vector<18x18x128xbf16> to vector<16x16x128xbf16>
    %61 = vector.shape_cast %60 : vector<16x16x128xbf16> to vector<256x128xbf16>
    %c128 = arith.constant 128 : index
    %c0_27 = arith.constant 0 : index
    %62 = vector.load %arg7[%c128, %c0_27] : memref<1152x128xbf16, #tpu.memory_space<vmem>>, vector<128x128xbf16>
    %cst_28 = arith.constant dense<0.000000e+00> : vector<256x128xf32>
    %63 = tpu.matmul %61, %62, %cst_28 {dimension_numbers = #tpu.dot_dimension_numbers<[1], [0], [0], [1], [0, 0, 1, 1], [], []>} : vector<256x128xbf16>, vector<128x128xbf16>, vector<256x128xf32> -> vector<256x128xf32>
    %64 = arith.addf %59, %63 : vector<256x128xf32>
    %65 = vector.extract_strided_slice %55 {offsets = [0, 2, 0], sizes = [16, 16, 128], strides = [1, 1, 1]} : vector<18x18x128xbf16> to vector<16x16x128xbf16>
    %66 = vector.shape_cast %65 : vector<16x16x128xbf16> to vector<256x128xbf16>
    %c256 = arith.constant 256 : index
    %c0_29 = arith.constant 0 : index
    %67 = vector.load %arg7[%c256, %c0_29] : memref<1152x128xbf16, #tpu.memory_space<vmem>>, vector<128x128xbf16>
    %cst_30 = arith.constant dense<0.000000e+00> : vector<256x128xf32>
    %68 = tpu.matmul %66, %67, %cst_30 {dimension_numbers = #tpu.dot_dimension_numbers<[1], [0], [0], [1], [0, 0, 1, 1], [], []>} : vector<256x128xbf16>, vector<128x128xbf16>, vector<256x128xf32> -> vector<256x128xf32>
    %69 = arith.addf %64, %68 : vector<256x128xf32>
    %70 = vector.extract_strided_slice %55 {offsets = [1, 0, 0], sizes = [16, 16, 128], strides = [1, 1, 1]} : vector<18x18x128xbf16> to vector<16x16x128xbf16>
    %71 = vector.shape_cast %70 : vector<16x16x128xbf16> to vector<256x128xbf16>
    %c384 = arith.constant 384 : index
    %c0_31 = arith.constant 0 : index
    %72 = vector.load %arg7[%c384, %c0_31] : memref<1152x128xbf16, #tpu.memory_space<vmem>>, vector<128x128xbf16>
    %cst_32 = arith.constant dense<0.000000e+00> : vector<256x128xf32>
    %73 = tpu.matmul %71, %72, %cst_32 {dimension_numbers = #tpu.dot_dimension_numbers<[1], [0], [0], [1], [0, 0, 1, 1], [], []>} : vector<256x128xbf16>, vector<128x128xbf16>, vector<256x128xf32> -> vector<256x128xf32>
    %74 = arith.addf %69, %73 : vector<256x128xf32>
    %75 = vector.extract_strided_slice %55 {offsets = [1, 1, 0], sizes = [16, 16, 128], strides = [1, 1, 1]} : vector<18x18x128xbf16> to vector<16x16x128xbf16>
    %76 = vector.shape_cast %75 : vector<16x16x128xbf16> to vector<256x128xbf16>
    %c512 = arith.constant 512 : index
    %c0_33 = arith.constant 0 : index
    %77 = vector.load %arg7[%c512, %c0_33] : memref<1152x128xbf16, #tpu.memory_space<vmem>>, vector<128x128xbf16>
    %cst_34 = arith.constant dense<0.000000e+00> : vector<256x128xf32>
    %78 = tpu.matmul %76, %77, %cst_34 {dimension_numbers = #tpu.dot_dimension_numbers<[1], [0], [0], [1], [0, 0, 1, 1], [], []>} : vector<256x128xbf16>, vector<128x128xbf16>, vector<256x128xf32> -> vector<256x128xf32>
    %79 = arith.addf %74, %78 : vector<256x128xf32>
    %80 = vector.extract_strided_slice %55 {offsets = [1, 2, 0], sizes = [16, 16, 128], strides = [1, 1, 1]} : vector<18x18x128xbf16> to vector<16x16x128xbf16>
    %81 = vector.shape_cast %80 : vector<16x16x128xbf16> to vector<256x128xbf16>
    %c640 = arith.constant 640 : index
    %c0_35 = arith.constant 0 : index
    %82 = vector.load %arg7[%c640, %c0_35] : memref<1152x128xbf16, #tpu.memory_space<vmem>>, vector<128x128xbf16>
    %cst_36 = arith.constant dense<0.000000e+00> : vector<256x128xf32>
    %83 = tpu.matmul %81, %82, %cst_36 {dimension_numbers = #tpu.dot_dimension_numbers<[1], [0], [0], [1], [0, 0, 1, 1], [], []>} : vector<256x128xbf16>, vector<128x128xbf16>, vector<256x128xf32> -> vector<256x128xf32>
    %84 = arith.addf %79, %83 : vector<256x128xf32>
    %85 = vector.extract_strided_slice %55 {offsets = [2, 0, 0], sizes = [16, 16, 128], strides = [1, 1, 1]} : vector<18x18x128xbf16> to vector<16x16x128xbf16>
    %86 = vector.shape_cast %85 : vector<16x16x128xbf16> to vector<256x128xbf16>
    %c768 = arith.constant 768 : index
    %c0_37 = arith.constant 0 : index
    %87 = vector.load %arg7[%c768, %c0_37] : memref<1152x128xbf16, #tpu.memory_space<vmem>>, vector<128x128xbf16>
    %cst_38 = arith.constant dense<0.000000e+00> : vector<256x128xf32>
    %88 = tpu.matmul %86, %87, %cst_38 {dimension_numbers = #tpu.dot_dimension_numbers<[1], [0], [0], [1], [0, 0, 1, 1], [], []>} : vector<256x128xbf16>, vector<128x128xbf16>, vector<256x128xf32> -> vector<256x128xf32>
    %89 = arith.addf %84, %88 : vector<256x128xf32>
    %90 = vector.extract_strided_slice %55 {offsets = [2, 1, 0], sizes = [16, 16, 128], strides = [1, 1, 1]} : vector<18x18x128xbf16> to vector<16x16x128xbf16>
    %91 = vector.shape_cast %90 : vector<16x16x128xbf16> to vector<256x128xbf16>
    %c896 = arith.constant 896 : index
    %c0_39 = arith.constant 0 : index
    %92 = vector.load %arg7[%c896, %c0_39] : memref<1152x128xbf16, #tpu.memory_space<vmem>>, vector<128x128xbf16>
    %cst_40 = arith.constant dense<0.000000e+00> : vector<256x128xf32>
    %93 = tpu.matmul %91, %92, %cst_40 {dimension_numbers = #tpu.dot_dimension_numbers<[1], [0], [0], [1], [0, 0, 1, 1], [], []>} : vector<256x128xbf16>, vector<128x128xbf16>, vector<256x128xf32> -> vector<256x128xf32>
    %94 = arith.addf %89, %93 : vector<256x128xf32>
    %95 = vector.extract_strided_slice %55 {offsets = [2, 2, 0], sizes = [16, 16, 128], strides = [1, 1, 1]} : vector<18x18x128xbf16> to vector<16x16x128xbf16>
    %96 = vector.shape_cast %95 : vector<16x16x128xbf16> to vector<256x128xbf16>
    %c1024 = arith.constant 1024 : index
    %c0_41 = arith.constant 0 : index
    %97 = vector.load %arg7[%c1024, %c0_41] : memref<1152x128xbf16, #tpu.memory_space<vmem>>, vector<128x128xbf16>
    %cst_42 = arith.constant dense<0.000000e+00> : vector<256x128xf32>
    %98 = tpu.matmul %96, %97, %cst_42 {dimension_numbers = #tpu.dot_dimension_numbers<[1], [0], [0], [1], [0, 0, 1, 1], [], []>} : vector<256x128xbf16>, vector<128x128xbf16>, vector<256x128xf32> -> vector<256x128xf32>
    %99 = arith.addf %94, %98 : vector<256x128xf32>
    %100 = vector.shape_cast %99 : vector<256x128xf32> to vector<16x16x128xf32>
    %101 = arith.truncf %100 : vector<16x16x128xf32> to vector<16x16x128xbf16>
    %c0_43 = arith.constant 0 : index
    %c0_44 = arith.constant 0 : index
    %c0_45 = arith.constant 0 : index
    %c0_46 = arith.constant 0 : index
    %102 = vector.load %arg8[%c0_43, %c0_44, %c0_45, %c0_46] : memref<1x16x16x128xbf16, #tpu.memory_space<vmem>>, vector<1x16x16x128xbf16>
    %103 = vector.shape_cast %102 : vector<1x16x16x128xbf16> to vector<16x16x128xbf16>
    %104 = vector.shape_cast %101 : vector<16x16x128xbf16> to vector<1x16x16x128xbf16>
    tpu.vector_store %arg8[%c0_43, %c0_44, %c0_45, %c0_46], %104 {strides = array<i32>} : memref<1x16x16x128xbf16, #tpu.memory_space<vmem>>, vector<1x16x16x128xbf16>,
    %cst_47 = arith.constant dense<0.000000e+00> : vector<128xf32>
    %105 = vector.multi_reduction <add>, %99, %cst_47 [0] : vector<256x128xf32> to vector<128xf32>
    %106 = vector.shape_cast %105 : vector<128xf32> to vector<1x128xf32>
    %107 = arith.mulf %99, %99 : vector<256x128xf32>
    %cst_48 = arith.constant dense<0.000000e+00> : vector<128xf32>
    %108 = vector.multi_reduction <add>, %107, %cst_48 [0] : vector<256x128xf32> to vector<128xf32>
    %109 = vector.shape_cast %108 : vector<128xf32> to vector<1x128xf32>
    %110 = tpu.concatenate %106, %109 in 0 : vector<1x128xf32>, vector<1x128xf32> -> vector<2x128xf32>
    %c0_49 = arith.constant 0 : index
    %c0_50 = arith.constant 0 : index
    %c0_51 = arith.constant 0 : index
    %c0_52 = arith.constant 0 : index
    %111 = vector.load %arg9[%c0_49, %c0_50, %c0_51, %c0_52] : memref<1x1x2x128xf32, #tpu.memory_space<vmem>>, vector<1x1x2x128xf32>
    %112 = vector.shape_cast %111 : vector<1x1x2x128xf32> to vector<2x128xf32>
    %113 = vector.shape_cast %110 : vector<2x128xf32> to vector<1x1x2x128xf32>
    tpu.vector_store %arg9[%c0_49, %c0_50, %c0_51, %c0_52], %113 {strides = array<i32>} : memref<1x1x2x128xf32, #tpu.memory_space<vmem>>, vector<1x1x2x128xf32>,
    return
  }
  func.func @transform_0(%arg0: i32, %arg1: i32) -> (i32, i32, i32, i32) {
    %c16_i32 = arith.constant 16 : i32
    %0 = arith.muli %arg1, %c16_i32 : i32
    %c1_i32 = arith.constant 1 : i32
    %1 = arith.subi %0, %c1_i32 : i32
    %c0_i32 = arith.constant 0 : i32
    %2 = arith.maxsi %1, %c0_i32 : i32
    %c0_i32_0 = arith.constant 0 : i32
    %c0_i32_1 = arith.constant 0 : i32
    %c0_i32_2 = arith.constant 0 : i32
    return %arg0, %2, %c0_i32_0, %c0_i32_1 : i32, i32, i32, i32
  }
  func.func @transform_1(%arg0: i32, %arg1: i32) -> (i32, i32, i32, i32) {
    %c0_i32 = arith.constant 0 : i32
    %c0_i32_0 = arith.constant 0 : i32
    %c0_i32_1 = arith.constant 0 : i32
    return %arg0, %arg1, %c0_i32, %c0_i32_0 : i32, i32, i32, i32
  }
  func.func @transform_2(%arg0: i32, %arg1: i32) -> (i32, i32, i32, i32) {
    %c16_i32 = arith.constant 16 : i32
    %0 = arith.muli %arg1, %c16_i32 : i32
    %c16_i32_0 = arith.constant 16 : i32
    %1 = arith.addi %0, %c16_i32_0 : i32
    %c15_i32 = arith.constant 15 : i32
    %2 = arith.minsi %1, %c15_i32 : i32
    %c0_i32 = arith.constant 0 : i32
    %c0_i32_1 = arith.constant 0 : i32
    %c0_i32_2 = arith.constant 0 : i32
    return %arg0, %2, %c0_i32, %c0_i32_1 : i32, i32, i32, i32
  }
  func.func @transform_3(%arg0: i32, %arg1: i32) -> (i32, i32) {
    %c0_i32 = arith.constant 0 : i32
    %c0_i32_0 = arith.constant 0 : i32
    %c0_i32_1 = arith.constant 0 : i32
    return %c0_i32, %c0_i32_0 : i32, i32
  }
  func.func @transform_4(%arg0: i32, %arg1: i32) -> (i32, i32) {
    %c0_i32 = arith.constant 0 : i32
    %c0_i32_0 = arith.constant 0 : i32
    %c0_i32_1 = arith.constant 0 : i32
    return %c0_i32, %c0_i32_0 : i32, i32
  }
  func.func @transform_5(%arg0: i32, %arg1: i32) -> (i32, i32) {
    %c0_i32 = arith.constant 0 : i32
    %c0_i32_0 = arith.constant 0 : i32
    %c0_i32_1 = arith.constant 0 : i32
    return %c0_i32, %c0_i32_0 : i32, i32
  }
  func.func @transform_6(%arg0: i32, %arg1: i32) -> (i32, i32, i32, i32) {
    %c0_i32 = arith.constant 0 : i32
    %c0_i32_0 = arith.constant 0 : i32
    %c0_i32_1 = arith.constant 0 : i32
    return %arg0, %arg1, %c0_i32, %c0_i32_0 : i32, i32, i32, i32
  }
  func.func @transform_7(%arg0: i32, %arg1: i32) -> (i32, i32, i32, i32) {
    %c0_i32 = arith.constant 0 : i32
    %c0_i32_0 = arith.constant 0 : i32
    %c0_i32_1 = arith.constant 0 : i32
    return %arg0, %arg1, %c0_i32, %c0_i32_0 : i32, i32, i32, i32
  }
}

</mosaic_0001>

<llo_original>
// kernel: upsample_bn_forward.2
$region0: #{upsample_bn_forward.2}
  #allocation0 [shape = 'u32[]', space=smem, size = 0x4, offset = 0x4, fixed_abs, tag = 'smem constant byte address 0x4 - core index']
  #allocation1 [shape = 'u32[144,128]{1,0:T(1,128)}', space=vmem, size = 0x12000, scoped, tag = 'internal scratch']
  %s0 = inlined_call_operand.hbm [shape: bf16[2,16,16,4], index: 0, kind: input, shape index: {}, may-alias: {0,1,2}]
  %s1 = inlined_call_operand.hbm [shape: bf16[2,16,16,4], index: 1, kind: input, shape index: {}, may-alias: {0,1,2}]
  %s2 = inlined_call_operand.hbm [shape: bf16[2,16,16,4], index: 2, kind: input, shape index: {}, may-alias: {0,1,2}]
  %s3 = inlined_call_operand.hbm [shape: bf16[2,16,16,4], index: 3, kind: input, shape index: {}, may-alias: {3,4,5}]
  %s4 = inlined_call_operand.hbm [shape: bf16[2,16,16,4], index: 4, kind: input, shape index: {}, may-alias: {3,4,5}]
  %s5 = inlined_call_operand.hbm [shape: bf16[2,16,16,4], index: 5, kind: input, shape index: {}, may-alias: {3,4,5}]
  %s6 = inlined_call_operand.hbm [shape: bf16[36,128], index: 6, kind: input, shape index: {}]
  %s7 = inlined_call_operand.hbm [shape: bf16[36,128], index: 7, kind: input, shape index: {}]
  %s8 = inlined_call_operand.hbm [shape: bf16[2,16,16,128], index: 8, kind: output, shape index: {0}]
  %s9 = inlined_call_operand.hbm [shape: f32[2,1,2,128], index: 9, kind: output, shape index: {1}]
  %10 = xla_tuple %s8, %s9
  %s11 = sld [smem:[#allocation0]]
  $region105: #{upsample_bn_forward.2} parent=0
    _
  %s13 = ssub.s32 1, %s11
  %s14 = scalar_select 0, %s13, %s11
  $region1: #{upsample_bn_forward.2} parent=0
    #allocation2 [shape = 'u8[8192]{0}', space=vmem, size = 0x2000, scoped, tag = 'input window, operand 0']
    #allocation3 [shape = 's32[2]{0}', space=sflag, size = 0x8, scoped, tag = 'scoped memory for upsample_bn_forward.2']
    #allocation4 [shape = 's32[2]{0}', space=sflag, size = 0x8, scoped, tag = 'scoped memory for upsample_bn_forward.2']
    #allocation5 [shape = 'u8[131072]{0}', space=vmem, size = 0x20000, scoped, tag = 'input window, operand 1']
    #allocation6 [shape = 's32[2]{0}', space=sflag, size = 0x8, scoped, tag = 'scoped memory for upsample_bn_forward.2']
    #allocation7 [shape = 'u8[8192]{0}', space=vmem, size = 0x2000, scoped, tag = 'input window, operand 2']
    #allocation8 [shape = 'u8[8192]{0}', space=vmem, size = 0x2000, scoped, tag = 'input window, operand 3']
    #allocation9 [shape = 's32[2]{0}', space=sflag, size = 0x8, scoped, tag = 'scoped memory for upsample_bn_forward.2']
    #allocation10 [shape = 'u8[131072]{0}', space=vmem, size = 0x20000, scoped, tag = 'input window, operand 4']
    #allocation11 [shape = 'u8[8192]{0}', space=vmem, size = 0x2000, scoped, tag = 'input window, operand 5']
    #allocation12 [shape = 's32[2]{0}', space=sflag, size = 0x8, scoped, tag = 'scoped memory for upsample_bn_forward.2']
    #allocation13 [shape = 'u8[10240]{0}', space=vmem, size = 0x2800, scoped, tag = 'input window, operand 6, single buffered']
    #allocation14 [shape = 'u8[10240]{0}', space=vmem, size = 0x2800, scoped, tag = 'input window, operand 7, single buffered']
    #allocation15 [shape = 's32[1]{0}', space=sflag, size = 0x4, scoped, tag = 'scoped memory for upsample_bn_forward.2']
    #allocation16 [shape = 'u8[131072]{0}', space=vmem, size = 0x20000, scoped, tag = 'output window, operand 0']
    #allocation17 [shape = 'u8[2048]{0}', space=vmem, size = 0x800, scoped, tag = 'output window, operand 1']
    #allocation18 [shape = 's32[2]{0}', space=sflag, size = 0x8, scoped, tag = 'scoped memory for upsample_bn_forward.2']
    %15 = vsyncpa [#allocation3], 0
    %s16 = scalar_lea.sflag [#allocation3], 1
    %17 = vsyncpa %s16, 0
    %18 = vsyncpa [#allocation6], 0
    %s19 = scalar_lea.sflag [#allocation6], 1
    %20 = vsyncpa %s19, 0
    %21 = vsyncpa [#allocation9], 0
    %s22 = scalar_lea.sflag [#allocation9], 1
    %23 = vsyncpa %s22, 0
    %24 = vsyncpa [#allocation12], 0
    %s25 = scalar_lea.sflag [#allocation12], 1
    %26 = vsyncpa %s25, 0
    %27 = vsyncpa [#allocation15], 0
    %28 = vsyncpa [#allocation4], 0
    %s29 = scalar_lea.sflag [#allocation4], 1
    %30 = vsyncpa %s29, 0
    %31 = vsyncpa [#allocation18], 0
    %s32 = scalar_lea.sflag [#allocation18], 1
    %33 = vsyncpa %s32, 0
    loop: start=0, step=1, limit=4
    $region2: #{upsample_bn_forward.2} parent=1 // loop_pre_header
      _
    $region3: #{upsample_bn_forward.2} parent=1 // loop_header
      %s35 = sphi 0, %s39
      %p36 = scmp.ge.s32.totalorder %s35, 4
      %s42 = sphi 0, %s54
      %s43 = sphi 0, %s50
      %s44 = sphi 0, %s42
      %s45 = sphi 0, %s43
      %s46 = sphi 0, %s44
      %s47 = sphi 0, %s45
      %s67 = sphi 0, %s69
      %s70 = sphi 0, %s67
      %s71 = sphi 0, %s70
      %s87 = sphi 0, %s71
      %s95 = sphi 0, %s97
      %s98 = sphi 0, %s95
      %s99 = sphi 0, %s98
      %s115 = sphi 0, %s99
      %s131 = sphi 0, %s133
      %s134 = sphi 0, %s131
      %s135 = sphi 0, %s134
      %s151 = sphi 0, %s135
      %s167 = sphi 0, %s169
      %s170 = sphi 0, %s167
      %s171 = sphi 0, %s170
      %s187 = sphi 0, %s171
      %s195 = sphi 0, %s197
      %s198 = sphi 0, %s195
      %s199 = sphi 0, %s198
      %s215 = sphi 0, %s199
      %s231 = sphi 0, %s233
      %s234 = sphi 0, %s231
      %s235 = sphi 0, %s234
      %s251 = sphi 0, %s235
      %s255 = sphi 0, %s255
      %s257 = sphi 0, %s255
      %s258 = sphi 0, %s257
      %s272 = sphi 0, %s258
      %s276 = sphi 0, %s276
      %s278 = sphi 0, %s276
      %s279 = sphi 0, %s278
      %s293 = sphi 0, %s279
      %s301 = sphi 0, %s303
      %s304 = sphi 0, %s301
      %s305 = sphi 0, %s304
      %s321 = sphi 0, %s305
      %s329 = sphi 0, %s331
      %s332 = sphi 0, %s329
      %s333 = sphi 0, %s332
      %s349 = sphi 0, %s333
    $region4: #{upsample_bn_forward.2} parent=1 // loop_header_branch
      %38 = sbr.rel (%p36) target = $region8
    $region5: #{upsample_bn_forward.2} parent=1 // loop_body
      %s40 = ssub.s32 %s35, 1
      %s41 = ssub.s32 %s35, 2
      %s48 = sadd.s32 1, %s43
      %p49 = scmp.ge.s32.totalorder %s48, 1
      %s50 = scalar_select %p49, 0, %s48
      %s51 = sadd.s32 1, %s42
      %s52 = scalar_select %p49, %s51, %s42
      %p53 = scmp.ge.s32.totalorder %s52, 2
      %s54 = scalar_select %p53, 0, %s52
      %s55 = smul.u32 %s43, 16
      %s56 = ssub.s32 %s55, 1
      %p57 = scmp.gt.s32.totalorder %s56, 0
      %s58 = scalar_select %p57, %s56, 0
      %s59 = smul.u32 %s50, 16
      %s60 = ssub.s32 %s59, 1
      %p61 = scmp.gt.s32.totalorder %s60, 0
      %s62 = scalar_select %p61, %s60, 0
      %s63 = ssub.s32 %s42, %s54
      %s64 = ssub.s32 %s58, %s62
      %s65 = sor.u32 %s63, %s64
      %p66 = scmp.eq.s32.totalorder %s65, 0
      %s68 = sadd.s32 %s67, 1
      %s69 = scalar_select %p66, %s67, %s68
      %p72 = pneg %p66
      %p73 = scmp.eq.s32.totalorder %s35, 1
      %p74 = por %p72, %p73
      %p75 = scmp.ne.s32.totalorder %s67, %s70
      %p76 = scmp.eq.s32.totalorder %s35, 0
      %p77 = por %p75, %p76
      %p78 = scmp.ne.s32.totalorder %s67, %s70
      %p79 = scmp.eq.s32.totalorder %s40, 1
      %p80 = por %p78, %p79
      %p81 = scmp.ne.s32.totalorder %s70, %s71
      %p82 = scmp.eq.s32.totalorder %s40, 0
      %p83 = por %p81, %p82
      %p84 = scmp.ne.s32.totalorder %s70, %s71
      %p85 = scmp.eq.s32.totalorder %s41, 1
      %p86 = por %p84, %p85
      %p88 = scmp.ne.s32.totalorder %s71, %s87
      %p89 = scmp.eq.s32.totalorder %s41, 0
      %p90 = por %p88, %p89
      %s91 = ssub.s32 %s42, %s54
      %s92 = ssub.s32 %s43, %s50
      %s93 = sor.u32 %s91, %s92
      %p94 = scmp.eq.s32.totalorder %s93, 0
      %s96 = sadd.s32 %s95, 1
      %s97 = scalar_select %p94, %s95, %s96
      %p100 = pneg %p94
      %p101 = scmp.eq.s32.totalorder %s35, 1
      %p102 = por %p100, %p101
      %p103 = scmp.ne.s32.totalorder %s95, %s98
      %p104 = scmp.eq.s32.totalorder %s35, 0
      %p105 = por %p103, %p104
      %p106 = scmp.ne.s32.totalorder %s95, %s98
      %p107 = scmp.eq.s32.totalorder %s40, 1
      %p108 = por %p106, %p107
      %p109 = scmp.ne.s32.totalorder %s98, %s99
      %p110 = scmp.eq.s32.totalorder %s40, 0
      %p111 = por %p109, %p110
      %p112 = scmp.ne.s32.totalorder %s98, %s99
      %p113 = scmp.eq.s32.totalorder %s41, 1
      %p114 = por %p112, %p113
      %p116 = scmp.ne.s32.totalorder %s99, %s115
      %p117 = scmp.eq.s32.totalorder %s41, 0
      %p118 = por %p116, %p117
      %s119 = smul.u32 %s43, 16
      %s120 = sadd.s32 %s119, 16
      %p121 = scmp.lt.s32.totalorder %s120, 15
      %s122 = scalar_select %p121, %s120, 15
      %s123 = smul.u32 %s50, 16
      %s124 = sadd.s32 %s123, 16
      %p125 = scmp.lt.s32.totalorder %s124, 15
      %s126 = scalar_select %p125, %s124, 15
      %s127 = ssub.s32 %s42, %s54
      %s128 = ssub.s32 %s122, %s126
      %s129 = sor.u32 %s127, %s128
      %p130 = scmp.eq.s32.totalorder %s129, 0
      %s132 = sadd.s32 %s131, 1
      %s133 = scalar_select %p130, %s131, %s132
      %p136 = pneg %p130
      %p137 = scmp.eq.s32.totalorder %s35, 1
      %p138 = por %p136, %p137
      %p139 = scmp.ne.s32.totalorder %s131, %s134
      %p140 = scmp.eq.s32.totalorder %s35, 0
      %p141 = por %p139, %p140
      %p142 = scmp.ne.s32.totalorder %s131, %s134
      %p143 = scmp.eq.s32.totalorder %s40, 1
      %p144 = por %p142, %p143
      %p145 = scmp.ne.s32.totalorder %s134, %s135
      %p146 = scmp.eq.s32.totalorder %s40, 0
      %p147 = por %p145, %p146
      %p148 = scmp.ne.s32.totalorder %s134, %s135
      %p149 = scmp.eq.s32.totalorder %s41, 1
      %p150 = por %p148, %p149
      %p152 = scmp.ne.s32.totalorder %s135, %s151
      %p153 = scmp.eq.s32.totalorder %s41, 0
      %p154 = por %p152, %p153
      %s155 = smul.u32 %s43, 16
      %s156 = ssub.s32 %s155, 1
      %p157 = scmp.gt.s32.totalorder %s156, 0
      %s158 = scalar_select %p157, %s156, 0
      %s159 = smul.u32 %s50, 16
      %s160 = ssub.s32 %s159, 1
      %p161 = scmp.gt.s32.totalorder %s160, 0
      %s162 = scalar_select %p161, %s160, 0
      %s163 = ssub.s32 %s42, %s54
      %s164 = ssub.s32 %s158, %s162
      %s165 = sor.u32 %s163, %s164
      %p166 = scmp.eq.s32.totalorder %s165, 0
      %s168 = sadd.s32 %s167, 1
      %s169 = scalar_select %p166, %s167, %s168
      %p172 = pneg %p166
      %p173 = scmp.eq.s32.totalorder %s35, 1
      %p174 = por %p172, %p173
      %p175 = scmp.ne.s32.totalorder %s167, %s170
      %p176 = scmp.eq.s32.totalorder %s35, 0
      %p177 = por %p175, %p176
      %p178 = scmp.ne.s32.totalorder %s167, %s170
      %p179 = scmp.eq.s32.totalorder %s40, 1
      %p180 = por %p178, %p179
      %p181 = scmp.ne.s32.totalorder %s170, %s171
      %p182 = scmp.eq.s32.totalorder %s40, 0
      %p183 = por %p181, %p182
      %p184 = scmp.ne.s32.totalorder %s170, %s171
      %p185 = scmp.eq.s32.totalorder %s41, 1
      %p186 = por %p184, %p185
      %p188 = scmp.ne.s32.totalorder %s171, %s187
      %p189 = scmp.eq.s32.totalorder %s41, 0
      %p190 = por %p188, %p189
      %s191 = ssub.s32 %s42, %s54
      %s192 = ssub.s32 %s43, %s50
      %s193 = sor.u32 %s191, %s192
      %p194 = scmp.eq.s32.totalorder %s193, 0
      %s196 = sadd.s32 %s195, 1
      %s197 = scalar_select %p194, %s195, %s196
      %p200 = pneg %p194
      %p201 = scmp.eq.s32.totalorder %s35, 1
      %p202 = por %p200, %p201
      %p203 = scmp.ne.s32.totalorder %s195, %s198
      %p204 = scmp.eq.s32.totalorder %s35, 0
      %p205 = por %p203, %p204
      %p206 = scmp.ne.s32.totalorder %s195, %s198
      %p207 = scmp.eq.s32.totalorder %s40, 1
      %p208 = por %p206, %p207
      %p209 = scmp.ne.s32.totalorder %s198, %s199
      %p210 = scmp.eq.s32.totalorder %s40, 0
      %p211 = por %p209, %p210
      %p212 = scmp.ne.s32.totalorder %s198, %s199
      %p213 = scmp.eq.s32.totalorder %s41, 1
      %p214 = por %p212, %p213
      %p216 = scmp.ne.s32.totalorder %s199, %s215
      %p217 = scmp.eq.s32.totalorder %s41, 0
      %p218 = por %p216, %p217
      %s219 = smul.u32 %s43, 16
      %s220 = sadd.s32 %s219, 16
      %p221 = scmp.lt.s32.totalorder %s220, 15
      %s222 = scalar_select %p221, %s220, 15
      %s223 = smul.u32 %s50, 16
      %s224 = sadd.s32 %s223, 16
      %p225 = scmp.lt.s32.totalorder %s224, 15
      %s226 = scalar_select %p225, %s224, 15
      %s227 = ssub.s32 %s42, %s54
      %s228 = ssub.s32 %s222, %s226
      %s229 = sor.u32 %s227, %s228
      %p230 = scmp.eq.s32.totalorder %s229, 0
      %s232 = sadd.s32 %s231, 1
      %s233 = scalar_select %p230, %s231, %s232
      %p236 = pneg %p230
      %p237 = scmp.eq.s32.totalorder %s35, 1
      %p238 = por %p236, %p237
      %p239 = scmp.ne.s32.totalorder %s231, %s234
      %p240 = scmp.eq.s32.totalorder %s35, 0
      %p241 = por %p239, %p240
      %p242 = scmp.ne.s32.totalorder %s231, %s234
      %p243 = scmp.eq.s32.totalorder %s40, 1
      %p244 = por %p242, %p243
      %p245 = scmp.ne.s32.totalorder %s234, %s235
      %p246 = scmp.eq.s32.totalorder %s40, 0
      %p247 = por %p245, %p246
      %p248 = scmp.ne.s32.totalorder %s234, %s235
      %p249 = scmp.eq.s32.totalorder %s41, 1
      %p250 = por %p248, %p249
      %p252 = scmp.ne.s32.totalorder %s235, %s251
      %p253 = scmp.eq.s32.totalorder %s41, 0
      %p254 = por %p252, %p253
      %s256 = sadd.s32 %s255, 1
      %p259 = scmp.eq.s32.totalorder %s35, 1
      %p260 = scmp.ne.s32.totalorder %s255, %s257
      %p261 = scmp.eq.s32.totalorder %s35, 0
      %p262 = por %p260, %p261
      %p263 = scmp.ne.s32.totalorder %s255, %s257
      %p264 = scmp.eq.s32.totalorder %s40, 1
      %p265 = por %p263, %p264
      %p266 = scmp.ne.s32.totalorder %s257, %s258
      %p267 = scmp.eq.s32.totalorder %s40, 0
      %p268 = por %p266, %p267
      %p269 = scmp.ne.s32.totalorder %s257, %s258
      %p270 = scmp.eq.s32.totalorder %s41, 1
      %p271 = por %p269, %p270
      %p273 = scmp.ne.s32.totalorder %s258, %s272
      %p274 = scmp.eq.s32.totalorder %s41, 0
      %p275 = por %p273, %p274
      %s277 = sadd.s32 %s276, 1
      %p280 = scmp.eq.s32.totalorder %s35, 1
      %p281 = scmp.ne.s32.totalorder %s276, %s278
      %p282 = scmp.eq.s32.totalorder %s35, 0
      %p283 = por %p281, %p282
      %p284 = scmp.ne.s32.totalorder %s276, %s278
      %p285 = scmp.eq.s32.totalorder %s40, 1
      %p286 = por %p284, %p285
      %p287 = scmp.ne.s32.totalorder %s278, %s279
      %p288 = scmp.eq.s32.totalorder %s40, 0
      %p289 = por %p287, %p288
      %p290 = scmp.ne.s32.totalorder %s278, %s279
      %p291 = scmp.eq.s32.totalorder %s41, 1
      %p292 = por %p290, %p291
      %p294 = scmp.ne.s32.totalorder %s279, %s293
      %p295 = scmp.eq.s32.totalorder %s41, 0
      %p296 = por %p294, %p295
      %s297 = ssub.s32 %s42, %s54
      %s298 = ssub.s32 %s43, %s50
      %s299 = sor.u32 %s297, %s298
      %p300 = scmp.eq.s32.totalorder %s299, 0
      %s302 = sadd.s32 %s301, 1
      %s303 = scalar_select %p300, %s301, %s302
      %p306 = pneg %p300
      %p307 = scmp.eq.s32.totalorder %s35, 1
      %p308 = por %p306, %p307
      %p309 = scmp.ne.s32.totalorder %s301, %s304
      %p310 = scmp.eq.s32.totalorder %s35, 0
      %p311 = por %p309, %p310
      %p312 = scmp.ne.s32.totalorder %s301, %s304
      %p313 = scmp.eq.s32.totalorder %s40, 1
      %p314 = por %p312, %p313
      %p315 = scmp.ne.s32.totalorder %s304, %s305
      %p316 = scmp.eq.s32.totalorder %s40, 0
      %p317 = por %p315, %p316
      %p318 = scmp.ne.s32.totalorder %s304, %s305
      %p319 = scmp.eq.s32.totalorder %s41, 1
      %p320 = por %p318, %p319
      %p322 = scmp.ne.s32.totalorder %s305, %s321
      %p323 = scmp.eq.s32.totalorder %s41, 0
      %p324 = por %p322, %p323
      %s325 = ssub.s32 %s42, %s54
      %s326 = ssub.s32 %s43, %s50
      %s327 = sor.u32 %s325, %s326
      %p328 = scmp.eq.s32.totalorder %s327, 0
      %s330 = sadd.s32 %s329, 1
      %s331 = scalar_select %p328, %s329, %s330
      %p334 = pneg %p328
      %p335 = scmp.eq.s32.totalorder %s35, 1
      %p336 = por %p334, %p335
      %p337 = scmp.ne.s32.totalorder %s329, %s332
      %p338 = scmp.eq.s32.totalorder %s35, 0
      %p339 = por %p337, %p338
      %p340 = scmp.ne.s32.totalorder %s329, %s332
      %p341 = scmp.eq.s32.totalorder %s40, 1
      %p342 = por %p340, %p341
      %p343 = scmp.ne.s32.totalorder %s332, %s333
      %p344 = scmp.eq.s32.totalorder %s40, 0
      %p345 = por %p343, %p344
      %p346 = scmp.ne.s32.totalorder %s332, %s333
      %p347 = scmp.eq.s32.totalorder %s41, 1
      %p348 = por %p346, %p347
      %p350 = scmp.ne.s32.totalorder %s333, %s349
      %p351 = scmp.eq.s32.totalorder %s41, 0
      %p352 = por %p350, %p351
      %p353 = scmp.le.s32.totalorder 1, %s35
      %p354 = scmp.lt.s32.totalorder %s35, 3
      %p355 = pnand %p353, %p354
      %p356 = pneg %p355
      // Predicated region
      $region9: #{upsample_bn_forward.2} parent=5 // pred_check
        _
      $region10: #{upsample_bn_forward.2} parent=5 // pred_check_branch
        %358 = sbr.rel (%p355) target = $region12
      $region11: #{upsample_bn_forward.2} parent=5 // pred_region
        %s359 = ssub.s32 %s35, 1
        // Predicated region
        $region13: #{upsample_bn_forward.2} parent=11 // pred_check
          %p360 = pneg %p268
        $region14: #{upsample_bn_forward.2} parent=11 // pred_check_branch
          %362 = sbr.rel (%p360) target = $region16
        $region15: #{upsample_bn_forward.2} parent=11 // pred_region
          %s364 = ssub.s32 320, 320
          %365 = vsyncadd [#allocation12], %s364
          %s366 = sshll.u32 [#allocation13], 4
          %s367 = int_to_ptr.vmem [resolvable:$true] %s366
          %372 = dma.hbm_to_vmem [thread:$0]  %s6, 320, %s367, [#allocation12], 64, 64, 4
        $region16: #{upsample_bn_forward.2} parent=11 // pred_fallthru
          _
        // Predicated region
        $region17: #{upsample_bn_forward.2} parent=11 // pred_check
          %p373 = pneg %p289
        $region18: #{upsample_bn_forward.2} parent=11 // pred_check_branch
          %375 = sbr.rel (%p373) target = $region20
        $region19: #{upsample_bn_forward.2} parent=11 // pred_region
          %s377 = ssub.s32 320, 320
          %378 = vsyncadd [#allocation15], %s377
          %s379 = sshll.u32 [#allocation14], 4
          %s380 = int_to_ptr.vmem [resolvable:$true] %s379
          %385 = dma.hbm_to_vmem [thread:$0]  %s7, 320, %s380, [#allocation15], 64, 64, 4
        $region20: #{upsample_bn_forward.2} parent=11 // pred_fallthru
          _
      $region12: #{upsample_bn_forward.2} parent=5 // pred_fallthru
        _
      %p386 = scmp.lt.s32.totalorder %s35, 2
      // Predicated region
      $region21: #{upsample_bn_forward.2} parent=5 // pred_check
        %p387 = pneg %p386
      $region22: #{upsample_bn_forward.2} parent=5 // pred_check_branch
        %389 = sbr.rel (%p387) target = $region24
      $region23: #{upsample_bn_forward.2} parent=5 // pred_region
        // Predicated region
        $region25: #{upsample_bn_forward.2} parent=23 // pred_check
          %p390 = pneg %p77
        $region26: #{upsample_bn_forward.2} parent=23 // pred_check_branch
          %392 = sbr.rel (%p390) target = $region28
        $region27: #{upsample_bn_forward.2} parent=23 // pred_region
          %s393 = sand.u32 %s67, 1
          %s394 = scalar_lea.sflag [#allocation3], %s393
          %s395 = sand.u32 %s67, 1
          %s396 = smul.addr %s395, 8
          %s397 = scalar_lea.vmem [#allocation2], %s396
          %s398 = smul.u32 %s43, 16
          %s399 = ssub.s32 %s398, 1
          %p400 = scmp.gt.s32.totalorder %s399, 0
          %s401 = scalar_select %p400, %s399, 0
          %s403 = ssub.s32 128, 128
          %404 = vsyncadd %s394, %s403
          %s405 = smul.addr %s401, 2
          %s406 = smul.addr %s42, 32
          %s407 = sadd.s32 %s405, %s406
          %s408 = smul.addr %s407, 64
          %s409 = scalar_lea.hbm %s0, %s408
          %s410 = sshll.u32 %s397, 4
          %s411 = int_to_ptr.vmem [resolvable:$true] %s410
          %416 = dma.hbm_to_vmem [thread:$0]  %s409, 128, %s411, %s394, 64, 64, 4
        $region28: #{upsample_bn_forward.2} parent=23 // pred_fallthru
          _
        // Predicated region
        $region29: #{upsample_bn_forward.2} parent=23 // pred_check
          %p417 = pneg %p105
        $region30: #{upsample_bn_forward.2} parent=23 // pred_check_branch
          %419 = sbr.rel (%p417) target = $region32
        $region31: #{upsample_bn_forward.2} parent=23 // pred_region
          %s420 = sand.u32 %s35, 1
          %s421 = scalar_lea.sflag [#allocation6], %s420
          %s422 = sand.u32 %s95, 1
          %s423 = smul.addr %s422, 128
          %s424 = scalar_lea.vmem [#allocation5], %s423
          %s425 = smul.u32 16, %s43
          %s427 = ssub.s32 2048, 2048
          %428 = vsyncadd %s421, %s427
          %s429 = smul.addr %s425, 2
          %s430 = smul.addr %s42, 32
          %s431 = sadd.s32 %s429, %s430
          %s432 = smul.addr %s431, 64
          %s433 = scalar_lea.hbm %s1, %s432
          %s434 = sshll.u32 %s424, 4
          %s435 = int_to_ptr.vmem [resolvable:$true] %s434
          %440 = dma.hbm_to_vmem [thread:$0]  %s433, 2048, %s435, %s421, 64, 64, 4
        $region32: #{upsample_bn_forward.2} parent=23 // pred_fallthru
          _
        // Predicated region
        $region33: #{upsample_bn_forward.2} parent=23 // pred_check
          %p441 = pneg %p141
        $region34: #{upsample_bn_forward.2} parent=23 // pred_check_branch
          %443 = sbr.rel (%p441) target = $region36
        $region35: #{upsample_bn_forward.2} parent=23 // pred_region
          %s444 = sand.u32 %s35, 1
          %s445 = scalar_lea.sflag [#allocation6], %s444
          %s446 = sand.u32 %s131, 1
          %s447 = smul.addr %s446, 8
          %s448 = scalar_lea.vmem [#allocation7], %s447
          %s449 = smul.u32 %s43, 16
          %s450 = sadd.s32 %s449, 16
          %p451 = scmp.lt.s32.totalorder %s450, 15
          %s452 = scalar_select %p451, %s450, 15
          %s454 = ssub.s32 128, 128
          %455 = vsyncadd %s445, %s454
          %s456 = smul.addr %s452, 2
          %s457 = smul.addr %s42, 32
          %s458 = sadd.s32 %s456, %s457
          %s459 = smul.addr %s458, 64
          %s460 = scalar_lea.hbm %s2, %s459
          %s461 = sshll.u32 %s448, 4
          %s462 = int_to_ptr.vmem [resolvable:$true] %s461
          %467 = dma.hbm_to_vmem [thread:$0]  %s460, 128, %s462, %s445, 64, 64, 4
        $region36: #{upsample_bn_forward.2} parent=23 // pred_fallthru
          _
        // Predicated region
        $region37: #{upsample_bn_forward.2} parent=23 // pred_check
          %p468 = pneg %p177
        $region38: #{upsample_bn_forward.2} parent=23 // pred_check_branch
          %470 = sbr.rel (%p468) target = $region40
        $region39: #{upsample_bn_forward.2} parent=23 // pred_region
          %s471 = sand.u32 %s35, 1
          %s472 = scalar_lea.sflag [#allocation9], %s471
          %s473 = sand.u32 %s167, 1
          %s474 = smul.addr %s473, 8
          %s475 = scalar_lea.vmem [#allocation8], %s474
          %s476 = smul.u32 %s43, 16
          %s477 = ssub.s32 %s476, 1
          %p478 = scmp.gt.s32.totalorder %s477, 0
          %s479 = scalar_select %p478, %s477, 0
          %s481 = ssub.s32 128, 128
          %482 = vsyncadd %s472, %s481
          %s483 = smul.addr %s479, 2
          %s484 = smul.addr %s42, 32
          %s485 = sadd.s32 %s483, %s484
          %s486 = smul.addr %s485, 64
          %s487 = scalar_lea.hbm %s3, %s486
          %s488 = sshll.u32 %s475, 4
          %s489 = int_to_ptr.vmem [resolvable:$true] %s488
          %494 = dma.hbm_to_vmem [thread:$0]  %s487, 128, %s489, %s472, 64, 64, 4
        $region40: #{upsample_bn_forward.2} parent=23 // pred_fallthru
          _
        // Predicated region
        $region41: #{upsample_bn_forward.2} parent=23 // pred_check
          %p495 = pneg %p205
        $region42: #{upsample_bn_forward.2} parent=23 // pred_check_branch
          %497 = sbr.rel (%p495) target = $region44
        $region43: #{upsample_bn_forward.2} parent=23 // pred_region
          %s498 = sand.u32 %s35, 1
          %s499 = scalar_lea.sflag [#allocation9], %s498
          %s500 = sand.u32 %s195, 1
          %s501 = smul.addr %s500, 128
          %s502 = scalar_lea.vmem [#allocation10], %s501
          %s503 = smul.u32 16, %s43
          %s505 = ssub.s32 2048, 2048
          %506 = vsyncadd %s499, %s505
          %s507 = smul.addr %s503, 2
          %s508 = smul.addr %s42, 32
          %s509 = sadd.s32 %s507, %s508
          %s510 = smul.addr %s509, 64
          %s511 = scalar_lea.hbm %s4, %s510
          %s512 = sshll.u32 %s502, 4
          %s513 = int_to_ptr.vmem [resolvable:$true] %s512
          %518 = dma.hbm_to_vmem [thread:$0]  %s511, 2048, %s513, %s499, 64, 64, 4
        $region44: #{upsample_bn_forward.2} parent=23 // pred_fallthru
          _
        // Predicated region
        $region45: #{upsample_bn_forward.2} parent=23 // pred_check
          %p519 = pneg %p241
        $region46: #{upsample_bn_forward.2} parent=23 // pred_check_branch
          %521 = sbr.rel (%p519) target = $region48
        $region47: #{upsample_bn_forward.2} parent=23 // pred_region
          %s522 = sand.u32 %s35, 1
          %s523 = scalar_lea.sflag [#allocation12], %s522
          %s524 = sand.u32 %s231, 1
          %s525 = smul.addr %s524, 8
          %s526 = scalar_lea.vmem [#allocation11], %s525
          %s527 = smul.u32 %s43, 16
          %s528 = sadd.s32 %s527, 16
          %p529 = scmp.lt.s32.totalorder %s528, 15
          %s530 = scalar_select %p529, %s528, 15
          %s532 = ssub.s32 128, 128
          %533 = vsyncadd %s523, %s532
          %s534 = smul.addr %s530, 2
          %s535 = smul.addr %s42, 32
          %s536 = sadd.s32 %s534, %s535
          %s537 = smul.addr %s536, 64
          %s538 = scalar_lea.hbm %s5, %s537
          %s539 = sshll.u32 %s526, 4
          %s540 = int_to_ptr.vmem [resolvable:$true] %s539
          %545 = dma.hbm_to_vmem [thread:$0]  %s538, 128, %s540, %s523, 64, 64, 4
        $region48: #{upsample_bn_forward.2} parent=23 // pred_fallthru
          _
      $region24: #{upsample_bn_forward.2} parent=5 // pred_fallthru
        _
      %p546 = scmp.le.s32.totalorder 1, %s35
      %p547 = scmp.lt.s32.totalorder %s35, 3
      %p548 = pnand %p546, %p547
      %p549 = pneg %p548
      // Predicated region
      $region49: #{upsample_bn_forward.2} parent=5 // pred_check
        _
      $region50: #{upsample_bn_forward.2} parent=5 // pred_check_branch
        %551 = sbr.rel (%p548) target = $region52
      $region51: #{upsample_bn_forward.2} parent=5 // pred_region
        %s552 = ssub.s32 %s35, 1
        %s553 = sand.u32 %s70, 1
        %s554 = scalar_lea.sflag [#allocation3], %s553
        %s555 = sand.u32 %s70, 1
        %s556 = smul.addr %s555, 8
        %s557 = scalar_lea.vmem [#allocation2], %s556
        // Predicated region
        $region53: #{upsample_bn_forward.2} parent=51 // pred_check
          %p558 = pneg %p83
        $region54: #{upsample_bn_forward.2} parent=51 // pred_check_branch
          %560 = sbr.rel (%p558) target = $region56
        $region55: #{upsample_bn_forward.2} parent=51 // pred_region
          %561 = dma.done %s554, 128
        $region56: #{upsample_bn_forward.2} parent=51 // pred_fallthru
          _
        %s562 = sand.u32 %s40, 1
        %s563 = scalar_lea.sflag [#allocation6], %s562
        %s564 = sand.u32 %s98, 1
        %s565 = smul.addr %s564, 128
        %s566 = scalar_lea.vmem [#allocation5], %s565
        // Predicated region
        $region57: #{upsample_bn_forward.2} parent=51 // pred_check
          %p567 = pneg %p111
        $region58: #{upsample_bn_forward.2} parent=51 // pred_check_branch
          %569 = sbr.rel (%p567) target = $region60
        $region59: #{upsample_bn_forward.2} parent=51 // pred_region
          %570 = dma.done %s563, 2048
        $region60: #{upsample_bn_forward.2} parent=51 // pred_fallthru
          _
        %s571 = sand.u32 %s40, 1
        %s572 = scalar_lea.sflag [#allocation6], %s571
        %s573 = sand.u32 %s134, 1
        %s574 = smul.addr %s573, 8
        %s575 = scalar_lea.vmem [#allocation7], %s574
        // Predicated region
        $region61: #{upsample_bn_forward.2} parent=51 // pred_check
          %p576 = pneg %p147
        $region62: #{upsample_bn_forward.2} parent=51 // pred_check_branch
          %578 = sbr.rel (%p576) target = $region64
        $region63: #{upsample_bn_forward.2} parent=51 // pred_region
          %579 = dma.done %s572, 128
        $region64: #{upsample_bn_forward.2} parent=51 // pred_fallthru
          _
        %s580 = sand.u32 %s40, 1
        %s581 = scalar_lea.sflag [#allocation9], %s580
        %s582 = sand.u32 %s170, 1
        %s583 = smul.addr %s582, 8
        %s584 = scalar_lea.vmem [#allocation8], %s583
        // Predicated region
        $region65: #{upsample_bn_forward.2} parent=51 // pred_check
          %p585 = pneg %p183
        $region66: #{upsample_bn_forward.2} parent=51 // pred_check_branch
          %587 = sbr.rel (%p585) target = $region68
        $region67: #{upsample_bn_forward.2} parent=51 // pred_region
          %588 = dma.done %s581, 128
        $region68: #{upsample_bn_forward.2} parent=51 // pred_fallthru
          _
        %s589 = sand.u32 %s40, 1
        %s590 = scalar_lea.sflag [#allocation9], %s589
        %s591 = sand.u32 %s198, 1
        %s592 = smul.addr %s591, 128
        %s593 = scalar_lea.vmem [#allocation10], %s592
        // Predicated region
        $region69: #{upsample_bn_forward.2} parent=51 // pred_check
          %p594 = pneg %p211
        $region70: #{upsample_bn_forward.2} parent=51 // pred_check_branch
          %596 = sbr.rel (%p594) target = $region72
        $region71: #{upsample_bn_forward.2} parent=51 // pred_region
          %597 = dma.done %s590, 2048
        $region72: #{upsample_bn_forward.2} parent=51 // pred_fallthru
          _
        %s598 = sand.u32 %s40, 1
        %s599 = scalar_lea.sflag [#allocation12], %s598
        %s600 = sand.u32 %s234, 1
        %s601 = smul.addr %s600, 8
        %s602 = scalar_lea.vmem [#allocation11], %s601
        // Predicated region
        $region73: #{upsample_bn_forward.2} parent=51 // pred_check
          %p603 = pneg %p247
        $region74: #{upsample_bn_forward.2} parent=51 // pred_check_branch
          %605 = sbr.rel (%p603) target = $region76
        $region75: #{upsample_bn_forward.2} parent=51 // pred_region
          %606 = dma.done %s599, 128
        $region76: #{upsample_bn_forward.2} parent=51 // pred_fallthru
          _
        // Predicated region
        $region77: #{upsample_bn_forward.2} parent=51 // pred_check
          %p607 = pneg %p268
        $region78: #{upsample_bn_forward.2} parent=51 // pred_check_branch
          %609 = sbr.rel (%p607) target = $region80
        $region79: #{upsample_bn_forward.2} parent=51 // pred_region
          %610 = dma.done [#allocation12], 320
        $region80: #{upsample_bn_forward.2} parent=51 // pred_fallthru
          _
        // Predicated region
        $region81: #{upsample_bn_forward.2} parent=51 // pred_check
          %p611 = pneg %p289
        $region82: #{upsample_bn_forward.2} parent=51 // pred_check_branch
          %613 = sbr.rel (%p611) target = $region84
        $region83: #{upsample_bn_forward.2} parent=51 // pred_region
          %614 = dma.done [#allocation15], 320
        $region84: #{upsample_bn_forward.2} parent=51 // pred_fallthru
          _
        %s615 = sand.u32 %s70, 1
        %s616 = scalar_lea.sflag [#allocation3], %s615
        %s617 = sand.u32 %s70, 1
        %s618 = smul.addr %s617, 8
        %s619 = scalar_lea.vmem [#allocation2], %s618
        %p620 = pneg %p83
        %p621 = pneg %p80
        %s622 = sand.u32 %s40, 1
        %s623 = scalar_lea.sflag [#allocation6], %s622
        %s624 = sand.u32 %s98, 1
        %s625 = smul.addr %s624, 128
        %s626 = scalar_lea.vmem [#allocation5], %s625
        %p627 = pneg %p111
        %p628 = pneg %p108
        %s629 = sand.u32 %s40, 1
        %s630 = scalar_lea.sflag [#allocation6], %s629
        %s631 = sand.u32 %s134, 1
        %s632 = smul.addr %s631, 8
        %s633 = scalar_lea.vmem [#allocation7], %s632
        %p634 = pneg %p147
        %p635 = pneg %p144
        %s636 = sand.u32 %s40, 1
        %s637 = scalar_lea.sflag [#allocation9], %s636
        %s638 = sand.u32 %s170, 1
        %s639 = smul.addr %s638, 8
        %s640 = scalar_lea.vmem [#allocation8], %s639
        %p641 = pneg %p183
        %p642 = pneg %p180
        %s643 = sand.u32 %s40, 1
        %s644 = scalar_lea.sflag [#allocation9], %s643
        %s645 = sand.u32 %s198, 1
        %s646 = smul.addr %s645, 128
        %s647 = scalar_lea.vmem [#allocation10], %s646
        %p648 = pneg %p211
        %p649 = pneg %p208
        %s650 = sand.u32 %s40, 1
        %s651 = scalar_lea.sflag [#allocation12], %s650
        %s652 = sand.u32 %s234, 1
        %s653 = smul.addr %s652, 8
        %s654 = scalar_lea.vmem [#allocation11], %s653
        %p655 = pneg %p247
        %p656 = pneg %p244
        %p657 = pneg %p268
        %p658 = pneg %p265
        %p659 = pneg %p289
        %p660 = pneg %p286
        %p661 = pneg %p317
        %p662 = pneg %p314
        %s663 = sand.u32 %s304, 1
        %s664 = scalar_lea.sflag [#allocation4], %s663
        %s665 = sand.u32 %s304, 1
        %s666 = smul.addr %s665, 128
        %s667 = scalar_lea.vmem [#allocation16], %s666
        %p668 = pneg %p345
        %p669 = pneg %p342
        %s670 = sand.u32 %s332, 1
        %s671 = scalar_lea.sflag [#allocation18], %s670
        %s672 = sand.u32 %s332, 1
        %s673 = smul.addr %s672, 2
        %s674 = scalar_lea.vmem [#allocation17], %s673
        %s675 = smul.u32 %s45, 16
        %s676 = ssub.s32 %s675, 1
        %p677 = scmp.gt.s32.totalorder %s676, 0
        %s678 = scalar_select %p677, %s676, 0
        %s679 = smul.u32 16, %s45
        %s680 = smul.u32 %s45, 16
        %s681 = sadd.s32 %s680, 16
        %p682 = scmp.lt.s32.totalorder %s681, 15
        %s683 = scalar_select %p682, %s681, 15
        %s684 = smul.u32 %s45, 16
        %s685 = ssub.s32 %s684, 1
        %p686 = scmp.gt.s32.totalorder %s685, 0
        %s687 = scalar_select %p686, %s685, 0
        %s688 = smul.u32 16, %s45
        %s689 = smul.u32 %s45, 16
        %s690 = sadd.s32 %s689, 16
        %p691 = scmp.lt.s32.totalorder %s690, 15
        %s692 = scalar_select %p691, %s690, 15
        %s693 = smul.u32 16, %s45
        %v695 = vld [vmem:[%s557] sm:$0xf]
        %v696 = vld [vmem:[%s557 + $0x4] sm:$0xf]
        %v697 = vld [vmem:[%s566] sm:$0xf]
        %v698 = vld [vmem:[%s566 + $0x4] sm:$0xf]
        %v699 = vld [vmem:[%s566 + $0x8] sm:$0xf]
        %v700 = vld [vmem:[%s566 + $0xc] sm:$0xf]
        %v701 = vld [vmem:[%s566 + $0x10] sm:$0xf]
        %v702 = vld [vmem:[%s566 + $0x14] sm:$0xf]
        %v703 = vld [vmem:[%s566 + $0x18] sm:$0xf]
        %v704 = vld [vmem:[%s566 + $0x1c] sm:$0xf]
        %v705 = vld [vmem:[%s566 + $0x20] sm:$0xf]
        %v706 = vld [vmem:[%s566 + $0x24] sm:$0xf]
        %v707 = vld [vmem:[%s566 + $0x28] sm:$0xf]
        %v708 = vld [vmem:[%s566 + $0x2c] sm:$0xf]
        %v709 = vld [vmem:[%s566 + $0x30] sm:$0xf]
        %v710 = vld [vmem:[%s566 + $0x34] sm:$0xf]
        %v711 = vld [vmem:[%s566 + $0x38] sm:$0xf]
        %v712 = vld [vmem:[%s566 + $0x3c] sm:$0xf]
        %v713 = vld [vmem:[%s566 + $0x40] sm:$0xf]
        %v714 = vld [vmem:[%s566 + $0x44] sm:$0xf]
        %v715 = vld [vmem:[%s566 + $0x48] sm:$0xf]
        %v716 = vld [vmem:[%s566 + $0x4c] sm:$0xf]
        %v717 = vld [vmem:[%s566 + $0x50] sm:$0xf]
        %v718 = vld [vmem:[%s566 + $0x54] sm:$0xf]
        %v719 = vld [vmem:[%s566 + $0x58] sm:$0xf]
        %v720 = vld [vmem:[%s566 + $0x5c] sm:$0xf]
        %v721 = vld [vmem:[%s566 + $0x60] sm:$0xf]
        %v722 = vld [vmem:[%s566 + $0x64] sm:$0xf]
        %v723 = vld [vmem:[%s566 + $0x68] sm:$0xf]
        %v724 = vld [vmem:[%s566 + $0x6c] sm:$0xf]
        %v725 = vld [vmem:[%s566 + $0x70] sm:$0xf]
        %v726 = vld [vmem:[%s566 + $0x74] sm:$0xf]
        %v727 = vld [vmem:[%s566 + $0x78] sm:$0xf]
        %v728 = vld [vmem:[%s566 + $0x7c] sm:$0xf]
        %v729 = vld [vmem:[%s575] sm:$0xf]
        %v730 = vld [vmem:[%s575 + $0x4] sm:$0xf]
        %p731 = scmp.eq.s32.totalorder %s45, 0
        %s732 = scalar_select %p731, 1, 0
        %v733 = vstv %s732
        %vm734 = vcmp.eq.s32.totalorder %v733, 1
        %v735 = vsel %vm734, 0, %v695
        %v736 = vsel %vm734, 0, %v696
        %v737 = vsel %vm734, 0, %v729
        %v738 = vsel %vm734, 0, %v730
        %v739 = vld [vmem:[%s584] sm:$0xf]
        %v740 = vld [vmem:[%s584 + $0x4] sm:$0xf]
        %v741 = vld [vmem:[%s593] sm:$0xf]
        %v742 = vld [vmem:[%s593 + $0x4] sm:$0xf]
        %v743 = vld [vmem:[%s593 + $0x8] sm:$0xf]
        %v744 = vld [vmem:[%s593 + $0xc] sm:$0xf]
        %v745 = vld [vmem:[%s593 + $0x10] sm:$0xf]
        %v746 = vld [vmem:[%s593 + $0x14] sm:$0xf]
        %v747 = vld [vmem:[%s593 + $0x18] sm:$0xf]
        %v748 = vld [vmem:[%s593 + $0x1c] sm:$0xf]
        %v749 = vld [vmem:[%s593 + $0x20] sm:$0xf]
        %v750 = vld [vmem:[%s593 + $0x24] sm:$0xf]
        %v751 = vld [vmem:[%s593 + $0x28] sm:$0xf]
        %v752 = vld [vmem:[%s593 + $0x2c] sm:$0xf]
        %v753 = vld [vmem:[%s593 + $0x30] sm:$0xf]
        %v754 = vld [vmem:[%s593 + $0x34] sm:$0xf]
        %v755 = vld [vmem:[%s593 + $0x38] sm:$0xf]
        %v756 = vld [vmem:[%s593 + $0x3c] sm:$0xf]
        %v757 = vld [vmem:[%s593 + $0x40] sm:$0xf]
        %v758 = vld [vmem:[%s593 + $0x44] sm:$0xf]
        %v759 = vld [vmem:[%s593 + $0x48] sm:$0xf]
        %v760 = vld [vmem:[%s593 + $0x4c] sm:$0xf]
        %v761 = vld [vmem:[%s593 + $0x50] sm:$0xf]
        %v762 = vld [vmem:[%s593 + $0x54] sm:$0xf]
        %v763 = vld [vmem:[%s593 + $0x58] sm:$0xf]
        %v764 = vld [vmem:[%s593 + $0x5c] sm:$0xf]
        %v765 = vld [vmem:[%s593 + $0x60] sm:$0xf]
        %v766 = vld [vmem:[%s593 + $0x64] sm:$0xf]
        %v767 = vld [vmem:[%s593 + $0x68] sm:$0xf]
        %v768 = vld [vmem:[%s593 + $0x6c] sm:$0xf]
        %v769 = vld [vmem:[%s593 + $0x70] sm:$0xf]
        %v770 = vld [vmem:[%s593 + $0x74] sm:$0xf]
        %v771 = vld [vmem:[%s593 + $0x78] sm:$0xf]
        %v772 = vld [vmem:[%s593 + $0x7c] sm:$0xf]
        %v773 = vld [vmem:[%s602] sm:$0xf]
        %v774 = vld [vmem:[%s602 + $0x4] sm:$0xf]
        %v775 = vsel %vm734, 0, %v739
        %v776 = vsel %vm734, 0, %v740
        %v777 = vsel %vm734, 0, %v773
        %v778 = vsel %vm734, 0, %v774
        %v815 = vunpack.c.l.b16 %v735
        %v816 = vunpack.c.l.b16 %v736
        %v817 = vunpack.c.l.b16 %v697
        %v818 = vunpack.c.l.b16 %v698
        %v819 = vunpack.c.l.b16 %v699
        %v820 = vunpack.c.l.b16 %v700
        %v821 = vunpack.c.l.b16 %v701
        %v822 = vunpack.c.l.b16 %v702
        %v823 = vunpack.c.l.b16 %v703
        %v824 = vunpack.c.l.b16 %v704
        %v825 = vunpack.c.l.b16 %v705
        %v826 = vunpack.c.l.b16 %v706
        %v827 = vunpack.c.l.b16 %v707
        %v828 = vunpack.c.l.b16 %v708
        %v829 = vunpack.c.l.b16 %v709
        %v830 = vunpack.c.l.b16 %v710
        %v831 = vunpack.c.l.b16 %v711
        %v832 = vunpack.c.l.b16 %v712
        %v833 = vunpack.c.l.b16 %v713
        %v834 = vunpack.c.l.b16 %v714
        %v835 = vunpack.c.l.b16 %v715
        %v836 = vunpack.c.l.b16 %v716
        %v837 = vunpack.c.l.b16 %v717
        %v838 = vunpack.c.l.b16 %v718
        %v839 = vunpack.c.l.b16 %v719
        %v840 = vunpack.c.l.b16 %v720
        %v841 = vunpack.c.l.b16 %v721
        %v842 = vunpack.c.l.b16 %v722
        %v843 = vunpack.c.l.b16 %v723
        %v844 = vunpack.c.l.b16 %v724
        %v845 = vunpack.c.l.b16 %v725
        %v846 = vunpack.c.l.b16 %v726
        %v847 = vunpack.c.l.b16 %v727
        %v848 = vunpack.c.l.b16 %v728
        %v849 = vunpack.c.l.b16 %v737
        %v850 = vunpack.c.l.b16 %v738
        %v851 = vpack.c.b16 %v816, %v815
        %v852 = vpack.c.b16 %v818, %v817
        %v853 = vpack.c.b16 %v820, %v819
        %v854 = vpack.c.b16 %v822, %v821
        %v855 = vpack.c.b16 %v824, %v823
        %v856 = vpack.c.b16 %v826, %v825
        %v857 = vpack.c.b16 %v828, %v827
        %v858 = vpack.c.b16 %v830, %v829
        %v859 = vpack.c.b16 %v832, %v831
        %v860 = vpack.c.b16 %v834, %v833
        %v861 = vpack.c.b16 %v836, %v835
        %v862 = vpack.c.b16 %v838, %v837
        %v863 = vpack.c.b16 %v840, %v839
        %v864 = vpack.c.b16 %v842, %v841
        %v865 = vpack.c.b16 %v844, %v843
        %v866 = vpack.c.b16 %v846, %v845
        %v867 = vpack.c.b16 %v848, %v847
        %v868 = vpack.c.b16 %v850, %v849
        %v870 = vshrl.u32 %v851, 16
        %v872 = vrot.slane %v870, 7
        %v873 = vshll.u32 %v851, 16
        %v875 = vor.u32 %v872, %v873
        %v877 = vshrl.u32 %v852, 16
        %v879 = vrot.slane %v877, 7
        %v880 = vshll.u32 %v852, 16
        %v882 = vor.u32 %v879, %v880
        %v884 = vshrl.u32 %v853, 16
        %v886 = vrot.slane %v884, 7
        %v887 = vshll.u32 %v853, 16
        %v889 = vor.u32 %v886, %v887
        %v891 = vshrl.u32 %v854, 16
        %v893 = vrot.slane %v891, 7
        %v894 = vshll.u32 %v854, 16
        %v896 = vor.u32 %v893, %v894
        %v898 = vshrl.u32 %v855, 16
        %v900 = vrot.slane %v898, 7
        %v901 = vshll.u32 %v855, 16
        %v903 = vor.u32 %v900, %v901
        %v905 = vshrl.u32 %v856, 16
        %v907 = vrot.slane %v905, 7
        %v908 = vshll.u32 %v856, 16
        %v910 = vor.u32 %v907, %v908
        %v912 = vshrl.u32 %v857, 16
        %v914 = vrot.slane %v912, 7
        %v915 = vshll.u32 %v857, 16
        %v917 = vor.u32 %v914, %v915
        %v919 = vshrl.u32 %v858, 16
        %v921 = vrot.slane %v919, 7
        %v922 = vshll.u32 %v858, 16
        %v924 = vor.u32 %v921, %v922
        %v926 = vshrl.u32 %v859, 16
        %v928 = vrot.slane %v926, 7
        %v929 = vshll.u32 %v859, 16
        %v931 = vor.u32 %v928, %v929
        %v933 = vshrl.u32 %v860, 16
        %v935 = vrot.slane %v933, 7
        %v936 = vshll.u32 %v860, 16
        %v938 = vor.u32 %v935, %v936
        %v940 = vshrl.u32 %v861, 16
        %v942 = vrot.slane %v940, 7
        %v943 = vshll.u32 %v861, 16
        %v945 = vor.u32 %v942, %v943
        %v947 = vshrl.u32 %v862, 16
        %v949 = vrot.slane %v947, 7
        %v950 = vshll.u32 %v862, 16
        %v952 = vor.u32 %v949, %v950
        %v954 = vshrl.u32 %v863, 16
        %v956 = vrot.slane %v954, 7
        %v957 = vshll.u32 %v863, 16
        %v959 = vor.u32 %v956, %v957
        %v961 = vshrl.u32 %v864, 16
        %v963 = vrot.slane %v961, 7
        %v964 = vshll.u32 %v864, 16
        %v966 = vor.u32 %v963, %v964
        %v968 = vshrl.u32 %v865, 16
        %v970 = vrot.slane %v968, 7
        %v971 = vshll.u32 %v865, 16
        %v973 = vor.u32 %v970, %v971
        %v975 = vshrl.u32 %v866, 16
        %v977 = vrot.slane %v975, 7
        %v978 = vshll.u32 %v866, 16
        %v980 = vor.u32 %v977, %v978
        %v982 = vshrl.u32 %v867, 16
        %v984 = vrot.slane %v982, 7
        %v985 = vshll.u32 %v867, 16
        %v987 = vor.u32 %v984, %v985
        %v989 = vshrl.u32 %v868, 16
        %v991 = vrot.slane %v989, 7
        %v992 = vshll.u32 %v868, 16
        %v994 = vor.u32 %v991, %v992
        %vm1031 = vcmask 1040384
        %vm1032 = vsmask.f32 256
        %vm1033 = vmand %vm1031, %vm1032
        %v1034 = vsel %vm1033, 0, %v875
        %v1035 = vsel %vm1033, 0, %v882
        %v1036 = vsel %vm1033, 0, %v889
        %v1037 = vsel %vm1033, 0, %v896
        %v1038 = vsel %vm1033, 0, %v903
        %v1039 = vsel %vm1033, 0, %v910
        %v1040 = vsel %vm1033, 0, %v917
        %v1041 = vsel %vm1033, 0, %v924
        %v1042 = vsel %vm1033, 0, %v931
        %v1043 = vsel %vm1033, 0, %v938
        %v1044 = vsel %vm1033, 0, %v945
        %v1045 = vsel %vm1033, 0, %v952
        %v1046 = vsel %vm1033, 0, %v959
        %v1047 = vsel %vm1033, 0, %v966
        %v1048 = vsel %vm1033, 0, %v973
        %v1049 = vsel %vm1033, 0, %v980
        %v1050 = vsel %vm1033, 0, %v987
        %v1051 = vsel %vm1033, 0, %v994
        %v1052 = vsel %vm1033, %v872, 0
        %v1053 = vsel %vm1033, %v879, 0
        %v1054 = vsel %vm1033, %v886, 0
        %v1055 = vsel %vm1033, %v893, 0
        %v1056 = vsel %vm1033, %v900, 0
        %v1057 = vsel %vm1033, %v907, 0
        %v1058 = vsel %vm1033, %v914, 0
        %v1059 = vsel %vm1033, %v921, 0
        %v1060 = vsel %vm1033, %v928, 0
        %v1061 = vsel %vm1033, %v935, 0
        %v1062 = vsel %vm1033, %v942, 0
        %v1063 = vsel %vm1033, %v949, 0
        %v1064 = vsel %vm1033, %v956, 0
        %v1065 = vsel %vm1033, %v963, 0
        %v1066 = vsel %vm1033, %v970, 0
        %v1067 = vsel %vm1033, %v977, 0
        %v1068 = vsel %vm1033, %v984, 0
        %v1069 = vsel %vm1033, %v991, 0
        %vm1070 = vsmask.f32 7424
        %v1072 = vshrl.u32 %v1034, 16
        %v1074 = vshll.u32 %v1034, 16
        %v1076 = vrot.slane %v1074, 1
        %v1077 = vor.u32 %v1072, %v1076
        %v1079 = vshll.u32 %v1052, 16
        %v1081 = vrot.slane %v1079, 1
        %v1082 = vsel %vm1070, %v1077, %v1081
        %v1084 = vshrl.u32 %v1035, 16
        %v1086 = vshll.u32 %v1035, 16
        %v1088 = vrot.slane %v1086, 1
        %v1089 = vor.u32 %v1084, %v1088
        %v1091 = vshll.u32 %v1053, 16
        %v1093 = vrot.slane %v1091, 1
        %v1094 = vsel %vm1070, %v1089, %v1093
        %v1096 = vshrl.u32 %v1036, 16
        %v1098 = vshll.u32 %v1036, 16
        %v1100 = vrot.slane %v1098, 1
        %v1101 = vor.u32 %v1096, %v1100
        %v1103 = vshll.u32 %v1054, 16
        %v1105 = vrot.slane %v1103, 1
        %v1106 = vsel %vm1070, %v1101, %v1105
        %v1108 = vshrl.u32 %v1037, 16
        %v1110 = vshll.u32 %v1037, 16
        %v1112 = vrot.slane %v1110, 1
        %v1113 = vor.u32 %v1108, %v1112
        %v1115 = vshll.u32 %v1055, 16
        %v1117 = vrot.slane %v1115, 1
        %v1118 = vsel %vm1070, %v1113, %v1117
        %v1120 = vshrl.u32 %v1038, 16
        %v1122 = vshll.u32 %v1038, 16
        %v1124 = vrot.slane %v1122, 1
        %v1125 = vor.u32 %v1120, %v1124
        %v1127 = vshll.u32 %v1056, 16
        %v1129 = vrot.slane %v1127, 1
        %v1130 = vsel %vm1070, %v1125, %v1129
        %v1132 = vshrl.u32 %v1039, 16
        %v1134 = vshll.u32 %v1039, 16
        %v1136 = vrot.slane %v1134, 1
        %v1137 = vor.u32 %v1132, %v1136
        %v1139 = vshll.u32 %v1057, 16
        %v1141 = vrot.slane %v1139, 1
        %v1142 = vsel %vm1070, %v1137, %v1141
        %v1144 = vshrl.u32 %v1040, 16
        %v1146 = vshll.u32 %v1040, 16
        %v1148 = vrot.slane %v1146, 1
        %v1149 = vor.u32 %v1144, %v1148
        %v1151 = vshll.u32 %v1058, 16
        %v1153 = vrot.slane %v1151, 1
        %v1154 = vsel %vm1070, %v1149, %v1153
        %v1156 = vshrl.u32 %v1041, 16
        %v1158 = vshll.u32 %v1041, 16
        %v1160 = vrot.slane %v1158, 1
        %v1161 = vor.u32 %v1156, %v1160
        %v1163 = vshll.u32 %v1059, 16
        %v1165 = vrot.slane %v1163, 1
        %v1166 = vsel %vm1070, %v1161, %v1165
        %v1168 = vshrl.u32 %v1042, 16
        %v1170 = vshll.u32 %v1042, 16
        %v1172 = vrot.slane %v1170, 1
        %v1173 = vor.u32 %v1168, %v1172
        %v1175 = vshll.u32 %v1060, 16
        %v1177 = vrot.slane %v1175, 1
        %v1178 = vsel %vm1070, %v1173, %v1177
        %v1180 = vshrl.u32 %v1043, 16
        %v1182 = vshll.u32 %v1043, 16
        %v1184 = vrot.slane %v1182, 1
        %v1185 = vor.u32 %v1180, %v1184
        %v1187 = vshll.u32 %v1061, 16
        %v1189 = vrot.slane %v1187, 1
        %v1190 = vsel %vm1070, %v1185, %v1189
        %v1192 = vshrl.u32 %v1044, 16
        %v1194 = vshll.u32 %v1044, 16
        %v1196 = vrot.slane %v1194, 1
        %v1197 = vor.u32 %v1192, %v1196
        %v1199 = vshll.u32 %v1062, 16
        %v1201 = vrot.slane %v1199, 1
        %v1202 = vsel %vm1070, %v1197, %v1201
        %v1204 = vshrl.u32 %v1045, 16
        %v1206 = vshll.u32 %v1045, 16
        %v1208 = vrot.slane %v1206, 1
        %v1209 = vor.u32 %v1204, %v1208
        %v1211 = vshll.u32 %v1063, 16
        %v1213 = vrot.slane %v1211, 1
        %v1214 = vsel %vm1070, %v1209, %v1213
        %v1216 = vshrl.u32 %v1046, 16
        %v1218 = vshll.u32 %v1046, 16
        %v1220 = vrot.slane %v1218, 1
        %v1221 = vor.u32 %v1216, %v1220
        %v1223 = vshll.u32 %v1064, 16
        %v1225 = vrot.slane %v1223, 1
        %v1226 = vsel %vm1070, %v1221, %v1225
        %v1228 = vshrl.u32 %v1047, 16
        %v1230 = vshll.u32 %v1047, 16
        %v1232 = vrot.slane %v1230, 1
        %v1233 = vor.u32 %v1228, %v1232
        %v1235 = vshll.u32 %v1065, 16
        %v1237 = vrot.slane %v1235, 1
        %v1238 = vsel %vm1070, %v1233, %v1237
        %v1240 = vshrl.u32 %v1048, 16
        %v1242 = vshll.u32 %v1048, 16
        %v1244 = vrot.slane %v1242, 1
        %v1245 = vor.u32 %v1240, %v1244
        %v1247 = vshll.u32 %v1066, 16
        %v1249 = vrot.slane %v1247, 1
        %v1250 = vsel %vm1070, %v1245, %v1249
        %v1252 = vshrl.u32 %v1049, 16
        %v1254 = vshll.u32 %v1049, 16
        %v1256 = vrot.slane %v1254, 1
        %v1257 = vor.u32 %v1252, %v1256
        %v1259 = vshll.u32 %v1067, 16
        %v1261 = vrot.slane %v1259, 1
        %v1262 = vsel %vm1070, %v1257, %v1261
        %vm1295 = vcmask 1046528
        %v1296 = vrot.slane %v1034, 1
        %v1297 = vrot.slane %v1052, 1
        %v1298 = vsel %vm1295, %v1296, %v1297
        %v1299 = vrot.slane %v1035, 1
        %v1300 = vrot.slane %v1053, 1
        %v1301 = vsel %vm1295, %v1299, %v1300
        %v1302 = vrot.slane %v1036, 1
        %v1303 = vrot.slane %v1054, 1
        %v1304 = vsel %vm1295, %v1302, %v1303
        %v1305 = vrot.slane %v1037, 1
        %v1306 = vrot.slane %v1055, 1
        %v1307 = vsel %vm1295, %v1305, %v1306
        %v1308 = vrot.slane %v1038, 1
        %v1309 = vrot.slane %v1056, 1
        %v1310 = vsel %vm1295, %v1308, %v1309
        %v1311 = vrot.slane %v1039, 1
        %v1312 = vrot.slane %v1057, 1
        %v1313 = vsel %vm1295, %v1311, %v1312
        %v1314 = vrot.slane %v1040, 1
        %v1315 = vrot.slane %v1058, 1
        %v1316 = vsel %vm1295, %v1314, %v1315
        %v1317 = vrot.slane %v1041, 1
        %v1318 = vrot.slane %v1059, 1
        %v1319 = vsel %vm1295, %v1317, %v1318
        %v1320 = vrot.slane %v1042, 1
        %v1321 = vrot.slane %v1060, 1
        %v1322 = vsel %vm1295, %v1320, %v1321
        %v1323 = vrot.slane %v1043, 1
        %v1324 = vrot.slane %v1061, 1
        %v1325 = vsel %vm1295, %v1323, %v1324
        %v1326 = vrot.slane %v1044, 1
        %v1327 = vrot.slane %v1062, 1
        %v1328 = vsel %vm1295, %v1326, %v1327
        %v1329 = vrot.slane %v1045, 1
        %v1330 = vrot.slane %v1063, 1
        %v1331 = vsel %vm1295, %v1329, %v1330
        %v1332 = vrot.slane %v1046, 1
        %v1333 = vrot.slane %v1064, 1
        %v1334 = vsel %vm1295, %v1332, %v1333
        %v1335 = vrot.slane %v1047, 1
        %v1336 = vrot.slane %v1065, 1
        %v1337 = vsel %vm1295, %v1335, %v1336
        %v1338 = vrot.slane %v1048, 1
        %v1339 = vrot.slane %v1066, 1
        %v1340 = vsel %vm1295, %v1338, %v1339
        %v1341 = vrot.slane %v1049, 1
        %v1342 = vrot.slane %v1067, 1
        %v1343 = vsel %vm1295, %v1341, %v1342
        %v1345 = vshrl.u32 %v1050, 16
        %v1347 = vshll.u32 %v1050, 16
        %v1349 = vrot.slane %v1347, 1
        %v1350 = vor.u32 %v1345, %v1349
        %v1352 = vshll.u32 %v1068, 16
        %v1354 = vrot.slane %v1352, 1
        %v1355 = vsel %vm1070, %v1350, %v1354
        %v1358 = vrot.slane %v1050, 1
        %v1359 = vrot.slane %v1068, 1
        %v1360 = vsel %vm1295, %v1358, %v1359
        %v1362 = vshrl.u32 %v1051, 16
        %v1364 = vshll.u32 %v1051, 16
        %v1366 = vrot.slane %v1364, 1
        %v1367 = vor.u32 %v1362, %v1366
        %v1369 = vshll.u32 %v1069, 16
        %v1371 = vrot.slane %v1369, 1
        %v1372 = vsel %vm1070, %v1367, %v1371
        %v1375 = vrot.slane %v1051, 1
        %v1376 = vrot.slane %v1069, 1
        %v1377 = vsel %vm1295, %v1375, %v1376
        %1378 = vrot.lane.b32.xlu0 %v1082, 4
        %v1379 = vpop.permute.xlu0 %1378
        %1380 = vrot.lane.b32.xlu0 %v1094, 4
        %v1381 = vpop.permute.xlu0 %1380
        %1382 = vrot.lane.b32.xlu0 %v1106, 4
        %v1383 = vpop.permute.xlu0 %1382
        %1384 = vrot.lane.b32.xlu0 %v1118, 4
        %v1385 = vpop.permute.xlu0 %1384
        %1386 = vrot.lane.b32.xlu0 %v1130, 4
        %v1387 = vpop.permute.xlu0 %1386
        %1388 = vrot.lane.b32.xlu0 %v1142, 4
        %v1389 = vpop.permute.xlu0 %1388
        %1390 = vrot.lane.b32.xlu0 %v1154, 4
        %v1391 = vpop.permute.xlu0 %1390
        %1392 = vrot.lane.b32.xlu0 %v1166, 4
        %v1393 = vpop.permute.xlu0 %1392
        %1394 = vrot.lane.b32.xlu0 %v1178, 4
        %v1395 = vpop.permute.xlu0 %1394
        %1396 = vrot.lane.b32.xlu0 %v1190, 4
        %v1397 = vpop.permute.xlu0 %1396
        %1398 = vrot.lane.b32.xlu0 %v1202, 4
        %v1399 = vpop.permute.xlu0 %1398
        %1400 = vrot.lane.b32.xlu0 %v1214, 4
        %v1401 = vpop.permute.xlu0 %1400
        %1402 = vrot.lane.b32.xlu0 %v1226, 4
        %v1403 = vpop.permute.xlu0 %1402
        %1404 = vrot.lane.b32.xlu0 %v1238, 4
        %v1405 = vpop.permute.xlu0 %1404
        %1406 = vrot.lane.b32.xlu0 %v1250, 4
        %v1407 = vpop.permute.xlu0 %1406
        %1408 = vrot.lane.b32.xlu0 %v1262, 4
        %v1409 = vpop.permute.xlu0 %1408
        %1410 = vrot.lane.b32.xlu0 %v1298, 8
        %v1411 = vpop.permute.xlu0 %1410
        %1412 = vrot.lane.b32.xlu0 %v1301, 8
        %v1413 = vpop.permute.xlu0 %1412
        %1414 = vrot.lane.b32.xlu0 %v1304, 8
        %v1415 = vpop.permute.xlu0 %1414
        %1416 = vrot.lane.b32.xlu0 %v1307, 8
        %v1417 = vpop.permute.xlu0 %1416
        %1418 = vrot.lane.b32.xlu0 %v1310, 8
        %v1419 = vpop.permute.xlu0 %1418
        %1420 = vrot.lane.b32.xlu0 %v1313, 8
        %v1421 = vpop.permute.xlu0 %1420
        %1422 = vrot.lane.b32.xlu0 %v1316, 8
        %v1423 = vpop.permute.xlu0 %1422
        %1424 = vrot.lane.b32.xlu0 %v1319, 8
        %v1425 = vpop.permute.xlu0 %1424
        %1426 = vrot.lane.b32.xlu0 %v1322, 8
        %v1427 = vpop.permute.xlu0 %1426
        %1428 = vrot.lane.b32.xlu0 %v1325, 8
        %v1429 = vpop.permute.xlu0 %1428
        %1430 = vrot.lane.b32.xlu0 %v1328, 8
        %v1431 = vpop.permute.xlu0 %1430
        %1432 = vrot.lane.b32.xlu0 %v1331, 8
        %v1433 = vpop.permute.xlu0 %1432
        %1434 = vrot.lane.b32.xlu0 %v1334, 8
        %v1435 = vpop.permute.xlu0 %1434
        %1436 = vrot.lane.b32.xlu0 %v1337, 8
        %v1437 = vpop.permute.xlu0 %1436
        %1438 = vrot.lane.b32.xlu0 %v1340, 8
        %v1439 = vpop.permute.xlu0 %1438
        %1440 = vrot.lane.b32.xlu0 %v1343, 8
        %v1441 = vpop.permute.xlu0 %1440
        %1442 = vrot.lane.b32.xlu0 %v1035, 12
        %v1443 = vpop.permute.xlu0 %1442
        %1444 = vrot.lane.b32.xlu0 %v1036, 12
        %v1445 = vpop.permute.xlu0 %1444
        %1446 = vrot.lane.b32.xlu0 %v1037, 12
        %v1447 = vpop.permute.xlu0 %1446
        %1448 = vrot.lane.b32.xlu0 %v1038, 12
        %v1449 = vpop.permute.xlu0 %1448
        %1450 = vrot.lane.b32.xlu0 %v1039, 12
        %v1451 = vpop.permute.xlu0 %1450
        %1452 = vrot.lane.b32.xlu0 %v1040, 12
        %v1453 = vpop.permute.xlu0 %1452
        %1454 = vrot.lane.b32.xlu0 %v1041, 12
        %v1455 = vpop.permute.xlu0 %1454
        %1456 = vrot.lane.b32.xlu0 %v1042, 12
        %v1457 = vpop.permute.xlu0 %1456
        %1458 = vrot.lane.b32.xlu0 %v1043, 12
        %v1459 = vpop.permute.xlu0 %1458
        %1460 = vrot.lane.b32.xlu0 %v1044, 12
        %v1461 = vpop.permute.xlu0 %1460
        %1462 = vrot.lane.b32.xlu0 %v1045, 12
        %v1463 = vpop.permute.xlu0 %1462
        %1464 = vrot.lane.b32.xlu0 %v1046, 12
        %v1465 = vpop.permute.xlu0 %1464
        %1466 = vrot.lane.b32.xlu0 %v1047, 12
        %v1467 = vpop.permute.xlu0 %1466
        %1468 = vrot.lane.b32.xlu0 %v1048, 12
        %v1469 = vpop.permute.xlu0 %1468
        %1470 = vrot.lane.b32.xlu0 %v1049, 12
        %v1471 = vpop.permute.xlu0 %1470
        %1472 = vrot.lane.b32.xlu0 %v1050, 12
        %v1473 = vpop.permute.xlu0 %1472
        %1474 = vrot.lane.b32.xlu0 %v1094, 16
        %v1475 = vpop.permute.xlu0 %1474
        %1476 = vrot.lane.b32.xlu0 %v1106, 16
        %v1477 = vpop.permute.xlu0 %1476
        %1478 = vrot.lane.b32.xlu0 %v1118, 16
        %v1479 = vpop.permute.xlu0 %1478
        %1480 = vrot.lane.b32.xlu0 %v1130, 16
        %v1481 = vpop.permute.xlu0 %1480
        %1482 = vrot.lane.b32.xlu0 %v1142, 16
        %v1483 = vpop.permute.xlu0 %1482
        %1484 = vrot.lane.b32.xlu0 %v1154, 16
        %v1485 = vpop.permute.xlu0 %1484
        %1486 = vrot.lane.b32.xlu0 %v1166, 16
        %v1487 = vpop.permute.xlu0 %1486
        %1488 = vrot.lane.b32.xlu0 %v1178, 16
        %v1489 = vpop.permute.xlu0 %1488
        %1490 = vrot.lane.b32.xlu0 %v1190, 16
        %v1491 = vpop.permute.xlu0 %1490
        %1492 = vrot.lane.b32.xlu0 %v1202, 16
        %v1493 = vpop.permute.xlu0 %1492
        %1494 = vrot.lane.b32.xlu0 %v1214, 16
        %v1495 = vpop.permute.xlu0 %1494
        %1496 = vrot.lane.b32.xlu0 %v1226, 16
        %v1497 = vpop.permute.xlu0 %1496
        %1498 = vrot.lane.b32.xlu0 %v1238, 16
        %v1499 = vpop.permute.xlu0 %1498
        %1500 = vrot.lane.b32.xlu0 %v1250, 16
        %v1501 = vpop.permute.xlu0 %1500
        %1502 = vrot.lane.b32.xlu0 %v1262, 16
        %v1503 = vpop.permute.xlu0 %1502
        %1504 = vrot.lane.b32.xlu0 %v1355, 16
        %v1505 = vpop.permute.xlu0 %1504
        %1506 = vrot.lane.b32.xlu0 %v1301, 20
        %v1507 = vpop.permute.xlu0 %1506
        %1508 = vrot.lane.b32.xlu0 %v1304, 20
        %v1509 = vpop.permute.xlu0 %1508
        %1510 = vrot.lane.b32.xlu0 %v1307, 20
        %v1511 = vpop.permute.xlu0 %1510
        %1512 = vrot.lane.b32.xlu0 %v1310, 20
        %v1513 = vpop.permute.xlu0 %1512
        %1514 = vrot.lane.b32.xlu0 %v1313, 20
        %v1515 = vpop.permute.xlu0 %1514
        %1516 = vrot.lane.b32.xlu0 %v1316, 20
        %v1517 = vpop.permute.xlu0 %1516
        %1518 = vrot.lane.b32.xlu0 %v1319, 20
        %v1519 = vpop.permute.xlu0 %1518
        %1520 = vrot.lane.b32.xlu0 %v1322, 20
        %v1521 = vpop.permute.xlu0 %1520
        %1522 = vrot.lane.b32.xlu0 %v1325, 20
        %v1523 = vpop.permute.xlu0 %1522
        %1524 = vrot.lane.b32.xlu0 %v1328, 20
        %v1525 = vpop.permute.xlu0 %1524
        %1526 = vrot.lane.b32.xlu0 %v1331, 20
        %v1527 = vpop.permute.xlu0 %1526
        %1528 = vrot.lane.b32.xlu0 %v1334, 20
        %v1529 = vpop.permute.xlu0 %1528
        %1530 = vrot.lane.b32.xlu0 %v1337, 20
        %v1531 = vpop.permute.xlu0 %1530
        %1532 = vrot.lane.b32.xlu0 %v1340, 20
        %v1533 = vpop.permute.xlu0 %1532
        %1534 = vrot.lane.b32.xlu0 %v1343, 20
        %v1535 = vpop.permute.xlu0 %1534
        %1536 = vrot.lane.b32.xlu0 %v1360, 20
        %v1537 = vpop.permute.xlu0 %1536
        %1538 = vrot.lane.b32.xlu0 %v1036, 24
        %v1539 = vpop.permute.xlu0 %1538
        %1540 = vrot.lane.b32.xlu0 %v1037, 24
        %v1541 = vpop.permute.xlu0 %1540
        %1542 = vrot.lane.b32.xlu0 %v1038, 24
        %v1543 = vpop.permute.xlu0 %1542
        %1544 = vrot.lane.b32.xlu0 %v1039, 24
        %v1545 = vpop.permute.xlu0 %1544
        %1546 = vrot.lane.b32.xlu0 %v1040, 24
        %v1547 = vpop.permute.xlu0 %1546
        %1548 = vrot.lane.b32.xlu0 %v1041, 24
        %v1549 = vpop.permute.xlu0 %1548
        %1550 = vrot.lane.b32.xlu0 %v1042, 24
        %v1551 = vpop.permute.xlu0 %1550
        %1552 = vrot.lane.b32.xlu0 %v1043, 24
        %v1553 = vpop.permute.xlu0 %1552
        %1554 = vrot.lane.b32.xlu0 %v1044, 24
        %v1555 = vpop.permute.xlu0 %1554
        %1556 = vrot.lane.b32.xlu0 %v1045, 24
        %v1557 = vpop.permute.xlu0 %1556
        %1558 = vrot.lane.b32.xlu0 %v1046, 24
        %v1559 = vpop.permute.xlu0 %1558
        %1560 = vrot.lane.b32.xlu0 %v1047, 24
        %v1561 = vpop.permute.xlu0 %1560
        %1562 = vrot.lane.b32.xlu0 %v1048, 24
        %v1563 = vpop.permute.xlu0 %1562
        %1564 = vrot.lane.b32.xlu0 %v1049, 24
        %v1565 = vpop.permute.xlu0 %1564
        %1566 = vrot.lane.b32.xlu0 %v1050, 24
        %v1567 = vpop.permute.xlu0 %1566
        %1568 = vrot.lane.b32.xlu0 %v1051, 24
        %v1569 = vpop.permute.xlu0 %1568
        %1570 = vrot.lane.b32.xlu0 %v1106, 28
        %v1571 = vpop.permute.xlu0 %1570
        %1572 = vrot.lane.b32.xlu0 %v1118, 28
        %v1573 = vpop.permute.xlu0 %1572
        %1574 = vrot.lane.b32.xlu0 %v1130, 28
        %v1575 = vpop.permute.xlu0 %1574
        %1576 = vrot.lane.b32.xlu0 %v1142, 28
        %v1577 = vpop.permute.xlu0 %1576
        %1578 = vrot.lane.b32.xlu0 %v1154, 28
        %v1579 = vpop.permute.xlu0 %1578
        %1580 = vrot.lane.b32.xlu0 %v1166, 28
        %v1581 = vpop.permute.xlu0 %1580
        %1582 = vrot.lane.b32.xlu0 %v1178, 28
        %v1583 = vpop.permute.xlu0 %1582
        %1584 = vrot.lane.b32.xlu0 %v1190, 28
        %v1585 = vpop.permute.xlu0 %1584
        %1586 = vrot.lane.b32.xlu0 %v1202, 28
        %v1587 = vpop.permute.xlu0 %1586
        %1588 = vrot.lane.b32.xlu0 %v1214, 28
        %v1589 = vpop.permute.xlu0 %1588
        %1590 = vrot.lane.b32.xlu0 %v1226, 28
        %v1591 = vpop.permute.xlu0 %1590
        %1592 = vrot.lane.b32.xlu0 %v1238, 28
        %v1593 = vpop.permute.xlu0 %1592
        %1594 = vrot.lane.b32.xlu0 %v1250, 28
        %v1595 = vpop.permute.xlu0 %1594
        %1596 = vrot.lane.b32.xlu0 %v1262, 28
        %v1597 = vpop.permute.xlu0 %1596
        %1598 = vrot.lane.b32.xlu0 %v1355, 28
        %v1599 = vpop.permute.xlu0 %1598
        %1600 = vrot.lane.b32.xlu0 %v1372, 28
        %v1601 = vpop.permute.xlu0 %1600
        %1602 = vrot.lane.b32.xlu0 %v1304, 32
        %v1603 = vpop.permute.xlu0 %1602
        %1604 = vrot.lane.b32.xlu0 %v1307, 32
        %v1605 = vpop.permute.xlu0 %1604
        %1606 = vrot.lane.b32.xlu0 %v1310, 32
        %v1607 = vpop.permute.xlu0 %1606
        %1608 = vrot.lane.b32.xlu0 %v1313, 32
        %v1609 = vpop.permute.xlu0 %1608
        %1610 = vrot.lane.b32.xlu0 %v1316, 32
        %v1611 = vpop.permute.xlu0 %1610
        %1612 = vrot.lane.b32.xlu0 %v1319, 32
        %v1613 = vpop.permute.xlu0 %1612
        %1614 = vrot.lane.b32.xlu0 %v1322, 32
        %v1615 = vpop.permute.xlu0 %1614
        %1616 = vrot.lane.b32.xlu0 %v1325, 32
        %v1617 = vpop.permute.xlu0 %1616
        %1618 = vrot.lane.b32.xlu0 %v1328, 32
        %v1619 = vpop.permute.xlu0 %1618
        %1620 = vrot.lane.b32.xlu0 %v1331, 32
        %v1621 = vpop.permute.xlu0 %1620
        %1622 = vrot.lane.b32.xlu0 %v1334, 32
        %v1623 = vpop.permute.xlu0 %1622
        %1624 = vrot.lane.b32.xlu0 %v1337, 32
        %v1625 = vpop.permute.xlu0 %1624
        %1626 = vrot.lane.b32.xlu0 %v1340, 32
        %v1627 = vpop.permute.xlu0 %1626
        %1628 = vrot.lane.b32.xlu0 %v1343, 32
        %v1629 = vpop.permute.xlu0 %1628
        %1630 = vrot.lane.b32.xlu0 %v1360, 32
        %v1631 = vpop.permute.xlu0 %1630
        %1632 = vrot.lane.b32.xlu0 %v1377, 32
        %v1633 = vpop.permute.xlu0 %1632
        %vm1634 = vcmask 31744
        %v1636 = vsel %vm1634, %v1034, %v1379
        %v1638 = vsel %vm1634, %v1035, %v1381
        %v1640 = vsel %vm1634, %v1036, %v1383
        %v1642 = vsel %vm1634, %v1037, %v1385
        %v1644 = vsel %vm1634, %v1038, %v1387
        %v1646 = vsel %vm1634, %v1039, %v1389
        %v1648 = vsel %vm1634, %v1040, %v1391
        %v1650 = vsel %vm1634, %v1041, %v1393
        %v1652 = vsel %vm1634, %v1042, %v1395
        %v1654 = vsel %vm1634, %v1043, %v1397
        %v1656 = vsel %vm1634, %v1044, %v1399
        %v1658 = vsel %vm1634, %v1045, %v1401
        %v1660 = vsel %vm1634, %v1046, %v1403
        %v1662 = vsel %vm1634, %v1047, %v1405
        %v1664 = vsel %vm1634, %v1048, %v1407
        %v1666 = vsel %vm1634, %v1049, %v1409
        %vm1667 = vcmask 64512
        %v1669 = vsel %vm1667, %v1636, %v1411
        %v1671 = vsel %vm1667, %v1638, %v1413
        %v1673 = vsel %vm1667, %v1640, %v1415
        %v1675 = vsel %vm1667, %v1642, %v1417
        %v1677 = vsel %vm1667, %v1644, %v1419
        %v1679 = vsel %vm1667, %v1646, %v1421
        %v1681 = vsel %vm1667, %v1648, %v1423
        %v1683 = vsel %vm1667, %v1650, %v1425
        %v1685 = vsel %vm1667, %v1652, %v1427
        %v1687 = vsel %vm1667, %v1654, %v1429
        %v1689 = vsel %vm1667, %v1656, %v1431
        %v1691 = vsel %vm1667, %v1658, %v1433
        %v1693 = vsel %vm1667, %v1660, %v1435
        %v1695 = vsel %vm1667, %v1662, %v1437
        %v1697 = vsel %vm1667, %v1664, %v1439
        %v1699 = vsel %vm1667, %v1666, %v1441
        %vm1700 = vcmask 97280
        %v1702 = vsel %vm1700, %v1669, %v1443
        %v1704 = vsel %vm1700, %v1671, %v1445
        %v1706 = vsel %vm1700, %v1673, %v1447
        %v1708 = vsel %vm1700, %v1675, %v1449
        %v1710 = vsel %vm1700, %v1677, %v1451
        %v1712 = vsel %vm1700, %v1679, %v1453
        %v1714 = vsel %vm1700, %v1681, %v1455
        %v1716 = vsel %vm1700, %v1683, %v1457
        %v1718 = vsel %vm1700, %v1685, %v1459
        %v1720 = vsel %vm1700, %v1687, %v1461
        %v1722 = vsel %vm1700, %v1689, %v1463
        %v1724 = vsel %vm1700, %v1691, %v1465
        %v1726 = vsel %vm1700, %v1693, %v1467
        %v1728 = vsel %vm1700, %v1695, %v1469
        %v1730 = vsel %vm1700, %v1697, %v1471
        %v1732 = vsel %vm1700, %v1699, %v1473
        %vm1733 = vcmask 130048
        %v1735 = vsel %vm1733, %v1702, %v1475
        %v1737 = vsel %vm1733, %v1704, %v1477
        %v1739 = vsel %vm1733, %v1706, %v1479
        %v1741 = vsel %vm1733, %v1708, %v1481
        %v1743 = vsel %vm1733, %v1710, %v1483
        %v1745 = vsel %vm1733, %v1712, %v1485
        %v1747 = vsel %vm1733, %v1714, %v1487
        %v1749 = vsel %vm1733, %v1716, %v1489
        %v1751 = vsel %vm1733, %v1718, %v1491
        %v1753 = vsel %vm1733, %v1720, %v1493
        %v1755 = vsel %vm1733, %v1722, %v1495
        %v1757 = vsel %vm1733, %v1724, %v1497
        %v1759 = vsel %vm1733, %v1726, %v1499
        %v1761 = vsel %vm1733, %v1728, %v1501
        %v1763 = vsel %vm1733, %v1730, %v1503
        %v1765 = vsel %vm1733, %v1732, %v1505
        %vm1766 = vcmask 162816
        %v1768 = vsel %vm1766, %v1735, %v1507
        %v1770 = vsel %vm1766, %v1737, %v1509
        %v1772 = vsel %vm1766, %v1739, %v1511
        %v1774 = vsel %vm1766, %v1741, %v1513
        %v1776 = vsel %vm1766, %v1743, %v1515
        %v1778 = vsel %vm1766, %v1745, %v1517
        %v1780 = vsel %vm1766, %v1747, %v1519
        %v1782 = vsel %vm1766, %v1749, %v1521
        %v1784 = vsel %vm1766, %v1751, %v1523
        %v1786 = vsel %vm1766, %v1753, %v1525
        %v1788 = vsel %vm1766, %v1755, %v1527
        %v1790 = vsel %vm1766, %v1757, %v1529
        %v1792 = vsel %vm1766, %v1759, %v1531
        %v1794 = vsel %vm1766, %v1761, %v1533
        %v1796 = vsel %vm1766, %v1763, %v1535
        %v1798 = vsel %vm1766, %v1765, %v1537
        %vm1799 = vcmask 195584
        %v1801 = vsel %vm1799, %v1768, %v1539
        %v1803 = vsel %vm1799, %v1770, %v1541
        %v1805 = vsel %vm1799, %v1772, %v1543
        %v1807 = vsel %vm1799, %v1774, %v1545
        %v1809 = vsel %vm1799, %v1776, %v1547
        %v1811 = vsel %vm1799, %v1778, %v1549
        %v1813 = vsel %vm1799, %v1780, %v1551
        %v1815 = vsel %vm1799, %v1782, %v1553
        %v1817 = vsel %vm1799, %v1784, %v1555
        %v1819 = vsel %vm1799, %v1786, %v1557
        %v1821 = vsel %vm1799, %v1788, %v1559
        %v1823 = vsel %vm1799, %v1790, %v1561
        %v1825 = vsel %vm1799, %v1792, %v1563
        %v1827 = vsel %vm1799, %v1794, %v1565
        %v1829 = vsel %vm1799, %v1796, %v1567
        %v1831 = vsel %vm1799, %v1798, %v1569
        %vm1832 = vcmask 228352
        %v1834 = vsel %vm1832, %v1801, %v1571
        %v1836 = vsel %vm1832, %v1803, %v1573
        %v1838 = vsel %vm1832, %v1805, %v1575
        %v1840 = vsel %vm1832, %v1807, %v1577
        %v1842 = vsel %vm1832, %v1809, %v1579
        %v1844 = vsel %vm1832, %v1811, %v1581
        %v1846 = vsel %vm1832, %v1813, %v1583
        %v1848 = vsel %vm1832, %v1815, %v1585
        %v1850 = vsel %vm1832, %v1817, %v1587
        %v1852 = vsel %vm1832, %v1819, %v1589
        %v1854 = vsel %vm1832, %v1821, %v1591
        %v1856 = vsel %vm1832, %v1823, %v1593
        %v1858 = vsel %vm1832, %v1825, %v1595
        %v1860 = vsel %vm1832, %v1827, %v1597
        %v1862 = vsel %vm1832, %v1829, %v1599
        %v1864 = vsel %vm1832, %v1831, %v1601
        %vm1865 = vcmask 261120
        %v1867 = vsel %vm1865, %v1834, %v1603
        %v1869 = vsel %vm1865, %v1836, %v1605
        %v1871 = vsel %vm1865, %v1838, %v1607
        %v1873 = vsel %vm1865, %v1840, %v1609
        %v1875 = vsel %vm1865, %v1842, %v1611
        %v1877 = vsel %vm1865, %v1844, %v1613
        %v1879 = vsel %vm1865, %v1846, %v1615
        %v1881 = vsel %vm1865, %v1848, %v1617
        %v1883 = vsel %vm1865, %v1850, %v1619
        %v1885 = vsel %vm1865, %v1852, %v1621
        %v1887 = vsel %vm1865, %v1854, %v1623
        %v1889 = vsel %vm1865, %v1856, %v1625
        %v1891 = vsel %vm1865, %v1858, %v1627
        %v1893 = vsel %vm1865, %v1860, %v1629
        %v1895 = vsel %vm1865, %v1862, %v1631
        %v1897 = vsel %vm1865, %v1864, %v1633
        %v1898 = vld [vmem:[#allocation13] sm:$0xf]
        %v1899 = vld [vmem:[#allocation13 + $0x4] sm:$0xf]
        %v1900 = vld [vmem:[#allocation13 + $0x8] sm:$0xf]
        %v1901 = vld [vmem:[#allocation13 + $0xc] sm:$0xf]
        %v1902 = vld [vmem:[#allocation13 + $0x10] sm:$0x3]
        %v1939 = vunpack.c.l.b16 %v775
        %v1940 = vunpack.c.l.b16 %v776
        %v1941 = vunpack.c.l.b16 %v741
        %v1942 = vunpack.c.l.b16 %v742
        %v1943 = vunpack.c.l.b16 %v743
        %v1944 = vunpack.c.l.b16 %v744
        %v1945 = vunpack.c.l.b16 %v745
        %v1946 = vunpack.c.l.b16 %v746
        %v1947 = vunpack.c.l.b16 %v747
        %v1948 = vunpack.c.l.b16 %v748
        %v1949 = vunpack.c.l.b16 %v749
        %v1950 = vunpack.c.l.b16 %v750
        %v1951 = vunpack.c.l.b16 %v751
        %v1952 = vunpack.c.l.b16 %v752
        %v1953 = vunpack.c.l.b16 %v753
        %v1954 = vunpack.c.l.b16 %v754
        %v1955 = vunpack.c.l.b16 %v755
        %v1956 = vunpack.c.l.b16 %v756
        %v1957 = vunpack.c.l.b16 %v757
        %v1958 = vunpack.c.l.b16 %v758
        %v1959 = vunpack.c.l.b16 %v759
        %v1960 = vunpack.c.l.b16 %v760
        %v1961 = vunpack.c.l.b16 %v761
        %v1962 = vunpack.c.l.b16 %v762
        %v1963 = vunpack.c.l.b16 %v763
        %v1964 = vunpack.c.l.b16 %v764
        %v1965 = vunpack.c.l.b16 %v765
        %v1966 = vunpack.c.l.b16 %v766
        %v1967 = vunpack.c.l.b16 %v767
        %v1968 = vunpack.c.l.b16 %v768
        %v1969 = vunpack.c.l.b16 %v769
        %v1970 = vunpack.c.l.b16 %v770
        %v1971 = vunpack.c.l.b16 %v771
        %v1972 = vunpack.c.l.b16 %v772
        %v1973 = vunpack.c.l.b16 %v777
        %v1974 = vunpack.c.l.b16 %v778
        %v1975 = vpack.c.b16 %v1940, %v1939
        %v1976 = vpack.c.b16 %v1942, %v1941
        %v1977 = vpack.c.b16 %v1944, %v1943
        %v1978 = vpack.c.b16 %v1946, %v1945
        %v1979 = vpack.c.b16 %v1948, %v1947
        %v1980 = vpack.c.b16 %v1950, %v1949
        %v1981 = vpack.c.b16 %v1952, %v1951
        %v1982 = vpack.c.b16 %v1954, %v1953
        %v1983 = vpack.c.b16 %v1956, %v1955
        %v1984 = vpack.c.b16 %v1958, %v1957
        %v1985 = vpack.c.b16 %v1960, %v1959
        %v1986 = vpack.c.b16 %v1962, %v1961
        %v1987 = vpack.c.b16 %v1964, %v1963
        %v1988 = vpack.c.b16 %v1966, %v1965
        %v1989 = vpack.c.b16 %v1968, %v1967
        %v1990 = vpack.c.b16 %v1970, %v1969
        %v1991 = vpack.c.b16 %v1972, %v1971
        %v1992 = vpack.c.b16 %v1974, %v1973
        %v1994 = vshrl.u32 %v1975, 16
        %v1996 = vrot.slane %v1994, 7
        %v1997 = vshll.u32 %v1975, 16
        %v1999 = vor.u32 %v1996, %v1997
        %v2001 = vshrl.u32 %v1976, 16
        %v2003 = vrot.slane %v2001, 7
        %v2004 = vshll.u32 %v1976, 16
        %v2006 = vor.u32 %v2003, %v2004
        %v2008 = vshrl.u32 %v1977, 16
        %v2010 = vrot.slane %v2008, 7
        %v2011 = vshll.u32 %v1977, 16
        %v2013 = vor.u32 %v2010, %v2011
        %v2015 = vshrl.u32 %v1978, 16
        %v2017 = vrot.slane %v2015, 7
        %v2018 = vshll.u32 %v1978, 16
        %v2020 = vor.u32 %v2017, %v2018
        %v2022 = vshrl.u32 %v1979, 16
        %v2024 = vrot.slane %v2022, 7
        %v2025 = vshll.u32 %v1979, 16
        %v2027 = vor.u32 %v2024, %v2025
        %v2029 = vshrl.u32 %v1980, 16
        %v2031 = vrot.slane %v2029, 7
        %v2032 = vshll.u32 %v1980, 16
        %v2034 = vor.u32 %v2031, %v2032
        %v2036 = vshrl.u32 %v1981, 16
        %v2038 = vrot.slane %v2036, 7
        %v2039 = vshll.u32 %v1981, 16
        %v2041 = vor.u32 %v2038, %v2039
        %v2043 = vshrl.u32 %v1982, 16
        %v2045 = vrot.slane %v2043, 7
        %v2046 = vshll.u32 %v1982, 16
        %v2048 = vor.u32 %v2045, %v2046
        %v2050 = vshrl.u32 %v1983, 16
        %v2052 = vrot.slane %v2050, 7
        %v2053 = vshll.u32 %v1983, 16
        %v2055 = vor.u32 %v2052, %v2053
        %v2057 = vshrl.u32 %v1984, 16
        %v2059 = vrot.slane %v2057, 7
        %v2060 = vshll.u32 %v1984, 16
        %v2062 = vor.u32 %v2059, %v2060
        %v2064 = vshrl.u32 %v1985, 16
        %v2066 = vrot.slane %v2064, 7
        %v2067 = vshll.u32 %v1985, 16
        %v2069 = vor.u32 %v2066, %v2067
        %v2071 = vshrl.u32 %v1986, 16
        %v2073 = vrot.slane %v2071, 7
        %v2074 = vshll.u32 %v1986, 16
        %v2076 = vor.u32 %v2073, %v2074
        %v2078 = vshrl.u32 %v1987, 16
        %v2080 = vrot.slane %v2078, 7
        %v2081 = vshll.u32 %v1987, 16
        %v2083 = vor.u32 %v2080, %v2081
        %v2085 = vshrl.u32 %v1988, 16
        %v2087 = vrot.slane %v2085, 7
        %v2088 = vshll.u32 %v1988, 16
        %v2090 = vor.u32 %v2087, %v2088
        %v2092 = vshrl.u32 %v1989, 16
        %v2094 = vrot.slane %v2092, 7
        %v2095 = vshll.u32 %v1989, 16
        %v2097 = vor.u32 %v2094, %v2095
        %v2099 = vshrl.u32 %v1990, 16
        %v2101 = vrot.slane %v2099, 7
        %v2102 = vshll.u32 %v1990, 16
        %v2104 = vor.u32 %v2101, %v2102
        %v2106 = vshrl.u32 %v1991, 16
        %v2108 = vrot.slane %v2106, 7
        %v2109 = vshll.u32 %v1991, 16
        %v2111 = vor.u32 %v2108, %v2109
        %v2113 = vshrl.u32 %v1992, 16
        %v2115 = vrot.slane %v2113, 7
        %v2116 = vshll.u32 %v1992, 16
        %v2118 = vor.u32 %v2115, %v2116
        %v2155 = vsel %vm1033, 0, %v1999
        %v2156 = vsel %vm1033, 0, %v2006
        %v2157 = vsel %vm1033, 0, %v2013
        %v2158 = vsel %vm1033, 0, %v2020
        %v2159 = vsel %vm1033, 0, %v2027
        %v2160 = vsel %vm1033, 0, %v2034
        %v2161 = vsel %vm1033, 0, %v2041
        %v2162 = vsel %vm1033, 0, %v2048
        %v2163 = vsel %vm1033, 0, %v2055
        %v2164 = vsel %vm1033, 0, %v2062
        %v2165 = vsel %vm1033, 0, %v2069
        %v2166 = vsel %vm1033, 0, %v2076
        %v2167 = vsel %vm1033, 0, %v2083
        %v2168 = vsel %vm1033, 0, %v2090
        %v2169 = vsel %vm1033, 0, %v2097
        %v2170 = vsel %vm1033, 0, %v2104
        %v2171 = vsel %vm1033, 0, %v2111
        %v2172 = vsel %vm1033, 0, %v2118
        %v2173 = vsel %vm1033, %v1996, 0
        %v2174 = vsel %vm1033, %v2003, 0
        %v2175 = vsel %vm1033, %v2010, 0
        %v2176 = vsel %vm1033, %v2017, 0
        %v2177 = vsel %vm1033, %v2024, 0
        %v2178 = vsel %vm1033, %v2031, 0
        %v2179 = vsel %vm1033, %v2038, 0
        %v2180 = vsel %vm1033, %v2045, 0
        %v2181 = vsel %vm1033, %v2052, 0
        %v2182 = vsel %vm1033, %v2059, 0
        %v2183 = vsel %vm1033, %v2066, 0
        %v2184 = vsel %vm1033, %v2073, 0
        %v2185 = vsel %vm1033, %v2080, 0
        %v2186 = vsel %vm1033, %v2087, 0
        %v2187 = vsel %vm1033, %v2094, 0
        %v2188 = vsel %vm1033, %v2101, 0
        %v2189 = vsel %vm1033, %v2108, 0
        %v2190 = vsel %vm1033, %v2115, 0
        %v2192 = vshrl.u32 %v2155, 16
        %v2194 = vshll.u32 %v2155, 16
        %v2196 = vrot.slane %v2194, 1
        %v2197 = vor.u32 %v2192, %v2196
        %v2199 = vshll.u32 %v2173, 16
        %v2201 = vrot.slane %v2199, 1
        %v2202 = vsel %vm1070, %v2197, %v2201
        %v2204 = vshrl.u32 %v2156, 16
        %v2206 = vshll.u32 %v2156, 16
        %v2208 = vrot.slane %v2206, 1
        %v2209 = vor.u32 %v2204, %v2208
        %v2211 = vshll.u32 %v2174, 16
        %v2213 = vrot.slane %v2211, 1
        %v2214 = vsel %vm1070, %v2209, %v2213
        %v2216 = vshrl.u32 %v2157, 16
        %v2218 = vshll.u32 %v2157, 16
        %v2220 = vrot.slane %v2218, 1
        %v2221 = vor.u32 %v2216, %v2220
        %v2223 = vshll.u32 %v2175, 16
        %v2225 = vrot.slane %v2223, 1
        %v2226 = vsel %vm1070, %v2221, %v2225
        %v2228 = vshrl.u32 %v2158, 16
        %v2230 = vshll.u32 %v2158, 16
        %v2232 = vrot.slane %v2230, 1
        %v2233 = vor.u32 %v2228, %v2232
        %v2235 = vshll.u32 %v2176, 16
        %v2237 = vrot.slane %v2235, 1
        %v2238 = vsel %vm1070, %v2233, %v2237
        %v2240 = vshrl.u32 %v2159, 16
        %v2242 = vshll.u32 %v2159, 16
        %v2244 = vrot.slane %v2242, 1
        %v2245 = vor.u32 %v2240, %v2244
        %v2247 = vshll.u32 %v2177, 16
        %v2249 = vrot.slane %v2247, 1
        %v2250 = vsel %vm1070, %v2245, %v2249
        %v2252 = vshrl.u32 %v2160, 16
        %v2254 = vshll.u32 %v2160, 16
        %v2256 = vrot.slane %v2254, 1
        %v2257 = vor.u32 %v2252, %v2256
        %v2259 = vshll.u32 %v2178, 16
        %v2261 = vrot.slane %v2259, 1
        %v2262 = vsel %vm1070, %v2257, %v2261
        %v2264 = vshrl.u32 %v2161, 16
        %v2266 = vshll.u32 %v2161, 16
        %v2268 = vrot.slane %v2266, 1
        %v2269 = vor.u32 %v2264, %v2268
        %v2271 = vshll.u32 %v2179, 16
        %v2273 = vrot.slane %v2271, 1
        %v2274 = vsel %vm1070, %v2269, %v2273
        %v2276 = vshrl.u32 %v2162, 16
        %v2278 = vshll.u32 %v2162, 16
        %v2280 = vrot.slane %v2278, 1
        %v2281 = vor.u32 %v2276, %v2280
        %v2283 = vshll.u32 %v2180, 16
        %v2285 = vrot.slane %v2283, 1
        %v2286 = vsel %vm1070, %v2281, %v2285
        %v2288 = vshrl.u32 %v2163, 16
        %v2290 = vshll.u32 %v2163, 16
        %v2292 = vrot.slane %v2290, 1
        %v2293 = vor.u32 %v2288, %v2292
        %v2295 = vshll.u32 %v2181, 16
        %v2297 = vrot.slane %v2295, 1
        %v2298 = vsel %vm1070, %v2293, %v2297
        %v2300 = vshrl.u32 %v2164, 16
        %v2302 = vshll.u32 %v2164, 16
        %v2304 = vrot.slane %v2302, 1
        %v2305 = vor.u32 %v2300, %v2304
        %v2307 = vshll.u32 %v2182, 16
        %v2309 = vrot.slane %v2307, 1
        %v2310 = vsel %vm1070, %v2305, %v2309
        %v2312 = vshrl.u32 %v2165, 16
        %v2314 = vshll.u32 %v2165, 16
        %v2316 = vrot.slane %v2314, 1
        %v2317 = vor.u32 %v2312, %v2316
        %v2319 = vshll.u32 %v2183, 16
        %v2321 = vrot.slane %v2319, 1
        %v2322 = vsel %vm1070, %v2317, %v2321
        %v2324 = vshrl.u32 %v2166, 16
        %v2326 = vshll.u32 %v2166, 16
        %v2328 = vrot.slane %v2326, 1
        %v2329 = vor.u32 %v2324, %v2328
        %v2331 = vshll.u32 %v2184, 16
        %v2333 = vrot.slane %v2331, 1
        %v2334 = vsel %vm1070, %v2329, %v2333
        %v2336 = vshrl.u32 %v2167, 16
        %v2338 = vshll.u32 %v2167, 16
        %v2340 = vrot.slane %v2338, 1
        %v2341 = vor.u32 %v2336, %v2340
        %v2343 = vshll.u32 %v2185, 16
        %v2345 = vrot.slane %v2343, 1
        %v2346 = vsel %vm1070, %v2341, %v2345
        %v2348 = vshrl.u32 %v2168, 16
        %v2350 = vshll.u32 %v2168, 16
        %v2352 = vrot.slane %v2350, 1
        %v2353 = vor.u32 %v2348, %v2352
        %v2355 = vshll.u32 %v2186, 16
        %v2357 = vrot.slane %v2355, 1
        %v2358 = vsel %vm1070, %v2353, %v2357
        %v2360 = vshrl.u32 %v2169, 16
        %v2362 = vshll.u32 %v2169, 16
        %v2364 = vrot.slane %v2362, 1
        %v2365 = vor.u32 %v2360, %v2364
        %v2367 = vshll.u32 %v2187, 16
        %v2369 = vrot.slane %v2367, 1
        %v2370 = vsel %vm1070, %v2365, %v2369
        %v2372 = vshrl.u32 %v2170, 16
        %v2374 = vshll.u32 %v2170, 16
        %v2376 = vrot.slane %v2374, 1
        %v2377 = vor.u32 %v2372, %v2376
        %v2379 = vshll.u32 %v2188, 16
        %v2381 = vrot.slane %v2379, 1
        %v2382 = vsel %vm1070, %v2377, %v2381
        %v2415 = vrot.slane %v2155, 1
        %v2416 = vrot.slane %v2173, 1
        %v2417 = vsel %vm1295, %v2415, %v2416
        %v2418 = vrot.slane %v2156, 1
        %v2419 = vrot.slane %v2174, 1
        %v2420 = vsel %vm1295, %v2418, %v2419
        %v2421 = vrot.slane %v2157, 1
        %v2422 = vrot.slane %v2175, 1
        %v2423 = vsel %vm1295, %v2421, %v2422
        %v2424 = vrot.slane %v2158, 1
        %v2425 = vrot.slane %v2176, 1
        %v2426 = vsel %vm1295, %v2424, %v2425
        %v2427 = vrot.slane %v2159, 1
        %v2428 = vrot.slane %v2177, 1
        %v2429 = vsel %vm1295, %v2427, %v2428
        %v2430 = vrot.slane %v2160, 1
        %v2431 = vrot.slane %v2178, 1
        %v2432 = vsel %vm1295, %v2430, %v2431
        %v2433 = vrot.slane %v2161, 1
        %v2434 = vrot.slane %v2179, 1
        %v2435 = vsel %vm1295, %v2433, %v2434
        %v2436 = vrot.slane %v2162, 1
        %v2437 = vrot.slane %v2180, 1
        %v2438 = vsel %vm1295, %v2436, %v2437
        %v2439 = vrot.slane %v2163, 1
        %v2440 = vrot.slane %v2181, 1
        %v2441 = vsel %vm1295, %v2439, %v2440
        %v2442 = vrot.slane %v2164, 1
        %v2443 = vrot.slane %v2182, 1
        %v2444 = vsel %vm1295, %v2442, %v2443
        %v2445 = vrot.slane %v2165, 1
        %v2446 = vrot.slane %v2183, 1
        %v2447 = vsel %vm1295, %v2445, %v2446
        %v2448 = vrot.slane %v2166, 1
        %v2449 = vrot.slane %v2184, 1
        %v2450 = vsel %vm1295, %v2448, %v2449
        %v2451 = vrot.slane %v2167, 1
        %v2452 = vrot.slane %v2185, 1
        %v2453 = vsel %vm1295, %v2451, %v2452
        %v2454 = vrot.slane %v2168, 1
        %v2455 = vrot.slane %v2186, 1
        %v2456 = vsel %vm1295, %v2454, %v2455
        %v2457 = vrot.slane %v2169, 1
        %v2458 = vrot.slane %v2187, 1
        %v2459 = vsel %vm1295, %v2457, %v2458
        %v2460 = vrot.slane %v2170, 1
        %v2461 = vrot.slane %v2188, 1
        %v2462 = vsel %vm1295, %v2460, %v2461
        %v2464 = vshrl.u32 %v2171, 16
        %v2466 = vshll.u32 %v2171, 16
        %v2468 = vrot.slane %v2466, 1
        %v2469 = vor.u32 %v2464, %v2468
        %v2471 = vshll.u32 %v2189, 16
        %v2473 = vrot.slane %v2471, 1
        %v2474 = vsel %vm1070, %v2469, %v2473
        %v2477 = vrot.slane %v2171, 1
        %v2478 = vrot.slane %v2189, 1
        %v2479 = vsel %vm1295, %v2477, %v2478
        %v2481 = vshrl.u32 %v2172, 16
        %v2483 = vshll.u32 %v2172, 16
        %v2485 = vrot.slane %v2483, 1
        %v2486 = vor.u32 %v2481, %v2485
        %v2488 = vshll.u32 %v2190, 16
        %v2490 = vrot.slane %v2488, 1
        %v2491 = vsel %vm1070, %v2486, %v2490
        %v2494 = vrot.slane %v2172, 1
        %v2495 = vrot.slane %v2190, 1
        %v2496 = vsel %vm1295, %v2494, %v2495
        %2497 = vrot.lane.b32.xlu0 %v2202, 4
        %v2498 = vpop.permute.xlu0 %2497
        %2499 = vrot.lane.b32.xlu0 %v2214, 4
        %v2500 = vpop.permute.xlu0 %2499
        %2501 = vrot.lane.b32.xlu0 %v2226, 4
        %v2502 = vpop.permute.xlu0 %2501
        %2503 = vrot.lane.b32.xlu0 %v2238, 4
        %v2504 = vpop.permute.xlu0 %2503
        %2505 = vrot.lane.b32.xlu0 %v2250, 4
        %v2506 = vpop.permute.xlu0 %2505
        %2507 = vrot.lane.b32.xlu0 %v2262, 4
        %v2508 = vpop.permute.xlu0 %2507
        %2509 = vrot.lane.b32.xlu0 %v2274, 4
        %v2510 = vpop.permute.xlu0 %2509
        %2511 = vrot.lane.b32.xlu0 %v2286, 4
        %v2512 = vpop.permute.xlu0 %2511
        %2513 = vrot.lane.b32.xlu0 %v2298, 4
        %v2514 = vpop.permute.xlu0 %2513
        %2515 = vrot.lane.b32.xlu0 %v2310, 4
        %v2516 = vpop.permute.xlu0 %2515
        %2517 = vrot.lane.b32.xlu0 %v2322, 4
        %v2518 = vpop.permute.xlu0 %2517
        %2519 = vrot.lane.b32.xlu0 %v2334, 4
        %v2520 = vpop.permute.xlu0 %2519
        %2521 = vrot.lane.b32.xlu0 %v2346, 4
        %v2522 = vpop.permute.xlu0 %2521
        %2523 = vrot.lane.b32.xlu0 %v2358, 4
        %v2524 = vpop.permute.xlu0 %2523
        %2525 = vrot.lane.b32.xlu0 %v2370, 4
        %v2526 = vpop.permute.xlu0 %2525
        %2527 = vrot.lane.b32.xlu0 %v2382, 4
        %v2528 = vpop.permute.xlu0 %2527
        %2529 = vrot.lane.b32.xlu0 %v2417, 8
        %v2530 = vpop.permute.xlu0 %2529
        %2531 = vrot.lane.b32.xlu0 %v2420, 8
        %v2532 = vpop.permute.xlu0 %2531
        %2533 = vrot.lane.b32.xlu0 %v2423, 8
        %v2534 = vpop.permute.xlu0 %2533
        %2535 = vrot.lane.b32.xlu0 %v2426, 8
        %v2536 = vpop.permute.xlu0 %2535
        %2537 = vrot.lane.b32.xlu0 %v2429, 8
        %v2538 = vpop.permute.xlu0 %2537
        %2539 = vrot.lane.b32.xlu0 %v2432, 8
        %v2540 = vpop.permute.xlu0 %2539
        %2541 = vrot.lane.b32.xlu0 %v2435, 8
        %v2542 = vpop.permute.xlu0 %2541
        %2543 = vrot.lane.b32.xlu0 %v2438, 8
        %v2544 = vpop.permute.xlu0 %2543
        %2545 = vrot.lane.b32.xlu0 %v2441, 8
        %v2546 = vpop.permute.xlu0 %2545
        %2547 = vrot.lane.b32.xlu0 %v2444, 8
        %v2548 = vpop.permute.xlu0 %2547
        %2549 = vrot.lane.b32.xlu0 %v2447, 8
        %v2550 = vpop.permute.xlu0 %2549
        %2551 = vrot.lane.b32.xlu0 %v2450, 8
        %v2552 = vpop.permute.xlu0 %2551
        %2553 = vrot.lane.b32.xlu0 %v2453, 8
        %v2554 = vpop.permute.xlu0 %2553
        %2555 = vrot.lane.b32.xlu0 %v2456, 8
        %v2556 = vpop.permute.xlu0 %2555
        %2557 = vrot.lane.b32.xlu0 %v2459, 8
        %v2558 = vpop.permute.xlu0 %2557
        %2559 = vrot.lane.b32.xlu0 %v2462, 8
        %v2560 = vpop.permute.xlu0 %2559
        %2561 = vrot.lane.b32.xlu0 %v2156, 12
        %v2562 = vpop.permute.xlu0 %2561
        %2563 = vrot.lane.b32.xlu0 %v2157, 12
        %v2564 = vpop.permute.xlu0 %2563
        %2565 = vrot.lane.b32.xlu0 %v2158, 12
        %v2566 = vpop.permute.xlu0 %2565
        %2567 = vrot.lane.b32.xlu0 %v2159, 12
        %v2568 = vpop.permute.xlu0 %2567
        %2569 = vrot.lane.b32.xlu0 %v2160, 12
        %v2570 = vpop.permute.xlu0 %2569
        %2571 = vrot.lane.b32.xlu0 %v2161, 12
        %v2572 = vpop.permute.xlu0 %2571
        %2573 = vrot.lane.b32.xlu0 %v2162, 12
        %v2574 = vpop.permute.xlu0 %2573
        %2575 = vrot.lane.b32.xlu0 %v2163, 12
        %v2576 = vpop.permute.xlu0 %2575
        %2577 = vrot.lane.b32.xlu0 %v2164, 12
        %v2578 = vpop.permute.xlu0 %2577
        %2579 = vrot.lane.b32.xlu0 %v2165, 12
        %v2580 = vpop.permute.xlu0 %2579
        %2581 = vrot.lane.b32.xlu0 %v2166, 12
        %v2582 = vpop.permute.xlu0 %2581
        %2583 = vrot.lane.b32.xlu0 %v2167, 12
        %v2584 = vpop.permute.xlu0 %2583
        %2585 = vrot.lane.b32.xlu0 %v2168, 12
        %v2586 = vpop.permute.xlu0 %2585
        %2587 = vrot.lane.b32.xlu0 %v2169, 12
        %v2588 = vpop.permute.xlu0 %2587
        %2589 = vrot.lane.b32.xlu0 %v2170, 12
        %v2590 = vpop.permute.xlu0 %2589
        %2591 = vrot.lane.b32.xlu0 %v2171, 12
        %v2592 = vpop.permute.xlu0 %2591
        %2593 = vrot.lane.b32.xlu0 %v2214, 16
        %v2594 = vpop.permute.xlu0 %2593
        %2595 = vrot.lane.b32.xlu0 %v2226, 16
        %v2596 = vpop.permute.xlu0 %2595
        %2597 = vrot.lane.b32.xlu0 %v2238, 16
        %v2598 = vpop.permute.xlu0 %2597
        %2599 = vrot.lane.b32.xlu0 %v2250, 16
        %v2600 = vpop.permute.xlu0 %2599
        %2601 = vrot.lane.b32.xlu0 %v2262, 16
        %v2602 = vpop.permute.xlu0 %2601
        %2603 = vrot.lane.b32.xlu0 %v2274, 16
        %v2604 = vpop.permute.xlu0 %2603
        %2605 = vrot.lane.b32.xlu0 %v2286, 16
        %v2606 = vpop.permute.xlu0 %2605
        %2607 = vrot.lane.b32.xlu0 %v2298, 16
        %v2608 = vpop.permute.xlu0 %2607
        %2609 = vrot.lane.b32.xlu0 %v2310, 16
        %v2610 = vpop.permute.xlu0 %2609
        %2611 = vrot.lane.b32.xlu0 %v2322, 16
        %v2612 = vpop.permute.xlu0 %2611
        %2613 = vrot.lane.b32.xlu0 %v2334, 16
        %v2614 = vpop.permute.xlu0 %2613
        %2615 = vrot.lane.b32.xlu0 %v2346, 16
        %v2616 = vpop.permute.xlu0 %2615
        %2617 = vrot.lane.b32.xlu0 %v2358, 16
        %v2618 = vpop.permute.xlu0 %2617
        %2619 = vrot.lane.b32.xlu0 %v2370, 16
        %v2620 = vpop.permute.xlu0 %2619
        %2621 = vrot.lane.b32.xlu0 %v2382, 16
        %v2622 = vpop.permute.xlu0 %2621
        %2623 = vrot.lane.b32.xlu0 %v2474, 16
        %v2624 = vpop.permute.xlu0 %2623
        %2625 = vrot.lane.b32.xlu0 %v2420, 20
        %v2626 = vpop.permute.xlu0 %2625
        %2627 = vrot.lane.b32.xlu0 %v2423, 20
        %v2628 = vpop.permute.xlu0 %2627
        %2629 = vrot.lane.b32.xlu0 %v2426, 20
        %v2630 = vpop.permute.xlu0 %2629
        %2631 = vrot.lane.b32.xlu0 %v2429, 20
        %v2632 = vpop.permute.xlu0 %2631
        %2633 = vrot.lane.b32.xlu0 %v2432, 20
        %v2634 = vpop.permute.xlu0 %2633
        %2635 = vrot.lane.b32.xlu0 %v2435, 20
        %v2636 = vpop.permute.xlu0 %2635
        %2637 = vrot.lane.b32.xlu0 %v2438, 20
        %v2638 = vpop.permute.xlu0 %2637
        %2639 = vrot.lane.b32.xlu0 %v2441, 20
        %v2640 = vpop.permute.xlu0 %2639
        %2641 = vrot.lane.b32.xlu0 %v2444, 20
        %v2642 = vpop.permute.xlu0 %2641
        %2643 = vrot.lane.b32.xlu0 %v2447, 20
        %v2644 = vpop.permute.xlu0 %2643
        %2645 = vrot.lane.b32.xlu0 %v2450, 20
        %v2646 = vpop.permute.xlu0 %2645
        %2647 = vrot.lane.b32.xlu0 %v2453, 20
        %v2648 = vpop.permute.xlu0 %2647
        %2649 = vrot.lane.b32.xlu0 %v2456, 20
        %v2650 = vpop.permute.xlu0 %2649
        %2651 = vrot.lane.b32.xlu0 %v2459, 20
        %v2652 = vpop.permute.xlu0 %2651
        %2653 = vrot.lane.b32.xlu0 %v2462, 20
        %v2654 = vpop.permute.xlu0 %2653
        %2655 = vrot.lane.b32.xlu0 %v2479, 20
        %v2656 = vpop.permute.xlu0 %2655
        %2657 = vrot.lane.b32.xlu0 %v2157, 24
        %v2658 = vpop.permute.xlu0 %2657
        %2659 = vrot.lane.b32.xlu0 %v2158, 24
        %v2660 = vpop.permute.xlu0 %2659
        %2661 = vrot.lane.b32.xlu0 %v2159, 24
        %v2662 = vpop.permute.xlu0 %2661
        %2663 = vrot.lane.b32.xlu0 %v2160, 24
        %v2664 = vpop.permute.xlu0 %2663
        %2665 = vrot.lane.b32.xlu0 %v2161, 24
        %v2666 = vpop.permute.xlu0 %2665
        %2667 = vrot.lane.b32.xlu0 %v2162, 24
        %v2668 = vpop.permute.xlu0 %2667
        %2669 = vrot.lane.b32.xlu0 %v2163, 24
        %v2670 = vpop.permute.xlu0 %2669
        %2671 = vrot.lane.b32.xlu0 %v2164, 24
        %v2672 = vpop.permute.xlu0 %2671
        %2673 = vrot.lane.b32.xlu0 %v2165, 24
        %v2674 = vpop.permute.xlu0 %2673
        %2675 = vrot.lane.b32.xlu0 %v2166, 24
        %v2676 = vpop.permute.xlu0 %2675
        %2677 = vrot.lane.b32.xlu0 %v2167, 24
        %v2678 = vpop.permute.xlu0 %2677
        %2679 = vrot.lane.b32.xlu0 %v2168, 24
        %v2680 = vpop.permute.xlu0 %2679
        %2681 = vrot.lane.b32.xlu0 %v2169, 24
        %v2682 = vpop.permute.xlu0 %2681
        %2683 = vrot.lane.b32.xlu0 %v2170, 24
        %v2684 = vpop.permute.xlu0 %2683
        %2685 = vrot.lane.b32.xlu0 %v2171, 24
        %v2686 = vpop.permute.xlu0 %2685
        %2687 = vrot.lane.b32.xlu0 %v2172, 24
        %v2688 = vpop.permute.xlu0 %2687
        %2689 = vrot.lane.b32.xlu0 %v2226, 28
        %v2690 = vpop.permute.xlu0 %2689
        %2691 = vrot.lane.b32.xlu0 %v2238, 28
        %v2692 = vpop.permute.xlu0 %2691
        %2693 = vrot.lane.b32.xlu0 %v2250, 28
        %v2694 = vpop.permute.xlu0 %2693
        %2695 = vrot.lane.b32.xlu0 %v2262, 28
        %v2696 = vpop.permute.xlu0 %2695
        %2697 = vrot.lane.b32.xlu0 %v2274, 28
        %v2698 = vpop.permute.xlu0 %2697
        %2699 = vrot.lane.b32.xlu0 %v2286, 28
        %v2700 = vpop.permute.xlu0 %2699
        %2701 = vrot.lane.b32.xlu0 %v2298, 28
        %v2702 = vpop.permute.xlu0 %2701
        %2703 = vrot.lane.b32.xlu0 %v2310, 28
        %v2704 = vpop.permute.xlu0 %2703
        %2705 = vrot.lane.b32.xlu0 %v2322, 28
        %v2706 = vpop.permute.xlu0 %2705
        %2707 = vrot.lane.b32.xlu0 %v2334, 28
        %v2708 = vpop.permute.xlu0 %2707
        %2709 = vrot.lane.b32.xlu0 %v2346, 28
        %v2710 = vpop.permute.xlu0 %2709
        %2711 = vrot.lane.b32.xlu0 %v2358, 28
        %v2712 = vpop.permute.xlu0 %2711
        %2713 = vrot.lane.b32.xlu0 %v2370, 28
        %v2714 = vpop.permute.xlu0 %2713
        %2715 = vrot.lane.b32.xlu0 %v2382, 28
        %v2716 = vpop.permute.xlu0 %2715
        %2717 = vrot.lane.b32.xlu0 %v2474, 28
        %v2718 = vpop.permute.xlu0 %2717
        %2719 = vrot.lane.b32.xlu0 %v2491, 28
        %v2720 = vpop.permute.xlu0 %2719
        %2721 = vrot.lane.b32.xlu0 %v2423, 32
        %v2722 = vpop.permute.xlu0 %2721
        %2723 = vrot.lane.b32.xlu0 %v2426, 32
        %v2724 = vpop.permute.xlu0 %2723
        %2725 = vrot.lane.b32.xlu0 %v2429, 32
        %v2726 = vpop.permute.xlu0 %2725
        %2727 = vrot.lane.b32.xlu0 %v2432, 32
        %v2728 = vpop.permute.xlu0 %2727
        %2729 = vrot.lane.b32.xlu0 %v2435, 32
        %v2730 = vpop.permute.xlu0 %2729
        %2731 = vrot.lane.b32.xlu0 %v2438, 32
        %v2732 = vpop.permute.xlu0 %2731
        %2733 = vrot.lane.b32.xlu0 %v2441, 32
        %v2734 = vpop.permute.xlu0 %2733
        %2735 = vrot.lane.b32.xlu0 %v2444, 32
        %v2736 = vpop.permute.xlu0 %2735
        %2737 = vrot.lane.b32.xlu0 %v2447, 32
        %v2738 = vpop.permute.xlu0 %2737
        %2739 = vrot.lane.b32.xlu0 %v2450, 32
        %v2740 = vpop.permute.xlu0 %2739
        %2741 = vrot.lane.b32.xlu0 %v2453, 32
        %v2742 = vpop.permute.xlu0 %2741
        %2743 = vrot.lane.b32.xlu0 %v2456, 32
        %v2744 = vpop.permute.xlu0 %2743
        %2745 = vrot.lane.b32.xlu0 %v2459, 32
        %v2746 = vpop.permute.xlu0 %2745
        %2747 = vrot.lane.b32.xlu0 %v2462, 32
        %v2748 = vpop.permute.xlu0 %2747
        %2749 = vrot.lane.b32.xlu0 %v2479, 32
        %v2750 = vpop.permute.xlu0 %2749
        %2751 = vrot.lane.b32.xlu0 %v2496, 32
        %v2752 = vpop.permute.xlu0 %2751
        %v2754 = vsel %vm1634, %v2155, %v2498
        %v2756 = vsel %vm1634, %v2156, %v2500
        %v2758 = vsel %vm1634, %v2157, %v2502
        %v2760 = vsel %vm1634, %v2158, %v2504
        %v2762 = vsel %vm1634, %v2159, %v2506
        %v2764 = vsel %vm1634, %v2160, %v2508
        %v2766 = vsel %vm1634, %v2161, %v2510
        %v2768 = vsel %vm1634, %v2162, %v2512
        %v2770 = vsel %vm1634, %v2163, %v2514
        %v2772 = vsel %vm1634, %v2164, %v2516
        %v2774 = vsel %vm1634, %v2165, %v2518
        %v2776 = vsel %vm1634, %v2166, %v2520
        %v2778 = vsel %vm1634, %v2167, %v2522
        %v2780 = vsel %vm1634, %v2168, %v2524
        %v2782 = vsel %vm1634, %v2169, %v2526
        %v2784 = vsel %vm1634, %v2170, %v2528
        %v2786 = vsel %vm1667, %v2754, %v2530
        %v2788 = vsel %vm1667, %v2756, %v2532
        %v2790 = vsel %vm1667, %v2758, %v2534
        %v2792 = vsel %vm1667, %v2760, %v2536
        %v2794 = vsel %vm1667, %v2762, %v2538
        %v2796 = vsel %vm1667, %v2764, %v2540
        %v2798 = vsel %vm1667, %v2766, %v2542
        %v2800 = vsel %vm1667, %v2768, %v2544
        %v2802 = vsel %vm1667, %v2770, %v2546
        %v2804 = vsel %vm1667, %v2772, %v2548
        %v2806 = vsel %vm1667, %v2774, %v2550
        %v2808 = vsel %vm1667, %v2776, %v2552
        %v2810 = vsel %vm1667, %v2778, %v2554
        %v2812 = vsel %vm1667, %v2780, %v2556
        %v2814 = vsel %vm1667, %v2782, %v2558
        %v2816 = vsel %vm1667, %v2784, %v2560
        %v2818 = vsel %vm1700, %v2786, %v2562
        %v2820 = vsel %vm1700, %v2788, %v2564
        %v2822 = vsel %vm1700, %v2790, %v2566
        %v2824 = vsel %vm1700, %v2792, %v2568
        %v2826 = vsel %vm1700, %v2794, %v2570
        %v2828 = vsel %vm1700, %v2796, %v2572
        %v2830 = vsel %vm1700, %v2798, %v2574
        %v2832 = vsel %vm1700, %v2800, %v2576
        %v2834 = vsel %vm1700, %v2802, %v2578
        %v2836 = vsel %vm1700, %v2804, %v2580
        %v2838 = vsel %vm1700, %v2806, %v2582
        %v2840 = vsel %vm1700, %v2808, %v2584
        %v2842 = vsel %vm1700, %v2810, %v2586
        %v2844 = vsel %vm1700, %v2812, %v2588
        %v2846 = vsel %vm1700, %v2814, %v2590
        %v2848 = vsel %vm1700, %v2816, %v2592
        %v2850 = vsel %vm1733, %v2818, %v2594
        %v2852 = vsel %vm1733, %v2820, %v2596
        %v2854 = vsel %vm1733, %v2822, %v2598
        %v2856 = vsel %vm1733, %v2824, %v2600
        %v2858 = vsel %vm1733, %v2826, %v2602
        %v2860 = vsel %vm1733, %v2828, %v2604
        %v2862 = vsel %vm1733, %v2830, %v2606
        %v2864 = vsel %vm1733, %v2832, %v2608
        %v2866 = vsel %vm1733, %v2834, %v2610
        %v2868 = vsel %vm1733, %v2836, %v2612
        %v2870 = vsel %vm1733, %v2838, %v2614
        %v2872 = vsel %vm1733, %v2840, %v2616
        %v2874 = vsel %vm1733, %v2842, %v2618
        %v2876 = vsel %vm1733, %v2844, %v2620
        %v2878 = vsel %vm1733, %v2846, %v2622
        %v2880 = vsel %vm1733, %v2848, %v2624
        %v2882 = vsel %vm1766, %v2850, %v2626
        %v2884 = vsel %vm1766, %v2852, %v2628
        %v2886 = vsel %vm1766, %v2854, %v2630
        %v2888 = vsel %vm1766, %v2856, %v2632
        %v2890 = vsel %vm1766, %v2858, %v2634
        %v2892 = vsel %vm1766, %v2860, %v2636
        %v2894 = vsel %vm1766, %v2862, %v2638
        %v2896 = vsel %vm1766, %v2864, %v2640
        %v2898 = vsel %vm1766, %v2866, %v2642
        %v2900 = vsel %vm1766, %v2868, %v2644
        %v2902 = vsel %vm1766, %v2870, %v2646
        %v2904 = vsel %vm1766, %v2872, %v2648
        %v2906 = vsel %vm1766, %v2874, %v2650
        %v2908 = vsel %vm1766, %v2876, %v2652
        %v2910 = vsel %vm1766, %v2878, %v2654
        %v2912 = vsel %vm1766, %v2880, %v2656
        %v2914 = vsel %vm1799, %v2882, %v2658
        %v2916 = vsel %vm1799, %v2884, %v2660
        %v2918 = vsel %vm1799, %v2886, %v2662
        %v2920 = vsel %vm1799, %v2888, %v2664
        %v2922 = vsel %vm1799, %v2890, %v2666
        %v2924 = vsel %vm1799, %v2892, %v2668
        %v2926 = vsel %vm1799, %v2894, %v2670
        %v2928 = vsel %vm1799, %v2896, %v2672
        %v2930 = vsel %vm1799, %v2898, %v2674
        %v2932 = vsel %vm1799, %v2900, %v2676
        %v2934 = vsel %vm1799, %v2902, %v2678
        %v2936 = vsel %vm1799, %v2904, %v2680
        %v2938 = vsel %vm1799, %v2906, %v2682
        %v2940 = vsel %vm1799, %v2908, %v2684
        %v2942 = vsel %vm1799, %v2910, %v2686
        %v2944 = vsel %vm1799, %v2912, %v2688
        %v2946 = vsel %vm1832, %v2914, %v2690
        %v2948 = vsel %vm1832, %v2916, %v2692
        %v2950 = vsel %vm1832, %v2918, %v2694
        %v2952 = vsel %vm1832, %v2920, %v2696
        %v2954 = vsel %vm1832, %v2922, %v2698
        %v2956 = vsel %vm1832, %v2924, %v2700
        %v2958 = vsel %vm1832, %v2926, %v2702
        %v2960 = vsel %vm1832, %v2928, %v2704
        %v2962 = vsel %vm1832, %v2930, %v2706
        %v2964 = vsel %vm1832, %v2932, %v2708
        %v2966 = vsel %vm1832, %v2934, %v2710
        %v2968 = vsel %vm1832, %v2936, %v2712
        %v2970 = vsel %vm1832, %v2938, %v2714
        %v2972 = vsel %vm1832, %v2940, %v2716
        %v2974 = vsel %vm1832, %v2942, %v2718
        %v2976 = vsel %vm1832, %v2944, %v2720
        %v2978 = vsel %vm1865, %v2946, %v2722
        %v2980 = vsel %vm1865, %v2948, %v2724
        %v2982 = vsel %vm1865, %v2950, %v2726
        %v2984 = vsel %vm1865, %v2952, %v2728
        %v2986 = vsel %vm1865, %v2954, %v2730
        %v2988 = vsel %vm1865, %v2956, %v2732
        %v2990 = vsel %vm1865, %v2958, %v2734
        %v2992 = vsel %vm1865, %v2960, %v2736
        %v2994 = vsel %vm1865, %v2962, %v2738
        %v2996 = vsel %vm1865, %v2964, %v2740
        %v2998 = vsel %vm1865, %v2966, %v2742
        %v3000 = vsel %vm1865, %v2968, %v2744
        %v3002 = vsel %vm1865, %v2970, %v2746
        %v3004 = vsel %vm1865, %v2972, %v2748
        %v3006 = vsel %vm1865, %v2974, %v2750
        %v3008 = vsel %vm1865, %v2976, %v2752
        %v3009 = vld [vmem:[#allocation14] sm:$0xf]
        %v3010 = vld [vmem:[#allocation14 + $0x4] sm:$0xf]
        %v3011 = vld [vmem:[#allocation14 + $0x8] sm:$0xf]
        %v3012 = vld [vmem:[#allocation14 + $0xc] sm:$0xf]
        %v3013 = vld [vmem:[#allocation14 + $0x10] sm:$0x3]
        %v3019 = vunpack.c.l.b16 %v3009
        %v3020 = vunpack.c.l.b16 %v3010
        %v3021 = vunpack.c.l.b16 %v3011
        %v3022 = vunpack.c.l.b16 %v3012
        %v3023 = vunpack.c.l.b16 %v3013
        %v3024 = vpack.c.b16 %v3020, %v3019
        %v3025 = vpack.c.b16 %v3022, %v3021
        %v3026 = vpack.c.b16 %v3023, %v3023
        %vm3029 = vcmask 293888
        %v3030 = vsel %vm3029, %v2978, 0
        %v3032 = vsel %vm3029, %v2980, 0
        %v3034 = vsel %vm3029, %v2982, 0
        %v3036 = vsel %vm3029, %v2984, 0
        %v3038 = vsel %vm3029, %v2986, 0
        %v3040 = vsel %vm3029, %v2988, 0
        %v3042 = vsel %vm3029, %v2990, 0
        %v3044 = vsel %vm3029, %v2992, 0
        %v3046 = vsel %vm3029, %v2994, 0
        %v3048 = vsel %vm3029, %v2996, 0
        %v3050 = vsel %vm3029, %v2998, 0
        %v3052 = vsel %vm3029, %v3000, 0
        %v3054 = vsel %vm3029, %v3002, 0
        %v3056 = vsel %vm3029, %v3004, 0
        %v3058 = vsel %vm3029, %v3006, 0
        %v3060 = vsel %vm3029, %v3008, 0
        %vm3062 = vcmask 1041408
        %v3064 = vsel %vm3062, %v3026, 0
        %3066 = vmatprep.subr.bf16.mxu0 0
        %3067 = vmatpush1.bf16.msra.mxu0 %v3024
        %3068 = vmatprep.subr.bf16.mxu0 0
        %3069 = vmatpush1.bf16.msra.mxu0 %v3025
        %3070 = vmatprep.subr.bf16.mxu0 0
        %3071 = vmatpush1.bf16.msra.mxu0 %v3064
        %3072 = vmatprep.subr.bf16.mxu0 0
        %3073 = vmatpush1.bf16.msra.mxu0 0
        %3074 = vmatprep.subr.bf16.mxu0 0
        %3075 = vmatpush1.bf16.msra.mxu0 0
        %3076 = vmatprep.subr.bf16.mxu0 0
        %3077 = vmatpush1.bf16.msra.mxu0 0
        %3078 = vmatprep.subr.bf16.mxu0 0
        %3079 = vmatpush1.bf16.msra.mxu0 0
        %3080 = vmatprep.subr.bf16.mxu0 0
        %3081 = vmatpush1.bf16.msra.mxu0 0
        %3082 = vmatprep.subr.bf16.mxu0 0
        %3083 = vmatpush1.bf16.msra.mxu0 0
        %3084 = vmatprep.subr.bf16.mxu0 0
        %3085 = vmatpush1.bf16.msra.mxu0 0
        %3086 = vmatprep.subr.bf16.mxu0 0
        %3087 = vmatpush1.bf16.msra.mxu0 0
        %3088 = vmatprep.subr.bf16.mxu0 0
        %3089 = vmatpush1.bf16.msra.mxu0 0
        %3090 = vmatprep.subr.bf16.mxu0 0
        %3091 = vmatpush1.bf16.msra.mxu0 0
        %3092 = vmatprep.subr.bf16.mxu0 0
        %3093 = vmatpush1.bf16.msra.mxu0 0
        %3094 = vmatprep.subr.bf16.mxu0 0
        %3095 = vmatpush1.bf16.msra.mxu0 0
        %3096 = vmatprep.subr.bf16.mxu0 0
        %3097 = vmatpush1.bf16.msra.mxu0 0
        %3098 = vmatprep.mubr.bf16.mxu0 0
        %3099 = vmatmul.mubr.bf16.gmra.mrb[0].mxu0 %v3030
        %v3100 = vpop.f32.mrb[0].mxu0
        %v3101 = vadd.f32 0.0, %v3100
        %v3102 = vpop.f32.mrb[0].mxu0
        %v3103 = vpop.f32.mrb[0].mxu0
        %v3104 = vadd.f32 0.0, %v3103
        %v3105 = vpop.f32.mrb[0].mxu0
        %3106 = vmatprep.mubr.bf16.mxu0 0
        %3107 = vmatmul.mubr.bf16.gmra.mrb[0].mxu0 %v3032
        %v3108 = vpop.f32.mrb[0].mxu0
        %v3109 = vadd.f32 0.0, %v3108
        %v3110 = vpop.f32.mrb[0].mxu0
        %v3111 = vpop.f32.mrb[0].mxu0
        %v3112 = vadd.f32 0.0, %v3111
        %v3113 = vpop.f32.mrb[0].mxu0
        %3114 = vmatprep.mubr.bf16.mxu0 0
        %3115 = vmatmul.mubr.bf16.gmra.mrb[0].mxu0 %v3034
        %v3116 = vpop.f32.mrb[0].mxu0
        %v3117 = vadd.f32 0.0, %v3116
        %v3118 = vpop.f32.mrb[0].mxu0
        %v3119 = vpop.f32.mrb[0].mxu0
        %v3120 = vadd.f32 0.0, %v3119
        %v3121 = vpop.f32.mrb[0].mxu0
        %3122 = vmatprep.mubr.bf16.mxu0 0
        %3123 = vmatmul.mubr.bf16.gmra.mrb[0].mxu0 %v3036
        %v3124 = vpop.f32.mrb[0].mxu0
        %v3125 = vadd.f32 0.0, %v3124
        %v3126 = vpop.f32.mrb[0].mxu0
        %v3127 = vpop.f32.mrb[0].mxu0
        %v3128 = vadd.f32 0.0, %v3127
        %v3129 = vpop.f32.mrb[0].mxu0
        %3130 = vmatprep.mubr.bf16.mxu0 0
        %3131 = vmatmul.mubr.bf16.gmra.mrb[0].mxu0 %v3038
        %v3132 = vpop.f32.mrb[0].mxu0
        %v3133 = vadd.f32 0.0, %v3132
        %v3134 = vpop.f32.mrb[0].mxu0
        %v3135 = vpop.f32.mrb[0].mxu0
        %v3136 = vadd.f32 0.0, %v3135
        %v3137 = vpop.f32.mrb[0].mxu0
        %3138 = vmatprep.mubr.bf16.mxu0 0
        %3139 = vmatmul.mubr.bf16.gmra.mrb[0].mxu0 %v3040
        %v3140 = vpop.f32.mrb[0].mxu0
        %v3141 = vadd.f32 0.0, %v3140
        %v3142 = vpop.f32.mrb[0].mxu0
        %v3143 = vpop.f32.mrb[0].mxu0
        %v3144 = vadd.f32 0.0, %v3143
        %v3145 = vpop.f32.mrb[0].mxu0
        %3146 = vmatprep.mubr.bf16.mxu0 0
        %3147 = vmatmul.mubr.bf16.gmra.mrb[0].mxu0 %v3042
        %v3148 = vpop.f32.mrb[0].mxu0
        %v3149 = vadd.f32 0.0, %v3148
        %v3150 = vpop.f32.mrb[0].mxu0
        %v3151 = vpop.f32.mrb[0].mxu0
        %v3152 = vadd.f32 0.0, %v3151
        %v3153 = vpop.f32.mrb[0].mxu0
        %3154 = vmatprep.mubr.bf16.mxu0 0
        %3155 = vmatmul.mubr.bf16.gmra.mrb[0].mxu0 %v3044
        %v3156 = vpop.f32.mrb[0].mxu0
        %v3157 = vadd.f32 0.0, %v3156
        %v3158 = vpop.f32.mrb[0].mxu0
        %v3159 = vpop.f32.mrb[0].mxu0
        %v3160 = vadd.f32 0.0, %v3159
        %v3161 = vpop.f32.mrb[0].mxu0
        %3162 = vmatprep.mubr.bf16.mxu0 0
        %3163 = vmatmul.mubr.bf16.gmra.mrb[0].mxu0 %v3046
        %v3164 = vpop.f32.mrb[0].mxu0
        %v3165 = vadd.f32 0.0, %v3164
        %v3166 = vpop.f32.mrb[0].mxu0
        %v3167 = vpop.f32.mrb[0].mxu0
        %v3168 = vadd.f32 0.0, %v3167
        %v3169 = vpop.f32.mrb[0].mxu0
        %3170 = vmatprep.mubr.bf16.mxu0 0
        %3171 = vmatmul.mubr.bf16.gmra.mrb[0].mxu0 %v3048
        %v3172 = vpop.f32.mrb[0].mxu0
        %v3173 = vadd.f32 0.0, %v3172
        %v3174 = vpop.f32.mrb[0].mxu0
        %v3175 = vpop.f32.mrb[0].mxu0
        %v3176 = vadd.f32 0.0, %v3175
        %v3177 = vpop.f32.mrb[0].mxu0
        %3178 = vmatprep.mubr.bf16.mxu0 0
        %3179 = vmatmul.mubr.bf16.gmra.mrb[0].mxu0 %v3050
        %v3180 = vpop.f32.mrb[0].mxu0
        %v3181 = vadd.f32 0.0, %v3180
        %v3182 = vpop.f32.mrb[0].mxu0
        %v3183 = vpop.f32.mrb[0].mxu0
        %v3184 = vadd.f32 0.0, %v3183
        %v3185 = vpop.f32.mrb[0].mxu0
        %3186 = vmatprep.mubr.bf16.mxu0 0
        %3187 = vmatmul.mubr.bf16.gmra.mrb[0].mxu0 %v3052
        %v3188 = vpop.f32.mrb[0].mxu0
        %v3189 = vadd.f32 0.0, %v3188
        %v3190 = vpop.f32.mrb[0].mxu0
        %v3191 = vpop.f32.mrb[0].mxu0
        %v3192 = vadd.f32 0.0, %v3191
        %v3193 = vpop.f32.mrb[0].mxu0
        %3194 = vmatprep.mubr.bf16.mxu0 0
        %3195 = vmatmul.mubr.bf16.gmra.mrb[0].mxu0 %v3054
        %v3196 = vpop.f32.mrb[0].mxu0
        %v3197 = vadd.f32 0.0, %v3196
        %v3198 = vpop.f32.mrb[0].mxu0
        %v3199 = vpop.f32.mrb[0].mxu0
        %v3200 = vadd.f32 0.0, %v3199
        %v3201 = vpop.f32.mrb[0].mxu0
        %3202 = vmatprep.mubr.bf16.mxu0 0
        %3203 = vmatmul.mubr.bf16.gmra.mrb[0].mxu0 %v3056
        %v3204 = vpop.f32.mrb[0].mxu0
        %v3205 = vadd.f32 0.0, %v3204
        %v3206 = vpop.f32.mrb[0].mxu0
        %v3207 = vpop.f32.mrb[0].mxu0
        %v3208 = vadd.f32 0.0, %v3207
        %v3209 = vpop.f32.mrb[0].mxu0
        %3210 = vmatprep.mubr.bf16.mxu0 0
        %3211 = vmatmul.mubr.bf16.gmra.mrb[0].mxu0 %v3058
        %v3212 = vpop.f32.mrb[0].mxu0
        %v3213 = vadd.f32 0.0, %v3212
        %v3214 = vpop.f32.mrb[0].mxu0
        %v3215 = vpop.f32.mrb[0].mxu0
        %v3216 = vadd.f32 0.0, %v3215
        %v3217 = vpop.f32.mrb[0].mxu0
        %3218 = vmatprep.mubr.bf16.mxu0 0
        %3219 = vmatmul.mubr.bf16.gmra.mrb[0].mxu0 %v3060
        %v3220 = vpop.f32.mrb[0].mxu0
        %v3221 = vadd.f32 0.0, %v3220
        %v3222 = vpop.f32.mrb[0].mxu0
        %v3223 = vpop.f32.mrb[0].mxu0
        %v3224 = vadd.f32 0.0, %v3223
        %v3225 = vpop.f32.mrb[0].mxu0
        %3226 = vdwg.mxu0
        %v3232 = vunpack.c.l.b16 %v1898
        %v3233 = vunpack.c.l.b16 %v1899
        %v3234 = vunpack.c.l.b16 %v1900
        %v3235 = vunpack.c.l.b16 %v1901
        %v3236 = vunpack.c.l.b16 %v1902
        %v3237 = vpack.c.b16 %v3233, %v3232
        %v3238 = vpack.c.b16 %v3235, %v3234
        %v3239 = vpack.c.b16 %v3236, %v3236
        %v3242 = vsel %vm3029, %v1867, 0
        %v3244 = vsel %vm3029, %v1869, 0
        %v3246 = vsel %vm3029, %v1871, 0
        %v3248 = vsel %vm3029, %v1873, 0
        %v3250 = vsel %vm3029, %v1875, 0
        %v3252 = vsel %vm3029, %v1877, 0
        %v3254 = vsel %vm3029, %v1879, 0
        %v3256 = vsel %vm3029, %v1881, 0
        %v3258 = vsel %vm3029, %v1883, 0
        %v3260 = vsel %vm3029, %v1885, 0
        %v3262 = vsel %vm3029, %v1887, 0
        %v3264 = vsel %vm3029, %v1889, 0
        %v3266 = vsel %vm3029, %v1891, 0
        %v3268 = vsel %vm3029, %v1893, 0
        %v3270 = vsel %vm3029, %v1895, 0
        %v3272 = vsel %vm3029, %v1897, 0
        %v3275 = vsel %vm3062, %v3239, 0
        %3277 = vmatprep.subr.bf16.mxu0 0
        %3278 = vmatpush1.bf16.msra.mxu0 %v3237
        %3279 = vmatprep.subr.bf16.mxu0 0
        %3280 = vmatpush1.bf16.msra.mxu0 %v3238
        %3281 = vmatprep.subr.bf16.mxu0 0
        %3282 = vmatpush1.bf16.msra.mxu0 %v3275
        %3283 = vmatprep.subr.bf16.mxu0 0
        %3284 = vmatpush1.bf16.msra.mxu0 0
        %3285 = vmatprep.subr.bf16.mxu0 0
        %3286 = vmatpush1.bf16.msra.mxu0 0
        %3287 = vmatprep.subr.bf16.mxu0 0
        %3288 = vmatpush1.bf16.msra.mxu0 0
        %3289 = vmatprep.subr.bf16.mxu0 0
        %3290 = vmatpush1.bf16.msra.mxu0 0
        %3291 = vmatprep.subr.bf16.mxu0 0
        %3292 = vmatpush1.bf16.msra.mxu0 0
        %3293 = vmatprep.subr.bf16.mxu0 0
        %3294 = vmatpush1.bf16.msra.mxu0 0
        %3295 = vmatprep.subr.bf16.mxu0 0
        %3296 = vmatpush1.bf16.msra.mxu0 0
        %3297 = vmatprep.subr.bf16.mxu0 0
        %3298 = vmatpush1.bf16.msra.mxu0 0
        %3299 = vmatprep.subr.bf16.mxu0 0
        %3300 = vmatpush1.bf16.msra.mxu0 0
        %3301 = vmatprep.subr.bf16.mxu0 0
        %3302 = vmatpush1.bf16.msra.mxu0 0
        %3303 = vmatprep.subr.bf16.mxu0 0
        %3304 = vmatpush1.bf16.msra.mxu0 0
        %3305 = vmatprep.subr.bf16.mxu0 0
        %3306 = vmatpush1.bf16.msra.mxu0 0
        %3307 = vmatprep.subr.bf16.mxu0 0
        %3308 = vmatpush1.bf16.msra.mxu0 0
        %3309 = vmatprep.mubr.bf16.mxu0 0
        %3310 = vmatmul.mubr.bf16.gmra.mrb[0].mxu0 %v3242
        %v3311 = vpop.f32.mrb[0].mxu0
        %v3312 = vadd.f32 %v3101, %v3311
        %v3313 = vpop.f32.mrb[0].mxu0
        %v3314 = vpop.f32.mrb[0].mxu0
        %v3315 = vadd.f32 %v3104, %v3314
        %v3316 = vpop.f32.mrb[0].mxu0
        %3317 = vmatprep.mubr.bf16.mxu0 0
        %3318 = vmatmul.mubr.bf16.gmra.mrb[0].mxu0 %v3244
        %v3319 = vpop.f32.mrb[0].mxu0
        %v3320 = vadd.f32 %v3109, %v3319
        %v3321 = vpop.f32.mrb[0].mxu0
        %v3322 = vpop.f32.mrb[0].mxu0
        %v3323 = vadd.f32 %v3112, %v3322
        %v3324 = vpop.f32.mrb[0].mxu0
        %3325 = vmatprep.mubr.bf16.mxu0 0
        %3326 = vmatmul.mubr.bf16.gmra.mrb[0].mxu0 %v3246
        %v3327 = vpop.f32.mrb[0].mxu0
        %v3328 = vadd.f32 %v3117, %v3327
        %v3329 = vpop.f32.mrb[0].mxu0
        %v3330 = vpop.f32.mrb[0].mxu0
        %v3331 = vadd.f32 %v3120, %v3330
        %v3332 = vpop.f32.mrb[0].mxu0
        %3333 = vmatprep.mubr.bf16.mxu0 0
        %3334 = vmatmul.mubr.bf16.gmra.mrb[0].mxu0 %v3248
        %v3335 = vpop.f32.mrb[0].mxu0
        %v3336 = vadd.f32 %v3125, %v3335
        %v3337 = vpop.f32.mrb[0].mxu0
        %v3338 = vpop.f32.mrb[0].mxu0
        %v3339 = vadd.f32 %v3128, %v3338
        %v3340 = vpop.f32.mrb[0].mxu0
        %3341 = vmatprep.mubr.bf16.mxu0 0
        %3342 = vmatmul.mubr.bf16.gmra.mrb[0].mxu0 %v3250
        %v3343 = vpop.f32.mrb[0].mxu0
        %v3344 = vadd.f32 %v3133, %v3343
        %v3345 = vpop.f32.mrb[0].mxu0
        %v3346 = vpop.f32.mrb[0].mxu0
        %v3347 = vadd.f32 %v3136, %v3346
        %v3348 = vpop.f32.mrb[0].mxu0
        %3349 = vmatprep.mubr.bf16.mxu0 0
        %3350 = vmatmul.mubr.bf16.gmra.mrb[0].mxu0 %v3252
        %v3351 = vpop.f32.mrb[0].mxu0
        %v3352 = vadd.f32 %v3141, %v3351
        %v3353 = vpop.f32.mrb[0].mxu0
        %v3354 = vpop.f32.mrb[0].mxu0
        %v3355 = vadd.f32 %v3144, %v3354
        %v3356 = vpop.f32.mrb[0].mxu0
        %3357 = vmatprep.mubr.bf16.mxu0 0
        %3358 = vmatmul.mubr.bf16.gmra.mrb[0].mxu0 %v3254
        %v3359 = vpop.f32.mrb[0].mxu0
        %v3360 = vadd.f32 %v3149, %v3359
        %v3361 = vpop.f32.mrb[0].mxu0
        %v3362 = vpop.f32.mrb[0].mxu0
        %v3363 = vadd.f32 %v3152, %v3362
        %v3364 = vpop.f32.mrb[0].mxu0
        %3365 = vmatprep.mubr.bf16.mxu0 0
        %3366 = vmatmul.mubr.bf16.gmra.mrb[0].mxu0 %v3256
        %v3367 = vpop.f32.mrb[0].mxu0
        %v3368 = vadd.f32 %v3157, %v3367
        %v3369 = vpop.f32.mrb[0].mxu0
        %v3370 = vpop.f32.mrb[0].mxu0
        %v3371 = vadd.f32 %v3160, %v3370
        %v3372 = vpop.f32.mrb[0].mxu0
        %3373 = vmatprep.mubr.bf16.mxu0 0
        %3374 = vmatmul.mubr.bf16.gmra.mrb[0].mxu0 %v3258
        %v3375 = vpop.f32.mrb[0].mxu0
        %v3376 = vadd.f32 %v3165, %v3375
        %v3377 = vpop.f32.mrb[0].mxu0
        %v3378 = vpop.f32.mrb[0].mxu0
        %v3379 = vadd.f32 %v3168, %v3378
        %v3380 = vpop.f32.mrb[0].mxu0
        %3381 = vmatprep.mubr.bf16.mxu0 0
        %3382 = vmatmul.mubr.bf16.gmra.mrb[0].mxu0 %v3260
        %v3383 = vpop.f32.mrb[0].mxu0
        %v3384 = vadd.f32 %v3173, %v3383
        %v3385 = vpop.f32.mrb[0].mxu0
        %v3386 = vpop.f32.mrb[0].mxu0
        %v3387 = vadd.f32 %v3176, %v3386
        %v3388 = vpop.f32.mrb[0].mxu0
        %3389 = vmatprep.mubr.bf16.mxu0 0
        %3390 = vmatmul.mubr.bf16.gmra.mrb[0].mxu0 %v3262
        %v3391 = vpop.f32.mrb[0].mxu0
        %v3392 = vadd.f32 %v3181, %v3391
        %v3393 = vpop.f32.mrb[0].mxu0
        %v3394 = vpop.f32.mrb[0].mxu0
        %v3395 = vadd.f32 %v3184, %v3394
        %v3396 = vpop.f32.mrb[0].mxu0
        %3397 = vmatprep.mubr.bf16.mxu0 0
        %3398 = vmatmul.mubr.bf16.gmra.mrb[0].mxu0 %v3264
        %v3399 = vpop.f32.mrb[0].mxu0
        %v3400 = vadd.f32 %v3189, %v3399
        %v3401 = vpop.f32.mrb[0].mxu0
        %v3402 = vpop.f32.mrb[0].mxu0
        %v3403 = vadd.f32 %v3192, %v3402
        %v3404 = vpop.f32.mrb[0].mxu0
        %3405 = vmatprep.mubr.bf16.mxu0 0
        %3406 = vmatmul.mubr.bf16.gmra.mrb[0].mxu0 %v3266
        %v3407 = vpop.f32.mrb[0].mxu0
        %v3408 = vadd.f32 %v3197, %v3407
        %v3409 = vpop.f32.mrb[0].mxu0
        %v3410 = vpop.f32.mrb[0].mxu0
        %v3411 = vadd.f32 %v3200, %v3410
        %v3412 = vpop.f32.mrb[0].mxu0
        %3413 = vmatprep.mubr.bf16.mxu0 0
        %3414 = vmatmul.mubr.bf16.gmra.mrb[0].mxu0 %v3268
        %v3415 = vpop.f32.mrb[0].mxu0
        %v3416 = vadd.f32 %v3205, %v3415
        %v3417 = vpop.f32.mrb[0].mxu0
        %v3418 = vpop.f32.mrb[0].mxu0
        %v3419 = vadd.f32 %v3208, %v3418
        %v3420 = vpop.f32.mrb[0].mxu0
        %3421 = vmatprep.mubr.bf16.mxu0 0
        %3422 = vmatmul.mubr.bf16.gmra.mrb[0].mxu0 %v3270
        %v3423 = vpop.f32.mrb[0].mxu0
        %v3424 = vadd.f32 %v3213, %v3423
        %v3425 = vpop.f32.mrb[0].mxu0
        %v3426 = vpop.f32.mrb[0].mxu0
        %v3427 = vadd.f32 %v3216, %v3426
        %v3428 = vpop.f32.mrb[0].mxu0
        %3429 = vmatprep.mubr.bf16.mxu0 0
        %3430 = vmatmul.mubr.bf16.gmra.mrb[0].mxu0 %v3272
        %v3431 = vpop.f32.mrb[0].mxu0
        %v3432 = vadd.f32 %v3221, %v3431
        %v3433 = vpop.f32.mrb[0].mxu0
        %v3434 = vpop.f32.mrb[0].mxu0
        %v3435 = vadd.f32 %v3224, %v3434
        %v3436 = vpop.f32.mrb[0].mxu0
        %3437 = vdwg.mxu0
        %v3438 = vpack.c.bf16 %v3315, %v3312
        %v3439 = vpack.c.bf16 %v3323, %v3320
        %v3440 = vpack.c.bf16 %v3331, %v3328
        %v3441 = vpack.c.bf16 %v3339, %v3336
        %v3442 = vpack.c.bf16 %v3347, %v3344
        %v3443 = vpack.c.bf16 %v3355, %v3352
        %v3444 = vpack.c.bf16 %v3363, %v3360
        %v3445 = vpack.c.bf16 %v3371, %v3368
        %v3446 = vpack.c.bf16 %v3379, %v3376
        %v3447 = vpack.c.bf16 %v3387, %v3384
        %v3448 = vpack.c.bf16 %v3395, %v3392
        %v3449 = vpack.c.bf16 %v3403, %v3400
        %v3450 = vpack.c.bf16 %v3411, %v3408
        %v3451 = vpack.c.bf16 %v3419, %v3416
        %v3452 = vpack.c.bf16 %v3427, %v3424
        %v3453 = vpack.c.bf16 %v3435, %v3432
        %v3470 = vunpack.c.l.b16 %v3438
        %v3471 = vunpack.c.h.b16 %v3438
        %v3472 = vunpack.c.l.b16 %v3439
        %v3473 = vunpack.c.h.b16 %v3439
        %v3474 = vunpack.c.l.b16 %v3440
        %v3475 = vunpack.c.h.b16 %v3440
        %v3476 = vunpack.c.l.b16 %v3441
        %v3477 = vunpack.c.h.b16 %v3441
        %v3478 = vunpack.c.l.b16 %v3442
        %v3479 = vunpack.c.h.b16 %v3442
        %v3480 = vunpack.c.l.b16 %v3443
        %v3481 = vunpack.c.h.b16 %v3443
        %v3482 = vunpack.c.l.b16 %v3444
        %v3483 = vunpack.c.h.b16 %v3444
        %v3484 = vunpack.c.l.b16 %v3445
        %v3485 = vunpack.c.h.b16 %v3445
        %v3486 = vunpack.c.l.b16 %v3446
        %v3487 = vunpack.c.h.b16 %v3446
        %v3488 = vunpack.c.l.b16 %v3447
        %v3489 = vunpack.c.h.b16 %v3447
        %v3490 = vunpack.c.l.b16 %v3448
        %v3491 = vunpack.c.h.b16 %v3448
        %v3492 = vunpack.c.l.b16 %v3449
        %v3493 = vunpack.c.h.b16 %v3449
        %v3494 = vunpack.c.l.b16 %v3450
        %v3495 = vunpack.c.h.b16 %v3450
        %v3496 = vunpack.c.l.b16 %v3451
        %v3497 = vunpack.c.h.b16 %v3451
        %v3498 = vunpack.c.l.b16 %v3452
        %v3499 = vunpack.c.h.b16 %v3452
        %v3500 = vunpack.c.l.b16 %v3453
        %v3501 = vunpack.c.h.b16 %v3453
        %v3502 = vpack.c.b16 %v3470, %v3470
        %v3503 = vpack.c.b16 %v3471, %v3471
        %v3504 = vpack.c.b16 %v3472, %v3472
        %v3505 = vpack.c.b16 %v3473, %v3473
        %v3506 = vpack.c.b16 %v3474, %v3474
        %v3507 = vpack.c.b16 %v3475, %v3475
        %v3508 = vpack.c.b16 %v3476, %v3476
        %v3509 = vpack.c.b16 %v3477, %v3477
        %v3510 = vpack.c.b16 %v3478, %v3478
        %v3511 = vpack.c.b16 %v3479, %v3479
        %v3512 = vpack.c.b16 %v3480, %v3480
        %v3513 = vpack.c.b16 %v3481, %v3481
        %v3514 = vpack.c.b16 %v3482, %v3482
        %v3515 = vpack.c.b16 %v3483, %v3483
        %v3516 = vpack.c.b16 %v3484, %v3484
        %v3517 = vpack.c.b16 %v3485, %v3485
        %v3518 = vpack.c.b16 %v3486, %v3486
        %v3519 = vpack.c.b16 %v3487, %v3487
        %v3520 = vpack.c.b16 %v3488, %v3488
        %v3521 = vpack.c.b16 %v3489, %v3489
        %v3522 = vpack.c.b16 %v3490, %v3490
        %v3523 = vpack.c.b16 %v3491, %v3491
        %v3524 = vpack.c.b16 %v3492, %v3492
        %v3525 = vpack.c.b16 %v3493, %v3493
        %v3526 = vpack.c.b16 %v3494, %v3494
        %v3527 = vpack.c.b16 %v3495, %v3495
        %v3528 = vpack.c.b16 %v3496, %v3496
        %v3529 = vpack.c.b16 %v3497, %v3497
        %v3530 = vpack.c.b16 %v3498, %v3498
        %v3531 = vpack.c.b16 %v3499, %v3499
        %v3532 = vpack.c.b16 %v3500, %v3500
        %v3533 = vpack.c.b16 %v3501, %v3501
        %3566 = vst [vmem:[%s667] sm:$0xf] %v3502
        %3567 = vst [vmem:[%s667 + $0x4] sm:$0xf] %v3503
        %3568 = vst [vmem:[%s667 + $0x8] sm:$0xf] %v3504
        %3569 = vst [vmem:[%s667 + $0xc] sm:$0xf] %v3505
        %3570 = vst [vmem:[%s667 + $0x10] sm:$0xf] %v3506
        %3571 = vst [vmem:[%s667 + $0x14] sm:$0xf] %v3507
        %3572 = vst [vmem:[%s667 + $0x18] sm:$0xf] %v3508
        %3573 = vst [vmem:[%s667 + $0x1c] sm:$0xf] %v3509
        %3574 = vst [vmem:[%s667 + $0x20] sm:$0xf] %v3510
        %3575 = vst [vmem:[%s667 + $0x24] sm:$0xf] %v3511
        %3576 = vst [vmem:[%s667 + $0x28] sm:$0xf] %v3512
        %3577 = vst [vmem:[%s667 + $0x2c] sm:$0xf] %v3513
        %3578 = vst [vmem:[%s667 + $0x30] sm:$0xf] %v3514
        %3579 = vst [vmem:[%s667 + $0x34] sm:$0xf] %v3515
        %3580 = vst [vmem:[%s667 + $0x38] sm:$0xf] %v3516
        %3581 = vst [vmem:[%s667 + $0x3c] sm:$0xf] %v3517
        %3582 = vst [vmem:[%s667 + $0x40] sm:$0xf] %v3518
        %3583 = vst [vmem:[%s667 + $0x44] sm:$0xf] %v3519
        %3584 = vst [vmem:[%s667 + $0x48] sm:$0xf] %v3520
        %3585 = vst [vmem:[%s667 + $0x4c] sm:$0xf] %v3521
        %3586 = vst [vmem:[%s667 + $0x50] sm:$0xf] %v3522
        %3587 = vst [vmem:[%s667 + $0x54] sm:$0xf] %v3523
        %3588 = vst [vmem:[%s667 + $0x58] sm:$0xf] %v3524
        %3589 = vst [vmem:[%s667 + $0x5c] sm:$0xf] %v3525
        %3590 = vst [vmem:[%s667 + $0x60] sm:$0xf] %v3526
        %3591 = vst [vmem:[%s667 + $0x64] sm:$0xf] %v3527
        %3592 = vst [vmem:[%s667 + $0x68] sm:$0xf] %v3528
        %3593 = vst [vmem:[%s667 + $0x6c] sm:$0xf] %v3529
        %3594 = vst [vmem:[%s667 + $0x70] sm:$0xf] %v3530
        %3595 = vst [vmem:[%s667 + $0x74] sm:$0xf] %v3531
        %3596 = vst [vmem:[%s667 + $0x78] sm:$0xf] %v3532
        %3597 = vst [vmem:[%s667 + $0x7c] sm:$0xf] %v3533
        %v3598 = vadd.f32 %v3312, %v3315
        %v3599 = vadd.f32 %v3598, %v3320
        %v3600 = vadd.f32 %v3599, %v3323
        %v3601 = vadd.f32 %v3600, %v3328
        %v3602 = vadd.f32 %v3601, %v3331
        %v3603 = vadd.f32 %v3602, %v3336
        %v3604 = vadd.f32 %v3603, %v3339
        %v3605 = vadd.f32 %v3604, %v3344
        %v3606 = vadd.f32 %v3605, %v3347
        %v3607 = vadd.f32 %v3606, %v3352
        %v3608 = vadd.f32 %v3607, %v3355
        %v3609 = vadd.f32 %v3608, %v3360
        %v3610 = vadd.f32 %v3609, %v3363
        %v3611 = vadd.f32 %v3610, %v3368
        %v3612 = vadd.f32 %v3611, %v3371
        %v3613 = vadd.f32 %v3612, %v3376
        %v3614 = vadd.f32 %v3613, %v3379
        %v3615 = vadd.f32 %v3614, %v3384
        %v3616 = vadd.f32 %v3615, %v3387
        %v3617 = vadd.f32 %v3616, %v3392
        %v3618 = vadd.f32 %v3617, %v3395
        %v3619 = vadd.f32 %v3618, %v3400
        %v3620 = vadd.f32 %v3619, %v3403
        %v3621 = vadd.f32 %v3620, %v3408
        %v3622 = vadd.f32 %v3621, %v3411
        %v3623 = vadd.f32 %v3622, %v3416
        %v3624 = vadd.f32 %v3623, %v3419
        %v3625 = vadd.f32 %v3624, %v3424
        %v3626 = vadd.f32 %v3625, %v3427
        %v3627 = vadd.f32 %v3626, %v3432
        %v3628 = vadd.f32 %v3627, %v3435
        %v3629 = vrot.slane %v3628, 4
        %v3630 = vadd.f32 %v3628, %v3629
        %v3631 = vrot.slane %v3630, 2
        %v3632 = vadd.f32 %v3630, %v3631
        %v3633 = vrot.slane %v3632, 1
        %v3634 = vadd.f32 %v3632, %v3633
        %v3635 = vmul.f32 %v3312, %v3312
        %v3636 = vmul.f32 %v3315, %v3315
        %v3637 = vmul.f32 %v3320, %v3320
        %v3638 = vmul.f32 %v3323, %v3323
        %v3639 = vmul.f32 %v3328, %v3328
        %v3640 = vmul.f32 %v3331, %v3331
        %v3641 = vmul.f32 %v3336, %v3336
        %v3642 = vmul.f32 %v3339, %v3339
        %v3643 = vmul.f32 %v3344, %v3344
        %v3644 = vmul.f32 %v3347, %v3347
        %v3645 = vmul.f32 %v3352, %v3352
        %v3646 = vmul.f32 %v3355, %v3355
        %v3647 = vmul.f32 %v3360, %v3360
        %v3648 = vmul.f32 %v3363, %v3363
        %v3649 = vmul.f32 %v3368, %v3368
        %v3650 = vmul.f32 %v3371, %v3371
        %v3651 = vmul.f32 %v3376, %v3376
        %v3652 = vmul.f32 %v3379, %v3379
        %v3653 = vmul.f32 %v3384, %v3384
        %v3654 = vmul.f32 %v3387, %v3387
        %v3655 = vmul.f32 %v3392, %v3392
        %v3656 = vmul.f32 %v3395, %v3395
        %v3657 = vmul.f32 %v3400, %v3400
        %v3658 = vmul.f32 %v3403, %v3403
        %v3659 = vmul.f32 %v3408, %v3408
        %v3660 = vmul.f32 %v3411, %v3411
        %v3661 = vmul.f32 %v3416, %v3416
        %v3662 = vmul.f32 %v3419, %v3419
        %v3663 = vmul.f32 %v3424, %v3424
        %v3664 = vmul.f32 %v3427, %v3427
        %v3665 = vmul.f32 %v3432, %v3432
        %v3666 = vmul.f32 %v3435, %v3435
        %v3667 = vadd.f32 %v3635, %v3636
        %v3668 = vadd.f32 %v3667, %v3637
        %v3669 = vadd.f32 %v3668, %v3638
        %v3670 = vadd.f32 %v3669, %v3639
        %v3671 = vadd.f32 %v3670, %v3640
        %v3672 = vadd.f32 %v3671, %v3641
        %v3673 = vadd.f32 %v3672, %v3642
        %v3674 = vadd.f32 %v3673, %v3643
        %v3675 = vadd.f32 %v3674, %v3644
        %v3676 = vadd.f32 %v3675, %v3645
        %v3677 = vadd.f32 %v3676, %v3646
        %v3678 = vadd.f32 %v3677, %v3647
        %v3679 = vadd.f32 %v3678, %v3648
        %v3680 = vadd.f32 %v3679, %v3649
        %v3681 = vadd.f32 %v3680, %v3650
        %v3682 = vadd.f32 %v3681, %v3651
        %v3683 = vadd.f32 %v3682, %v3652
        %v3684 = vadd.f32 %v3683, %v3653
        %v3685 = vadd.f32 %v3684, %v3654
        %v3686 = vadd.f32 %v3685, %v3655
        %v3687 = vadd.f32 %v3686, %v3656
        %v3688 = vadd.f32 %v3687, %v3657
        %v3689 = vadd.f32 %v3688, %v3658
        %v3690 = vadd.f32 %v3689, %v3659
        %v3691 = vadd.f32 %v3690, %v3660
        %v3692 = vadd.f32 %v3691, %v3661
        %v3693 = vadd.f32 %v3692, %v3662
        %v3694 = vadd.f32 %v3693, %v3663
        %v3695 = vadd.f32 %v3694, %v3664
        %v3696 = vadd.f32 %v3695, %v3665
        %v3697 = vadd.f32 %v3696, %v3666
        %v3698 = vrot.slane %v3697, 4
        %v3699 = vadd.f32 %v3697, %v3698
        %v3700 = vrot.slane %v3699, 2
        %v3701 = vadd.f32 %v3699, %v3700
        %v3702 = vrot.slane %v3701, 1
        %v3703 = vadd.f32 %v3701, %v3702
        %vm3704 = vcmask 1040384
        %v3705 = vsel %vm3704, %v3634, %v3703
        %3706 = vst [vmem:[%s674] sm:$0x3] %v3705
        %s3707 = sand.u32 %s304, 1
        %s3708 = scalar_lea.sflag [#allocation4], %s3707
        %s3709 = sand.u32 %s304, 1
        %s3710 = smul.addr %s3709, 128
        %s3711 = scalar_lea.vmem [#allocation16], %s3710
        %s3712 = sand.u32 %s332, 1
        %s3713 = scalar_lea.sflag [#allocation18], %s3712
        %s3714 = sand.u32 %s332, 1
        %s3715 = smul.addr %s3714, 2
        %s3716 = scalar_lea.vmem [#allocation17], %s3715
        // Predicated region
        $region85: #{upsample_bn_forward.2} parent=51 // pred_check
          %p3717 = pneg %p314
        $region86: #{upsample_bn_forward.2} parent=51 // pred_check_branch
          %3719 = sbr.rel (%p3717) target = $region88
        $region87: #{upsample_bn_forward.2} parent=51 // pred_region
          %s3720 = smul.u32 16, %s45
          %s3722 = ssub.s32 2048, 2048
          %3723 = vsyncadd %s3708, %s3722
          %s3724 = smul.addr %s3720, 2
          %s3725 = smul.addr %s44, 32
          %s3726 = sadd.s32 %s3724, %s3725
          %s3727 = smul.addr %s3726, 64
          %s3728 = scalar_lea.hbm %s8, %s3727
          %s3729 = sshll.u32 %s3711, 4
          %s3730 = int_to_ptr.vmem [resolvable:$true] %s3729
          %3735 = dma.vmem_to_hbm [thread:$0]  %s3730, 2048, %s3728, %s3708, 64, 64, 4
        $region88: #{upsample_bn_forward.2} parent=51 // pred_fallthru
          _
        // Predicated region
        $region89: #{upsample_bn_forward.2} parent=51 // pred_check
          %p3736 = pneg %p342
        $region90: #{upsample_bn_forward.2} parent=51 // pred_check_branch
          %3738 = sbr.rel (%p3736) target = $region92
        $region91: #{upsample_bn_forward.2} parent=51 // pred_region
          %s3740 = ssub.s32 32, 32
          %3741 = vsyncadd %s3713, %s3740
          %s3742 = sadd.s32 %s45, %s44
          %s3743 = smul.addr %s3742, 32
          %s3744 = scalar_lea.hbm %s9, %s3743
          %s3746 = sshll.u32 %s3716, 4
          %s3747 = int_to_ptr.vmem [resolvable:$true] %s3746
          %3749 = dma.vmem_to_hbm [thread:$0]  %s3747, 32, %s3744, %s3713
        $region92: #{upsample_bn_forward.2} parent=51 // pred_fallthru
          _
      $region52: #{upsample_bn_forward.2} parent=5 // pred_fallthru
        _
      %p3750 = scmp.le.s32.totalorder 2, %s35
      // Predicated region
      $region93: #{upsample_bn_forward.2} parent=5 // pred_check
        %p3751 = pneg %p3750
      $region94: #{upsample_bn_forward.2} parent=5 // pred_check_branch
        %3753 = sbr.rel (%p3751) target = $region96
      $region95: #{upsample_bn_forward.2} parent=5 // pred_region
        %s3754 = ssub.s32 %s35, 2
        // Predicated region
        $region97: #{upsample_bn_forward.2} parent=95 // pred_check
          %p3755 = pneg %p320
        $region98: #{upsample_bn_forward.2} parent=95 // pred_check_branch
          %3757 = sbr.rel (%p3755) target = $region100
        $region99: #{upsample_bn_forward.2} parent=95 // pred_region
          %s3758 = sand.u32 %s305, 1
          %s3759 = scalar_lea.sflag [#allocation4], %s3758
          %s3760 = sand.u32 %s305, 1
          %s3761 = smul.addr %s3760, 128
          %s3762 = scalar_lea.vmem [#allocation16], %s3761
          %3763 = dma.done %s3759, 2048
        $region100: #{upsample_bn_forward.2} parent=95 // pred_fallthru
          _
        // Predicated region
        $region101: #{upsample_bn_forward.2} parent=95 // pred_check
          %p3764 = pneg %p348
        $region102: #{upsample_bn_forward.2} parent=95 // pred_check_branch
          %3766 = sbr.rel (%p3764) target = $region104
        $region103: #{upsample_bn_forward.2} parent=95 // pred_region
          %s3767 = sand.u32 %s333, 1
          %s3768 = scalar_lea.sflag [#allocation18], %s3767
          %s3769 = sand.u32 %s333, 1
          %s3770 = smul.addr %s3769, 2
          %s3771 = scalar_lea.vmem [#allocation17], %s3770
          %3772 = dma.done %s3768, 32
        $region104: #{upsample_bn_forward.2} parent=95 // pred_fallthru
          _
      $region96: #{upsample_bn_forward.2} parent=5 // pred_fallthru
        _
    $region6: #{upsample_bn_forward.2} parent=1 // loop_footer
      %s39 = sadd.s32 1, %s35
    $region7: #{upsample_bn_forward.2} parent=1 // loop_footer_branch
      %34 = sbr.rel target = $region3
    $region8: #{upsample_bn_forward.2} parent=1 // loop_exit
      _
    %3773 = vsyncpa [#allocation3], 1
    %s3774 = scalar_lea.sflag [#allocation3], 1
    %3775 = vsyncpa %s3774, 1
    %3776 = vsyncpa [#allocation6], 1
    %s3777 = scalar_lea.sflag [#allocation6], 1
    %3778 = vsyncpa %s3777, 1
    %3779 = vsyncpa [#allocation9], 1
    %s3780 = scalar_lea.sflag [#allocation9], 1
    %3781 = vsyncpa %s3780, 1
    %3782 = vsyncpa [#allocation12], 1
    %s3783 = scalar_lea.sflag [#allocation12], 1
    %3784 = vsyncpa %s3783, 1
    %3785 = vsyncpa [#allocation15], 1
    %3786 = vsyncpa [#allocation4], 1
    %s3787 = scalar_lea.sflag [#allocation4], 1
    %3788 = vsyncpa %s3787, 1
    %3789 = vsyncpa [#allocation18], 1
    %s3790 = scalar_lea.sflag [#allocation18], 1
    %3791 = vsyncpa %s3790, 1

// kernel: upsample_bn_forward.3
$region0: #{upsample_bn_forward.3}
  #allocation0 [shape = 'u32[]', space=smem, size = 0x4, offset = 0x4, fixed_abs, tag = 'smem constant byte address 0x4 - core index']
  #allocation1 [shape = 'u32[144,128]{1,0:T(1,128)}', space=vmem, size = 0x12000, scoped, tag = 'internal scratch']
  %s0 = inlined_call_operand.hbm [shape: bf16[2,16,16,128], index: 0, kind: input, shape index: {}, may-alias: {0,1,2}]
  %s1 = inlined_call_operand.hbm [shape: bf16[2,16,16,128], index: 1, kind: input, shape index: {}, may-alias: {0,1,2}]
  %s2 = inlined_call_operand.hbm [shape: bf16[2,16,16,128], index: 2, kind: input, shape index: {}, may-alias: {0,1,2}]
  %s3 = inlined_call_operand.hbm [shape: f32[1,128], index: 3, kind: input, shape index: {}]
  %s4 = inlined_call_operand.hbm [shape: f32[1,128], index: 4, kind: input, shape index: {}]
  %s5 = inlined_call_operand.hbm [shape: bf16[1152,128], index: 5, kind: input, shape index: {}]
  %s6 = inlined_call_operand.hbm [shape: bf16[2,16,16,128], index: 6, kind: output, shape index: {0}]
  %s7 = inlined_call_operand.hbm [shape: f32[2,1,2,128], index: 7, kind: output, shape index: {1}]
  %8 = xla_tuple %s6, %s7
  %s9 = sld [smem:[#allocation0]]
  $region89: #{upsample_bn_forward.3} parent=0
    _
  %s11 = ssub.s32 1, %s9
  %s12 = scalar_select 0, %s11, %s9
  $region1: #{upsample_bn_forward.3} parent=0
    #allocation2 [shape = 'u8[8192]{0}', space=vmem, size = 0x2000, scoped, tag = 'input window, operand 0']
    #allocation3 [shape = 's32[2]{0}', space=sflag, size = 0x8, scoped, tag = 'scoped memory for upsample_bn_forward.3']
    #allocation4 [shape = 's32[2]{0}', space=sflag, size = 0x8, scoped, tag = 'scoped memory for upsample_bn_forward.3']
    #allocation5 [shape = 'u8[131072]{0}', space=vmem, size = 0x20000, scoped, tag = 'input window, operand 1']
    #allocation6 [shape = 's32[2]{0}', space=sflag, size = 0x8, scoped, tag = 'scoped memory for upsample_bn_forward.3']
    #allocation7 [shape = 'u8[8192]{0}', space=vmem, size = 0x2000, scoped, tag = 'input window, operand 2']
    #allocation8 [shape = 'u8[512]{0}', space=vmem, size = 0x400, scoped, tag = 'input window, operand 3, single buffered']
    #allocation9 [shape = 's32[1]{0}', space=sflag, size = 0x4, scoped, tag = 'scoped memory for upsample_bn_forward.3']
    #allocation10 [shape = 'u8[512]{0}', space=vmem, size = 0x400, scoped, tag = 'input window, operand 4, single buffered']
    #allocation11 [shape = 'u8[294912]{0}', space=vmem, size = 0x48000, scoped, tag = 'input window, operand 5, single buffered']
    #allocation12 [shape = 's32[1]{0}', space=sflag, size = 0x4, scoped, tag = 'scoped memory for upsample_bn_forward.3']
    #allocation13 [shape = 'u8[131072]{0}', space=vmem, size = 0x20000, scoped, tag = 'output window, operand 0']
    #allocation14 [shape = 'u8[2048]{0}', space=vmem, size = 0x800, scoped, tag = 'output window, operand 1']
    #allocation15 [shape = 's32[2]{0}', space=sflag, size = 0x8, scoped, tag = 'scoped memory for upsample_bn_forward.3']
    %13 = vsyncpa [#allocation3], 0
    %s14 = scalar_lea.sflag [#allocation3], 1
    %15 = vsyncpa %s14, 0
    %16 = vsyncpa [#allocation6], 0
    %s17 = scalar_lea.sflag [#allocation6], 1
    %18 = vsyncpa %s17, 0
    %19 = vsyncpa [#allocation9], 0
    %20 = vsyncpa [#allocation12], 0
    %21 = vsyncpa [#allocation4], 0
    %s22 = scalar_lea.sflag [#allocation4], 1
    %23 = vsyncpa %s22, 0
    %24 = vsyncpa [#allocation15], 0
    %s25 = scalar_lea.sflag [#allocation15], 1
    %26 = vsyncpa %s25, 0
    loop: start=0, step=1, limit=4
    $region2: #{upsample_bn_forward.3} parent=1 // loop_pre_header
      _
    $region3: #{upsample_bn_forward.3} parent=1 // loop_header
      %s28 = sphi 0, %s32
      %p29 = scmp.ge.s32.totalorder %s28, 4
      %s35 = sphi 0, %s47
      %s36 = sphi 0, %s43
      %s37 = sphi 0, %s35
      %s38 = sphi 0, %s36
      %s39 = sphi 0, %s37
      %s40 = sphi 0, %s38
      %s60 = sphi 0, %s62
      %s63 = sphi 0, %s60
      %s64 = sphi 0, %s63
      %s80 = sphi 0, %s64
      %s88 = sphi 0, %s90
      %s91 = sphi 0, %s88
      %s92 = sphi 0, %s91
      %s108 = sphi 0, %s92
      %s124 = sphi 0, %s126
      %s127 = sphi 0, %s124
      %s128 = sphi 0, %s127
      %s144 = sphi 0, %s128
      %s148 = sphi 0, %s148
      %s150 = sphi 0, %s148
      %s151 = sphi 0, %s150
      %s165 = sphi 0, %s151
      %s169 = sphi 0, %s169
      %s171 = sphi 0, %s169
      %s172 = sphi 0, %s171
      %s186 = sphi 0, %s172
      %s190 = sphi 0, %s190
      %s192 = sphi 0, %s190
      %s193 = sphi 0, %s192
      %s207 = sphi 0, %s193
      %s215 = sphi 0, %s217
      %s218 = sphi 0, %s215
      %s219 = sphi 0, %s218
      %s235 = sphi 0, %s219
      %s243 = sphi 0, %s245
      %s246 = sphi 0, %s243
      %s247 = sphi 0, %s246
      %s263 = sphi 0, %s247
    $region4: #{upsample_bn_forward.3} parent=1 // loop_header_branch
      %31 = sbr.rel (%p29) target = $region8
    $region5: #{upsample_bn_forward.3} parent=1 // loop_body
      %s33 = ssub.s32 %s28, 1
      %s34 = ssub.s32 %s28, 2
      %s41 = sadd.s32 1, %s36
      %p42 = scmp.ge.s32.totalorder %s41, 1
      %s43 = scalar_select %p42, 0, %s41
      %s44 = sadd.s32 1, %s35
      %s45 = scalar_select %p42, %s44, %s35
      %p46 = scmp.ge.s32.totalorder %s45, 2
      %s47 = scalar_select %p46, 0, %s45
      %s48 = smul.u32 %s36, 16
      %s49 = ssub.s32 %s48, 1
      %p50 = scmp.gt.s32.totalorder %s49, 0
      %s51 = scalar_select %p50, %s49, 0
      %s52 = smul.u32 %s43, 16
      %s53 = ssub.s32 %s52, 1
      %p54 = scmp.gt.s32.totalorder %s53, 0
      %s55 = scalar_select %p54, %s53, 0
      %s56 = ssub.s32 %s35, %s47
      %s57 = ssub.s32 %s51, %s55
      %s58 = sor.u32 %s56, %s57
      %p59 = scmp.eq.s32.totalorder %s58, 0
      %s61 = sadd.s32 %s60, 1
      %s62 = scalar_select %p59, %s60, %s61
      %p65 = pneg %p59
      %p66 = scmp.eq.s32.totalorder %s28, 1
      %p67 = por %p65, %p66
      %p68 = scmp.ne.s32.totalorder %s60, %s63
      %p69 = scmp.eq.s32.totalorder %s28, 0
      %p70 = por %p68, %p69
      %p71 = scmp.ne.s32.totalorder %s60, %s63
      %p72 = scmp.eq.s32.totalorder %s33, 1
      %p73 = por %p71, %p72
      %p74 = scmp.ne.s32.totalorder %s63, %s64
      %p75 = scmp.eq.s32.totalorder %s33, 0
      %p76 = por %p74, %p75
      %p77 = scmp.ne.s32.totalorder %s63, %s64
      %p78 = scmp.eq.s32.totalorder %s34, 1
      %p79 = por %p77, %p78
      %p81 = scmp.ne.s32.totalorder %s64, %s80
      %p82 = scmp.eq.s32.totalorder %s34, 0
      %p83 = por %p81, %p82
      %s84 = ssub.s32 %s35, %s47
      %s85 = ssub.s32 %s36, %s43
      %s86 = sor.u32 %s84, %s85
      %p87 = scmp.eq.s32.totalorder %s86, 0
      %s89 = sadd.s32 %s88, 1
      %s90 = scalar_select %p87, %s88, %s89
      %p93 = pneg %p87
      %p94 = scmp.eq.s32.totalorder %s28, 1
      %p95 = por %p93, %p94
      %p96 = scmp.ne.s32.totalorder %s88, %s91
      %p97 = scmp.eq.s32.totalorder %s28, 0
      %p98 = por %p96, %p97
      %p99 = scmp.ne.s32.totalorder %s88, %s91
      %p100 = scmp.eq.s32.totalorder %s33, 1
      %p101 = por %p99, %p100
      %p102 = scmp.ne.s32.totalorder %s91, %s92
      %p103 = scmp.eq.s32.totalorder %s33, 0
      %p104 = por %p102, %p103
      %p105 = scmp.ne.s32.totalorder %s91, %s92
      %p106 = scmp.eq.s32.totalorder %s34, 1
      %p107 = por %p105, %p106
      %p109 = scmp.ne.s32.totalorder %s92, %s108
      %p110 = scmp.eq.s32.totalorder %s34, 0
      %p111 = por %p109, %p110
      %s112 = smul.u32 %s36, 16
      %s113 = sadd.s32 %s112, 16
      %p114 = scmp.lt.s32.totalorder %s113, 15
      %s115 = scalar_select %p114, %s113, 15
      %s116 = smul.u32 %s43, 16
      %s117 = sadd.s32 %s116, 16
      %p118 = scmp.lt.s32.totalorder %s117, 15
      %s119 = scalar_select %p118, %s117, 15
      %s120 = ssub.s32 %s35, %s47
      %s121 = ssub.s32 %s115, %s119
      %s122 = sor.u32 %s120, %s121
      %p123 = scmp.eq.s32.totalorder %s122, 0
      %s125 = sadd.s32 %s124, 1
      %s126 = scalar_select %p123, %s124, %s125
      %p129 = pneg %p123
      %p130 = scmp.eq.s32.totalorder %s28, 1
      %p131 = por %p129, %p130
      %p132 = scmp.ne.s32.totalorder %s124, %s127
      %p133 = scmp.eq.s32.totalorder %s28, 0
      %p134 = por %p132, %p133
      %p135 = scmp.ne.s32.totalorder %s124, %s127
      %p136 = scmp.eq.s32.totalorder %s33, 1
      %p137 = por %p135, %p136
      %p138 = scmp.ne.s32.totalorder %s127, %s128
      %p139 = scmp.eq.s32.totalorder %s33, 0
      %p140 = por %p138, %p139
      %p141 = scmp.ne.s32.totalorder %s127, %s128
      %p142 = scmp.eq.s32.totalorder %s34, 1
      %p143 = por %p141, %p142
      %p145 = scmp.ne.s32.totalorder %s128, %s144
      %p146 = scmp.eq.s32.totalorder %s34, 0
      %p147 = por %p145, %p146
      %s149 = sadd.s32 %s148, 1
      %p152 = scmp.eq.s32.totalorder %s28, 1
      %p153 = scmp.ne.s32.totalorder %s148, %s150
      %p154 = scmp.eq.s32.totalorder %s28, 0
      %p155 = por %p153, %p154
      %p156 = scmp.ne.s32.totalorder %s148, %s150
      %p157 = scmp.eq.s32.totalorder %s33, 1
      %p158 = por %p156, %p157
      %p159 = scmp.ne.s32.totalorder %s150, %s151
      %p160 = scmp.eq.s32.totalorder %s33, 0
      %p161 = por %p159, %p160
      %p162 = scmp.ne.s32.totalorder %s150, %s151
      %p163 = scmp.eq.s32.totalorder %s34, 1
      %p164 = por %p162, %p163
      %p166 = scmp.ne.s32.totalorder %s151, %s165
      %p167 = scmp.eq.s32.totalorder %s34, 0
      %p168 = por %p166, %p167
      %s170 = sadd.s32 %s169, 1
      %p173 = scmp.eq.s32.totalorder %s28, 1
      %p174 = scmp.ne.s32.totalorder %s169, %s171
      %p175 = scmp.eq.s32.totalorder %s28, 0
      %p176 = por %p174, %p175
      %p177 = scmp.ne.s32.totalorder %s169, %s171
      %p178 = scmp.eq.s32.totalorder %s33, 1
      %p179 = por %p177, %p178
      %p180 = scmp.ne.s32.totalorder %s171, %s172
      %p181 = scmp.eq.s32.totalorder %s33, 0
      %p182 = por %p180, %p181
      %p183 = scmp.ne.s32.totalorder %s171, %s172
      %p184 = scmp.eq.s32.totalorder %s34, 1
      %p185 = por %p183, %p184
      %p187 = scmp.ne.s32.totalorder %s172, %s186
      %p188 = scmp.eq.s32.totalorder %s34, 0
      %p189 = por %p187, %p188
      %s191 = sadd.s32 %s190, 1
      %p194 = scmp.eq.s32.totalorder %s28, 1
      %p195 = scmp.ne.s32.totalorder %s190, %s192
      %p196 = scmp.eq.s32.totalorder %s28, 0
      %p197 = por %p195, %p196
      %p198 = scmp.ne.s32.totalorder %s190, %s192
      %p199 = scmp.eq.s32.totalorder %s33, 1
      %p200 = por %p198, %p199
      %p201 = scmp.ne.s32.totalorder %s192, %s193
      %p202 = scmp.eq.s32.totalorder %s33, 0
      %p203 = por %p201, %p202
      %p204 = scmp.ne.s32.totalorder %s192, %s193
      %p205 = scmp.eq.s32.totalorder %s34, 1
      %p206 = por %p204, %p205
      %p208 = scmp.ne.s32.totalorder %s193, %s207
      %p209 = scmp.eq.s32.totalorder %s34, 0
      %p210 = por %p208, %p209
      %s211 = ssub.s32 %s35, %s47
      %s212 = ssub.s32 %s36, %s43
      %s213 = sor.u32 %s211, %s212
      %p214 = scmp.eq.s32.totalorder %s213, 0
      %s216 = sadd.s32 %s215, 1
      %s217 = scalar_select %p214, %s215, %s216
      %p220 = pneg %p214
      %p221 = scmp.eq.s32.totalorder %s28, 1
      %p222 = por %p220, %p221
      %p223 = scmp.ne.s32.totalorder %s215, %s218
      %p224 = scmp.eq.s32.totalorder %s28, 0
      %p225 = por %p223, %p224
      %p226 = scmp.ne.s32.totalorder %s215, %s218
      %p227 = scmp.eq.s32.totalorder %s33, 1
      %p228 = por %p226, %p227
      %p229 = scmp.ne.s32.totalorder %s218, %s219
      %p230 = scmp.eq.s32.totalorder %s33, 0
      %p231 = por %p229, %p230
      %p232 = scmp.ne.s32.totalorder %s218, %s219
      %p233 = scmp.eq.s32.totalorder %s34, 1
      %p234 = por %p232, %p233
      %p236 = scmp.ne.s32.totalorder %s219, %s235
      %p237 = scmp.eq.s32.totalorder %s34, 0
      %p238 = por %p236, %p237
      %s239 = ssub.s32 %s35, %s47
      %s240 = ssub.s32 %s36, %s43
      %s241 = sor.u32 %s239, %s240
      %p242 = scmp.eq.s32.totalorder %s241, 0
      %s244 = sadd.s32 %s243, 1
      %s245 = scalar_select %p242, %s243, %s244
      %p248 = pneg %p242
      %p249 = scmp.eq.s32.totalorder %s28, 1
      %p250 = por %p248, %p249
      %p251 = scmp.ne.s32.totalorder %s243, %s246
      %p252 = scmp.eq.s32.totalorder %s28, 0
      %p253 = por %p251, %p252
      %p254 = scmp.ne.s32.totalorder %s243, %s246
      %p255 = scmp.eq.s32.totalorder %s33, 1
      %p256 = por %p254, %p255
      %p257 = scmp.ne.s32.totalorder %s246, %s247
      %p258 = scmp.eq.s32.totalorder %s33, 0
      %p259 = por %p257, %p258
      %p260 = scmp.ne.s32.totalorder %s246, %s247
      %p261 = scmp.eq.s32.totalorder %s34, 1
      %p262 = por %p260, %p261
      %p264 = scmp.ne.s32.totalorder %s247, %s263
      %p265 = scmp.eq.s32.totalorder %s34, 0
      %p266 = por %p264, %p265
      %p267 = scmp.le.s32.totalorder 1, %s28
      %p268 = scmp.lt.s32.totalorder %s28, 3
      %p269 = pnand %p267, %p268
      %p270 = pneg %p269
      // Predicated region
      $region9: #{upsample_bn_forward.3} parent=5 // pred_check
        _
      $region10: #{upsample_bn_forward.3} parent=5 // pred_check_branch
        %272 = sbr.rel (%p269) target = $region12
      $region11: #{upsample_bn_forward.3} parent=5 // pred_region
        %s273 = ssub.s32 %s28, 1
        // Predicated region
        $region13: #{upsample_bn_forward.3} parent=11 // pred_check
          %p274 = pneg %p161
        $region14: #{upsample_bn_forward.3} parent=11 // pred_check_branch
          %276 = sbr.rel (%p274) target = $region16
        $region15: #{upsample_bn_forward.3} parent=11 // pred_region
          %s278 = ssub.s32 16, 16
          %279 = vsyncadd [#allocation9], %s278
          %s281 = sshll.u32 [#allocation8], 4
          %s282 = int_to_ptr.vmem [resolvable:$true] %s281
          %284 = dma.hbm_to_vmem [thread:$0]  %s3, 16, %s282, [#allocation9]
        $region16: #{upsample_bn_forward.3} parent=11 // pred_fallthru
          _
        // Predicated region
        $region17: #{upsample_bn_forward.3} parent=11 // pred_check
          %p285 = pneg %p182
        $region18: #{upsample_bn_forward.3} parent=11 // pred_check_branch
          %287 = sbr.rel (%p285) target = $region20
        $region19: #{upsample_bn_forward.3} parent=11 // pred_region
          %s289 = ssub.s32 16, 16
          %290 = vsyncadd [#allocation9], %s289
          %s292 = sshll.u32 [#allocation10], 4
          %s293 = int_to_ptr.vmem [resolvable:$true] %s292
          %295 = dma.hbm_to_vmem [thread:$0]  %s4, 16, %s293, [#allocation9]
        $region20: #{upsample_bn_forward.3} parent=11 // pred_fallthru
          _
        // Predicated region
        $region21: #{upsample_bn_forward.3} parent=11 // pred_check
          %p296 = pneg %p203
        $region22: #{upsample_bn_forward.3} parent=11 // pred_check_branch
          %298 = sbr.rel (%p296) target = $region24
        $region23: #{upsample_bn_forward.3} parent=11 // pred_region
          %s300 = ssub.s32 9216, 9216
          %301 = vsyncadd [#allocation12], %s300
          %s302 = sshll.u32 [#allocation11], 4
          %s303 = int_to_ptr.vmem [resolvable:$true] %s302
          %308 = dma.hbm_to_vmem [thread:$0]  %s5, 9216, %s303, [#allocation12], 64, 64, 4
        $region24: #{upsample_bn_forward.3} parent=11 // pred_fallthru
          _
      $region12: #{upsample_bn_forward.3} parent=5 // pred_fallthru
        _
      %p309 = scmp.lt.s32.totalorder %s28, 2
      // Predicated region
      $region25: #{upsample_bn_forward.3} parent=5 // pred_check
        %p310 = pneg %p309
      $region26: #{upsample_bn_forward.3} parent=5 // pred_check_branch
        %312 = sbr.rel (%p310) target = $region28
      $region27: #{upsample_bn_forward.3} parent=5 // pred_region
        // Predicated region
        $region29: #{upsample_bn_forward.3} parent=27 // pred_check
          %p313 = pneg %p70
        $region30: #{upsample_bn_forward.3} parent=27 // pred_check_branch
          %315 = sbr.rel (%p313) target = $region32
        $region31: #{upsample_bn_forward.3} parent=27 // pred_region
          %s316 = sand.u32 %s60, 1
          %s317 = scalar_lea.sflag [#allocation3], %s316
          %s318 = sand.u32 %s60, 1
          %s319 = smul.addr %s318, 8
          %s320 = scalar_lea.vmem [#allocation2], %s319
          %s321 = smul.u32 %s36, 16
          %s322 = ssub.s32 %s321, 1
          %p323 = scmp.gt.s32.totalorder %s322, 0
          %s324 = scalar_select %p323, %s322, 0
          %s326 = ssub.s32 128, 128
          %327 = vsyncadd %s317, %s326
          %s328 = smul.addr %s324, 2
          %s329 = smul.addr %s35, 32
          %s330 = sadd.s32 %s328, %s329
          %s331 = smul.addr %s330, 64
          %s332 = scalar_lea.hbm %s0, %s331
          %s333 = sshll.u32 %s320, 4
          %s334 = int_to_ptr.vmem [resolvable:$true] %s333
          %339 = dma.hbm_to_vmem [thread:$0]  %s332, 128, %s334, %s317, 64, 64, 4
        $region32: #{upsample_bn_forward.3} parent=27 // pred_fallthru
          _
        // Predicated region
        $region33: #{upsample_bn_forward.3} parent=27 // pred_check
          %p340 = pneg %p98
        $region34: #{upsample_bn_forward.3} parent=27 // pred_check_branch
          %342 = sbr.rel (%p340) target = $region36
        $region35: #{upsample_bn_forward.3} parent=27 // pred_region
          %s343 = sand.u32 %s28, 1
          %s344 = scalar_lea.sflag [#allocation6], %s343
          %s345 = sand.u32 %s88, 1
          %s346 = smul.addr %s345, 128
          %s347 = scalar_lea.vmem [#allocation5], %s346
          %s348 = smul.u32 16, %s36
          %s350 = ssub.s32 2048, 2048
          %351 = vsyncadd %s344, %s350
          %s352 = smul.addr %s348, 2
          %s353 = smul.addr %s35, 32
          %s354 = sadd.s32 %s352, %s353
          %s355 = smul.addr %s354, 64
          %s356 = scalar_lea.hbm %s1, %s355
          %s357 = sshll.u32 %s347, 4
          %s358 = int_to_ptr.vmem [resolvable:$true] %s357
          %363 = dma.hbm_to_vmem [thread:$0]  %s356, 2048, %s358, %s344, 64, 64, 4
        $region36: #{upsample_bn_forward.3} parent=27 // pred_fallthru
          _
        // Predicated region
        $region37: #{upsample_bn_forward.3} parent=27 // pred_check
          %p364 = pneg %p134
        $region38: #{upsample_bn_forward.3} parent=27 // pred_check_branch
          %366 = sbr.rel (%p364) target = $region40
        $region39: #{upsample_bn_forward.3} parent=27 // pred_region
          %s367 = sand.u32 %s28, 1
          %s368 = scalar_lea.sflag [#allocation6], %s367
          %s369 = sand.u32 %s124, 1
          %s370 = smul.addr %s369, 8
          %s371 = scalar_lea.vmem [#allocation7], %s370
          %s372 = smul.u32 %s36, 16
          %s373 = sadd.s32 %s372, 16
          %p374 = scmp.lt.s32.totalorder %s373, 15
          %s375 = scalar_select %p374, %s373, 15
          %s377 = ssub.s32 128, 128
          %378 = vsyncadd %s368, %s377
          %s379 = smul.addr %s375, 2
          %s380 = smul.addr %s35, 32
          %s381 = sadd.s32 %s379, %s380
          %s382 = smul.addr %s381, 64
          %s383 = scalar_lea.hbm %s2, %s382
          %s384 = sshll.u32 %s371, 4
          %s385 = int_to_ptr.vmem [resolvable:$true] %s384
          %390 = dma.hbm_to_vmem [thread:$0]  %s383, 128, %s385, %s368, 64, 64, 4
        $region40: #{upsample_bn_forward.3} parent=27 // pred_fallthru
          _
      $region28: #{upsample_bn_forward.3} parent=5 // pred_fallthru
        _
      %p391 = scmp.le.s32.totalorder 1, %s28
      %p392 = scmp.lt.s32.totalorder %s28, 3
      %p393 = pnand %p391, %p392
      %p394 = pneg %p393
      // Predicated region
      $region41: #{upsample_bn_forward.3} parent=5 // pred_check
        _
      $region42: #{upsample_bn_forward.3} parent=5 // pred_check_branch
        %396 = sbr.rel (%p393) target = $region44
      $region43: #{upsample_bn_forward.3} parent=5 // pred_region
        %s397 = ssub.s32 %s28, 1
        %s398 = sand.u32 %s63, 1
        %s399 = scalar_lea.sflag [#allocation3], %s398
        %s400 = sand.u32 %s63, 1
        %s401 = smul.addr %s400, 8
        %s402 = scalar_lea.vmem [#allocation2], %s401
        // Predicated region
        $region45: #{upsample_bn_forward.3} parent=43 // pred_check
          %p403 = pneg %p76
        $region46: #{upsample_bn_forward.3} parent=43 // pred_check_branch
          %405 = sbr.rel (%p403) target = $region48
        $region47: #{upsample_bn_forward.3} parent=43 // pred_region
          %406 = dma.done %s399, 128
        $region48: #{upsample_bn_forward.3} parent=43 // pred_fallthru
          _
        %s407 = sand.u32 %s33, 1
        %s408 = scalar_lea.sflag [#allocation6], %s407
        %s409 = sand.u32 %s91, 1
        %s410 = smul.addr %s409, 128
        %s411 = scalar_lea.vmem [#allocation5], %s410
        // Predicated region
        $region49: #{upsample_bn_forward.3} parent=43 // pred_check
          %p412 = pneg %p104
        $region50: #{upsample_bn_forward.3} parent=43 // pred_check_branch
          %414 = sbr.rel (%p412) target = $region52
        $region51: #{upsample_bn_forward.3} parent=43 // pred_region
          %415 = dma.done %s408, 2048
        $region52: #{upsample_bn_forward.3} parent=43 // pred_fallthru
          _
        %s416 = sand.u32 %s33, 1
        %s417 = scalar_lea.sflag [#allocation6], %s416
        %s418 = sand.u32 %s127, 1
        %s419 = smul.addr %s418, 8
        %s420 = scalar_lea.vmem [#allocation7], %s419
        // Predicated region
        $region53: #{upsample_bn_forward.3} parent=43 // pred_check
          %p421 = pneg %p140
        $region54: #{upsample_bn_forward.3} parent=43 // pred_check_branch
          %423 = sbr.rel (%p421) target = $region56
        $region55: #{upsample_bn_forward.3} parent=43 // pred_region
          %424 = dma.done %s417, 128
        $region56: #{upsample_bn_forward.3} parent=43 // pred_fallthru
          _
        // Predicated region
        $region57: #{upsample_bn_forward.3} parent=43 // pred_check
          %p425 = pneg %p161
        $region58: #{upsample_bn_forward.3} parent=43 // pred_check_branch
          %427 = sbr.rel (%p425) target = $region60
        $region59: #{upsample_bn_forward.3} parent=43 // pred_region
          %428 = dma.done [#allocation9], 16
        $region60: #{upsample_bn_forward.3} parent=43 // pred_fallthru
          _
        // Predicated region
        $region61: #{upsample_bn_forward.3} parent=43 // pred_check
          %p429 = pneg %p182
        $region62: #{upsample_bn_forward.3} parent=43 // pred_check_branch
          %431 = sbr.rel (%p429) target = $region64
        $region63: #{upsample_bn_forward.3} parent=43 // pred_region
          %432 = dma.done [#allocation9], 16
        $region64: #{upsample_bn_forward.3} parent=43 // pred_fallthru
          _
        // Predicated region
        $region65: #{upsample_bn_forward.3} parent=43 // pred_check
          %p433 = pneg %p203
        $region66: #{upsample_bn_forward.3} parent=43 // pred_check_branch
          %435 = sbr.rel (%p433) target = $region68
        $region67: #{upsample_bn_forward.3} parent=43 // pred_region
          %436 = dma.done [#allocation12], 9216
        $region68: #{upsample_bn_forward.3} parent=43 // pred_fallthru
          _
        %s437 = sand.u32 %s63, 1
        %s438 = scalar_lea.sflag [#allocation3], %s437
        %s439 = sand.u32 %s63, 1
        %s440 = smul.addr %s439, 8
        %s441 = scalar_lea.vmem [#allocation2], %s440
        %p442 = pneg %p76
        %p443 = pneg %p73
        %s444 = sand.u32 %s33, 1
        %s445 = scalar_lea.sflag [#allocation6], %s444
        %s446 = sand.u32 %s91, 1
        %s447 = smul.addr %s446, 128
        %s448 = scalar_lea.vmem [#allocation5], %s447
        %p449 = pneg %p104
        %p450 = pneg %p101
        %s451 = sand.u32 %s33, 1
        %s452 = scalar_lea.sflag [#allocation6], %s451
        %s453 = sand.u32 %s127, 1
        %s454 = smul.addr %s453, 8
        %s455 = scalar_lea.vmem [#allocation7], %s454
        %p456 = pneg %p140
        %p457 = pneg %p137
        %p458 = pneg %p161
        %p459 = pneg %p158
        %p460 = pneg %p182
        %p461 = pneg %p179
        %p462 = pneg %p203
        %p463 = pneg %p200
        %p464 = pneg %p231
        %p465 = pneg %p228
        %s466 = sand.u32 %s218, 1
        %s467 = scalar_lea.sflag [#allocation4], %s466
        %s468 = sand.u32 %s218, 1
        %s469 = smul.addr %s468, 128
        %s470 = scalar_lea.vmem [#allocation13], %s469
        %p471 = pneg %p259
        %p472 = pneg %p256
        %s473 = sand.u32 %s246, 1
        %s474 = scalar_lea.sflag [#allocation15], %s473
        %s475 = sand.u32 %s246, 1
        %s476 = smul.addr %s475, 2
        %s477 = scalar_lea.vmem [#allocation14], %s476
        %s478 = smul.u32 %s38, 16
        %s479 = ssub.s32 %s478, 1
        %p480 = scmp.gt.s32.totalorder %s479, 0
        %s481 = scalar_select %p480, %s479, 0
        %s482 = smul.u32 16, %s38
        %s483 = smul.u32 %s38, 16
        %s484 = sadd.s32 %s483, 16
        %p485 = scmp.lt.s32.totalorder %s484, 15
        %s486 = scalar_select %p485, %s484, 15
        %s487 = smul.u32 16, %s38
        %v489 = vld [vmem:[#allocation8] sm:$0x1]
        %v490 = vld [vmem:[#allocation10] sm:$0x1]
        %v491 = vld [vmem:[%s402] sm:$0xf]
        %v492 = vld [vmem:[%s402 + $0x4] sm:$0xf]
        %v493 = vunpack.c.l.bf16 %v491
        %v494 = vunpack.c.l.bf16 %v492
        %v496 = vlaneseq
        %v497 = vshrl.u32 %v496, 7
        %v498 = vsub.s32 0, %v497
        %v499 = vrot.slane %v489, %v498
        %v501 = vmul.f32 %v493, %v499
        %v502 = vmul.f32 %v494, %v499
        %v504 = vlaneseq
        %v505 = vshrl.u32 %v504, 7
        %v506 = vsub.s32 0, %v505
        %v507 = vrot.slane %v490, %v506
        %v509 = vadd.f32 %v501, %v507
        %v510 = vadd.f32 %v502, %v507
        %vm511 = vcmp.gt.f32.partialorder %v509, 0.0
        %vm512 = vcmp.gt.f32.partialorder %v510, 0.0
        %v513 = vmul.f32 %v509, 0.01
        %v514 = vmul.f32 %v510, 0.01
        %v515 = vsel %vm511, %v509, %v513
        %v516 = vsel %vm512, %v510, %v514
        %v517 = vpack.c.bf16 %v516, %v515
        %v518 = vld [vmem:[%s411] sm:$0xf]
        %v519 = vld [vmem:[%s411 + $0x4] sm:$0xf]
        %v520 = vld [vmem:[%s411 + $0x8] sm:$0xf]
        %v521 = vld [vmem:[%s411 + $0xc] sm:$0xf]
        %v522 = vld [vmem:[%s411 + $0x10] sm:$0xf]
        %v523 = vld [vmem:[%s411 + $0x14] sm:$0xf]
        %v524 = vld [vmem:[%s411 + $0x18] sm:$0xf]
        %v525 = vld [vmem:[%s411 + $0x1c] sm:$0xf]
        %v526 = vld [vmem:[%s411 + $0x20] sm:$0xf]
        %v527 = vld [vmem:[%s411 + $0x24] sm:$0xf]
        %v528 = vld [vmem:[%s411 + $0x28] sm:$0xf]
        %v529 = vld [vmem:[%s411 + $0x2c] sm:$0xf]
        %v530 = vld [vmem:[%s411 + $0x30] sm:$0xf]
        %v531 = vld [vmem:[%s411 + $0x34] sm:$0xf]
        %v532 = vld [vmem:[%s411 + $0x38] sm:$0xf]
        %v533 = vld [vmem:[%s411 + $0x3c] sm:$0xf]
        %v534 = vld [vmem:[%s411 + $0x40] sm:$0xf]
        %v535 = vld [vmem:[%s411 + $0x44] sm:$0xf]
        %v536 = vld [vmem:[%s411 + $0x48] sm:$0xf]
        %v537 = vld [vmem:[%s411 + $0x4c] sm:$0xf]
        %v538 = vld [vmem:[%s411 + $0x50] sm:$0xf]
        %v539 = vld [vmem:[%s411 + $0x54] sm:$0xf]
        %v540 = vld [vmem:[%s411 + $0x58] sm:$0xf]
        %v541 = vld [vmem:[%s411 + $0x5c] sm:$0xf]
        %v542 = vld [vmem:[%s411 + $0x60] sm:$0xf]
        %v543 = vld [vmem:[%s411 + $0x64] sm:$0xf]
        %v544 = vld [vmem:[%s411 + $0x68] sm:$0xf]
        %v545 = vld [vmem:[%s411 + $0x6c] sm:$0xf]
        %v546 = vld [vmem:[%s411 + $0x70] sm:$0xf]
        %v547 = vld [vmem:[%s411 + $0x74] sm:$0xf]
        %v548 = vld [vmem:[%s411 + $0x78] sm:$0xf]
        %v549 = vld [vmem:[%s411 + $0x7c] sm:$0xf]
        %v550 = vunpack.c.l.bf16 %v518
        %v551 = vunpack.c.l.bf16 %v519
        %v552 = vunpack.c.l.bf16 %v520
        %v553 = vunpack.c.l.bf16 %v521
        %v554 = vunpack.c.l.bf16 %v522
        %v555 = vunpack.c.l.bf16 %v523
        %v556 = vunpack.c.l.bf16 %v524
        %v557 = vunpack.c.l.bf16 %v525
        %v558 = vunpack.c.l.bf16 %v526
        %v559 = vunpack.c.l.bf16 %v527
        %v560 = vunpack.c.l.bf16 %v528
        %v561 = vunpack.c.l.bf16 %v529
        %v562 = vunpack.c.l.bf16 %v530
        %v563 = vunpack.c.l.bf16 %v531
        %v564 = vunpack.c.l.bf16 %v532
        %v565 = vunpack.c.l.bf16 %v533
        %v566 = vunpack.c.l.bf16 %v534
        %v567 = vunpack.c.l.bf16 %v535
        %v568 = vunpack.c.l.bf16 %v536
        %v569 = vunpack.c.l.bf16 %v537
        %v570 = vunpack.c.l.bf16 %v538
        %v571 = vunpack.c.l.bf16 %v539
        %v572 = vunpack.c.l.bf16 %v540
        %v573 = vunpack.c.l.bf16 %v541
        %v574 = vunpack.c.l.bf16 %v542
        %v575 = vunpack.c.l.bf16 %v543
        %v576 = vunpack.c.l.bf16 %v544
        %v577 = vunpack.c.l.bf16 %v545
        %v578 = vunpack.c.l.bf16 %v546
        %v579 = vunpack.c.l.bf16 %v547
        %v580 = vunpack.c.l.bf16 %v548
        %v581 = vunpack.c.l.bf16 %v549
        %v582 = vmul.f32 %v550, %v499
        %v583 = vmul.f32 %v551, %v499
        %v584 = vmul.f32 %v552, %v499
        %v585 = vmul.f32 %v553, %v499
        %v586 = vmul.f32 %v554, %v499
        %v587 = vmul.f32 %v555, %v499
        %v588 = vmul.f32 %v556, %v499
        %v589 = vmul.f32 %v557, %v499
        %v590 = vmul.f32 %v558, %v499
        %v591 = vmul.f32 %v559, %v499
        %v592 = vmul.f32 %v560, %v499
        %v593 = vmul.f32 %v561, %v499
        %v594 = vmul.f32 %v562, %v499
        %v595 = vmul.f32 %v563, %v499
        %v596 = vmul.f32 %v564, %v499
        %v597 = vmul.f32 %v565, %v499
        %v598 = vmul.f32 %v566, %v499
        %v599 = vmul.f32 %v567, %v499
        %v600 = vmul.f32 %v568, %v499
        %v601 = vmul.f32 %v569, %v499
        %v602 = vmul.f32 %v570, %v499
        %v603 = vmul.f32 %v571, %v499
        %v604 = vmul.f32 %v572, %v499
        %v605 = vmul.f32 %v573, %v499
        %v606 = vmul.f32 %v574, %v499
        %v607 = vmul.f32 %v575, %v499
        %v608 = vmul.f32 %v576, %v499
        %v609 = vmul.f32 %v577, %v499
        %v610 = vmul.f32 %v578, %v499
        %v611 = vmul.f32 %v579, %v499
        %v612 = vmul.f32 %v580, %v499
        %v613 = vmul.f32 %v581, %v499
        %v614 = vadd.f32 %v582, %v507
        %v615 = vadd.f32 %v583, %v507
        %v616 = vadd.f32 %v584, %v507
        %v617 = vadd.f32 %v585, %v507
        %v618 = vadd.f32 %v586, %v507
        %v619 = vadd.f32 %v587, %v507
        %v620 = vadd.f32 %v588, %v507
        %v621 = vadd.f32 %v589, %v507
        %v622 = vadd.f32 %v590, %v507
        %v623 = vadd.f32 %v591, %v507
        %v624 = vadd.f32 %v592, %v507
        %v625 = vadd.f32 %v593, %v507
        %v626 = vadd.f32 %v594, %v507
        %v627 = vadd.f32 %v595, %v507
        %v628 = vadd.f32 %v596, %v507
        %v629 = vadd.f32 %v597, %v507
        %v630 = vadd.f32 %v598, %v507
        %v631 = vadd.f32 %v599, %v507
        %v632 = vadd.f32 %v600, %v507
        %v633 = vadd.f32 %v601, %v507
        %v634 = vadd.f32 %v602, %v507
        %v635 = vadd.f32 %v603, %v507
        %v636 = vadd.f32 %v604, %v507
        %v637 = vadd.f32 %v605, %v507
        %v638 = vadd.f32 %v606, %v507
        %v639 = vadd.f32 %v607, %v507
        %v640 = vadd.f32 %v608, %v507
        %v641 = vadd.f32 %v609, %v507
        %v642 = vadd.f32 %v610, %v507
        %v643 = vadd.f32 %v611, %v507
        %v644 = vadd.f32 %v612, %v507
        %v645 = vadd.f32 %v613, %v507
        %vm646 = vcmp.gt.f32.partialorder %v614, 0.0
        %vm647 = vcmp.gt.f32.partialorder %v615, 0.0
        %vm648 = vcmp.gt.f32.partialorder %v616, 0.0
        %vm649 = vcmp.gt.f32.partialorder %v617, 0.0
        %vm650 = vcmp.gt.f32.partialorder %v618, 0.0
        %vm651 = vcmp.gt.f32.partialorder %v619, 0.0
        %vm652 = vcmp.gt.f32.partialorder %v620, 0.0
        %vm653 = vcmp.gt.f32.partialorder %v621, 0.0
        %vm654 = vcmp.gt.f32.partialorder %v622, 0.0
        %vm655 = vcmp.gt.f32.partialorder %v623, 0.0
        %vm656 = vcmp.gt.f32.partialorder %v624, 0.0
        %vm657 = vcmp.gt.f32.partialorder %v625, 0.0
        %vm658 = vcmp.gt.f32.partialorder %v626, 0.0
        %vm659 = vcmp.gt.f32.partialorder %v627, 0.0
        %vm660 = vcmp.gt.f32.partialorder %v628, 0.0
        %vm661 = vcmp.gt.f32.partialorder %v629, 0.0
        %vm662 = vcmp.gt.f32.partialorder %v630, 0.0
        %vm663 = vcmp.gt.f32.partialorder %v631, 0.0
        %vm664 = vcmp.gt.f32.partialorder %v632, 0.0
        %vm665 = vcmp.gt.f32.partialorder %v633, 0.0
        %vm666 = vcmp.gt.f32.partialorder %v634, 0.0
        %vm667 = vcmp.gt.f32.partialorder %v635, 0.0
        %vm668 = vcmp.gt.f32.partialorder %v636, 0.0
        %vm669 = vcmp.gt.f32.partialorder %v637, 0.0
        %vm670 = vcmp.gt.f32.partialorder %v638, 0.0
        %vm671 = vcmp.gt.f32.partialorder %v639, 0.0
        %vm672 = vcmp.gt.f32.partialorder %v640, 0.0
        %vm673 = vcmp.gt.f32.partialorder %v641, 0.0
        %vm674 = vcmp.gt.f32.partialorder %v642, 0.0
        %vm675 = vcmp.gt.f32.partialorder %v643, 0.0
        %vm676 = vcmp.gt.f32.partialorder %v644, 0.0
        %vm677 = vcmp.gt.f32.partialorder %v645, 0.0
        %v678 = vmul.f32 %v614, 0.01
        %v679 = vmul.f32 %v615, 0.01
        %v680 = vmul.f32 %v616, 0.01
        %v681 = vmul.f32 %v617, 0.01
        %v682 = vmul.f32 %v618, 0.01
        %v683 = vmul.f32 %v619, 0.01
        %v684 = vmul.f32 %v620, 0.01
        %v685 = vmul.f32 %v621, 0.01
        %v686 = vmul.f32 %v622, 0.01
        %v687 = vmul.f32 %v623, 0.01
        %v688 = vmul.f32 %v624, 0.01
        %v689 = vmul.f32 %v625, 0.01
        %v690 = vmul.f32 %v626, 0.01
        %v691 = vmul.f32 %v627, 0.01
        %v692 = vmul.f32 %v628, 0.01
        %v693 = vmul.f32 %v629, 0.01
        %v694 = vmul.f32 %v630, 0.01
        %v695 = vmul.f32 %v631, 0.01
        %v696 = vmul.f32 %v632, 0.01
        %v697 = vmul.f32 %v633, 0.01
        %v698 = vmul.f32 %v634, 0.01
        %v699 = vmul.f32 %v635, 0.01
        %v700 = vmul.f32 %v636, 0.01
        %v701 = vmul.f32 %v637, 0.01
        %v702 = vmul.f32 %v638, 0.01
        %v703 = vmul.f32 %v639, 0.01
        %v704 = vmul.f32 %v640, 0.01
        %v705 = vmul.f32 %v641, 0.01
        %v706 = vmul.f32 %v642, 0.01
        %v707 = vmul.f32 %v643, 0.01
        %v708 = vmul.f32 %v644, 0.01
        %v709 = vmul.f32 %v645, 0.01
        %v710 = vsel %vm646, %v614, %v678
        %v711 = vsel %vm647, %v615, %v679
        %v712 = vsel %vm648, %v616, %v680
        %v713 = vsel %vm649, %v617, %v681
        %v714 = vsel %vm650, %v618, %v682
        %v715 = vsel %vm651, %v619, %v683
        %v716 = vsel %vm652, %v620, %v684
        %v717 = vsel %vm653, %v621, %v685
        %v718 = vsel %vm654, %v622, %v686
        %v719 = vsel %vm655, %v623, %v687
        %v720 = vsel %vm656, %v624, %v688
        %v721 = vsel %vm657, %v625, %v689
        %v722 = vsel %vm658, %v626, %v690
        %v723 = vsel %vm659, %v627, %v691
        %v724 = vsel %vm660, %v628, %v692
        %v725 = vsel %vm661, %v629, %v693
        %v726 = vsel %vm662, %v630, %v694
        %v727 = vsel %vm663, %v631, %v695
        %v728 = vsel %vm664, %v632, %v696
        %v729 = vsel %vm665, %v633, %v697
        %v730 = vsel %vm666, %v634, %v698
        %v731 = vsel %vm667, %v635, %v699
        %v732 = vsel %vm668, %v636, %v700
        %v733 = vsel %vm669, %v637, %v701
        %v734 = vsel %vm670, %v638, %v702
        %v735 = vsel %vm671, %v639, %v703
        %v736 = vsel %vm672, %v640, %v704
        %v737 = vsel %vm673, %v641, %v705
        %v738 = vsel %vm674, %v642, %v706
        %v739 = vsel %vm675, %v643, %v707
        %v740 = vsel %vm676, %v644, %v708
        %v741 = vsel %vm677, %v645, %v709
        %v742 = vpack.c.bf16 %v711, %v710
        %v743 = vpack.c.bf16 %v713, %v712
        %v744 = vpack.c.bf16 %v715, %v714
        %v745 = vpack.c.bf16 %v717, %v716
        %v746 = vpack.c.bf16 %v719, %v718
        %v747 = vpack.c.bf16 %v721, %v720
        %v748 = vpack.c.bf16 %v723, %v722
        %v749 = vpack.c.bf16 %v725, %v724
        %v750 = vpack.c.bf16 %v727, %v726
        %v751 = vpack.c.bf16 %v729, %v728
        %v752 = vpack.c.bf16 %v731, %v730
        %v753 = vpack.c.bf16 %v733, %v732
        %v754 = vpack.c.bf16 %v735, %v734
        %v755 = vpack.c.bf16 %v737, %v736
        %v756 = vpack.c.bf16 %v739, %v738
        %v757 = vpack.c.bf16 %v741, %v740
        %v758 = vld [vmem:[%s420] sm:$0xf]
        %v759 = vld [vmem:[%s420 + $0x4] sm:$0xf]
        %v760 = vunpack.c.l.bf16 %v758
        %v761 = vunpack.c.l.bf16 %v759
        %v762 = vmul.f32 %v760, %v499
        %v763 = vmul.f32 %v761, %v499
        %v764 = vadd.f32 %v762, %v507
        %v765 = vadd.f32 %v763, %v507
        %vm766 = vcmp.gt.f32.partialorder %v764, 0.0
        %vm767 = vcmp.gt.f32.partialorder %v765, 0.0
        %v768 = vmul.f32 %v764, 0.01
        %v769 = vmul.f32 %v765, 0.01
        %v770 = vsel %vm766, %v764, %v768
        %v771 = vsel %vm767, %v765, %v769
        %v772 = vpack.c.bf16 %v771, %v770
        %p773 = scmp.eq.s32.totalorder %s38, 0
        %s774 = scalar_select %p773, 1, 0
        %v775 = vstv %s774
        %vm776 = vcmp.eq.s32.totalorder %v775, 1
        %v777 = vsel %vm776, 0, %v517
        %v778 = vsel %vm776, 0, %v772
        %v780 = vshrl.u32 %v777, 16
        %v782 = vrot.slane %v780, 7
        %v783 = vshll.u32 %v777, 16
        %v785 = vor.u32 %v782, %v783
        %v787 = vshrl.u32 %v742, 16
        %v789 = vrot.slane %v787, 7
        %v790 = vshll.u32 %v742, 16
        %v792 = vor.u32 %v789, %v790
        %v794 = vshrl.u32 %v743, 16
        %v796 = vrot.slane %v794, 7
        %v797 = vshll.u32 %v743, 16
        %v799 = vor.u32 %v796, %v797
        %v801 = vshrl.u32 %v744, 16
        %v803 = vrot.slane %v801, 7
        %v804 = vshll.u32 %v744, 16
        %v806 = vor.u32 %v803, %v804
        %v808 = vshrl.u32 %v745, 16
        %v810 = vrot.slane %v808, 7
        %v811 = vshll.u32 %v745, 16
        %v813 = vor.u32 %v810, %v811
        %v815 = vshrl.u32 %v746, 16
        %v817 = vrot.slane %v815, 7
        %v818 = vshll.u32 %v746, 16
        %v820 = vor.u32 %v817, %v818
        %v822 = vshrl.u32 %v747, 16
        %v824 = vrot.slane %v822, 7
        %v825 = vshll.u32 %v747, 16
        %v827 = vor.u32 %v824, %v825
        %v829 = vshrl.u32 %v748, 16
        %v831 = vrot.slane %v829, 7
        %v832 = vshll.u32 %v748, 16
        %v834 = vor.u32 %v831, %v832
        %v836 = vshrl.u32 %v749, 16
        %v838 = vrot.slane %v836, 7
        %v839 = vshll.u32 %v749, 16
        %v841 = vor.u32 %v838, %v839
        %v843 = vshrl.u32 %v750, 16
        %v845 = vrot.slane %v843, 7
        %v846 = vshll.u32 %v750, 16
        %v848 = vor.u32 %v845, %v846
        %v850 = vshrl.u32 %v751, 16
        %v852 = vrot.slane %v850, 7
        %v853 = vshll.u32 %v751, 16
        %v855 = vor.u32 %v852, %v853
        %v857 = vshrl.u32 %v752, 16
        %v859 = vrot.slane %v857, 7
        %v860 = vshll.u32 %v752, 16
        %v862 = vor.u32 %v859, %v860
        %v864 = vshrl.u32 %v753, 16
        %v866 = vrot.slane %v864, 7
        %v867 = vshll.u32 %v753, 16
        %v869 = vor.u32 %v866, %v867
        %v871 = vshrl.u32 %v754, 16
        %v873 = vrot.slane %v871, 7
        %v874 = vshll.u32 %v754, 16
        %v876 = vor.u32 %v873, %v874
        %v878 = vshrl.u32 %v755, 16
        %v880 = vrot.slane %v878, 7
        %v881 = vshll.u32 %v755, 16
        %v883 = vor.u32 %v880, %v881
        %v885 = vshrl.u32 %v756, 16
        %v887 = vrot.slane %v885, 7
        %v888 = vshll.u32 %v756, 16
        %v890 = vor.u32 %v887, %v888
        %v892 = vshrl.u32 %v757, 16
        %v894 = vrot.slane %v892, 7
        %v895 = vshll.u32 %v757, 16
        %v897 = vor.u32 %v894, %v895
        %v899 = vshrl.u32 %v778, 16
        %v901 = vrot.slane %v899, 7
        %v902 = vshll.u32 %v778, 16
        %v904 = vor.u32 %v901, %v902
        %vm941 = vcmask 1040384
        %vm942 = vsmask.f32 256
        %vm943 = vmand %vm941, %vm942
        %v944 = vsel %vm943, 0, %v785
        %v945 = vsel %vm943, 0, %v792
        %v946 = vsel %vm943, 0, %v799
        %v947 = vsel %vm943, 0, %v806
        %v948 = vsel %vm943, 0, %v813
        %v949 = vsel %vm943, 0, %v820
        %v950 = vsel %vm943, 0, %v827
        %v951 = vsel %vm943, 0, %v834
        %v952 = vsel %vm943, 0, %v841
        %v953 = vsel %vm943, 0, %v848
        %v954 = vsel %vm943, 0, %v855
        %v955 = vsel %vm943, 0, %v862
        %v956 = vsel %vm943, 0, %v869
        %v957 = vsel %vm943, 0, %v876
        %v958 = vsel %vm943, 0, %v883
        %v959 = vsel %vm943, 0, %v890
        %v960 = vsel %vm943, 0, %v897
        %v961 = vsel %vm943, 0, %v904
        %v962 = vsel %vm943, %v782, 0
        %v963 = vsel %vm943, %v789, 0
        %v964 = vsel %vm943, %v796, 0
        %v965 = vsel %vm943, %v803, 0
        %v966 = vsel %vm943, %v810, 0
        %v967 = vsel %vm943, %v817, 0
        %v968 = vsel %vm943, %v824, 0
        %v969 = vsel %vm943, %v831, 0
        %v970 = vsel %vm943, %v838, 0
        %v971 = vsel %vm943, %v845, 0
        %v972 = vsel %vm943, %v852, 0
        %v973 = vsel %vm943, %v859, 0
        %v974 = vsel %vm943, %v866, 0
        %v975 = vsel %vm943, %v873, 0
        %v976 = vsel %vm943, %v880, 0
        %v977 = vsel %vm943, %v887, 0
        %v978 = vsel %vm943, %v894, 0
        %v979 = vsel %vm943, %v901, 0
        %v980 = vld [vmem:[#allocation11] sm:$0xf]
        %v981 = vld [vmem:[#allocation11 + $0x4] sm:$0xf]
        %v982 = vld [vmem:[#allocation11 + $0x8] sm:$0xf]
        %v983 = vld [vmem:[#allocation11 + $0xc] sm:$0xf]
        %v984 = vld [vmem:[#allocation11 + $0x10] sm:$0xf]
        %v985 = vld [vmem:[#allocation11 + $0x14] sm:$0xf]
        %v986 = vld [vmem:[#allocation11 + $0x18] sm:$0xf]
        %v987 = vld [vmem:[#allocation11 + $0x1c] sm:$0xf]
        %v988 = vld [vmem:[#allocation11 + $0x20] sm:$0xf]
        %v989 = vld [vmem:[#allocation11 + $0x24] sm:$0xf]
        %v990 = vld [vmem:[#allocation11 + $0x28] sm:$0xf]
        %v991 = vld [vmem:[#allocation11 + $0x2c] sm:$0xf]
        %v992 = vld [vmem:[#allocation11 + $0x30] sm:$0xf]
        %v993 = vld [vmem:[#allocation11 + $0x34] sm:$0xf]
        %v994 = vld [vmem:[#allocation11 + $0x38] sm:$0xf]
        %v995 = vld [vmem:[#allocation11 + $0x3c] sm:$0xf]
        %vm996 = vsmask.f32 7424
        %v998 = vshrl.u32 %v944, 16
        %v1000 = vshll.u32 %v944, 16
        %v1002 = vrot.slane %v1000, 1
        %v1003 = vor.u32 %v998, %v1002
        %v1005 = vshll.u32 %v962, 16
        %v1007 = vrot.slane %v1005, 1
        %v1008 = vsel %vm996, %v1003, %v1007
        %v1010 = vshrl.u32 %v945, 16
        %v1012 = vshll.u32 %v945, 16
        %v1014 = vrot.slane %v1012, 1
        %v1015 = vor.u32 %v1010, %v1014
        %v1017 = vshll.u32 %v963, 16
        %v1019 = vrot.slane %v1017, 1
        %v1020 = vsel %vm996, %v1015, %v1019
        %v1022 = vshrl.u32 %v946, 16
        %v1024 = vshll.u32 %v946, 16
        %v1026 = vrot.slane %v1024, 1
        %v1027 = vor.u32 %v1022, %v1026
        %v1029 = vshll.u32 %v964, 16
        %v1031 = vrot.slane %v1029, 1
        %v1032 = vsel %vm996, %v1027, %v1031
        %v1034 = vshrl.u32 %v947, 16
        %v1036 = vshll.u32 %v947, 16
        %v1038 = vrot.slane %v1036, 1
        %v1039 = vor.u32 %v1034, %v1038
        %v1041 = vshll.u32 %v965, 16
        %v1043 = vrot.slane %v1041, 1
        %v1044 = vsel %vm996, %v1039, %v1043
        %v1046 = vshrl.u32 %v948, 16
        %v1048 = vshll.u32 %v948, 16
        %v1050 = vrot.slane %v1048, 1
        %v1051 = vor.u32 %v1046, %v1050
        %v1053 = vshll.u32 %v966, 16
        %v1055 = vrot.slane %v1053, 1
        %v1056 = vsel %vm996, %v1051, %v1055
        %v1058 = vshrl.u32 %v949, 16
        %v1060 = vshll.u32 %v949, 16
        %v1062 = vrot.slane %v1060, 1
        %v1063 = vor.u32 %v1058, %v1062
        %v1065 = vshll.u32 %v967, 16
        %v1067 = vrot.slane %v1065, 1
        %v1068 = vsel %vm996, %v1063, %v1067
        %v1070 = vshrl.u32 %v950, 16
        %v1072 = vshll.u32 %v950, 16
        %v1074 = vrot.slane %v1072, 1
        %v1075 = vor.u32 %v1070, %v1074
        %v1077 = vshll.u32 %v968, 16
        %v1079 = vrot.slane %v1077, 1
        %v1080 = vsel %vm996, %v1075, %v1079
        %v1082 = vshrl.u32 %v951, 16
        %v1084 = vshll.u32 %v951, 16
        %v1086 = vrot.slane %v1084, 1
        %v1087 = vor.u32 %v1082, %v1086
        %v1089 = vshll.u32 %v969, 16
        %v1091 = vrot.slane %v1089, 1
        %v1092 = vsel %vm996, %v1087, %v1091
        %v1094 = vshrl.u32 %v952, 16
        %v1096 = vshll.u32 %v952, 16
        %v1098 = vrot.slane %v1096, 1
        %v1099 = vor.u32 %v1094, %v1098
        %v1101 = vshll.u32 %v970, 16
        %v1103 = vrot.slane %v1101, 1
        %v1104 = vsel %vm996, %v1099, %v1103
        %v1106 = vshrl.u32 %v953, 16
        %v1108 = vshll.u32 %v953, 16
        %v1110 = vrot.slane %v1108, 1
        %v1111 = vor.u32 %v1106, %v1110
        %v1113 = vshll.u32 %v971, 16
        %v1115 = vrot.slane %v1113, 1
        %v1116 = vsel %vm996, %v1111, %v1115
        %v1118 = vshrl.u32 %v954, 16
        %v1120 = vshll.u32 %v954, 16
        %v1122 = vrot.slane %v1120, 1
        %v1123 = vor.u32 %v1118, %v1122
        %v1125 = vshll.u32 %v972, 16
        %v1127 = vrot.slane %v1125, 1
        %v1128 = vsel %vm996, %v1123, %v1127
        %v1130 = vshrl.u32 %v955, 16
        %v1132 = vshll.u32 %v955, 16
        %v1134 = vrot.slane %v1132, 1
        %v1135 = vor.u32 %v1130, %v1134
        %v1137 = vshll.u32 %v973, 16
        %v1139 = vrot.slane %v1137, 1
        %v1140 = vsel %vm996, %v1135, %v1139
        %v1142 = vshrl.u32 %v956, 16
        %v1144 = vshll.u32 %v956, 16
        %v1146 = vrot.slane %v1144, 1
        %v1147 = vor.u32 %v1142, %v1146
        %v1149 = vshll.u32 %v974, 16
        %v1151 = vrot.slane %v1149, 1
        %v1152 = vsel %vm996, %v1147, %v1151
        %v1154 = vshrl.u32 %v957, 16
        %v1156 = vshll.u32 %v957, 16
        %v1158 = vrot.slane %v1156, 1
        %v1159 = vor.u32 %v1154, %v1158
        %v1161 = vshll.u32 %v975, 16
        %v1163 = vrot.slane %v1161, 1
        %v1164 = vsel %vm996, %v1159, %v1163
        %v1166 = vshrl.u32 %v958, 16
        %v1168 = vshll.u32 %v958, 16
        %v1170 = vrot.slane %v1168, 1
        %v1171 = vor.u32 %v1166, %v1170
        %v1173 = vshll.u32 %v976, 16
        %v1175 = vrot.slane %v1173, 1
        %v1176 = vsel %vm996, %v1171, %v1175
        %v1178 = vshrl.u32 %v959, 16
        %v1180 = vshll.u32 %v959, 16
        %v1182 = vrot.slane %v1180, 1
        %v1183 = vor.u32 %v1178, %v1182
        %v1185 = vshll.u32 %v977, 16
        %v1187 = vrot.slane %v1185, 1
        %v1188 = vsel %vm996, %v1183, %v1187
        %v1205 = vld [vmem:[#allocation11 + $0x40] sm:$0xf]
        %v1206 = vld [vmem:[#allocation11 + $0x44] sm:$0xf]
        %v1207 = vld [vmem:[#allocation11 + $0x48] sm:$0xf]
        %v1208 = vld [vmem:[#allocation11 + $0x4c] sm:$0xf]
        %v1209 = vld [vmem:[#allocation11 + $0x50] sm:$0xf]
        %v1210 = vld [vmem:[#allocation11 + $0x54] sm:$0xf]
        %v1211 = vld [vmem:[#allocation11 + $0x58] sm:$0xf]
        %v1212 = vld [vmem:[#allocation11 + $0x5c] sm:$0xf]
        %v1213 = vld [vmem:[#allocation11 + $0x60] sm:$0xf]
        %v1214 = vld [vmem:[#allocation11 + $0x64] sm:$0xf]
        %v1215 = vld [vmem:[#allocation11 + $0x68] sm:$0xf]
        %v1216 = vld [vmem:[#allocation11 + $0x6c] sm:$0xf]
        %v1217 = vld [vmem:[#allocation11 + $0x70] sm:$0xf]
        %v1218 = vld [vmem:[#allocation11 + $0x74] sm:$0xf]
        %v1219 = vld [vmem:[#allocation11 + $0x78] sm:$0xf]
        %v1220 = vld [vmem:[#allocation11 + $0x7c] sm:$0xf]
        %v1237 = vunpack.c.l.b16 %v1205
        %v1238 = vunpack.c.l.b16 %v1206
        %v1239 = vunpack.c.l.b16 %v1207
        %v1240 = vunpack.c.l.b16 %v1208
        %v1241 = vunpack.c.l.b16 %v1209
        %v1242 = vunpack.c.l.b16 %v1210
        %v1243 = vunpack.c.l.b16 %v1211
        %v1244 = vunpack.c.l.b16 %v1212
        %v1245 = vunpack.c.l.b16 %v1213
        %v1246 = vunpack.c.l.b16 %v1214
        %v1247 = vunpack.c.l.b16 %v1215
        %v1248 = vunpack.c.l.b16 %v1216
        %v1249 = vunpack.c.l.b16 %v1217
        %v1250 = vunpack.c.l.b16 %v1218
        %v1251 = vunpack.c.l.b16 %v1219
        %v1252 = vunpack.c.l.b16 %v1220
        %v1253 = vpack.c.b16 %v1238, %v1237
        %v1254 = vpack.c.b16 %v1240, %v1239
        %v1255 = vpack.c.b16 %v1242, %v1241
        %v1256 = vpack.c.b16 %v1244, %v1243
        %v1257 = vpack.c.b16 %v1246, %v1245
        %v1258 = vpack.c.b16 %v1248, %v1247
        %v1259 = vpack.c.b16 %v1250, %v1249
        %v1260 = vpack.c.b16 %v1252, %v1251
        %1269 = vmatprep.subr.bf16.mxu0 0
        %1270 = vmatpush1.bf16.msra.mxu0 %v1253
        %1271 = vmatprep.subr.bf16.mxu0 0
        %1272 = vmatpush1.bf16.msra.mxu0 %v1254
        %1273 = vmatprep.subr.bf16.mxu0 0
        %1274 = vmatpush1.bf16.msra.mxu0 %v1255
        %1275 = vmatprep.subr.bf16.mxu0 0
        %1276 = vmatpush1.bf16.msra.mxu0 %v1256
        %1277 = vmatprep.subr.bf16.mxu0 0
        %1278 = vmatpush1.bf16.msra.mxu0 %v1257
        %1279 = vmatprep.subr.bf16.mxu0 0
        %1280 = vmatpush1.bf16.msra.mxu0 %v1258
        %1281 = vmatprep.subr.bf16.mxu0 0
        %1282 = vmatpush1.bf16.msra.mxu0 %v1259
        %1283 = vmatprep.subr.bf16.mxu0 0
        %1284 = vmatpush1.bf16.msra.mxu0 %v1260
        %1285 = vmatprep.subr.bf16.mxu0 0
        %1286 = vmatpush1.bf16.msra.mxu0 0
        %1287 = vmatprep.subr.bf16.mxu0 0
        %1288 = vmatpush1.bf16.msra.mxu0 0
        %1289 = vmatprep.subr.bf16.mxu0 0
        %1290 = vmatpush1.bf16.msra.mxu0 0
        %1291 = vmatprep.subr.bf16.mxu0 0
        %1292 = vmatpush1.bf16.msra.mxu0 0
        %1293 = vmatprep.subr.bf16.mxu0 0
        %1294 = vmatpush1.bf16.msra.mxu0 0
        %1295 = vmatprep.subr.bf16.mxu0 0
        %1296 = vmatpush1.bf16.msra.mxu0 0
        %1297 = vmatprep.subr.bf16.mxu0 0
        %1298 = vmatpush1.bf16.msra.mxu0 0
        %1299 = vmatprep.subr.bf16.mxu0 0
        %1300 = vmatpush1.bf16.msra.mxu0 0
        %1301 = vmatprep.mubr.bf16.mxu0 0
        %1302 = vmatmul.mubr.bf16.gmra.mrb[0].mxu0 %v1008
        %v1303 = vpop.f32.mrb[0].mxu0
        %v1304 = vadd.f32 0.0, %v1303
        %v1305 = vpop.f32.mrb[0].mxu0
        %v1306 = vpop.f32.mrb[0].mxu0
        %v1307 = vadd.f32 0.0, %v1306
        %v1308 = vpop.f32.mrb[0].mxu0
        %1309 = vmatprep.mubr.bf16.mxu0 0
        %1310 = vmatmul.mubr.bf16.gmra.mrb[0].mxu0 %v1020
        %v1311 = vpop.f32.mrb[0].mxu0
        %v1312 = vadd.f32 0.0, %v1311
        %v1313 = vpop.f32.mrb[0].mxu0
        %v1314 = vpop.f32.mrb[0].mxu0
        %v1315 = vadd.f32 0.0, %v1314
        %v1316 = vpop.f32.mrb[0].mxu0
        %1317 = vmatprep.mubr.bf16.mxu0 0
        %1318 = vmatmul.mubr.bf16.gmra.mrb[0].mxu0 %v1032
        %v1319 = vpop.f32.mrb[0].mxu0
        %v1320 = vadd.f32 0.0, %v1319
        %v1321 = vpop.f32.mrb[0].mxu0
        %v1322 = vpop.f32.mrb[0].mxu0
        %v1323 = vadd.f32 0.0, %v1322
        %v1324 = vpop.f32.mrb[0].mxu0
        %1325 = vmatprep.mubr.bf16.mxu0 0
        %1326 = vmatmul.mubr.bf16.gmra.mrb[0].mxu0 %v1044
        %v1327 = vpop.f32.mrb[0].mxu0
        %v1328 = vadd.f32 0.0, %v1327
        %v1329 = vpop.f32.mrb[0].mxu0
        %v1330 = vpop.f32.mrb[0].mxu0
        %v1331 = vadd.f32 0.0, %v1330
        %v1332 = vpop.f32.mrb[0].mxu0
        %1333 = vmatprep.mubr.bf16.mxu0 0
        %1334 = vmatmul.mubr.bf16.gmra.mrb[0].mxu0 %v1056
        %v1335 = vpop.f32.mrb[0].mxu0
        %v1336 = vadd.f32 0.0, %v1335
        %v1337 = vpop.f32.mrb[0].mxu0
        %v1338 = vpop.f32.mrb[0].mxu0
        %v1339 = vadd.f32 0.0, %v1338
        %v1340 = vpop.f32.mrb[0].mxu0
        %1341 = vmatprep.mubr.bf16.mxu0 0
        %1342 = vmatmul.mubr.bf16.gmra.mrb[0].mxu0 %v1068
        %v1343 = vpop.f32.mrb[0].mxu0
        %v1344 = vadd.f32 0.0, %v1343
        %v1345 = vpop.f32.mrb[0].mxu0
        %v1346 = vpop.f32.mrb[0].mxu0
        %v1347 = vadd.f32 0.0, %v1346
        %v1348 = vpop.f32.mrb[0].mxu0
        %1349 = vmatprep.mubr.bf16.mxu0 0
        %1350 = vmatmul.mubr.bf16.gmra.mrb[0].mxu0 %v1080
        %v1351 = vpop.f32.mrb[0].mxu0
        %v1352 = vadd.f32 0.0, %v1351
        %v1353 = vpop.f32.mrb[0].mxu0
        %v1354 = vpop.f32.mrb[0].mxu0
        %v1355 = vadd.f32 0.0, %v1354
        %v1356 = vpop.f32.mrb[0].mxu0
        %1357 = vmatprep.mubr.bf16.mxu0 0
        %1358 = vmatmul.mubr.bf16.gmra.mrb[0].mxu0 %v1092
        %v1359 = vpop.f32.mrb[0].mxu0
        %v1360 = vadd.f32 0.0, %v1359
        %v1361 = vpop.f32.mrb[0].mxu0
        %v1362 = vpop.f32.mrb[0].mxu0
        %v1363 = vadd.f32 0.0, %v1362
        %v1364 = vpop.f32.mrb[0].mxu0
        %1365 = vmatprep.mubr.bf16.mxu0 0
        %1366 = vmatmul.mubr.bf16.gmra.mrb[0].mxu0 %v1104
        %v1367 = vpop.f32.mrb[0].mxu0
        %v1368 = vadd.f32 0.0, %v1367
        %v1369 = vpop.f32.mrb[0].mxu0
        %v1370 = vpop.f32.mrb[0].mxu0
        %v1371 = vadd.f32 0.0, %v1370
        %v1372 = vpop.f32.mrb[0].mxu0
        %1373 = vmatprep.mubr.bf16.mxu0 0
        %1374 = vmatmul.mubr.bf16.gmra.mrb[0].mxu0 %v1116
        %v1375 = vpop.f32.mrb[0].mxu0
        %v1376 = vadd.f32 0.0, %v1375
        %v1377 = vpop.f32.mrb[0].mxu0
        %v1378 = vpop.f32.mrb[0].mxu0
        %v1379 = vadd.f32 0.0, %v1378
        %v1380 = vpop.f32.mrb[0].mxu0
        %1381 = vmatprep.mubr.bf16.mxu0 0
        %1382 = vmatmul.mubr.bf16.gmra.mrb[0].mxu0 %v1128
        %v1383 = vpop.f32.mrb[0].mxu0
        %v1384 = vadd.f32 0.0, %v1383
        %v1385 = vpop.f32.mrb[0].mxu0
        %v1386 = vpop.f32.mrb[0].mxu0
        %v1387 = vadd.f32 0.0, %v1386
        %v1388 = vpop.f32.mrb[0].mxu0
        %1389 = vmatprep.mubr.bf16.mxu0 0
        %1390 = vmatmul.mubr.bf16.gmra.mrb[0].mxu0 %v1140
        %v1391 = vpop.f32.mrb[0].mxu0
        %v1392 = vadd.f32 0.0, %v1391
        %v1393 = vpop.f32.mrb[0].mxu0
        %v1394 = vpop.f32.mrb[0].mxu0
        %v1395 = vadd.f32 0.0, %v1394
        %v1396 = vpop.f32.mrb[0].mxu0
        %1397 = vmatprep.mubr.bf16.mxu0 0
        %1398 = vmatmul.mubr.bf16.gmra.mrb[0].mxu0 %v1152
        %v1399 = vpop.f32.mrb[0].mxu0
        %v1400 = vadd.f32 0.0, %v1399
        %v1401 = vpop.f32.mrb[0].mxu0
        %v1402 = vpop.f32.mrb[0].mxu0
        %v1403 = vadd.f32 0.0, %v1402
        %v1404 = vpop.f32.mrb[0].mxu0
        %1405 = vmatprep.mubr.bf16.mxu0 0
        %1406 = vmatmul.mubr.bf16.gmra.mrb[0].mxu0 %v1164
        %v1407 = vpop.f32.mrb[0].mxu0
        %v1408 = vadd.f32 0.0, %v1407
        %v1409 = vpop.f32.mrb[0].mxu0
        %v1410 = vpop.f32.mrb[0].mxu0
        %v1411 = vadd.f32 0.0, %v1410
        %v1412 = vpop.f32.mrb[0].mxu0
        %1413 = vmatprep.mubr.bf16.mxu0 0
        %1414 = vmatmul.mubr.bf16.gmra.mrb[0].mxu0 %v1176
        %v1415 = vpop.f32.mrb[0].mxu0
        %v1416 = vadd.f32 0.0, %v1415
        %v1417 = vpop.f32.mrb[0].mxu0
        %v1418 = vpop.f32.mrb[0].mxu0
        %v1419 = vadd.f32 0.0, %v1418
        %v1420 = vpop.f32.mrb[0].mxu0
        %1421 = vmatprep.mubr.bf16.mxu0 0
        %1422 = vmatmul.mubr.bf16.gmra.mrb[0].mxu0 %v1188
        %v1423 = vpop.f32.mrb[0].mxu0
        %v1424 = vadd.f32 0.0, %v1423
        %v1425 = vpop.f32.mrb[0].mxu0
        %v1426 = vpop.f32.mrb[0].mxu0
        %v1427 = vadd.f32 0.0, %v1426
        %v1428 = vpop.f32.mrb[0].mxu0
        %1429 = vdwg.mxu0
        %v1446 = vunpack.c.l.b16 %v980
        %v1447 = vunpack.c.l.b16 %v981
        %v1448 = vunpack.c.l.b16 %v982
        %v1449 = vunpack.c.l.b16 %v983
        %v1450 = vunpack.c.l.b16 %v984
        %v1451 = vunpack.c.l.b16 %v985
        %v1452 = vunpack.c.l.b16 %v986
        %v1453 = vunpack.c.l.b16 %v987
        %v1454 = vunpack.c.l.b16 %v988
        %v1455 = vunpack.c.l.b16 %v989
        %v1456 = vunpack.c.l.b16 %v990
        %v1457 = vunpack.c.l.b16 %v991
        %v1458 = vunpack.c.l.b16 %v992
        %v1459 = vunpack.c.l.b16 %v993
        %v1460 = vunpack.c.l.b16 %v994
        %v1461 = vunpack.c.l.b16 %v995
        %v1462 = vpack.c.b16 %v1447, %v1446
        %v1463 = vpack.c.b16 %v1449, %v1448
        %v1464 = vpack.c.b16 %v1451, %v1450
        %v1465 = vpack.c.b16 %v1453, %v1452
        %v1466 = vpack.c.b16 %v1455, %v1454
        %v1467 = vpack.c.b16 %v1457, %v1456
        %v1468 = vpack.c.b16 %v1459, %v1458
        %v1469 = vpack.c.b16 %v1461, %v1460
        %1478 = vmatprep.subr.bf16.mxu0 0
        %1479 = vmatpush1.bf16.msra.mxu0 %v1462
        %1480 = vmatprep.subr.bf16.mxu0 0
        %1481 = vmatpush1.bf16.msra.mxu0 %v1463
        %1482 = vmatprep.subr.bf16.mxu0 0
        %1483 = vmatpush1.bf16.msra.mxu0 %v1464
        %1484 = vmatprep.subr.bf16.mxu0 0
        %1485 = vmatpush1.bf16.msra.mxu0 %v1465
        %1486 = vmatprep.subr.bf16.mxu0 0
        %1487 = vmatpush1.bf16.msra.mxu0 %v1466
        %1488 = vmatprep.subr.bf16.mxu0 0
        %1489 = vmatpush1.bf16.msra.mxu0 %v1467
        %1490 = vmatprep.subr.bf16.mxu0 0
        %1491 = vmatpush1.bf16.msra.mxu0 %v1468
        %1492 = vmatprep.subr.bf16.mxu0 0
        %1493 = vmatpush1.bf16.msra.mxu0 %v1469
        %1494 = vmatprep.subr.bf16.mxu0 0
        %1495 = vmatpush1.bf16.msra.mxu0 0
        %1496 = vmatprep.subr.bf16.mxu0 0
        %1497 = vmatpush1.bf16.msra.mxu0 0
        %1498 = vmatprep.subr.bf16.mxu0 0
        %1499 = vmatpush1.bf16.msra.mxu0 0
        %1500 = vmatprep.subr.bf16.mxu0 0
        %1501 = vmatpush1.bf16.msra.mxu0 0
        %1502 = vmatprep.subr.bf16.mxu0 0
        %1503 = vmatpush1.bf16.msra.mxu0 0
        %1504 = vmatprep.subr.bf16.mxu0 0
        %1505 = vmatpush1.bf16.msra.mxu0 0
        %1506 = vmatprep.subr.bf16.mxu0 0
        %1507 = vmatpush1.bf16.msra.mxu0 0
        %1508 = vmatprep.subr.bf16.mxu0 0
        %1509 = vmatpush1.bf16.msra.mxu0 0
        %1510 = vmatprep.mubr.bf16.mxu0 0
        %1511 = vmatmul.mubr.bf16.gmra.mrb[0].mxu0 %v944
        %v1512 = vpop.f32.mrb[0].mxu0
        %v1513 = vadd.f32 %v1304, %v1512
        %v1514 = vpop.f32.mrb[0].mxu0
        %v1515 = vpop.f32.mrb[0].mxu0
        %v1516 = vadd.f32 %v1307, %v1515
        %v1517 = vpop.f32.mrb[0].mxu0
        %1518 = vmatprep.mubr.bf16.mxu0 0
        %1519 = vmatmul.mubr.bf16.gmra.mrb[0].mxu0 %v945
        %v1520 = vpop.f32.mrb[0].mxu0
        %v1521 = vadd.f32 %v1312, %v1520
        %v1522 = vpop.f32.mrb[0].mxu0
        %v1523 = vpop.f32.mrb[0].mxu0
        %v1524 = vadd.f32 %v1315, %v1523
        %v1525 = vpop.f32.mrb[0].mxu0
        %1526 = vmatprep.mubr.bf16.mxu0 0
        %1527 = vmatmul.mubr.bf16.gmra.mrb[0].mxu0 %v946
        %v1528 = vpop.f32.mrb[0].mxu0
        %v1529 = vadd.f32 %v1320, %v1528
        %v1530 = vpop.f32.mrb[0].mxu0
        %v1531 = vpop.f32.mrb[0].mxu0
        %v1532 = vadd.f32 %v1323, %v1531
        %v1533 = vpop.f32.mrb[0].mxu0
        %1534 = vmatprep.mubr.bf16.mxu0 0
        %1535 = vmatmul.mubr.bf16.gmra.mrb[0].mxu0 %v947
        %v1536 = vpop.f32.mrb[0].mxu0
        %v1537 = vadd.f32 %v1328, %v1536
        %v1538 = vpop.f32.mrb[0].mxu0
        %v1539 = vpop.f32.mrb[0].mxu0
        %v1540 = vadd.f32 %v1331, %v1539
        %v1541 = vpop.f32.mrb[0].mxu0
        %1542 = vmatprep.mubr.bf16.mxu0 0
        %1543 = vmatmul.mubr.bf16.gmra.mrb[0].mxu0 %v948
        %v1544 = vpop.f32.mrb[0].mxu0
        %v1545 = vadd.f32 %v1336, %v1544
        %v1546 = vpop.f32.mrb[0].mxu0
        %v1547 = vpop.f32.mrb[0].mxu0
        %v1548 = vadd.f32 %v1339, %v1547
        %v1549 = vpop.f32.mrb[0].mxu0
        %1550 = vmatprep.mubr.bf16.mxu0 0
        %1551 = vmatmul.mubr.bf16.gmra.mrb[0].mxu0 %v949
        %v1552 = vpop.f32.mrb[0].mxu0
        %v1553 = vadd.f32 %v1344, %v1552
        %v1554 = vpop.f32.mrb[0].mxu0
        %v1555 = vpop.f32.mrb[0].mxu0
        %v1556 = vadd.f32 %v1347, %v1555
        %v1557 = vpop.f32.mrb[0].mxu0
        %1558 = vmatprep.mubr.bf16.mxu0 0
        %1559 = vmatmul.mubr.bf16.gmra.mrb[0].mxu0 %v950
        %v1560 = vpop.f32.mrb[0].mxu0
        %v1561 = vadd.f32 %v1352, %v1560
        %v1562 = vpop.f32.mrb[0].mxu0
        %v1563 = vpop.f32.mrb[0].mxu0
        %v1564 = vadd.f32 %v1355, %v1563
        %v1565 = vpop.f32.mrb[0].mxu0
        %1566 = vmatprep.mubr.bf16.mxu0 0
        %1567 = vmatmul.mubr.bf16.gmra.mrb[0].mxu0 %v951
        %v1568 = vpop.f32.mrb[0].mxu0
        %v1569 = vadd.f32 %v1360, %v1568
        %v1570 = vpop.f32.mrb[0].mxu0
        %v1571 = vpop.f32.mrb[0].mxu0
        %v1572 = vadd.f32 %v1363, %v1571
        %v1573 = vpop.f32.mrb[0].mxu0
        %1574 = vmatprep.mubr.bf16.mxu0 0
        %1575 = vmatmul.mubr.bf16.gmra.mrb[0].mxu0 %v952
        %v1576 = vpop.f32.mrb[0].mxu0
        %v1577 = vadd.f32 %v1368, %v1576
        %v1578 = vpop.f32.mrb[0].mxu0
        %v1579 = vpop.f32.mrb[0].mxu0
        %v1580 = vadd.f32 %v1371, %v1579
        %v1581 = vpop.f32.mrb[0].mxu0
        %1582 = vmatprep.mubr.bf16.mxu0 0
        %1583 = vmatmul.mubr.bf16.gmra.mrb[0].mxu0 %v953
        %v1584 = vpop.f32.mrb[0].mxu0
        %v1585 = vadd.f32 %v1376, %v1584
        %v1586 = vpop.f32.mrb[0].mxu0
        %v1587 = vpop.f32.mrb[0].mxu0
        %v1588 = vadd.f32 %v1379, %v1587
        %v1589 = vpop.f32.mrb[0].mxu0
        %1590 = vmatprep.mubr.bf16.mxu0 0
        %1591 = vmatmul.mubr.bf16.gmra.mrb[0].mxu0 %v954
        %v1592 = vpop.f32.mrb[0].mxu0
        %v1593 = vadd.f32 %v1384, %v1592
        %v1594 = vpop.f32.mrb[0].mxu0
        %v1595 = vpop.f32.mrb[0].mxu0
        %v1596 = vadd.f32 %v1387, %v1595
        %v1597 = vpop.f32.mrb[0].mxu0
        %1598 = vmatprep.mubr.bf16.mxu0 0
        %1599 = vmatmul.mubr.bf16.gmra.mrb[0].mxu0 %v955
        %v1600 = vpop.f32.mrb[0].mxu0
        %v1601 = vadd.f32 %v1392, %v1600
        %v1602 = vpop.f32.mrb[0].mxu0
        %v1603 = vpop.f32.mrb[0].mxu0
        %v1604 = vadd.f32 %v1395, %v1603
        %v1605 = vpop.f32.mrb[0].mxu0
        %1606 = vmatprep.mubr.bf16.mxu0 0
        %1607 = vmatmul.mubr.bf16.gmra.mrb[0].mxu0 %v956
        %v1608 = vpop.f32.mrb[0].mxu0
        %v1609 = vadd.f32 %v1400, %v1608
        %v1610 = vpop.f32.mrb[0].mxu0
        %v1611 = vpop.f32.mrb[0].mxu0
        %v1612 = vadd.f32 %v1403, %v1611
        %v1613 = vpop.f32.mrb[0].mxu0
        %1614 = vmatprep.mubr.bf16.mxu0 0
        %1615 = vmatmul.mubr.bf16.gmra.mrb[0].mxu0 %v957
        %v1616 = vpop.f32.mrb[0].mxu0
        %v1617 = vadd.f32 %v1408, %v1616
        %v1618 = vpop.f32.mrb[0].mxu0
        %v1619 = vpop.f32.mrb[0].mxu0
        %v1620 = vadd.f32 %v1411, %v1619
        %v1621 = vpop.f32.mrb[0].mxu0
        %1622 = vmatprep.mubr.bf16.mxu0 0
        %1623 = vmatmul.mubr.bf16.gmra.mrb[0].mxu0 %v958
        %v1624 = vpop.f32.mrb[0].mxu0
        %v1625 = vadd.f32 %v1416, %v1624
        %v1626 = vpop.f32.mrb[0].mxu0
        %v1627 = vpop.f32.mrb[0].mxu0
        %v1628 = vadd.f32 %v1419, %v1627
        %v1629 = vpop.f32.mrb[0].mxu0
        %1630 = vmatprep.mubr.bf16.mxu0 0
        %1631 = vmatmul.mubr.bf16.gmra.mrb[0].mxu0 %v959
        %v1632 = vpop.f32.mrb[0].mxu0
        %v1633 = vadd.f32 %v1424, %v1632
        %v1634 = vpop.f32.mrb[0].mxu0
        %v1635 = vpop.f32.mrb[0].mxu0
        %v1636 = vadd.f32 %v1427, %v1635
        %v1637 = vpop.f32.mrb[0].mxu0
        %1638 = vdwg.mxu0
        %vm1671 = vcmask 1046528
        %v1672 = vrot.slane %v944, 1
        %v1673 = vrot.slane %v962, 1
        %v1674 = vsel %vm1671, %v1672, %v1673
        %v1675 = vrot.slane %v945, 1
        %v1676 = vrot.slane %v963, 1
        %v1677 = vsel %vm1671, %v1675, %v1676
        %v1678 = vrot.slane %v946, 1
        %v1679 = vrot.slane %v964, 1
        %v1680 = vsel %vm1671, %v1678, %v1679
        %v1681 = vrot.slane %v947, 1
        %v1682 = vrot.slane %v965, 1
        %v1683 = vsel %vm1671, %v1681, %v1682
        %v1684 = vrot.slane %v948, 1
        %v1685 = vrot.slane %v966, 1
        %v1686 = vsel %vm1671, %v1684, %v1685
        %v1687 = vrot.slane %v949, 1
        %v1688 = vrot.slane %v967, 1
        %v1689 = vsel %vm1671, %v1687, %v1688
        %v1690 = vrot.slane %v950, 1
        %v1691 = vrot.slane %v968, 1
        %v1692 = vsel %vm1671, %v1690, %v1691
        %v1693 = vrot.slane %v951, 1
        %v1694 = vrot.slane %v969, 1
        %v1695 = vsel %vm1671, %v1693, %v1694
        %v1696 = vrot.slane %v952, 1
        %v1697 = vrot.slane %v970, 1
        %v1698 = vsel %vm1671, %v1696, %v1697
        %v1699 = vrot.slane %v953, 1
        %v1700 = vrot.slane %v971, 1
        %v1701 = vsel %vm1671, %v1699, %v1700
        %v1702 = vrot.slane %v954, 1
        %v1703 = vrot.slane %v972, 1
        %v1704 = vsel %vm1671, %v1702, %v1703
        %v1705 = vrot.slane %v955, 1
        %v1706 = vrot.slane %v973, 1
        %v1707 = vsel %vm1671, %v1705, %v1706
        %v1708 = vrot.slane %v956, 1
        %v1709 = vrot.slane %v974, 1
        %v1710 = vsel %vm1671, %v1708, %v1709
        %v1711 = vrot.slane %v957, 1
        %v1712 = vrot.slane %v975, 1
        %v1713 = vsel %vm1671, %v1711, %v1712
        %v1714 = vrot.slane %v958, 1
        %v1715 = vrot.slane %v976, 1
        %v1716 = vsel %vm1671, %v1714, %v1715
        %v1717 = vrot.slane %v959, 1
        %v1718 = vrot.slane %v977, 1
        %v1719 = vsel %vm1671, %v1717, %v1718
        %v1736 = vld [vmem:[#allocation11 + $0x80] sm:$0xf]
        %v1737 = vld [vmem:[#allocation11 + $0x84] sm:$0xf]
        %v1738 = vld [vmem:[#allocation11 + $0x88] sm:$0xf]
        %v1739 = vld [vmem:[#allocation11 + $0x8c] sm:$0xf]
        %v1740 = vld [vmem:[#allocation11 + $0x90] sm:$0xf]
        %v1741 = vld [vmem:[#allocation11 + $0x94] sm:$0xf]
        %v1742 = vld [vmem:[#allocation11 + $0x98] sm:$0xf]
        %v1743 = vld [vmem:[#allocation11 + $0x9c] sm:$0xf]
        %v1744 = vld [vmem:[#allocation11 + $0xa0] sm:$0xf]
        %v1745 = vld [vmem:[#allocation11 + $0xa4] sm:$0xf]
        %v1746 = vld [vmem:[#allocation11 + $0xa8] sm:$0xf]
        %v1747 = vld [vmem:[#allocation11 + $0xac] sm:$0xf]
        %v1748 = vld [vmem:[#allocation11 + $0xb0] sm:$0xf]
        %v1749 = vld [vmem:[#allocation11 + $0xb4] sm:$0xf]
        %v1750 = vld [vmem:[#allocation11 + $0xb8] sm:$0xf]
        %v1751 = vld [vmem:[#allocation11 + $0xbc] sm:$0xf]
        %v1768 = vunpack.c.l.b16 %v1736
        %v1769 = vunpack.c.l.b16 %v1737
        %v1770 = vunpack.c.l.b16 %v1738
        %v1771 = vunpack.c.l.b16 %v1739
        %v1772 = vunpack.c.l.b16 %v1740
        %v1773 = vunpack.c.l.b16 %v1741
        %v1774 = vunpack.c.l.b16 %v1742
        %v1775 = vunpack.c.l.b16 %v1743
        %v1776 = vunpack.c.l.b16 %v1744
        %v1777 = vunpack.c.l.b16 %v1745
        %v1778 = vunpack.c.l.b16 %v1746
        %v1779 = vunpack.c.l.b16 %v1747
        %v1780 = vunpack.c.l.b16 %v1748
        %v1781 = vunpack.c.l.b16 %v1749
        %v1782 = vunpack.c.l.b16 %v1750
        %v1783 = vunpack.c.l.b16 %v1751
        %v1784 = vpack.c.b16 %v1769, %v1768
        %v1785 = vpack.c.b16 %v1771, %v1770
        %v1786 = vpack.c.b16 %v1773, %v1772
        %v1787 = vpack.c.b16 %v1775, %v1774
        %v1788 = vpack.c.b16 %v1777, %v1776
        %v1789 = vpack.c.b16 %v1779, %v1778
        %v1790 = vpack.c.b16 %v1781, %v1780
        %v1791 = vpack.c.b16 %v1783, %v1782
        %1800 = vmatprep.subr.bf16.mxu0 0
        %1801 = vmatpush1.bf16.msra.mxu0 %v1784
        %1802 = vmatprep.subr.bf16.mxu0 0
        %1803 = vmatpush1.bf16.msra.mxu0 %v1785
        %1804 = vmatprep.subr.bf16.mxu0 0
        %1805 = vmatpush1.bf16.msra.mxu0 %v1786
        %1806 = vmatprep.subr.bf16.mxu0 0
        %1807 = vmatpush1.bf16.msra.mxu0 %v1787
        %1808 = vmatprep.subr.bf16.mxu0 0
        %1809 = vmatpush1.bf16.msra.mxu0 %v1788
        %1810 = vmatprep.subr.bf16.mxu0 0
        %1811 = vmatpush1.bf16.msra.mxu0 %v1789
        %1812 = vmatprep.subr.bf16.mxu0 0
        %1813 = vmatpush1.bf16.msra.mxu0 %v1790
        %1814 = vmatprep.subr.bf16.mxu0 0
        %1815 = vmatpush1.bf16.msra.mxu0 %v1791
        %1816 = vmatprep.subr.bf16.mxu0 0
        %1817 = vmatpush1.bf16.msra.mxu0 0
        %1818 = vmatprep.subr.bf16.mxu0 0
        %1819 = vmatpush1.bf16.msra.mxu0 0
        %1820 = vmatprep.subr.bf16.mxu0 0
        %1821 = vmatpush1.bf16.msra.mxu0 0
        %1822 = vmatprep.subr.bf16.mxu0 0
        %1823 = vmatpush1.bf16.msra.mxu0 0
        %1824 = vmatprep.subr.bf16.mxu0 0
        %1825 = vmatpush1.bf16.msra.mxu0 0
        %1826 = vmatprep.subr.bf16.mxu0 0
        %1827 = vmatpush1.bf16.msra.mxu0 0
        %1828 = vmatprep.subr.bf16.mxu0 0
        %1829 = vmatpush1.bf16.msra.mxu0 0
        %1830 = vmatprep.subr.bf16.mxu0 0
        %1831 = vmatpush1.bf16.msra.mxu0 0
        %1832 = vmatprep.mubr.bf16.mxu0 0
        %1833 = vmatmul.mubr.bf16.gmra.mrb[0].mxu0 %v1674
        %v1834 = vpop.f32.mrb[0].mxu0
        %v1835 = vadd.f32 0.0, %v1834
        %v1836 = vpop.f32.mrb[0].mxu0
        %v1837 = vpop.f32.mrb[0].mxu0
        %v1838 = vadd.f32 0.0, %v1837
        %v1839 = vpop.f32.mrb[0].mxu0
        %1840 = vmatprep.mubr.bf16.mxu0 0
        %1841 = vmatmul.mubr.bf16.gmra.mrb[0].mxu0 %v1677
        %v1842 = vpop.f32.mrb[0].mxu0
        %v1843 = vadd.f32 0.0, %v1842
        %v1844 = vpop.f32.mrb[0].mxu0
        %v1845 = vpop.f32.mrb[0].mxu0
        %v1846 = vadd.f32 0.0, %v1845
        %v1847 = vpop.f32.mrb[0].mxu0
        %1848 = vmatprep.mubr.bf16.mxu0 0
        %1849 = vmatmul.mubr.bf16.gmra.mrb[0].mxu0 %v1680
        %v1850 = vpop.f32.mrb[0].mxu0
        %v1851 = vadd.f32 0.0, %v1850
        %v1852 = vpop.f32.mrb[0].mxu0
        %v1853 = vpop.f32.mrb[0].mxu0
        %v1854 = vadd.f32 0.0, %v1853
        %v1855 = vpop.f32.mrb[0].mxu0
        %1856 = vmatprep.mubr.bf16.mxu0 0
        %1857 = vmatmul.mubr.bf16.gmra.mrb[0].mxu0 %v1683
        %v1858 = vpop.f32.mrb[0].mxu0
        %v1859 = vadd.f32 0.0, %v1858
        %v1860 = vpop.f32.mrb[0].mxu0
        %v1861 = vpop.f32.mrb[0].mxu0
        %v1862 = vadd.f32 0.0, %v1861
        %v1863 = vpop.f32.mrb[0].mxu0
        %1864 = vmatprep.mubr.bf16.mxu0 0
        %1865 = vmatmul.mubr.bf16.gmra.mrb[0].mxu0 %v1686
        %v1866 = vpop.f32.mrb[0].mxu0
        %v1867 = vadd.f32 0.0, %v1866
        %v1868 = vpop.f32.mrb[0].mxu0
        %v1869 = vpop.f32.mrb[0].mxu0
        %v1870 = vadd.f32 0.0, %v1869
        %v1871 = vpop.f32.mrb[0].mxu0
        %1872 = vmatprep.mubr.bf16.mxu0 0
        %1873 = vmatmul.mubr.bf16.gmra.mrb[0].mxu0 %v1689
        %v1874 = vpop.f32.mrb[0].mxu0
        %v1875 = vadd.f32 0.0, %v1874
        %v1876 = vpop.f32.mrb[0].mxu0
        %v1877 = vpop.f32.mrb[0].mxu0
        %v1878 = vadd.f32 0.0, %v1877
        %v1879 = vpop.f32.mrb[0].mxu0
        %1880 = vmatprep.mubr.bf16.mxu0 0
        %1881 = vmatmul.mubr.bf16.gmra.mrb[0].mxu0 %v1692
        %v1882 = vpop.f32.mrb[0].mxu0
        %v1883 = vadd.f32 0.0, %v1882
        %v1884 = vpop.f32.mrb[0].mxu0
        %v1885 = vpop.f32.mrb[0].mxu0
        %v1886 = vadd.f32 0.0, %v1885
        %v1887 = vpop.f32.mrb[0].mxu0
        %1888 = vmatprep.mubr.bf16.mxu0 0
        %1889 = vmatmul.mubr.bf16.gmra.mrb[0].mxu0 %v1695
        %v1890 = vpop.f32.mrb[0].mxu0
        %v1891 = vadd.f32 0.0, %v1890
        %v1892 = vpop.f32.mrb[0].mxu0
        %v1893 = vpop.f32.mrb[0].mxu0
        %v1894 = vadd.f32 0.0, %v1893
        %v1895 = vpop.f32.mrb[0].mxu0
        %1896 = vmatprep.mubr.bf16.mxu0 0
        %1897 = vmatmul.mubr.bf16.gmra.mrb[0].mxu0 %v1698
        %v1898 = vpop.f32.mrb[0].mxu0
        %v1899 = vadd.f32 0.0, %v1898
        %v1900 = vpop.f32.mrb[0].mxu0
        %v1901 = vpop.f32.mrb[0].mxu0
        %v1902 = vadd.f32 0.0, %v1901
        %v1903 = vpop.f32.mrb[0].mxu0
        %1904 = vmatprep.mubr.bf16.mxu0 0
        %1905 = vmatmul.mubr.bf16.gmra.mrb[0].mxu0 %v1701
        %v1906 = vpop.f32.mrb[0].mxu0
        %v1907 = vadd.f32 0.0, %v1906
        %v1908 = vpop.f32.mrb[0].mxu0
        %v1909 = vpop.f32.mrb[0].mxu0
        %v1910 = vadd.f32 0.0, %v1909
        %v1911 = vpop.f32.mrb[0].mxu0
        %1912 = vmatprep.mubr.bf16.mxu0 0
        %1913 = vmatmul.mubr.bf16.gmra.mrb[0].mxu0 %v1704
        %v1914 = vpop.f32.mrb[0].mxu0
        %v1915 = vadd.f32 0.0, %v1914
        %v1916 = vpop.f32.mrb[0].mxu0
        %v1917 = vpop.f32.mrb[0].mxu0
        %v1918 = vadd.f32 0.0, %v1917
        %v1919 = vpop.f32.mrb[0].mxu0
        %1920 = vmatprep.mubr.bf16.mxu0 0
        %1921 = vmatmul.mubr.bf16.gmra.mrb[0].mxu0 %v1707
        %v1922 = vpop.f32.mrb[0].mxu0
        %v1923 = vadd.f32 0.0, %v1922
        %v1924 = vpop.f32.mrb[0].mxu0
        %v1925 = vpop.f32.mrb[0].mxu0
        %v1926 = vadd.f32 0.0, %v1925
        %v1927 = vpop.f32.mrb[0].mxu0
        %1928 = vmatprep.mubr.bf16.mxu0 0
        %1929 = vmatmul.mubr.bf16.gmra.mrb[0].mxu0 %v1710
        %v1930 = vpop.f32.mrb[0].mxu0
        %v1931 = vadd.f32 0.0, %v1930
        %v1932 = vpop.f32.mrb[0].mxu0
        %v1933 = vpop.f32.mrb[0].mxu0
        %v1934 = vadd.f32 0.0, %v1933
        %v1935 = vpop.f32.mrb[0].mxu0
        %1936 = vmatprep.mubr.bf16.mxu0 0
        %1937 = vmatmul.mubr.bf16.gmra.mrb[0].mxu0 %v1713
        %v1938 = vpop.f32.mrb[0].mxu0
        %v1939 = vadd.f32 0.0, %v1938
        %v1940 = vpop.f32.mrb[0].mxu0
        %v1941 = vpop.f32.mrb[0].mxu0
        %v1942 = vadd.f32 0.0, %v1941
        %v1943 = vpop.f32.mrb[0].mxu0
        %1944 = vmatprep.mubr.bf16.mxu0 0
        %1945 = vmatmul.mubr.bf16.gmra.mrb[0].mxu0 %v1716
        %v1946 = vpop.f32.mrb[0].mxu0
        %v1947 = vadd.f32 0.0, %v1946
        %v1948 = vpop.f32.mrb[0].mxu0
        %v1949 = vpop.f32.mrb[0].mxu0
        %v1950 = vadd.f32 0.0, %v1949
        %v1951 = vpop.f32.mrb[0].mxu0
        %1952 = vmatprep.mubr.bf16.mxu0 0
        %1953 = vmatmul.mubr.bf16.gmra.mrb[0].mxu0 %v1719
        %v1954 = vpop.f32.mrb[0].mxu0
        %v1955 = vadd.f32 0.0, %v1954
        %v1956 = vpop.f32.mrb[0].mxu0
        %v1957 = vpop.f32.mrb[0].mxu0
        %v1958 = vadd.f32 0.0, %v1957
        %v1959 = vpop.f32.mrb[0].mxu0
        %1960 = vdwg.mxu0
        %v1961 = vadd.f32 %v1513, %v1835
        %v1962 = vadd.f32 %v1516, %v1838
        %v1963 = vadd.f32 %v1521, %v1843
        %v1964 = vadd.f32 %v1524, %v1846
        %v1965 = vadd.f32 %v1529, %v1851
        %v1966 = vadd.f32 %v1532, %v1854
        %v1967 = vadd.f32 %v1537, %v1859
        %v1968 = vadd.f32 %v1540, %v1862
        %v1969 = vadd.f32 %v1545, %v1867
        %v1970 = vadd.f32 %v1548, %v1870
        %v1971 = vadd.f32 %v1553, %v1875
        %v1972 = vadd.f32 %v1556, %v1878
        %v1973 = vadd.f32 %v1561, %v1883
        %v1974 = vadd.f32 %v1564, %v1886
        %v1975 = vadd.f32 %v1569, %v1891
        %v1976 = vadd.f32 %v1572, %v1894
        %v1977 = vadd.f32 %v1577, %v1899
        %v1978 = vadd.f32 %v1580, %v1902
        %v1979 = vadd.f32 %v1585, %v1907
        %v1980 = vadd.f32 %v1588, %v1910
        %v1981 = vadd.f32 %v1593, %v1915
        %v1982 = vadd.f32 %v1596, %v1918
        %v1983 = vadd.f32 %v1601, %v1923
        %v1984 = vadd.f32 %v1604, %v1926
        %v1985 = vadd.f32 %v1609, %v1931
        %v1986 = vadd.f32 %v1612, %v1934
        %v1987 = vadd.f32 %v1617, %v1939
        %v1988 = vadd.f32 %v1620, %v1942
        %v1989 = vadd.f32 %v1625, %v1947
        %v1990 = vadd.f32 %v1628, %v1950
        %v1991 = vadd.f32 %v1633, %v1955
        %v1992 = vadd.f32 %v1636, %v1958
        %v1993 = vld [vmem:[#allocation11 + $0xc0] sm:$0xf]
        %v1994 = vld [vmem:[#allocation11 + $0xc4] sm:$0xf]
        %v1995 = vld [vmem:[#allocation11 + $0xc8] sm:$0xf]
        %v1996 = vld [vmem:[#allocation11 + $0xcc] sm:$0xf]
        %v1997 = vld [vmem:[#allocation11 + $0xd0] sm:$0xf]
        %v1998 = vld [vmem:[#allocation11 + $0xd4] sm:$0xf]
        %v1999 = vld [vmem:[#allocation11 + $0xd8] sm:$0xf]
        %v2000 = vld [vmem:[#allocation11 + $0xdc] sm:$0xf]
        %v2001 = vld [vmem:[#allocation11 + $0xe0] sm:$0xf]
        %v2002 = vld [vmem:[#allocation11 + $0xe4] sm:$0xf]
        %v2003 = vld [vmem:[#allocation11 + $0xe8] sm:$0xf]
        %v2004 = vld [vmem:[#allocation11 + $0xec] sm:$0xf]
        %v2005 = vld [vmem:[#allocation11 + $0xf0] sm:$0xf]
        %v2006 = vld [vmem:[#allocation11 + $0xf4] sm:$0xf]
        %v2007 = vld [vmem:[#allocation11 + $0xf8] sm:$0xf]
        %v2008 = vld [vmem:[#allocation11 + $0xfc] sm:$0xf]
        %v2025 = vunpack.c.l.b16 %v1993
        %v2026 = vunpack.c.l.b16 %v1994
        %v2027 = vunpack.c.l.b16 %v1995
        %v2028 = vunpack.c.l.b16 %v1996
        %v2029 = vunpack.c.l.b16 %v1997
        %v2030 = vunpack.c.l.b16 %v1998
        %v2031 = vunpack.c.l.b16 %v1999
        %v2032 = vunpack.c.l.b16 %v2000
        %v2033 = vunpack.c.l.b16 %v2001
        %v2034 = vunpack.c.l.b16 %v2002
        %v2035 = vunpack.c.l.b16 %v2003
        %v2036 = vunpack.c.l.b16 %v2004
        %v2037 = vunpack.c.l.b16 %v2005
        %v2038 = vunpack.c.l.b16 %v2006
        %v2039 = vunpack.c.l.b16 %v2007
        %v2040 = vunpack.c.l.b16 %v2008
        %v2041 = vpack.c.b16 %v2026, %v2025
        %v2042 = vpack.c.b16 %v2028, %v2027
        %v2043 = vpack.c.b16 %v2030, %v2029
        %v2044 = vpack.c.b16 %v2032, %v2031
        %v2045 = vpack.c.b16 %v2034, %v2033
        %v2046 = vpack.c.b16 %v2036, %v2035
        %v2047 = vpack.c.b16 %v2038, %v2037
        %v2048 = vpack.c.b16 %v2040, %v2039
        %2057 = vmatprep.subr.bf16.mxu0 0
        %2058 = vmatpush1.bf16.msra.mxu0 %v2041
        %2059 = vmatprep.subr.bf16.mxu0 0
        %2060 = vmatpush1.bf16.msra.mxu0 %v2042
        %2061 = vmatprep.subr.bf16.mxu0 0
        %2062 = vmatpush1.bf16.msra.mxu0 %v2043
        %2063 = vmatprep.subr.bf16.mxu0 0
        %2064 = vmatpush1.bf16.msra.mxu0 %v2044
        %2065 = vmatprep.subr.bf16.mxu0 0
        %2066 = vmatpush1.bf16.msra.mxu0 %v2045
        %2067 = vmatprep.subr.bf16.mxu0 0
        %2068 = vmatpush1.bf16.msra.mxu0 %v2046
        %2069 = vmatprep.subr.bf16.mxu0 0
        %2070 = vmatpush1.bf16.msra.mxu0 %v2047
        %2071 = vmatprep.subr.bf16.mxu0 0
        %2072 = vmatpush1.bf16.msra.mxu0 %v2048
        %2073 = vmatprep.subr.bf16.mxu0 0
        %2074 = vmatpush1.bf16.msra.mxu0 0
        %2075 = vmatprep.subr.bf16.mxu0 0
        %2076 = vmatpush1.bf16.msra.mxu0 0
        %2077 = vmatprep.subr.bf16.mxu0 0
        %2078 = vmatpush1.bf16.msra.mxu0 0
        %2079 = vmatprep.subr.bf16.mxu0 0
        %2080 = vmatpush1.bf16.msra.mxu0 0
        %2081 = vmatprep.subr.bf16.mxu0 0
        %2082 = vmatpush1.bf16.msra.mxu0 0
        %2083 = vmatprep.subr.bf16.mxu0 0
        %2084 = vmatpush1.bf16.msra.mxu0 0
        %2085 = vmatprep.subr.bf16.mxu0 0
        %2086 = vmatpush1.bf16.msra.mxu0 0
        %2087 = vmatprep.subr.bf16.mxu0 0
        %2088 = vmatpush1.bf16.msra.mxu0 0
        %2089 = vmatprep.mubr.bf16.mxu0 0
        %2090 = vmatmul.mubr.bf16.gmra.mrb[0].mxu0 %v945
        %v2091 = vpop.f32.mrb[0].mxu0
        %v2092 = vadd.f32 0.0, %v2091
        %v2093 = vpop.f32.mrb[0].mxu0
        %v2094 = vpop.f32.mrb[0].mxu0
        %v2095 = vadd.f32 0.0, %v2094
        %v2096 = vpop.f32.mrb[0].mxu0
        %2097 = vmatprep.mubr.bf16.mxu0 0
        %2098 = vmatmul.mubr.bf16.gmra.mrb[0].mxu0 %v946
        %v2099 = vpop.f32.mrb[0].mxu0
        %v2100 = vadd.f32 0.0, %v2099
        %v2101 = vpop.f32.mrb[0].mxu0
        %v2102 = vpop.f32.mrb[0].mxu0
        %v2103 = vadd.f32 0.0, %v2102
        %v2104 = vpop.f32.mrb[0].mxu0
        %2105 = vmatprep.mubr.bf16.mxu0 0
        %2106 = vmatmul.mubr.bf16.gmra.mrb[0].mxu0 %v947
        %v2107 = vpop.f32.mrb[0].mxu0
        %v2108 = vadd.f32 0.0, %v2107
        %v2109 = vpop.f32.mrb[0].mxu0
        %v2110 = vpop.f32.mrb[0].mxu0
        %v2111 = vadd.f32 0.0, %v2110
        %v2112 = vpop.f32.mrb[0].mxu0
        %2113 = vmatprep.mubr.bf16.mxu0 0
        %2114 = vmatmul.mubr.bf16.gmra.mrb[0].mxu0 %v948
        %v2115 = vpop.f32.mrb[0].mxu0
        %v2116 = vadd.f32 0.0, %v2115
        %v2117 = vpop.f32.mrb[0].mxu0
        %v2118 = vpop.f32.mrb[0].mxu0
        %v2119 = vadd.f32 0.0, %v2118
        %v2120 = vpop.f32.mrb[0].mxu0
        %2121 = vmatprep.mubr.bf16.mxu0 0
        %2122 = vmatmul.mubr.bf16.gmra.mrb[0].mxu0 %v949
        %v2123 = vpop.f32.mrb[0].mxu0
        %v2124 = vadd.f32 0.0, %v2123
        %v2125 = vpop.f32.mrb[0].mxu0
        %v2126 = vpop.f32.mrb[0].mxu0
        %v2127 = vadd.f32 0.0, %v2126
        %v2128 = vpop.f32.mrb[0].mxu0
        %2129 = vmatprep.mubr.bf16.mxu0 0
        %2130 = vmatmul.mubr.bf16.gmra.mrb[0].mxu0 %v950
        %v2131 = vpop.f32.mrb[0].mxu0
        %v2132 = vadd.f32 0.0, %v2131
        %v2133 = vpop.f32.mrb[0].mxu0
        %v2134 = vpop.f32.mrb[0].mxu0
        %v2135 = vadd.f32 0.0, %v2134
        %v2136 = vpop.f32.mrb[0].mxu0
        %2137 = vmatprep.mubr.bf16.mxu0 0
        %2138 = vmatmul.mubr.bf16.gmra.mrb[0].mxu0 %v951
        %v2139 = vpop.f32.mrb[0].mxu0
        %v2140 = vadd.f32 0.0, %v2139
        %v2141 = vpop.f32.mrb[0].mxu0
        %v2142 = vpop.f32.mrb[0].mxu0
        %v2143 = vadd.f32 0.0, %v2142
        %v2144 = vpop.f32.mrb[0].mxu0
        %2145 = vmatprep.mubr.bf16.mxu0 0
        %2146 = vmatmul.mubr.bf16.gmra.mrb[0].mxu0 %v952
        %v2147 = vpop.f32.mrb[0].mxu0
        %v2148 = vadd.f32 0.0, %v2147
        %v2149 = vpop.f32.mrb[0].mxu0
        %v2150 = vpop.f32.mrb[0].mxu0
        %v2151 = vadd.f32 0.0, %v2150
        %v2152 = vpop.f32.mrb[0].mxu0
        %2153 = vmatprep.mubr.bf16.mxu0 0
        %2154 = vmatmul.mubr.bf16.gmra.mrb[0].mxu0 %v953
        %v2155 = vpop.f32.mrb[0].mxu0
        %v2156 = vadd.f32 0.0, %v2155
        %v2157 = vpop.f32.mrb[0].mxu0
        %v2158 = vpop.f32.mrb[0].mxu0
        %v2159 = vadd.f32 0.0, %v2158
        %v2160 = vpop.f32.mrb[0].mxu0
        %2161 = vmatprep.mubr.bf16.mxu0 0
        %2162 = vmatmul.mubr.bf16.gmra.mrb[0].mxu0 %v954
        %v2163 = vpop.f32.mrb[0].mxu0
        %v2164 = vadd.f32 0.0, %v2163
        %v2165 = vpop.f32.mrb[0].mxu0
        %v2166 = vpop.f32.mrb[0].mxu0
        %v2167 = vadd.f32 0.0, %v2166
        %v2168 = vpop.f32.mrb[0].mxu0
        %2169 = vmatprep.mubr.bf16.mxu0 0
        %2170 = vmatmul.mubr.bf16.gmra.mrb[0].mxu0 %v955
        %v2171 = vpop.f32.mrb[0].mxu0
        %v2172 = vadd.f32 0.0, %v2171
        %v2173 = vpop.f32.mrb[0].mxu0
        %v2174 = vpop.f32.mrb[0].mxu0
        %v2175 = vadd.f32 0.0, %v2174
        %v2176 = vpop.f32.mrb[0].mxu0
        %2177 = vmatprep.mubr.bf16.mxu0 0
        %2178 = vmatmul.mubr.bf16.gmra.mrb[0].mxu0 %v956
        %v2179 = vpop.f32.mrb[0].mxu0
        %v2180 = vadd.f32 0.0, %v2179
        %v2181 = vpop.f32.mrb[0].mxu0
        %v2182 = vpop.f32.mrb[0].mxu0
        %v2183 = vadd.f32 0.0, %v2182
        %v2184 = vpop.f32.mrb[0].mxu0
        %2185 = vmatprep.mubr.bf16.mxu0 0
        %2186 = vmatmul.mubr.bf16.gmra.mrb[0].mxu0 %v957
        %v2187 = vpop.f32.mrb[0].mxu0
        %v2188 = vadd.f32 0.0, %v2187
        %v2189 = vpop.f32.mrb[0].mxu0
        %v2190 = vpop.f32.mrb[0].mxu0
        %v2191 = vadd.f32 0.0, %v2190
        %v2192 = vpop.f32.mrb[0].mxu0
        %2193 = vmatprep.mubr.bf16.mxu0 0
        %2194 = vmatmul.mubr.bf16.gmra.mrb[0].mxu0 %v958
        %v2195 = vpop.f32.mrb[0].mxu0
        %v2196 = vadd.f32 0.0, %v2195
        %v2197 = vpop.f32.mrb[0].mxu0
        %v2198 = vpop.f32.mrb[0].mxu0
        %v2199 = vadd.f32 0.0, %v2198
        %v2200 = vpop.f32.mrb[0].mxu0
        %2201 = vmatprep.mubr.bf16.mxu0 0
        %2202 = vmatmul.mubr.bf16.gmra.mrb[0].mxu0 %v959
        %v2203 = vpop.f32.mrb[0].mxu0
        %v2204 = vadd.f32 0.0, %v2203
        %v2205 = vpop.f32.mrb[0].mxu0
        %v2206 = vpop.f32.mrb[0].mxu0
        %v2207 = vadd.f32 0.0, %v2206
        %v2208 = vpop.f32.mrb[0].mxu0
        %2209 = vmatprep.mubr.bf16.mxu0 0
        %2210 = vmatmul.mubr.bf16.gmra.mrb[0].mxu0 %v960
        %v2211 = vpop.f32.mrb[0].mxu0
        %v2212 = vadd.f32 0.0, %v2211
        %v2213 = vpop.f32.mrb[0].mxu0
        %v2214 = vpop.f32.mrb[0].mxu0
        %v2215 = vadd.f32 0.0, %v2214
        %v2216 = vpop.f32.mrb[0].mxu0
        %2217 = vdwg.mxu0
        %v2218 = vadd.f32 %v1961, %v2092
        %v2219 = vadd.f32 %v1962, %v2095
        %v2220 = vadd.f32 %v1963, %v2100
        %v2221 = vadd.f32 %v1964, %v2103
        %v2222 = vadd.f32 %v1965, %v2108
        %v2223 = vadd.f32 %v1966, %v2111
        %v2224 = vadd.f32 %v1967, %v2116
        %v2225 = vadd.f32 %v1968, %v2119
        %v2226 = vadd.f32 %v1969, %v2124
        %v2227 = vadd.f32 %v1970, %v2127
        %v2228 = vadd.f32 %v1971, %v2132
        %v2229 = vadd.f32 %v1972, %v2135
        %v2230 = vadd.f32 %v1973, %v2140
        %v2231 = vadd.f32 %v1974, %v2143
        %v2232 = vadd.f32 %v1975, %v2148
        %v2233 = vadd.f32 %v1976, %v2151
        %v2234 = vadd.f32 %v1977, %v2156
        %v2235 = vadd.f32 %v1978, %v2159
        %v2236 = vadd.f32 %v1979, %v2164
        %v2237 = vadd.f32 %v1980, %v2167
        %v2238 = vadd.f32 %v1981, %v2172
        %v2239 = vadd.f32 %v1982, %v2175
        %v2240 = vadd.f32 %v1983, %v2180
        %v2241 = vadd.f32 %v1984, %v2183
        %v2242 = vadd.f32 %v1985, %v2188
        %v2243 = vadd.f32 %v1986, %v2191
        %v2244 = vadd.f32 %v1987, %v2196
        %v2245 = vadd.f32 %v1988, %v2199
        %v2246 = vadd.f32 %v1989, %v2204
        %v2247 = vadd.f32 %v1990, %v2207
        %v2248 = vadd.f32 %v1991, %v2212
        %v2249 = vadd.f32 %v1992, %v2215
        %v2251 = vshrl.u32 %v960, 16
        %v2253 = vshll.u32 %v960, 16
        %v2255 = vrot.slane %v2253, 1
        %v2256 = vor.u32 %v2251, %v2255
        %v2258 = vshll.u32 %v978, 16
        %v2260 = vrot.slane %v2258, 1
        %v2261 = vsel %vm996, %v2256, %v2260
        %v2263 = vld [vmem:[#allocation11 + $0x100] sm:$0xf]
        %v2264 = vld [vmem:[#allocation11 + $0x104] sm:$0xf]
        %v2265 = vld [vmem:[#allocation11 + $0x108] sm:$0xf]
        %v2266 = vld [vmem:[#allocation11 + $0x10c] sm:$0xf]
        %v2267 = vld [vmem:[#allocation11 + $0x110] sm:$0xf]
        %v2268 = vld [vmem:[#allocation11 + $0x114] sm:$0xf]
        %v2269 = vld [vmem:[#allocation11 + $0x118] sm:$0xf]
        %v2270 = vld [vmem:[#allocation11 + $0x11c] sm:$0xf]
        %v2271 = vld [vmem:[#allocation11 + $0x120] sm:$0xf]
        %v2272 = vld [vmem:[#allocation11 + $0x124] sm:$0xf]
        %v2273 = vld [vmem:[#allocation11 + $0x128] sm:$0xf]
        %v2274 = vld [vmem:[#allocation11 + $0x12c] sm:$0xf]
        %v2275 = vld [vmem:[#allocation11 + $0x130] sm:$0xf]
        %v2276 = vld [vmem:[#allocation11 + $0x134] sm:$0xf]
        %v2277 = vld [vmem:[#allocation11 + $0x138] sm:$0xf]
        %v2278 = vld [vmem:[#allocation11 + $0x13c] sm:$0xf]
        %v2295 = vunpack.c.l.b16 %v2263
        %v2296 = vunpack.c.l.b16 %v2264
        %v2297 = vunpack.c.l.b16 %v2265
        %v2298 = vunpack.c.l.b16 %v2266
        %v2299 = vunpack.c.l.b16 %v2267
        %v2300 = vunpack.c.l.b16 %v2268
        %v2301 = vunpack.c.l.b16 %v2269
        %v2302 = vunpack.c.l.b16 %v2270
        %v2303 = vunpack.c.l.b16 %v2271
        %v2304 = vunpack.c.l.b16 %v2272
        %v2305 = vunpack.c.l.b16 %v2273
        %v2306 = vunpack.c.l.b16 %v2274
        %v2307 = vunpack.c.l.b16 %v2275
        %v2308 = vunpack.c.l.b16 %v2276
        %v2309 = vunpack.c.l.b16 %v2277
        %v2310 = vunpack.c.l.b16 %v2278
        %v2311 = vpack.c.b16 %v2296, %v2295
        %v2312 = vpack.c.b16 %v2298, %v2297
        %v2313 = vpack.c.b16 %v2300, %v2299
        %v2314 = vpack.c.b16 %v2302, %v2301
        %v2315 = vpack.c.b16 %v2304, %v2303
        %v2316 = vpack.c.b16 %v2306, %v2305
        %v2317 = vpack.c.b16 %v2308, %v2307
        %v2318 = vpack.c.b16 %v2310, %v2309
        %2327 = vmatprep.subr.bf16.mxu0 0
        %2328 = vmatpush1.bf16.msra.mxu0 %v2311
        %2329 = vmatprep.subr.bf16.mxu0 0
        %2330 = vmatpush1.bf16.msra.mxu0 %v2312
        %2331 = vmatprep.subr.bf16.mxu0 0
        %2332 = vmatpush1.bf16.msra.mxu0 %v2313
        %2333 = vmatprep.subr.bf16.mxu0 0
        %2334 = vmatpush1.bf16.msra.mxu0 %v2314
        %2335 = vmatprep.subr.bf16.mxu0 0
        %2336 = vmatpush1.bf16.msra.mxu0 %v2315
        %2337 = vmatprep.subr.bf16.mxu0 0
        %2338 = vmatpush1.bf16.msra.mxu0 %v2316
        %2339 = vmatprep.subr.bf16.mxu0 0
        %2340 = vmatpush1.bf16.msra.mxu0 %v2317
        %2341 = vmatprep.subr.bf16.mxu0 0
        %2342 = vmatpush1.bf16.msra.mxu0 %v2318
        %2343 = vmatprep.subr.bf16.mxu0 0
        %2344 = vmatpush1.bf16.msra.mxu0 0
        %2345 = vmatprep.subr.bf16.mxu0 0
        %2346 = vmatpush1.bf16.msra.mxu0 0
        %2347 = vmatprep.subr.bf16.mxu0 0
        %2348 = vmatpush1.bf16.msra.mxu0 0
        %2349 = vmatprep.subr.bf16.mxu0 0
        %2350 = vmatpush1.bf16.msra.mxu0 0
        %2351 = vmatprep.subr.bf16.mxu0 0
        %2352 = vmatpush1.bf16.msra.mxu0 0
        %2353 = vmatprep.subr.bf16.mxu0 0
        %2354 = vmatpush1.bf16.msra.mxu0 0
        %2355 = vmatprep.subr.bf16.mxu0 0
        %2356 = vmatpush1.bf16.msra.mxu0 0
        %2357 = vmatprep.subr.bf16.mxu0 0
        %2358 = vmatpush1.bf16.msra.mxu0 0
        %2359 = vmatprep.mubr.bf16.mxu0 0
        %2360 = vmatmul.mubr.bf16.gmra.mrb[0].mxu0 %v1020
        %v2361 = vpop.f32.mrb[0].mxu0
        %v2362 = vadd.f32 0.0, %v2361
        %v2363 = vpop.f32.mrb[0].mxu0
        %v2364 = vpop.f32.mrb[0].mxu0
        %v2365 = vadd.f32 0.0, %v2364
        %v2366 = vpop.f32.mrb[0].mxu0
        %2367 = vmatprep.mubr.bf16.mxu0 0
        %2368 = vmatmul.mubr.bf16.gmra.mrb[0].mxu0 %v1032
        %v2369 = vpop.f32.mrb[0].mxu0
        %v2370 = vadd.f32 0.0, %v2369
        %v2371 = vpop.f32.mrb[0].mxu0
        %v2372 = vpop.f32.mrb[0].mxu0
        %v2373 = vadd.f32 0.0, %v2372
        %v2374 = vpop.f32.mrb[0].mxu0
        %2375 = vmatprep.mubr.bf16.mxu0 0
        %2376 = vmatmul.mubr.bf16.gmra.mrb[0].mxu0 %v1044
        %v2377 = vpop.f32.mrb[0].mxu0
        %v2378 = vadd.f32 0.0, %v2377
        %v2379 = vpop.f32.mrb[0].mxu0
        %v2380 = vpop.f32.mrb[0].mxu0
        %v2381 = vadd.f32 0.0, %v2380
        %v2382 = vpop.f32.mrb[0].mxu0
        %2383 = vmatprep.mubr.bf16.mxu0 0
        %2384 = vmatmul.mubr.bf16.gmra.mrb[0].mxu0 %v1056
        %v2385 = vpop.f32.mrb[0].mxu0
        %v2386 = vadd.f32 0.0, %v2385
        %v2387 = vpop.f32.mrb[0].mxu0
        %v2388 = vpop.f32.mrb[0].mxu0
        %v2389 = vadd.f32 0.0, %v2388
        %v2390 = vpop.f32.mrb[0].mxu0
        %2391 = vmatprep.mubr.bf16.mxu0 0
        %2392 = vmatmul.mubr.bf16.gmra.mrb[0].mxu0 %v1068
        %v2393 = vpop.f32.mrb[0].mxu0
        %v2394 = vadd.f32 0.0, %v2393
        %v2395 = vpop.f32.mrb[0].mxu0
        %v2396 = vpop.f32.mrb[0].mxu0
        %v2397 = vadd.f32 0.0, %v2396
        %v2398 = vpop.f32.mrb[0].mxu0
        %2399 = vmatprep.mubr.bf16.mxu0 0
        %2400 = vmatmul.mubr.bf16.gmra.mrb[0].mxu0 %v1080
        %v2401 = vpop.f32.mrb[0].mxu0
        %v2402 = vadd.f32 0.0, %v2401
        %v2403 = vpop.f32.mrb[0].mxu0
        %v2404 = vpop.f32.mrb[0].mxu0
        %v2405 = vadd.f32 0.0, %v2404
        %v2406 = vpop.f32.mrb[0].mxu0
        %2407 = vmatprep.mubr.bf16.mxu0 0
        %2408 = vmatmul.mubr.bf16.gmra.mrb[0].mxu0 %v1092
        %v2409 = vpop.f32.mrb[0].mxu0
        %v2410 = vadd.f32 0.0, %v2409
        %v2411 = vpop.f32.mrb[0].mxu0
        %v2412 = vpop.f32.mrb[0].mxu0
        %v2413 = vadd.f32 0.0, %v2412
        %v2414 = vpop.f32.mrb[0].mxu0
        %2415 = vmatprep.mubr.bf16.mxu0 0
        %2416 = vmatmul.mubr.bf16.gmra.mrb[0].mxu0 %v1104
        %v2417 = vpop.f32.mrb[0].mxu0
        %v2418 = vadd.f32 0.0, %v2417
        %v2419 = vpop.f32.mrb[0].mxu0
        %v2420 = vpop.f32.mrb[0].mxu0
        %v2421 = vadd.f32 0.0, %v2420
        %v2422 = vpop.f32.mrb[0].mxu0
        %2423 = vmatprep.mubr.bf16.mxu0 0
        %2424 = vmatmul.mubr.bf16.gmra.mrb[0].mxu0 %v1116
        %v2425 = vpop.f32.mrb[0].mxu0
        %v2426 = vadd.f32 0.0, %v2425
        %v2427 = vpop.f32.mrb[0].mxu0
        %v2428 = vpop.f32.mrb[0].mxu0
        %v2429 = vadd.f32 0.0, %v2428
        %v2430 = vpop.f32.mrb[0].mxu0
        %2431 = vmatprep.mubr.bf16.mxu0 0
        %2432 = vmatmul.mubr.bf16.gmra.mrb[0].mxu0 %v1128
        %v2433 = vpop.f32.mrb[0].mxu0
        %v2434 = vadd.f32 0.0, %v2433
        %v2435 = vpop.f32.mrb[0].mxu0
        %v2436 = vpop.f32.mrb[0].mxu0
        %v2437 = vadd.f32 0.0, %v2436
        %v2438 = vpop.f32.mrb[0].mxu0
        %2439 = vmatprep.mubr.bf16.mxu0 0
        %2440 = vmatmul.mubr.bf16.gmra.mrb[0].mxu0 %v1140
        %v2441 = vpop.f32.mrb[0].mxu0
        %v2442 = vadd.f32 0.0, %v2441
        %v2443 = vpop.f32.mrb[0].mxu0
        %v2444 = vpop.f32.mrb[0].mxu0
        %v2445 = vadd.f32 0.0, %v2444
        %v2446 = vpop.f32.mrb[0].mxu0
        %2447 = vmatprep.mubr.bf16.mxu0 0
        %2448 = vmatmul.mubr.bf16.gmra.mrb[0].mxu0 %v1152
        %v2449 = vpop.f32.mrb[0].mxu0
        %v2450 = vadd.f32 0.0, %v2449
        %v2451 = vpop.f32.mrb[0].mxu0
        %v2452 = vpop.f32.mrb[0].mxu0
        %v2453 = vadd.f32 0.0, %v2452
        %v2454 = vpop.f32.mrb[0].mxu0
        %2455 = vmatprep.mubr.bf16.mxu0 0
        %2456 = vmatmul.mubr.bf16.gmra.mrb[0].mxu0 %v1164
        %v2457 = vpop.f32.mrb[0].mxu0
        %v2458 = vadd.f32 0.0, %v2457
        %v2459 = vpop.f32.mrb[0].mxu0
        %v2460 = vpop.f32.mrb[0].mxu0
        %v2461 = vadd.f32 0.0, %v2460
        %v2462 = vpop.f32.mrb[0].mxu0
        %2463 = vmatprep.mubr.bf16.mxu0 0
        %2464 = vmatmul.mubr.bf16.gmra.mrb[0].mxu0 %v1176
        %v2465 = vpop.f32.mrb[0].mxu0
        %v2466 = vadd.f32 0.0, %v2465
        %v2467 = vpop.f32.mrb[0].mxu0
        %v2468 = vpop.f32.mrb[0].mxu0
        %v2469 = vadd.f32 0.0, %v2468
        %v2470 = vpop.f32.mrb[0].mxu0
        %2471 = vmatprep.mubr.bf16.mxu0 0
        %2472 = vmatmul.mubr.bf16.gmra.mrb[0].mxu0 %v1188
        %v2473 = vpop.f32.mrb[0].mxu0
        %v2474 = vadd.f32 0.0, %v2473
        %v2475 = vpop.f32.mrb[0].mxu0
        %v2476 = vpop.f32.mrb[0].mxu0
        %v2477 = vadd.f32 0.0, %v2476
        %v2478 = vpop.f32.mrb[0].mxu0
        %2479 = vmatprep.mubr.bf16.mxu0 0
        %2480 = vmatmul.mubr.bf16.gmra.mrb[0].mxu0 %v2261
        %v2481 = vpop.f32.mrb[0].mxu0
        %v2482 = vadd.f32 0.0, %v2481
        %v2483 = vpop.f32.mrb[0].mxu0
        %v2484 = vpop.f32.mrb[0].mxu0
        %v2485 = vadd.f32 0.0, %v2484
        %v2486 = vpop.f32.mrb[0].mxu0
        %2487 = vdwg.mxu0
        %v2488 = vadd.f32 %v2218, %v2362
        %v2489 = vadd.f32 %v2219, %v2365
        %v2490 = vadd.f32 %v2220, %v2370
        %v2491 = vadd.f32 %v2221, %v2373
        %v2492 = vadd.f32 %v2222, %v2378
        %v2493 = vadd.f32 %v2223, %v2381
        %v2494 = vadd.f32 %v2224, %v2386
        %v2495 = vadd.f32 %v2225, %v2389
        %v2496 = vadd.f32 %v2226, %v2394
        %v2497 = vadd.f32 %v2227, %v2397
        %v2498 = vadd.f32 %v2228, %v2402
        %v2499 = vadd.f32 %v2229, %v2405
        %v2500 = vadd.f32 %v2230, %v2410
        %v2501 = vadd.f32 %v2231, %v2413
        %v2502 = vadd.f32 %v2232, %v2418
        %v2503 = vadd.f32 %v2233, %v2421
        %v2504 = vadd.f32 %v2234, %v2426
        %v2505 = vadd.f32 %v2235, %v2429
        %v2506 = vadd.f32 %v2236, %v2434
        %v2507 = vadd.f32 %v2237, %v2437
        %v2508 = vadd.f32 %v2238, %v2442
        %v2509 = vadd.f32 %v2239, %v2445
        %v2510 = vadd.f32 %v2240, %v2450
        %v2511 = vadd.f32 %v2241, %v2453
        %v2512 = vadd.f32 %v2242, %v2458
        %v2513 = vadd.f32 %v2243, %v2461
        %v2514 = vadd.f32 %v2244, %v2466
        %v2515 = vadd.f32 %v2245, %v2469
        %v2516 = vadd.f32 %v2246, %v2474
        %v2517 = vadd.f32 %v2247, %v2477
        %v2518 = vadd.f32 %v2248, %v2482
        %v2519 = vadd.f32 %v2249, %v2485
        %v2522 = vrot.slane %v960, 1
        %v2523 = vrot.slane %v978, 1
        %v2524 = vsel %vm1671, %v2522, %v2523
        %v2526 = vld [vmem:[#allocation11 + $0x140] sm:$0xf]
        %v2527 = vld [vmem:[#allocation11 + $0x144] sm:$0xf]
        %v2528 = vld [vmem:[#allocation11 + $0x148] sm:$0xf]
        %v2529 = vld [vmem:[#allocation11 + $0x14c] sm:$0xf]
        %v2530 = vld [vmem:[#allocation11 + $0x150] sm:$0xf]
        %v2531 = vld [vmem:[#allocation11 + $0x154] sm:$0xf]
        %v2532 = vld [vmem:[#allocation11 + $0x158] sm:$0xf]
        %v2533 = vld [vmem:[#allocation11 + $0x15c] sm:$0xf]
        %v2534 = vld [vmem:[#allocation11 + $0x160] sm:$0xf]
        %v2535 = vld [vmem:[#allocation11 + $0x164] sm:$0xf]
        %v2536 = vld [vmem:[#allocation11 + $0x168] sm:$0xf]
        %v2537 = vld [vmem:[#allocation11 + $0x16c] sm:$0xf]
        %v2538 = vld [vmem:[#allocation11 + $0x170] sm:$0xf]
        %v2539 = vld [vmem:[#allocation11 + $0x174] sm:$0xf]
        %v2540 = vld [vmem:[#allocation11 + $0x178] sm:$0xf]
        %v2541 = vld [vmem:[#allocation11 + $0x17c] sm:$0xf]
        %v2558 = vunpack.c.l.b16 %v2526
        %v2559 = vunpack.c.l.b16 %v2527
        %v2560 = vunpack.c.l.b16 %v2528
        %v2561 = vunpack.c.l.b16 %v2529
        %v2562 = vunpack.c.l.b16 %v2530
        %v2563 = vunpack.c.l.b16 %v2531
        %v2564 = vunpack.c.l.b16 %v2532
        %v2565 = vunpack.c.l.b16 %v2533
        %v2566 = vunpack.c.l.b16 %v2534
        %v2567 = vunpack.c.l.b16 %v2535
        %v2568 = vunpack.c.l.b16 %v2536
        %v2569 = vunpack.c.l.b16 %v2537
        %v2570 = vunpack.c.l.b16 %v2538
        %v2571 = vunpack.c.l.b16 %v2539
        %v2572 = vunpack.c.l.b16 %v2540
        %v2573 = vunpack.c.l.b16 %v2541
        %v2574 = vpack.c.b16 %v2559, %v2558
        %v2575 = vpack.c.b16 %v2561, %v2560
        %v2576 = vpack.c.b16 %v2563, %v2562
        %v2577 = vpack.c.b16 %v2565, %v2564
        %v2578 = vpack.c.b16 %v2567, %v2566
        %v2579 = vpack.c.b16 %v2569, %v2568
        %v2580 = vpack.c.b16 %v2571, %v2570
        %v2581 = vpack.c.b16 %v2573, %v2572
        %2590 = vmatprep.subr.bf16.mxu0 0
        %2591 = vmatpush1.bf16.msra.mxu0 %v2574
        %2592 = vmatprep.subr.bf16.mxu0 0
        %2593 = vmatpush1.bf16.msra.mxu0 %v2575
        %2594 = vmatprep.subr.bf16.mxu0 0
        %2595 = vmatpush1.bf16.msra.mxu0 %v2576
        %2596 = vmatprep.subr.bf16.mxu0 0
        %2597 = vmatpush1.bf16.msra.mxu0 %v2577
        %2598 = vmatprep.subr.bf16.mxu0 0
        %2599 = vmatpush1.bf16.msra.mxu0 %v2578
        %2600 = vmatprep.subr.bf16.mxu0 0
        %2601 = vmatpush1.bf16.msra.mxu0 %v2579
        %2602 = vmatprep.subr.bf16.mxu0 0
        %2603 = vmatpush1.bf16.msra.mxu0 %v2580
        %2604 = vmatprep.subr.bf16.mxu0 0
        %2605 = vmatpush1.bf16.msra.mxu0 %v2581
        %2606 = vmatprep.subr.bf16.mxu0 0
        %2607 = vmatpush1.bf16.msra.mxu0 0
        %2608 = vmatprep.subr.bf16.mxu0 0
        %2609 = vmatpush1.bf16.msra.mxu0 0
        %2610 = vmatprep.subr.bf16.mxu0 0
        %2611 = vmatpush1.bf16.msra.mxu0 0
        %2612 = vmatprep.subr.bf16.mxu0 0
        %2613 = vmatpush1.bf16.msra.mxu0 0
        %2614 = vmatprep.subr.bf16.mxu0 0
        %2615 = vmatpush1.bf16.msra.mxu0 0
        %2616 = vmatprep.subr.bf16.mxu0 0
        %2617 = vmatpush1.bf16.msra.mxu0 0
        %2618 = vmatprep.subr.bf16.mxu0 0
        %2619 = vmatpush1.bf16.msra.mxu0 0
        %2620 = vmatprep.subr.bf16.mxu0 0
        %2621 = vmatpush1.bf16.msra.mxu0 0
        %2622 = vmatprep.mubr.bf16.mxu0 0
        %2623 = vmatmul.mubr.bf16.gmra.mrb[0].mxu0 %v1677
        %v2624 = vpop.f32.mrb[0].mxu0
        %v2625 = vadd.f32 0.0, %v2624
        %v2626 = vpop.f32.mrb[0].mxu0
        %v2627 = vpop.f32.mrb[0].mxu0
        %v2628 = vadd.f32 0.0, %v2627
        %v2629 = vpop.f32.mrb[0].mxu0
        %2630 = vmatprep.mubr.bf16.mxu0 0
        %2631 = vmatmul.mubr.bf16.gmra.mrb[0].mxu0 %v1680
        %v2632 = vpop.f32.mrb[0].mxu0
        %v2633 = vadd.f32 0.0, %v2632
        %v2634 = vpop.f32.mrb[0].mxu0
        %v2635 = vpop.f32.mrb[0].mxu0
        %v2636 = vadd.f32 0.0, %v2635
        %v2637 = vpop.f32.mrb[0].mxu0
        %2638 = vmatprep.mubr.bf16.mxu0 0
        %2639 = vmatmul.mubr.bf16.gmra.mrb[0].mxu0 %v1683
        %v2640 = vpop.f32.mrb[0].mxu0
        %v2641 = vadd.f32 0.0, %v2640
        %v2642 = vpop.f32.mrb[0].mxu0
        %v2643 = vpop.f32.mrb[0].mxu0
        %v2644 = vadd.f32 0.0, %v2643
        %v2645 = vpop.f32.mrb[0].mxu0
        %2646 = vmatprep.mubr.bf16.mxu0 0
        %2647 = vmatmul.mubr.bf16.gmra.mrb[0].mxu0 %v1686
        %v2648 = vpop.f32.mrb[0].mxu0
        %v2649 = vadd.f32 0.0, %v2648
        %v2650 = vpop.f32.mrb[0].mxu0
        %v2651 = vpop.f32.mrb[0].mxu0
        %v2652 = vadd.f32 0.0, %v2651
        %v2653 = vpop.f32.mrb[0].mxu0
        %2654 = vmatprep.mubr.bf16.mxu0 0
        %2655 = vmatmul.mubr.bf16.gmra.mrb[0].mxu0 %v1689
        %v2656 = vpop.f32.mrb[0].mxu0
        %v2657 = vadd.f32 0.0, %v2656
        %v2658 = vpop.f32.mrb[0].mxu0
        %v2659 = vpop.f32.mrb[0].mxu0
        %v2660 = vadd.f32 0.0, %v2659
        %v2661 = vpop.f32.mrb[0].mxu0
        %2662 = vmatprep.mubr.bf16.mxu0 0
        %2663 = vmatmul.mubr.bf16.gmra.mrb[0].mxu0 %v1692
        %v2664 = vpop.f32.mrb[0].mxu0
        %v2665 = vadd.f32 0.0, %v2664
        %v2666 = vpop.f32.mrb[0].mxu0
        %v2667 = vpop.f32.mrb[0].mxu0
        %v2668 = vadd.f32 0.0, %v2667
        %v2669 = vpop.f32.mrb[0].mxu0
        %2670 = vmatprep.mubr.bf16.mxu0 0
        %2671 = vmatmul.mubr.bf16.gmra.mrb[0].mxu0 %v1695
        %v2672 = vpop.f32.mrb[0].mxu0
        %v2673 = vadd.f32 0.0, %v2672
        %v2674 = vpop.f32.mrb[0].mxu0
        %v2675 = vpop.f32.mrb[0].mxu0
        %v2676 = vadd.f32 0.0, %v2675
        %v2677 = vpop.f32.mrb[0].mxu0
        %2678 = vmatprep.mubr.bf16.mxu0 0
        %2679 = vmatmul.mubr.bf16.gmra.mrb[0].mxu0 %v1698
        %v2680 = vpop.f32.mrb[0].mxu0
        %v2681 = vadd.f32 0.0, %v2680
        %v2682 = vpop.f32.mrb[0].mxu0
        %v2683 = vpop.f32.mrb[0].mxu0
        %v2684 = vadd.f32 0.0, %v2683
        %v2685 = vpop.f32.mrb[0].mxu0
        %2686 = vmatprep.mubr.bf16.mxu0 0
        %2687 = vmatmul.mubr.bf16.gmra.mrb[0].mxu0 %v1701
        %v2688 = vpop.f32.mrb[0].mxu0
        %v2689 = vadd.f32 0.0, %v2688
        %v2690 = vpop.f32.mrb[0].mxu0
        %v2691 = vpop.f32.mrb[0].mxu0
        %v2692 = vadd.f32 0.0, %v2691
        %v2693 = vpop.f32.mrb[0].mxu0
        %2694 = vmatprep.mubr.bf16.mxu0 0
        %2695 = vmatmul.mubr.bf16.gmra.mrb[0].mxu0 %v1704
        %v2696 = vpop.f32.mrb[0].mxu0
        %v2697 = vadd.f32 0.0, %v2696
        %v2698 = vpop.f32.mrb[0].mxu0
        %v2699 = vpop.f32.mrb[0].mxu0
        %v2700 = vadd.f32 0.0, %v2699
        %v2701 = vpop.f32.mrb[0].mxu0
        %2702 = vmatprep.mubr.bf16.mxu0 0
        %2703 = vmatmul.mubr.bf16.gmra.mrb[0].mxu0 %v1707
        %v2704 = vpop.f32.mrb[0].mxu0
        %v2705 = vadd.f32 0.0, %v2704
        %v2706 = vpop.f32.mrb[0].mxu0
        %v2707 = vpop.f32.mrb[0].mxu0
        %v2708 = vadd.f32 0.0, %v2707
        %v2709 = vpop.f32.mrb[0].mxu0
        %2710 = vmatprep.mubr.bf16.mxu0 0
        %2711 = vmatmul.mubr.bf16.gmra.mrb[0].mxu0 %v1710
        %v2712 = vpop.f32.mrb[0].mxu0
        %v2713 = vadd.f32 0.0, %v2712
        %v2714 = vpop.f32.mrb[0].mxu0
        %v2715 = vpop.f32.mrb[0].mxu0
        %v2716 = vadd.f32 0.0, %v2715
        %v2717 = vpop.f32.mrb[0].mxu0
        %2718 = vmatprep.mubr.bf16.mxu0 0
        %2719 = vmatmul.mubr.bf16.gmra.mrb[0].mxu0 %v1713
        %v2720 = vpop.f32.mrb[0].mxu0
        %v2721 = vadd.f32 0.0, %v2720
        %v2722 = vpop.f32.mrb[0].mxu0
        %v2723 = vpop.f32.mrb[0].mxu0
        %v2724 = vadd.f32 0.0, %v2723
        %v2725 = vpop.f32.mrb[0].mxu0
        %2726 = vmatprep.mubr.bf16.mxu0 0
        %2727 = vmatmul.mubr.bf16.gmra.mrb[0].mxu0 %v1716
        %v2728 = vpop.f32.mrb[0].mxu0
        %v2729 = vadd.f32 0.0, %v2728
        %v2730 = vpop.f32.mrb[0].mxu0
        %v2731 = vpop.f32.mrb[0].mxu0
        %v2732 = vadd.f32 0.0, %v2731
        %v2733 = vpop.f32.mrb[0].mxu0
        %2734 = vmatprep.mubr.bf16.mxu0 0
        %2735 = vmatmul.mubr.bf16.gmra.mrb[0].mxu0 %v1719
        %v2736 = vpop.f32.mrb[0].mxu0
        %v2737 = vadd.f32 0.0, %v2736
        %v2738 = vpop.f32.mrb[0].mxu0
        %v2739 = vpop.f32.mrb[0].mxu0
        %v2740 = vadd.f32 0.0, %v2739
        %v2741 = vpop.f32.mrb[0].mxu0
        %2742 = vmatprep.mubr.bf16.mxu0 0
        %2743 = vmatmul.mubr.bf16.gmra.mrb[0].mxu0 %v2524
        %v2744 = vpop.f32.mrb[0].mxu0
        %v2745 = vadd.f32 0.0, %v2744
        %v2746 = vpop.f32.mrb[0].mxu0
        %v2747 = vpop.f32.mrb[0].mxu0
        %v2748 = vadd.f32 0.0, %v2747
        %v2749 = vpop.f32.mrb[0].mxu0
        %2750 = vdwg.mxu0
        %v2751 = vadd.f32 %v2488, %v2625
        %v2752 = vadd.f32 %v2489, %v2628
        %v2753 = vadd.f32 %v2490, %v2633
        %v2754 = vadd.f32 %v2491, %v2636
        %v2755 = vadd.f32 %v2492, %v2641
        %v2756 = vadd.f32 %v2493, %v2644
        %v2757 = vadd.f32 %v2494, %v2649
        %v2758 = vadd.f32 %v2495, %v2652
        %v2759 = vadd.f32 %v2496, %v2657
        %v2760 = vadd.f32 %v2497, %v2660
        %v2761 = vadd.f32 %v2498, %v2665
        %v2762 = vadd.f32 %v2499, %v2668
        %v2763 = vadd.f32 %v2500, %v2673
        %v2764 = vadd.f32 %v2501, %v2676
        %v2765 = vadd.f32 %v2502, %v2681
        %v2766 = vadd.f32 %v2503, %v2684
        %v2767 = vadd.f32 %v2504, %v2689
        %v2768 = vadd.f32 %v2505, %v2692
        %v2769 = vadd.f32 %v2506, %v2697
        %v2770 = vadd.f32 %v2507, %v2700
        %v2771 = vadd.f32 %v2508, %v2705
        %v2772 = vadd.f32 %v2509, %v2708
        %v2773 = vadd.f32 %v2510, %v2713
        %v2774 = vadd.f32 %v2511, %v2716
        %v2775 = vadd.f32 %v2512, %v2721
        %v2776 = vadd.f32 %v2513, %v2724
        %v2777 = vadd.f32 %v2514, %v2729
        %v2778 = vadd.f32 %v2515, %v2732
        %v2779 = vadd.f32 %v2516, %v2737
        %v2780 = vadd.f32 %v2517, %v2740
        %v2781 = vadd.f32 %v2518, %v2745
        %v2782 = vadd.f32 %v2519, %v2748
        %v2783 = vld [vmem:[#allocation11 + $0x180] sm:$0xf]
        %v2784 = vld [vmem:[#allocation11 + $0x184] sm:$0xf]
        %v2785 = vld [vmem:[#allocation11 + $0x188] sm:$0xf]
        %v2786 = vld [vmem:[#allocation11 + $0x18c] sm:$0xf]
        %v2787 = vld [vmem:[#allocation11 + $0x190] sm:$0xf]
        %v2788 = vld [vmem:[#allocation11 + $0x194] sm:$0xf]
        %v2789 = vld [vmem:[#allocation11 + $0x198] sm:$0xf]
        %v2790 = vld [vmem:[#allocation11 + $0x19c] sm:$0xf]
        %v2791 = vld [vmem:[#allocation11 + $0x1a0] sm:$0xf]
        %v2792 = vld [vmem:[#allocation11 + $0x1a4] sm:$0xf]
        %v2793 = vld [vmem:[#allocation11 + $0x1a8] sm:$0xf]
        %v2794 = vld [vmem:[#allocation11 + $0x1ac] sm:$0xf]
        %v2795 = vld [vmem:[#allocation11 + $0x1b0] sm:$0xf]
        %v2796 = vld [vmem:[#allocation11 + $0x1b4] sm:$0xf]
        %v2797 = vld [vmem:[#allocation11 + $0x1b8] sm:$0xf]
        %v2798 = vld [vmem:[#allocation11 + $0x1bc] sm:$0xf]
        %v2815 = vunpack.c.l.b16 %v2783
        %v2816 = vunpack.c.l.b16 %v2784
        %v2817 = vunpack.c.l.b16 %v2785
        %v2818 = vunpack.c.l.b16 %v2786
        %v2819 = vunpack.c.l.b16 %v2787
        %v2820 = vunpack.c.l.b16 %v2788
        %v2821 = vunpack.c.l.b16 %v2789
        %v2822 = vunpack.c.l.b16 %v2790
        %v2823 = vunpack.c.l.b16 %v2791
        %v2824 = vunpack.c.l.b16 %v2792
        %v2825 = vunpack.c.l.b16 %v2793
        %v2826 = vunpack.c.l.b16 %v2794
        %v2827 = vunpack.c.l.b16 %v2795
        %v2828 = vunpack.c.l.b16 %v2796
        %v2829 = vunpack.c.l.b16 %v2797
        %v2830 = vunpack.c.l.b16 %v2798
        %v2831 = vpack.c.b16 %v2816, %v2815
        %v2832 = vpack.c.b16 %v2818, %v2817
        %v2833 = vpack.c.b16 %v2820, %v2819
        %v2834 = vpack.c.b16 %v2822, %v2821
        %v2835 = vpack.c.b16 %v2824, %v2823
        %v2836 = vpack.c.b16 %v2826, %v2825
        %v2837 = vpack.c.b16 %v2828, %v2827
        %v2838 = vpack.c.b16 %v2830, %v2829
        %2847 = vmatprep.subr.bf16.mxu0 0
        %2848 = vmatpush1.bf16.msra.mxu0 %v2831
        %2849 = vmatprep.subr.bf16.mxu0 0
        %2850 = vmatpush1.bf16.msra.mxu0 %v2832
        %2851 = vmatprep.subr.bf16.mxu0 0
        %2852 = vmatpush1.bf16.msra.mxu0 %v2833
        %2853 = vmatprep.subr.bf16.mxu0 0
        %2854 = vmatpush1.bf16.msra.mxu0 %v2834
        %2855 = vmatprep.subr.bf16.mxu0 0
        %2856 = vmatpush1.bf16.msra.mxu0 %v2835
        %2857 = vmatprep.subr.bf16.mxu0 0
        %2858 = vmatpush1.bf16.msra.mxu0 %v2836
        %2859 = vmatprep.subr.bf16.mxu0 0
        %2860 = vmatpush1.bf16.msra.mxu0 %v2837
        %2861 = vmatprep.subr.bf16.mxu0 0
        %2862 = vmatpush1.bf16.msra.mxu0 %v2838
        %2863 = vmatprep.subr.bf16.mxu0 0
        %2864 = vmatpush1.bf16.msra.mxu0 0
        %2865 = vmatprep.subr.bf16.mxu0 0
        %2866 = vmatpush1.bf16.msra.mxu0 0
        %2867 = vmatprep.subr.bf16.mxu0 0
        %2868 = vmatpush1.bf16.msra.mxu0 0
        %2869 = vmatprep.subr.bf16.mxu0 0
        %2870 = vmatpush1.bf16.msra.mxu0 0
        %2871 = vmatprep.subr.bf16.mxu0 0
        %2872 = vmatpush1.bf16.msra.mxu0 0
        %2873 = vmatprep.subr.bf16.mxu0 0
        %2874 = vmatpush1.bf16.msra.mxu0 0
        %2875 = vmatprep.subr.bf16.mxu0 0
        %2876 = vmatpush1.bf16.msra.mxu0 0
        %2877 = vmatprep.subr.bf16.mxu0 0
        %2878 = vmatpush1.bf16.msra.mxu0 0
        %2879 = vmatprep.mubr.bf16.mxu0 0
        %2880 = vmatmul.mubr.bf16.gmra.mrb[0].mxu0 %v946
        %v2881 = vpop.f32.mrb[0].mxu0
        %v2882 = vadd.f32 0.0, %v2881
        %v2883 = vpop.f32.mrb[0].mxu0
        %v2884 = vpop.f32.mrb[0].mxu0
        %v2885 = vadd.f32 0.0, %v2884
        %v2886 = vpop.f32.mrb[0].mxu0
        %2887 = vmatprep.mubr.bf16.mxu0 0
        %2888 = vmatmul.mubr.bf16.gmra.mrb[0].mxu0 %v947
        %v2889 = vpop.f32.mrb[0].mxu0
        %v2890 = vadd.f32 0.0, %v2889
        %v2891 = vpop.f32.mrb[0].mxu0
        %v2892 = vpop.f32.mrb[0].mxu0
        %v2893 = vadd.f32 0.0, %v2892
        %v2894 = vpop.f32.mrb[0].mxu0
        %2895 = vmatprep.mubr.bf16.mxu0 0
        %2896 = vmatmul.mubr.bf16.gmra.mrb[0].mxu0 %v948
        %v2897 = vpop.f32.mrb[0].mxu0
        %v2898 = vadd.f32 0.0, %v2897
        %v2899 = vpop.f32.mrb[0].mxu0
        %v2900 = vpop.f32.mrb[0].mxu0
        %v2901 = vadd.f32 0.0, %v2900
        %v2902 = vpop.f32.mrb[0].mxu0
        %2903 = vmatprep.mubr.bf16.mxu0 0
        %2904 = vmatmul.mubr.bf16.gmra.mrb[0].mxu0 %v949
        %v2905 = vpop.f32.mrb[0].mxu0
        %v2906 = vadd.f32 0.0, %v2905
        %v2907 = vpop.f32.mrb[0].mxu0
        %v2908 = vpop.f32.mrb[0].mxu0
        %v2909 = vadd.f32 0.0, %v2908
        %v2910 = vpop.f32.mrb[0].mxu0
        %2911 = vmatprep.mubr.bf16.mxu0 0
        %2912 = vmatmul.mubr.bf16.gmra.mrb[0].mxu0 %v950
        %v2913 = vpop.f32.mrb[0].mxu0
        %v2914 = vadd.f32 0.0, %v2913
        %v2915 = vpop.f32.mrb[0].mxu0
        %v2916 = vpop.f32.mrb[0].mxu0
        %v2917 = vadd.f32 0.0, %v2916
        %v2918 = vpop.f32.mrb[0].mxu0
        %2919 = vmatprep.mubr.bf16.mxu0 0
        %2920 = vmatmul.mubr.bf16.gmra.mrb[0].mxu0 %v951
        %v2921 = vpop.f32.mrb[0].mxu0
        %v2922 = vadd.f32 0.0, %v2921
        %v2923 = vpop.f32.mrb[0].mxu0
        %v2924 = vpop.f32.mrb[0].mxu0
        %v2925 = vadd.f32 0.0, %v2924
        %v2926 = vpop.f32.mrb[0].mxu0
        %2927 = vmatprep.mubr.bf16.mxu0 0
        %2928 = vmatmul.mubr.bf16.gmra.mrb[0].mxu0 %v952
        %v2929 = vpop.f32.mrb[0].mxu0
        %v2930 = vadd.f32 0.0, %v2929
        %v2931 = vpop.f32.mrb[0].mxu0
        %v2932 = vpop.f32.mrb[0].mxu0
        %v2933 = vadd.f32 0.0, %v2932
        %v2934 = vpop.f32.mrb[0].mxu0
        %2935 = vmatprep.mubr.bf16.mxu0 0
        %2936 = vmatmul.mubr.bf16.gmra.mrb[0].mxu0 %v953
        %v2937 = vpop.f32.mrb[0].mxu0
        %v2938 = vadd.f32 0.0, %v2937
        %v2939 = vpop.f32.mrb[0].mxu0
        %v2940 = vpop.f32.mrb[0].mxu0
        %v2941 = vadd.f32 0.0, %v2940
        %v2942 = vpop.f32.mrb[0].mxu0
        %2943 = vmatprep.mubr.bf16.mxu0 0
        %2944 = vmatmul.mubr.bf16.gmra.mrb[0].mxu0 %v954
        %v2945 = vpop.f32.mrb[0].mxu0
        %v2946 = vadd.f32 0.0, %v2945
        %v2947 = vpop.f32.mrb[0].mxu0
        %v2948 = vpop.f32.mrb[0].mxu0
        %v2949 = vadd.f32 0.0, %v2948
        %v2950 = vpop.f32.mrb[0].mxu0
        %2951 = vmatprep.mubr.bf16.mxu0 0
        %2952 = vmatmul.mubr.bf16.gmra.mrb[0].mxu0 %v955
        %v2953 = vpop.f32.mrb[0].mxu0
        %v2954 = vadd.f32 0.0, %v2953
        %v2955 = vpop.f32.mrb[0].mxu0
        %v2956 = vpop.f32.mrb[0].mxu0
        %v2957 = vadd.f32 0.0, %v2956
        %v2958 = vpop.f32.mrb[0].mxu0
        %2959 = vmatprep.mubr.bf16.mxu0 0
        %2960 = vmatmul.mubr.bf16.gmra.mrb[0].mxu0 %v956
        %v2961 = vpop.f32.mrb[0].mxu0
        %v2962 = vadd.f32 0.0, %v2961
        %v2963 = vpop.f32.mrb[0].mxu0
        %v2964 = vpop.f32.mrb[0].mxu0
        %v2965 = vadd.f32 0.0, %v2964
        %v2966 = vpop.f32.mrb[0].mxu0
        %2967 = vmatprep.mubr.bf16.mxu0 0
        %2968 = vmatmul.mubr.bf16.gmra.mrb[0].mxu0 %v957
        %v2969 = vpop.f32.mrb[0].mxu0
        %v2970 = vadd.f32 0.0, %v2969
        %v2971 = vpop.f32.mrb[0].mxu0
        %v2972 = vpop.f32.mrb[0].mxu0
        %v2973 = vadd.f32 0.0, %v2972
        %v2974 = vpop.f32.mrb[0].mxu0
        %2975 = vmatprep.mubr.bf16.mxu0 0
        %2976 = vmatmul.mubr.bf16.gmra.mrb[0].mxu0 %v958
        %v2977 = vpop.f32.mrb[0].mxu0
        %v2978 = vadd.f32 0.0, %v2977
        %v2979 = vpop.f32.mrb[0].mxu0
        %v2980 = vpop.f32.mrb[0].mxu0
        %v2981 = vadd.f32 0.0, %v2980
        %v2982 = vpop.f32.mrb[0].mxu0
        %2983 = vmatprep.mubr.bf16.mxu0 0
        %2984 = vmatmul.mubr.bf16.gmra.mrb[0].mxu0 %v959
        %v2985 = vpop.f32.mrb[0].mxu0
        %v2986 = vadd.f32 0.0, %v2985
        %v2987 = vpop.f32.mrb[0].mxu0
        %v2988 = vpop.f32.mrb[0].mxu0
        %v2989 = vadd.f32 0.0, %v2988
        %v2990 = vpop.f32.mrb[0].mxu0
        %2991 = vmatprep.mubr.bf16.mxu0 0
        %2992 = vmatmul.mubr.bf16.gmra.mrb[0].mxu0 %v960
        %v2993 = vpop.f32.mrb[0].mxu0
        %v2994 = vadd.f32 0.0, %v2993
        %v2995 = vpop.f32.mrb[0].mxu0
        %v2996 = vpop.f32.mrb[0].mxu0
        %v2997 = vadd.f32 0.0, %v2996
        %v2998 = vpop.f32.mrb[0].mxu0
        %2999 = vmatprep.mubr.bf16.mxu0 0
        %3000 = vmatmul.mubr.bf16.gmra.mrb[0].mxu0 %v961
        %v3001 = vpop.f32.mrb[0].mxu0
        %v3002 = vadd.f32 0.0, %v3001
        %v3003 = vpop.f32.mrb[0].mxu0
        %v3004 = vpop.f32.mrb[0].mxu0
        %v3005 = vadd.f32 0.0, %v3004
        %v3006 = vpop.f32.mrb[0].mxu0
        %3007 = vdwg.mxu0
        %v3008 = vadd.f32 %v2751, %v2882
        %v3009 = vadd.f32 %v2752, %v2885
        %v3010 = vadd.f32 %v2753, %v2890
        %v3011 = vadd.f32 %v2754, %v2893
        %v3012 = vadd.f32 %v2755, %v2898
        %v3013 = vadd.f32 %v2756, %v2901
        %v3014 = vadd.f32 %v2757, %v2906
        %v3015 = vadd.f32 %v2758, %v2909
        %v3016 = vadd.f32 %v2759, %v2914
        %v3017 = vadd.f32 %v2760, %v2917
        %v3018 = vadd.f32 %v2761, %v2922
        %v3019 = vadd.f32 %v2762, %v2925
        %v3020 = vadd.f32 %v2763, %v2930
        %v3021 = vadd.f32 %v2764, %v2933
        %v3022 = vadd.f32 %v2765, %v2938
        %v3023 = vadd.f32 %v2766, %v2941
        %v3024 = vadd.f32 %v2767, %v2946
        %v3025 = vadd.f32 %v2768, %v2949
        %v3026 = vadd.f32 %v2769, %v2954
        %v3027 = vadd.f32 %v2770, %v2957
        %v3028 = vadd.f32 %v2771, %v2962
        %v3029 = vadd.f32 %v2772, %v2965
        %v3030 = vadd.f32 %v2773, %v2970
        %v3031 = vadd.f32 %v2774, %v2973
        %v3032 = vadd.f32 %v2775, %v2978
        %v3033 = vadd.f32 %v2776, %v2981
        %v3034 = vadd.f32 %v2777, %v2986
        %v3035 = vadd.f32 %v2778, %v2989
        %v3036 = vadd.f32 %v2779, %v2994
        %v3037 = vadd.f32 %v2780, %v2997
        %v3038 = vadd.f32 %v2781, %v3002
        %v3039 = vadd.f32 %v2782, %v3005
        %v3041 = vshrl.u32 %v961, 16
        %v3043 = vshll.u32 %v961, 16
        %v3045 = vrot.slane %v3043, 1
        %v3046 = vor.u32 %v3041, %v3045
        %v3048 = vshll.u32 %v979, 16
        %v3050 = vrot.slane %v3048, 1
        %v3051 = vsel %vm996, %v3046, %v3050
        %v3053 = vld [vmem:[#allocation11 + $0x1c0] sm:$0xf]
        %v3054 = vld [vmem:[#allocation11 + $0x1c4] sm:$0xf]
        %v3055 = vld [vmem:[#allocation11 + $0x1c8] sm:$0xf]
        %v3056 = vld [vmem:[#allocation11 + $0x1cc] sm:$0xf]
        %v3057 = vld [vmem:[#allocation11 + $0x1d0] sm:$0xf]
        %v3058 = vld [vmem:[#allocation11 + $0x1d4] sm:$0xf]
        %v3059 = vld [vmem:[#allocation11 + $0x1d8] sm:$0xf]
        %v3060 = vld [vmem:[#allocation11 + $0x1dc] sm:$0xf]
        %v3061 = vld [vmem:[#allocation11 + $0x1e0] sm:$0xf]
        %v3062 = vld [vmem:[#allocation11 + $0x1e4] sm:$0xf]
        %v3063 = vld [vmem:[#allocation11 + $0x1e8] sm:$0xf]
        %v3064 = vld [vmem:[#allocation11 + $0x1ec] sm:$0xf]
        %v3065 = vld [vmem:[#allocation11 + $0x1f0] sm:$0xf]
        %v3066 = vld [vmem:[#allocation11 + $0x1f4] sm:$0xf]
        %v3067 = vld [vmem:[#allocation11 + $0x1f8] sm:$0xf]
        %v3068 = vld [vmem:[#allocation11 + $0x1fc] sm:$0xf]
        %v3085 = vunpack.c.l.b16 %v3053
        %v3086 = vunpack.c.l.b16 %v3054
        %v3087 = vunpack.c.l.b16 %v3055
        %v3088 = vunpack.c.l.b16 %v3056
        %v3089 = vunpack.c.l.b16 %v3057
        %v3090 = vunpack.c.l.b16 %v3058
        %v3091 = vunpack.c.l.b16 %v3059
        %v3092 = vunpack.c.l.b16 %v3060
        %v3093 = vunpack.c.l.b16 %v3061
        %v3094 = vunpack.c.l.b16 %v3062
        %v3095 = vunpack.c.l.b16 %v3063
        %v3096 = vunpack.c.l.b16 %v3064
        %v3097 = vunpack.c.l.b16 %v3065
        %v3098 = vunpack.c.l.b16 %v3066
        %v3099 = vunpack.c.l.b16 %v3067
        %v3100 = vunpack.c.l.b16 %v3068
        %v3101 = vpack.c.b16 %v3086, %v3085
        %v3102 = vpack.c.b16 %v3088, %v3087
        %v3103 = vpack.c.b16 %v3090, %v3089
        %v3104 = vpack.c.b16 %v3092, %v3091
        %v3105 = vpack.c.b16 %v3094, %v3093
        %v3106 = vpack.c.b16 %v3096, %v3095
        %v3107 = vpack.c.b16 %v3098, %v3097
        %v3108 = vpack.c.b16 %v3100, %v3099
        %3117 = vmatprep.subr.bf16.mxu0 0
        %3118 = vmatpush1.bf16.msra.mxu0 %v3101
        %3119 = vmatprep.subr.bf16.mxu0 0
        %3120 = vmatpush1.bf16.msra.mxu0 %v3102
        %3121 = vmatprep.subr.bf16.mxu0 0
        %3122 = vmatpush1.bf16.msra.mxu0 %v3103
        %3123 = vmatprep.subr.bf16.mxu0 0
        %3124 = vmatpush1.bf16.msra.mxu0 %v3104
        %3125 = vmatprep.subr.bf16.mxu0 0
        %3126 = vmatpush1.bf16.msra.mxu0 %v3105
        %3127 = vmatprep.subr.bf16.mxu0 0
        %3128 = vmatpush1.bf16.msra.mxu0 %v3106
        %3129 = vmatprep.subr.bf16.mxu0 0
        %3130 = vmatpush1.bf16.msra.mxu0 %v3107
        %3131 = vmatprep.subr.bf16.mxu0 0
        %3132 = vmatpush1.bf16.msra.mxu0 %v3108
        %3133 = vmatprep.subr.bf16.mxu0 0
        %3134 = vmatpush1.bf16.msra.mxu0 0
        %3135 = vmatprep.subr.bf16.mxu0 0
        %3136 = vmatpush1.bf16.msra.mxu0 0
        %3137 = vmatprep.subr.bf16.mxu0 0
        %3138 = vmatpush1.bf16.msra.mxu0 0
        %3139 = vmatprep.subr.bf16.mxu0 0
        %3140 = vmatpush1.bf16.msra.mxu0 0
        %3141 = vmatprep.subr.bf16.mxu0 0
        %3142 = vmatpush1.bf16.msra.mxu0 0
        %3143 = vmatprep.subr.bf16.mxu0 0
        %3144 = vmatpush1.bf16.msra.mxu0 0
        %3145 = vmatprep.subr.bf16.mxu0 0
        %3146 = vmatpush1.bf16.msra.mxu0 0
        %3147 = vmatprep.subr.bf16.mxu0 0
        %3148 = vmatpush1.bf16.msra.mxu0 0
        %3149 = vmatprep.mubr.bf16.mxu0 0
        %3150 = vmatmul.mubr.bf16.gmra.mrb[0].mxu0 %v1032
        %v3151 = vpop.f32.mrb[0].mxu0
        %v3152 = vadd.f32 0.0, %v3151
        %v3153 = vpop.f32.mrb[0].mxu0
        %v3154 = vpop.f32.mrb[0].mxu0
        %v3155 = vadd.f32 0.0, %v3154
        %v3156 = vpop.f32.mrb[0].mxu0
        %3157 = vmatprep.mubr.bf16.mxu0 0
        %3158 = vmatmul.mubr.bf16.gmra.mrb[0].mxu0 %v1044
        %v3159 = vpop.f32.mrb[0].mxu0
        %v3160 = vadd.f32 0.0, %v3159
        %v3161 = vpop.f32.mrb[0].mxu0
        %v3162 = vpop.f32.mrb[0].mxu0
        %v3163 = vadd.f32 0.0, %v3162
        %v3164 = vpop.f32.mrb[0].mxu0
        %3165 = vmatprep.mubr.bf16.mxu0 0
        %3166 = vmatmul.mubr.bf16.gmra.mrb[0].mxu0 %v1056
        %v3167 = vpop.f32.mrb[0].mxu0
        %v3168 = vadd.f32 0.0, %v3167
        %v3169 = vpop.f32.mrb[0].mxu0
        %v3170 = vpop.f32.mrb[0].mxu0
        %v3171 = vadd.f32 0.0, %v3170
        %v3172 = vpop.f32.mrb[0].mxu0
        %3173 = vmatprep.mubr.bf16.mxu0 0
        %3174 = vmatmul.mubr.bf16.gmra.mrb[0].mxu0 %v1068
        %v3175 = vpop.f32.mrb[0].mxu0
        %v3176 = vadd.f32 0.0, %v3175
        %v3177 = vpop.f32.mrb[0].mxu0
        %v3178 = vpop.f32.mrb[0].mxu0
        %v3179 = vadd.f32 0.0, %v3178
        %v3180 = vpop.f32.mrb[0].mxu0
        %3181 = vmatprep.mubr.bf16.mxu0 0
        %3182 = vmatmul.mubr.bf16.gmra.mrb[0].mxu0 %v1080
        %v3183 = vpop.f32.mrb[0].mxu0
        %v3184 = vadd.f32 0.0, %v3183
        %v3185 = vpop.f32.mrb[0].mxu0
        %v3186 = vpop.f32.mrb[0].mxu0
        %v3187 = vadd.f32 0.0, %v3186
        %v3188 = vpop.f32.mrb[0].mxu0
        %3189 = vmatprep.mubr.bf16.mxu0 0
        %3190 = vmatmul.mubr.bf16.gmra.mrb[0].mxu0 %v1092
        %v3191 = vpop.f32.mrb[0].mxu0
        %v3192 = vadd.f32 0.0, %v3191
        %v3193 = vpop.f32.mrb[0].mxu0
        %v3194 = vpop.f32.mrb[0].mxu0
        %v3195 = vadd.f32 0.0, %v3194
        %v3196 = vpop.f32.mrb[0].mxu0
        %3197 = vmatprep.mubr.bf16.mxu0 0
        %3198 = vmatmul.mubr.bf16.gmra.mrb[0].mxu0 %v1104
        %v3199 = vpop.f32.mrb[0].mxu0
        %v3200 = vadd.f32 0.0, %v3199
        %v3201 = vpop.f32.mrb[0].mxu0
        %v3202 = vpop.f32.mrb[0].mxu0
        %v3203 = vadd.f32 0.0, %v3202
        %v3204 = vpop.f32.mrb[0].mxu0
        %3205 = vmatprep.mubr.bf16.mxu0 0
        %3206 = vmatmul.mubr.bf16.gmra.mrb[0].mxu0 %v1116
        %v3207 = vpop.f32.mrb[0].mxu0
        %v3208 = vadd.f32 0.0, %v3207
        %v3209 = vpop.f32.mrb[0].mxu0
        %v3210 = vpop.f32.mrb[0].mxu0
        %v3211 = vadd.f32 0.0, %v3210
        %v3212 = vpop.f32.mrb[0].mxu0
        %3213 = vmatprep.mubr.bf16.mxu0 0
        %3214 = vmatmul.mubr.bf16.gmra.mrb[0].mxu0 %v1128
        %v3215 = vpop.f32.mrb[0].mxu0
        %v3216 = vadd.f32 0.0, %v3215
        %v3217 = vpop.f32.mrb[0].mxu0
        %v3218 = vpop.f32.mrb[0].mxu0
        %v3219 = vadd.f32 0.0, %v3218
        %v3220 = vpop.f32.mrb[0].mxu0
        %3221 = vmatprep.mubr.bf16.mxu0 0
        %3222 = vmatmul.mubr.bf16.gmra.mrb[0].mxu0 %v1140
        %v3223 = vpop.f32.mrb[0].mxu0
        %v3224 = vadd.f32 0.0, %v3223
        %v3225 = vpop.f32.mrb[0].mxu0
        %v3226 = vpop.f32.mrb[0].mxu0
        %v3227 = vadd.f32 0.0, %v3226
        %v3228 = vpop.f32.mrb[0].mxu0
        %3229 = vmatprep.mubr.bf16.mxu0 0
        %3230 = vmatmul.mubr.bf16.gmra.mrb[0].mxu0 %v1152
        %v3231 = vpop.f32.mrb[0].mxu0
        %v3232 = vadd.f32 0.0, %v3231
        %v3233 = vpop.f32.mrb[0].mxu0
        %v3234 = vpop.f32.mrb[0].mxu0
        %v3235 = vadd.f32 0.0, %v3234
        %v3236 = vpop.f32.mrb[0].mxu0
        %3237 = vmatprep.mubr.bf16.mxu0 0
        %3238 = vmatmul.mubr.bf16.gmra.mrb[0].mxu0 %v1164
        %v3239 = vpop.f32.mrb[0].mxu0
        %v3240 = vadd.f32 0.0, %v3239
        %v3241 = vpop.f32.mrb[0].mxu0
        %v3242 = vpop.f32.mrb[0].mxu0
        %v3243 = vadd.f32 0.0, %v3242
        %v3244 = vpop.f32.mrb[0].mxu0
        %3245 = vmatprep.mubr.bf16.mxu0 0
        %3246 = vmatmul.mubr.bf16.gmra.mrb[0].mxu0 %v1176
        %v3247 = vpop.f32.mrb[0].mxu0
        %v3248 = vadd.f32 0.0, %v3247
        %v3249 = vpop.f32.mrb[0].mxu0
        %v3250 = vpop.f32.mrb[0].mxu0
        %v3251 = vadd.f32 0.0, %v3250
        %v3252 = vpop.f32.mrb[0].mxu0
        %3253 = vmatprep.mubr.bf16.mxu0 0
        %3254 = vmatmul.mubr.bf16.gmra.mrb[0].mxu0 %v1188
        %v3255 = vpop.f32.mrb[0].mxu0
        %v3256 = vadd.f32 0.0, %v3255
        %v3257 = vpop.f32.mrb[0].mxu0
        %v3258 = vpop.f32.mrb[0].mxu0
        %v3259 = vadd.f32 0.0, %v3258
        %v3260 = vpop.f32.mrb[0].mxu0
        %3261 = vmatprep.mubr.bf16.mxu0 0
        %3262 = vmatmul.mubr.bf16.gmra.mrb[0].mxu0 %v2261
        %v3263 = vpop.f32.mrb[0].mxu0
        %v3264 = vadd.f32 0.0, %v3263
        %v3265 = vpop.f32.mrb[0].mxu0
        %v3266 = vpop.f32.mrb[0].mxu0
        %v3267 = vadd.f32 0.0, %v3266
        %v3268 = vpop.f32.mrb[0].mxu0
        %3269 = vmatprep.mubr.bf16.mxu0 0
        %3270 = vmatmul.mubr.bf16.gmra.mrb[0].mxu0 %v3051
        %v3271 = vpop.f32.mrb[0].mxu0
        %v3272 = vadd.f32 0.0, %v3271
        %v3273 = vpop.f32.mrb[0].mxu0
        %v3274 = vpop.f32.mrb[0].mxu0
        %v3275 = vadd.f32 0.0, %v3274
        %v3276 = vpop.f32.mrb[0].mxu0
        %3277 = vdwg.mxu0
        %v3278 = vadd.f32 %v3008, %v3152
        %v3279 = vadd.f32 %v3009, %v3155
        %v3280 = vadd.f32 %v3010, %v3160
        %v3281 = vadd.f32 %v3011, %v3163
        %v3282 = vadd.f32 %v3012, %v3168
        %v3283 = vadd.f32 %v3013, %v3171
        %v3284 = vadd.f32 %v3014, %v3176
        %v3285 = vadd.f32 %v3015, %v3179
        %v3286 = vadd.f32 %v3016, %v3184
        %v3287 = vadd.f32 %v3017, %v3187
        %v3288 = vadd.f32 %v3018, %v3192
        %v3289 = vadd.f32 %v3019, %v3195
        %v3290 = vadd.f32 %v3020, %v3200
        %v3291 = vadd.f32 %v3021, %v3203
        %v3292 = vadd.f32 %v3022, %v3208
        %v3293 = vadd.f32 %v3023, %v3211
        %v3294 = vadd.f32 %v3024, %v3216
        %v3295 = vadd.f32 %v3025, %v3219
        %v3296 = vadd.f32 %v3026, %v3224
        %v3297 = vadd.f32 %v3027, %v3227
        %v3298 = vadd.f32 %v3028, %v3232
        %v3299 = vadd.f32 %v3029, %v3235
        %v3300 = vadd.f32 %v3030, %v3240
        %v3301 = vadd.f32 %v3031, %v3243
        %v3302 = vadd.f32 %v3032, %v3248
        %v3303 = vadd.f32 %v3033, %v3251
        %v3304 = vadd.f32 %v3034, %v3256
        %v3305 = vadd.f32 %v3035, %v3259
        %v3306 = vadd.f32 %v3036, %v3264
        %v3307 = vadd.f32 %v3037, %v3267
        %v3308 = vadd.f32 %v3038, %v3272
        %v3309 = vadd.f32 %v3039, %v3275
        %v3312 = vrot.slane %v961, 1
        %v3313 = vrot.slane %v979, 1
        %v3314 = vsel %vm1671, %v3312, %v3313
        %v3316 = vld [vmem:[#allocation11 + $0x200] sm:$0xf]
        %v3317 = vld [vmem:[#allocation11 + $0x204] sm:$0xf]
        %v3318 = vld [vmem:[#allocation11 + $0x208] sm:$0xf]
        %v3319 = vld [vmem:[#allocation11 + $0x20c] sm:$0xf]
        %v3320 = vld [vmem:[#allocation11 + $0x210] sm:$0xf]
        %v3321 = vld [vmem:[#allocation11 + $0x214] sm:$0xf]
        %v3322 = vld [vmem:[#allocation11 + $0x218] sm:$0xf]
        %v3323 = vld [vmem:[#allocation11 + $0x21c] sm:$0xf]
        %v3324 = vld [vmem:[#allocation11 + $0x220] sm:$0xf]
        %v3325 = vld [vmem:[#allocation11 + $0x224] sm:$0xf]
        %v3326 = vld [vmem:[#allocation11 + $0x228] sm:$0xf]
        %v3327 = vld [vmem:[#allocation11 + $0x22c] sm:$0xf]
        %v3328 = vld [vmem:[#allocation11 + $0x230] sm:$0xf]
        %v3329 = vld [vmem:[#allocation11 + $0x234] sm:$0xf]
        %v3330 = vld [vmem:[#allocation11 + $0x238] sm:$0xf]
        %v3331 = vld [vmem:[#allocation11 + $0x23c] sm:$0xf]
        %v3348 = vunpack.c.l.b16 %v3316
        %v3349 = vunpack.c.l.b16 %v3317
        %v3350 = vunpack.c.l.b16 %v3318
        %v3351 = vunpack.c.l.b16 %v3319
        %v3352 = vunpack.c.l.b16 %v3320
        %v3353 = vunpack.c.l.b16 %v3321
        %v3354 = vunpack.c.l.b16 %v3322
        %v3355 = vunpack.c.l.b16 %v3323
        %v3356 = vunpack.c.l.b16 %v3324
        %v3357 = vunpack.c.l.b16 %v3325
        %v3358 = vunpack.c.l.b16 %v3326
        %v3359 = vunpack.c.l.b16 %v3327
        %v3360 = vunpack.c.l.b16 %v3328
        %v3361 = vunpack.c.l.b16 %v3329
        %v3362 = vunpack.c.l.b16 %v3330
        %v3363 = vunpack.c.l.b16 %v3331
        %v3364 = vpack.c.b16 %v3349, %v3348
        %v3365 = vpack.c.b16 %v3351, %v3350
        %v3366 = vpack.c.b16 %v3353, %v3352
        %v3367 = vpack.c.b16 %v3355, %v3354
        %v3368 = vpack.c.b16 %v3357, %v3356
        %v3369 = vpack.c.b16 %v3359, %v3358
        %v3370 = vpack.c.b16 %v3361, %v3360
        %v3371 = vpack.c.b16 %v3363, %v3362
        %3380 = vmatprep.subr.bf16.mxu0 0
        %3381 = vmatpush1.bf16.msra.mxu0 %v3364
        %3382 = vmatprep.subr.bf16.mxu0 0
        %3383 = vmatpush1.bf16.msra.mxu0 %v3365
        %3384 = vmatprep.subr.bf16.mxu0 0
        %3385 = vmatpush1.bf16.msra.mxu0 %v3366
        %3386 = vmatprep.subr.bf16.mxu0 0
        %3387 = vmatpush1.bf16.msra.mxu0 %v3367
        %3388 = vmatprep.subr.bf16.mxu0 0
        %3389 = vmatpush1.bf16.msra.mxu0 %v3368
        %3390 = vmatprep.subr.bf16.mxu0 0
        %3391 = vmatpush1.bf16.msra.mxu0 %v3369
        %3392 = vmatprep.subr.bf16.mxu0 0
        %3393 = vmatpush1.bf16.msra.mxu0 %v3370
        %3394 = vmatprep.subr.bf16.mxu0 0
        %3395 = vmatpush1.bf16.msra.mxu0 %v3371
        %3396 = vmatprep.subr.bf16.mxu0 0
        %3397 = vmatpush1.bf16.msra.mxu0 0
        %3398 = vmatprep.subr.bf16.mxu0 0
        %3399 = vmatpush1.bf16.msra.mxu0 0
        %3400 = vmatprep.subr.bf16.mxu0 0
        %3401 = vmatpush1.bf16.msra.mxu0 0
        %3402 = vmatprep.subr.bf16.mxu0 0
        %3403 = vmatpush1.bf16.msra.mxu0 0
        %3404 = vmatprep.subr.bf16.mxu0 0
        %3405 = vmatpush1.bf16.msra.mxu0 0
        %3406 = vmatprep.subr.bf16.mxu0 0
        %3407 = vmatpush1.bf16.msra.mxu0 0
        %3408 = vmatprep.subr.bf16.mxu0 0
        %3409 = vmatpush1.bf16.msra.mxu0 0
        %3410 = vmatprep.subr.bf16.mxu0 0
        %3411 = vmatpush1.bf16.msra.mxu0 0
        %3412 = vmatprep.mubr.bf16.mxu0 0
        %3413 = vmatmul.mubr.bf16.gmra.mrb[0].mxu0 %v1680
        %v3414 = vpop.f32.mrb[0].mxu0
        %v3415 = vadd.f32 0.0, %v3414
        %v3416 = vpop.f32.mrb[0].mxu0
        %v3417 = vpop.f32.mrb[0].mxu0
        %v3418 = vadd.f32 0.0, %v3417
        %v3419 = vpop.f32.mrb[0].mxu0
        %3420 = vmatprep.mubr.bf16.mxu0 0
        %3421 = vmatmul.mubr.bf16.gmra.mrb[0].mxu0 %v1683
        %v3422 = vpop.f32.mrb[0].mxu0
        %v3423 = vadd.f32 0.0, %v3422
        %v3424 = vpop.f32.mrb[0].mxu0
        %v3425 = vpop.f32.mrb[0].mxu0
        %v3426 = vadd.f32 0.0, %v3425
        %v3427 = vpop.f32.mrb[0].mxu0
        %3428 = vmatprep.mubr.bf16.mxu0 0
        %3429 = vmatmul.mubr.bf16.gmra.mrb[0].mxu0 %v1686
        %v3430 = vpop.f32.mrb[0].mxu0
        %v3431 = vadd.f32 0.0, %v3430
        %v3432 = vpop.f32.mrb[0].mxu0
        %v3433 = vpop.f32.mrb[0].mxu0
        %v3434 = vadd.f32 0.0, %v3433
        %v3435 = vpop.f32.mrb[0].mxu0
        %3436 = vmatprep.mubr.bf16.mxu0 0
        %3437 = vmatmul.mubr.bf16.gmra.mrb[0].mxu0 %v1689
        %v3438 = vpop.f32.mrb[0].mxu0
        %v3439 = vadd.f32 0.0, %v3438
        %v3440 = vpop.f32.mrb[0].mxu0
        %v3441 = vpop.f32.mrb[0].mxu0
        %v3442 = vadd.f32 0.0, %v3441
        %v3443 = vpop.f32.mrb[0].mxu0
        %3444 = vmatprep.mubr.bf16.mxu0 0
        %3445 = vmatmul.mubr.bf16.gmra.mrb[0].mxu0 %v1692
        %v3446 = vpop.f32.mrb[0].mxu0
        %v3447 = vadd.f32 0.0, %v3446
        %v3448 = vpop.f32.mrb[0].mxu0
        %v3449 = vpop.f32.mrb[0].mxu0
        %v3450 = vadd.f32 0.0, %v3449
        %v3451 = vpop.f32.mrb[0].mxu0
        %3452 = vmatprep.mubr.bf16.mxu0 0
        %3453 = vmatmul.mubr.bf16.gmra.mrb[0].mxu0 %v1695
        %v3454 = vpop.f32.mrb[0].mxu0
        %v3455 = vadd.f32 0.0, %v3454
        %v3456 = vpop.f32.mrb[0].mxu0
        %v3457 = vpop.f32.mrb[0].mxu0
        %v3458 = vadd.f32 0.0, %v3457
        %v3459 = vpop.f32.mrb[0].mxu0
        %3460 = vmatprep.mubr.bf16.mxu0 0
        %3461 = vmatmul.mubr.bf16.gmra.mrb[0].mxu0 %v1698
        %v3462 = vpop.f32.mrb[0].mxu0
        %v3463 = vadd.f32 0.0, %v3462
        %v3464 = vpop.f32.mrb[0].mxu0
        %v3465 = vpop.f32.mrb[0].mxu0
        %v3466 = vadd.f32 0.0, %v3465
        %v3467 = vpop.f32.mrb[0].mxu0
        %3468 = vmatprep.mubr.bf16.mxu0 0
        %3469 = vmatmul.mubr.bf16.gmra.mrb[0].mxu0 %v1701
        %v3470 = vpop.f32.mrb[0].mxu0
        %v3471 = vadd.f32 0.0, %v3470
        %v3472 = vpop.f32.mrb[0].mxu0
        %v3473 = vpop.f32.mrb[0].mxu0
        %v3474 = vadd.f32 0.0, %v3473
        %v3475 = vpop.f32.mrb[0].mxu0
        %3476 = vmatprep.mubr.bf16.mxu0 0
        %3477 = vmatmul.mubr.bf16.gmra.mrb[0].mxu0 %v1704
        %v3478 = vpop.f32.mrb[0].mxu0
        %v3479 = vadd.f32 0.0, %v3478
        %v3480 = vpop.f32.mrb[0].mxu0
        %v3481 = vpop.f32.mrb[0].mxu0
        %v3482 = vadd.f32 0.0, %v3481
        %v3483 = vpop.f32.mrb[0].mxu0
        %3484 = vmatprep.mubr.bf16.mxu0 0
        %3485 = vmatmul.mubr.bf16.gmra.mrb[0].mxu0 %v1707
        %v3486 = vpop.f32.mrb[0].mxu0
        %v3487 = vadd.f32 0.0, %v3486
        %v3488 = vpop.f32.mrb[0].mxu0
        %v3489 = vpop.f32.mrb[0].mxu0
        %v3490 = vadd.f32 0.0, %v3489
        %v3491 = vpop.f32.mrb[0].mxu0
        %3492 = vmatprep.mubr.bf16.mxu0 0
        %3493 = vmatmul.mubr.bf16.gmra.mrb[0].mxu0 %v1710
        %v3494 = vpop.f32.mrb[0].mxu0
        %v3495 = vadd.f32 0.0, %v3494
        %v3496 = vpop.f32.mrb[0].mxu0
        %v3497 = vpop.f32.mrb[0].mxu0
        %v3498 = vadd.f32 0.0, %v3497
        %v3499 = vpop.f32.mrb[0].mxu0
        %3500 = vmatprep.mubr.bf16.mxu0 0
        %3501 = vmatmul.mubr.bf16.gmra.mrb[0].mxu0 %v1713
        %v3502 = vpop.f32.mrb[0].mxu0
        %v3503 = vadd.f32 0.0, %v3502
        %v3504 = vpop.f32.mrb[0].mxu0
        %v3505 = vpop.f32.mrb[0].mxu0
        %v3506 = vadd.f32 0.0, %v3505
        %v3507 = vpop.f32.mrb[0].mxu0
        %3508 = vmatprep.mubr.bf16.mxu0 0
        %3509 = vmatmul.mubr.bf16.gmra.mrb[0].mxu0 %v1716
        %v3510 = vpop.f32.mrb[0].mxu0
        %v3511 = vadd.f32 0.0, %v3510
        %v3512 = vpop.f32.mrb[0].mxu0
        %v3513 = vpop.f32.mrb[0].mxu0
        %v3514 = vadd.f32 0.0, %v3513
        %v3515 = vpop.f32.mrb[0].mxu0
        %3516 = vmatprep.mubr.bf16.mxu0 0
        %3517 = vmatmul.mubr.bf16.gmra.mrb[0].mxu0 %v1719
        %v3518 = vpop.f32.mrb[0].mxu0
        %v3519 = vadd.f32 0.0, %v3518
        %v3520 = vpop.f32.mrb[0].mxu0
        %v3521 = vpop.f32.mrb[0].mxu0
        %v3522 = vadd.f32 0.0, %v3521
        %v3523 = vpop.f32.mrb[0].mxu0
        %3524 = vmatprep.mubr.bf16.mxu0 0
        %3525 = vmatmul.mubr.bf16.gmra.mrb[0].mxu0 %v2524
        %v3526 = vpop.f32.mrb[0].mxu0
        %v3527 = vadd.f32 0.0, %v3526
        %v3528 = vpop.f32.mrb[0].mxu0
        %v3529 = vpop.f32.mrb[0].mxu0
        %v3530 = vadd.f32 0.0, %v3529
        %v3531 = vpop.f32.mrb[0].mxu0
        %3532 = vmatprep.mubr.bf16.mxu0 0
        %3533 = vmatmul.mubr.bf16.gmra.mrb[0].mxu0 %v3314
        %v3534 = vpop.f32.mrb[0].mxu0
        %v3535 = vadd.f32 0.0, %v3534
        %v3536 = vpop.f32.mrb[0].mxu0
        %v3537 = vpop.f32.mrb[0].mxu0
        %v3538 = vadd.f32 0.0, %v3537
        %v3539 = vpop.f32.mrb[0].mxu0
        %3540 = vdwg.mxu0
        %v3541 = vadd.f32 %v3278, %v3415
        %v3542 = vadd.f32 %v3279, %v3418
        %v3543 = vadd.f32 %v3280, %v3423
        %v3544 = vadd.f32 %v3281, %v3426
        %v3545 = vadd.f32 %v3282, %v3431
        %v3546 = vadd.f32 %v3283, %v3434
        %v3547 = vadd.f32 %v3284, %v3439
        %v3548 = vadd.f32 %v3285, %v3442
        %v3549 = vadd.f32 %v3286, %v3447
        %v3550 = vadd.f32 %v3287, %v3450
        %v3551 = vadd.f32 %v3288, %v3455
        %v3552 = vadd.f32 %v3289, %v3458
        %v3553 = vadd.f32 %v3290, %v3463
        %v3554 = vadd.f32 %v3291, %v3466
        %v3555 = vadd.f32 %v3292, %v3471
        %v3556 = vadd.f32 %v3293, %v3474
        %v3557 = vadd.f32 %v3294, %v3479
        %v3558 = vadd.f32 %v3295, %v3482
        %v3559 = vadd.f32 %v3296, %v3487
        %v3560 = vadd.f32 %v3297, %v3490
        %v3561 = vadd.f32 %v3298, %v3495
        %v3562 = vadd.f32 %v3299, %v3498
        %v3563 = vadd.f32 %v3300, %v3503
        %v3564 = vadd.f32 %v3301, %v3506
        %v3565 = vadd.f32 %v3302, %v3511
        %v3566 = vadd.f32 %v3303, %v3514
        %v3567 = vadd.f32 %v3304, %v3519
        %v3568 = vadd.f32 %v3305, %v3522
        %v3569 = vadd.f32 %v3306, %v3527
        %v3570 = vadd.f32 %v3307, %v3530
        %v3571 = vadd.f32 %v3308, %v3535
        %v3572 = vadd.f32 %v3309, %v3538
        %v3573 = vpack.c.bf16 %v3542, %v3541
        %v3574 = vpack.c.bf16 %v3544, %v3543
        %v3575 = vpack.c.bf16 %v3546, %v3545
        %v3576 = vpack.c.bf16 %v3548, %v3547
        %v3577 = vpack.c.bf16 %v3550, %v3549
        %v3578 = vpack.c.bf16 %v3552, %v3551
        %v3579 = vpack.c.bf16 %v3554, %v3553
        %v3580 = vpack.c.bf16 %v3556, %v3555
        %v3581 = vpack.c.bf16 %v3558, %v3557
        %v3582 = vpack.c.bf16 %v3560, %v3559
        %v3583 = vpack.c.bf16 %v3562, %v3561
        %v3584 = vpack.c.bf16 %v3564, %v3563
        %v3585 = vpack.c.bf16 %v3566, %v3565
        %v3586 = vpack.c.bf16 %v3568, %v3567
        %v3587 = vpack.c.bf16 %v3570, %v3569
        %v3588 = vpack.c.bf16 %v3572, %v3571
        %v3605 = vunpack.c.l.b16 %v3573
        %v3606 = vunpack.c.h.b16 %v3573
        %v3607 = vunpack.c.l.b16 %v3574
        %v3608 = vunpack.c.h.b16 %v3574
        %v3609 = vunpack.c.l.b16 %v3575
        %v3610 = vunpack.c.h.b16 %v3575
        %v3611 = vunpack.c.l.b16 %v3576
        %v3612 = vunpack.c.h.b16 %v3576
        %v3613 = vunpack.c.l.b16 %v3577
        %v3614 = vunpack.c.h.b16 %v3577
        %v3615 = vunpack.c.l.b16 %v3578
        %v3616 = vunpack.c.h.b16 %v3578
        %v3617 = vunpack.c.l.b16 %v3579
        %v3618 = vunpack.c.h.b16 %v3579
        %v3619 = vunpack.c.l.b16 %v3580
        %v3620 = vunpack.c.h.b16 %v3580
        %v3621 = vunpack.c.l.b16 %v3581
        %v3622 = vunpack.c.h.b16 %v3581
        %v3623 = vunpack.c.l.b16 %v3582
        %v3624 = vunpack.c.h.b16 %v3582
        %v3625 = vunpack.c.l.b16 %v3583
        %v3626 = vunpack.c.h.b16 %v3583
        %v3627 = vunpack.c.l.b16 %v3584
        %v3628 = vunpack.c.h.b16 %v3584
        %v3629 = vunpack.c.l.b16 %v3585
        %v3630 = vunpack.c.h.b16 %v3585
        %v3631 = vunpack.c.l.b16 %v3586
        %v3632 = vunpack.c.h.b16 %v3586
        %v3633 = vunpack.c.l.b16 %v3587
        %v3634 = vunpack.c.h.b16 %v3587
        %v3635 = vunpack.c.l.b16 %v3588
        %v3636 = vunpack.c.h.b16 %v3588
        %v3637 = vpack.c.b16 %v3605, %v3605
        %v3638 = vpack.c.b16 %v3606, %v3606
        %v3639 = vpack.c.b16 %v3607, %v3607
        %v3640 = vpack.c.b16 %v3608, %v3608
        %v3641 = vpack.c.b16 %v3609, %v3609
        %v3642 = vpack.c.b16 %v3610, %v3610
        %v3643 = vpack.c.b16 %v3611, %v3611
        %v3644 = vpack.c.b16 %v3612, %v3612
        %v3645 = vpack.c.b16 %v3613, %v3613
        %v3646 = vpack.c.b16 %v3614, %v3614
        %v3647 = vpack.c.b16 %v3615, %v3615
        %v3648 = vpack.c.b16 %v3616, %v3616
        %v3649 = vpack.c.b16 %v3617, %v3617
        %v3650 = vpack.c.b16 %v3618, %v3618
        %v3651 = vpack.c.b16 %v3619, %v3619
        %v3652 = vpack.c.b16 %v3620, %v3620
        %v3653 = vpack.c.b16 %v3621, %v3621
        %v3654 = vpack.c.b16 %v3622, %v3622
        %v3655 = vpack.c.b16 %v3623, %v3623
        %v3656 = vpack.c.b16 %v3624, %v3624
        %v3657 = vpack.c.b16 %v3625, %v3625
        %v3658 = vpack.c.b16 %v3626, %v3626
        %v3659 = vpack.c.b16 %v3627, %v3627
        %v3660 = vpack.c.b16 %v3628, %v3628
        %v3661 = vpack.c.b16 %v3629, %v3629
        %v3662 = vpack.c.b16 %v3630, %v3630
        %v3663 = vpack.c.b16 %v3631, %v3631
        %v3664 = vpack.c.b16 %v3632, %v3632
        %v3665 = vpack.c.b16 %v3633, %v3633
        %v3666 = vpack.c.b16 %v3634, %v3634
        %v3667 = vpack.c.b16 %v3635, %v3635
        %v3668 = vpack.c.b16 %v3636, %v3636
        %3701 = vst [vmem:[%s470] sm:$0xf] %v3637
        %3702 = vst [vmem:[%s470 + $0x4] sm:$0xf] %v3638
        %3703 = vst [vmem:[%s470 + $0x8] sm:$0xf] %v3639
        %3704 = vst [vmem:[%s470 + $0xc] sm:$0xf] %v3640
        %3705 = vst [vmem:[%s470 + $0x10] sm:$0xf] %v3641
        %3706 = vst [vmem:[%s470 + $0x14] sm:$0xf] %v3642
        %3707 = vst [vmem:[%s470 + $0x18] sm:$0xf] %v3643
        %3708 = vst [vmem:[%s470 + $0x1c] sm:$0xf] %v3644
        %3709 = vst [vmem:[%s470 + $0x20] sm:$0xf] %v3645
        %3710 = vst [vmem:[%s470 + $0x24] sm:$0xf] %v3646
        %3711 = vst [vmem:[%s470 + $0x28] sm:$0xf] %v3647
        %3712 = vst [vmem:[%s470 + $0x2c] sm:$0xf] %v3648
        %3713 = vst [vmem:[%s470 + $0x30] sm:$0xf] %v3649
        %3714 = vst [vmem:[%s470 + $0x34] sm:$0xf] %v3650
        %3715 = vst [vmem:[%s470 + $0x38] sm:$0xf] %v3651
        %3716 = vst [vmem:[%s470 + $0x3c] sm:$0xf] %v3652
        %3717 = vst [vmem:[%s470 + $0x40] sm:$0xf] %v3653
        %3718 = vst [vmem:[%s470 + $0x44] sm:$0xf] %v3654
        %3719 = vst [vmem:[%s470 + $0x48] sm:$0xf] %v3655
        %3720 = vst [vmem:[%s470 + $0x4c] sm:$0xf] %v3656
        %3721 = vst [vmem:[%s470 + $0x50] sm:$0xf] %v3657
        %3722 = vst [vmem:[%s470 + $0x54] sm:$0xf] %v3658
        %3723 = vst [vmem:[%s470 + $0x58] sm:$0xf] %v3659
        %3724 = vst [vmem:[%s470 + $0x5c] sm:$0xf] %v3660
        %3725 = vst [vmem:[%s470 + $0x60] sm:$0xf] %v3661
        %3726 = vst [vmem:[%s470 + $0x64] sm:$0xf] %v3662
        %3727 = vst [vmem:[%s470 + $0x68] sm:$0xf] %v3663
        %3728 = vst [vmem:[%s470 + $0x6c] sm:$0xf] %v3664
        %3729 = vst [vmem:[%s470 + $0x70] sm:$0xf] %v3665
        %3730 = vst [vmem:[%s470 + $0x74] sm:$0xf] %v3666
        %3731 = vst [vmem:[%s470 + $0x78] sm:$0xf] %v3667
        %3732 = vst [vmem:[%s470 + $0x7c] sm:$0xf] %v3668
        %v3733 = vadd.f32 %v3541, %v3542
        %v3734 = vadd.f32 %v3733, %v3543
        %v3735 = vadd.f32 %v3734, %v3544
        %v3736 = vadd.f32 %v3735, %v3545
        %v3737 = vadd.f32 %v3736, %v3546
        %v3738 = vadd.f32 %v3737, %v3547
        %v3739 = vadd.f32 %v3738, %v3548
        %v3740 = vadd.f32 %v3739, %v3549
        %v3741 = vadd.f32 %v3740, %v3550
        %v3742 = vadd.f32 %v3741, %v3551
        %v3743 = vadd.f32 %v3742, %v3552
        %v3744 = vadd.f32 %v3743, %v3553
        %v3745 = vadd.f32 %v3744, %v3554
        %v3746 = vadd.f32 %v3745, %v3555
        %v3747 = vadd.f32 %v3746, %v3556
        %v3748 = vadd.f32 %v3747, %v3557
        %v3749 = vadd.f32 %v3748, %v3558
        %v3750 = vadd.f32 %v3749, %v3559
        %v3751 = vadd.f32 %v3750, %v3560
        %v3752 = vadd.f32 %v3751, %v3561
        %v3753 = vadd.f32 %v3752, %v3562
        %v3754 = vadd.f32 %v3753, %v3563
        %v3755 = vadd.f32 %v3754, %v3564
        %v3756 = vadd.f32 %v3755, %v3565
        %v3757 = vadd.f32 %v3756, %v3566
        %v3758 = vadd.f32 %v3757, %v3567
        %v3759 = vadd.f32 %v3758, %v3568
        %v3760 = vadd.f32 %v3759, %v3569
        %v3761 = vadd.f32 %v3760, %v3570
        %v3762 = vadd.f32 %v3761, %v3571
        %v3763 = vadd.f32 %v3762, %v3572
        %v3764 = vrot.slane %v3763, 4
        %v3765 = vadd.f32 %v3763, %v3764
        %v3766 = vrot.slane %v3765, 2
        %v3767 = vadd.f32 %v3765, %v3766
        %v3768 = vrot.slane %v3767, 1
        %v3769 = vadd.f32 %v3767, %v3768
        %v3770 = vmul.f32 %v3541, %v3541
        %v3771 = vmul.f32 %v3542, %v3542
        %v3772 = vmul.f32 %v3543, %v3543
        %v3773 = vmul.f32 %v3544, %v3544
        %v3774 = vmul.f32 %v3545, %v3545
        %v3775 = vmul.f32 %v3546, %v3546
        %v3776 = vmul.f32 %v3547, %v3547
        %v3777 = vmul.f32 %v3548, %v3548
        %v3778 = vmul.f32 %v3549, %v3549
        %v3779 = vmul.f32 %v3550, %v3550
        %v3780 = vmul.f32 %v3551, %v3551
        %v3781 = vmul.f32 %v3552, %v3552
        %v3782 = vmul.f32 %v3553, %v3553
        %v3783 = vmul.f32 %v3554, %v3554
        %v3784 = vmul.f32 %v3555, %v3555
        %v3785 = vmul.f32 %v3556, %v3556
        %v3786 = vmul.f32 %v3557, %v3557
        %v3787 = vmul.f32 %v3558, %v3558
        %v3788 = vmul.f32 %v3559, %v3559
        %v3789 = vmul.f32 %v3560, %v3560
        %v3790 = vmul.f32 %v3561, %v3561
        %v3791 = vmul.f32 %v3562, %v3562
        %v3792 = vmul.f32 %v3563, %v3563
        %v3793 = vmul.f32 %v3564, %v3564
        %v3794 = vmul.f32 %v3565, %v3565
        %v3795 = vmul.f32 %v3566, %v3566
        %v3796 = vmul.f32 %v3567, %v3567
        %v3797 = vmul.f32 %v3568, %v3568
        %v3798 = vmul.f32 %v3569, %v3569
        %v3799 = vmul.f32 %v3570, %v3570
        %v3800 = vmul.f32 %v3571, %v3571
        %v3801 = vmul.f32 %v3572, %v3572
        %v3802 = vadd.f32 %v3770, %v3771
        %v3803 = vadd.f32 %v3802, %v3772
        %v3804 = vadd.f32 %v3803, %v3773
        %v3805 = vadd.f32 %v3804, %v3774
        %v3806 = vadd.f32 %v3805, %v3775
        %v3807 = vadd.f32 %v3806, %v3776
        %v3808 = vadd.f32 %v3807, %v3777
        %v3809 = vadd.f32 %v3808, %v3778
        %v3810 = vadd.f32 %v3809, %v3779
        %v3811 = vadd.f32 %v3810, %v3780
        %v3812 = vadd.f32 %v3811, %v3781
        %v3813 = vadd.f32 %v3812, %v3782
        %v3814 = vadd.f32 %v3813, %v3783
        %v3815 = vadd.f32 %v3814, %v3784
        %v3816 = vadd.f32 %v3815, %v3785
        %v3817 = vadd.f32 %v3816, %v3786
        %v3818 = vadd.f32 %v3817, %v3787
        %v3819 = vadd.f32 %v3818, %v3788
        %v3820 = vadd.f32 %v3819, %v3789
        %v3821 = vadd.f32 %v3820, %v3790
        %v3822 = vadd.f32 %v3821, %v3791
        %v3823 = vadd.f32 %v3822, %v3792
        %v3824 = vadd.f32 %v3823, %v3793
        %v3825 = vadd.f32 %v3824, %v3794
        %v3826 = vadd.f32 %v3825, %v3795
        %v3827 = vadd.f32 %v3826, %v3796
        %v3828 = vadd.f32 %v3827, %v3797
        %v3829 = vadd.f32 %v3828, %v3798
        %v3830 = vadd.f32 %v3829, %v3799
        %v3831 = vadd.f32 %v3830, %v3800
        %v3832 = vadd.f32 %v3831, %v3801
        %v3833 = vrot.slane %v3832, 4
        %v3834 = vadd.f32 %v3832, %v3833
        %v3835 = vrot.slane %v3834, 2
        %v3836 = vadd.f32 %v3834, %v3835
        %v3837 = vrot.slane %v3836, 1
        %v3838 = vadd.f32 %v3836, %v3837
        %vm3839 = vcmask 1040384
        %v3840 = vsel %vm3839, %v3769, %v3838
        %3841 = vst [vmem:[%s477] sm:$0x3] %v3840
        %s3842 = sand.u32 %s218, 1
        %s3843 = scalar_lea.sflag [#allocation4], %s3842
        %s3844 = sand.u32 %s218, 1
        %s3845 = smul.addr %s3844, 128
        %s3846 = scalar_lea.vmem [#allocation13], %s3845
        %s3847 = sand.u32 %s246, 1
        %s3848 = scalar_lea.sflag [#allocation15], %s3847
        %s3849 = sand.u32 %s246, 1
        %s3850 = smul.addr %s3849, 2
        %s3851 = scalar_lea.vmem [#allocation14], %s3850
        // Predicated region
        $region69: #{upsample_bn_forward.3} parent=43 // pred_check
          %p3852 = pneg %p228
        $region70: #{upsample_bn_forward.3} parent=43 // pred_check_branch
          %3854 = sbr.rel (%p3852) target = $region72
        $region71: #{upsample_bn_forward.3} parent=43 // pred_region
          %s3855 = smul.u32 16, %s38
          %s3857 = ssub.s32 2048, 2048
          %3858 = vsyncadd %s3843, %s3857
          %s3859 = smul.addr %s3855, 2
          %s3860 = smul.addr %s37, 32
          %s3861 = sadd.s32 %s3859, %s3860
          %s3862 = smul.addr %s3861, 64
          %s3863 = scalar_lea.hbm %s6, %s3862
          %s3864 = sshll.u32 %s3846, 4
          %s3865 = int_to_ptr.vmem [resolvable:$true] %s3864
          %3870 = dma.vmem_to_hbm [thread:$0]  %s3865, 2048, %s3863, %s3843, 64, 64, 4
        $region72: #{upsample_bn_forward.3} parent=43 // pred_fallthru
          _
        // Predicated region
        $region73: #{upsample_bn_forward.3} parent=43 // pred_check
          %p3871 = pneg %p256
        $region74: #{upsample_bn_forward.3} parent=43 // pred_check_branch
          %3873 = sbr.rel (%p3871) target = $region76
        $region75: #{upsample_bn_forward.3} parent=43 // pred_region
          %s3875 = ssub.s32 32, 32
          %3876 = vsyncadd %s3848, %s3875
          %s3877 = sadd.s32 %s38, %s37
          %s3878 = smul.addr %s3877, 32
          %s3879 = scalar_lea.hbm %s7, %s3878
          %s3881 = sshll.u32 %s3851, 4
          %s3882 = int_to_ptr.vmem [resolvable:$true] %s3881
          %3884 = dma.vmem_to_hbm [thread:$0]  %s3882, 32, %s3879, %s3848
        $region76: #{upsample_bn_forward.3} parent=43 // pred_fallthru
          _
      $region44: #{upsample_bn_forward.3} parent=5 // pred_fallthru
        _
      %p3885 = scmp.le.s32.totalorder 2, %s28
      // Predicated region
      $region77: #{upsample_bn_forward.3} parent=5 // pred_check
        %p3886 = pneg %p3885
      $region78: #{upsample_bn_forward.3} parent=5 // pred_check_branch
        %3888 = sbr.rel (%p3886) target = $region80
      $region79: #{upsample_bn_forward.3} parent=5 // pred_region
        %s3889 = ssub.s32 %s28, 2
        // Predicated region
        $region81: #{upsample_bn_forward.3} parent=79 // pred_check
          %p3890 = pneg %p234
        $region82: #{upsample_bn_forward.3} parent=79 // pred_check_branch
          %3892 = sbr.rel (%p3890) target = $region84
        $region83: #{upsample_bn_forward.3} parent=79 // pred_region
          %s3893 = sand.u32 %s219, 1
          %s3894 = scalar_lea.sflag [#allocation4], %s3893
          %s3895 = sand.u32 %s219, 1
          %s3896 = smul.addr %s3895, 128
          %s3897 = scalar_lea.vmem [#allocation13], %s3896
          %3898 = dma.done %s3894, 2048
        $region84: #{upsample_bn_forward.3} parent=79 // pred_fallthru
          _
        // Predicated region
        $region85: #{upsample_bn_forward.3} parent=79 // pred_check
          %p3899 = pneg %p262
        $region86: #{upsample_bn_forward.3} parent=79 // pred_check_branch
          %3901 = sbr.rel (%p3899) target = $region88
        $region87: #{upsample_bn_forward.3} parent=79 // pred_region
          %s3902 = sand.u32 %s247, 1
          %s3903 = scalar_lea.sflag [#allocation15], %s3902
          %s3904 = sand.u32 %s247, 1
          %s3905 = smul.addr %s3904, 2
          %s3906 = scalar_lea.vmem [#allocation14], %s3905
          %3907 = dma.done %s3903, 32
        $region88: #{upsample_bn_forward.3} parent=79 // pred_fallthru
          _
      $region80: #{upsample_bn_forward.3} parent=5 // pred_fallthru
        _
    $region6: #{upsample_bn_forward.3} parent=1 // loop_footer
      %s32 = sadd.s32 1, %s28
    $region7: #{upsample_bn_forward.3} parent=1 // loop_footer_branch
      %27 = sbr.rel target = $region3
    $region8: #{upsample_bn_forward.3} parent=1 // loop_exit
      _
    %3908 = vsyncpa [#allocation3], 1
    %s3909 = scalar_lea.sflag [#allocation3], 1
    %3910 = vsyncpa %s3909, 1
    %3911 = vsyncpa [#allocation6], 1
    %s3912 = scalar_lea.sflag [#allocation6], 1
    %3913 = vsyncpa %s3912, 1
    %3914 = vsyncpa [#allocation9], 1
    %3915 = vsyncpa [#allocation12], 1
    %3916 = vsyncpa [#allocation4], 1
    %s3917 = scalar_lea.sflag [#allocation4], 1
    %3918 = vsyncpa %s3917, 1
    %3919 = vsyncpa [#allocation15], 1
    %s3920 = scalar_lea.sflag [#allocation15], 1
    %3921 = vsyncpa %s3920, 1

</llo_original>
